<compile_context>
chip_gen: v5e
topology: v5e:2x2
jax: 0.10.0
libtpu: 0.0.40
codegen_flags: <defaults>
</compile_context>

<pallas_src>
import jax
import jax.numpy as jnp
from jax.experimental import pallas as pl
from jax.experimental.pallas import tpu as pltpu

C = 256          # channel count fixed by the module's __init__
KS = 3           # 3x3 conv, padding = 1


def _conv3x3(pad_ref, w_ref, H, W, Cc):
    """3x3 conv over a zero-padded bf16 VMEM buffer as 9 MXU matmuls.

    pad_ref: VMEM scratch (H+2, W+2, Cc) bf16, zero border.
    w_ref:   (9, Cc, Cc) bf16, tap-major (dh*3 + dw).
    Returns f32 accumulator of shape (H*W, Cc).
    """
    acc = None
    for dh in range(KS):
        for dw in range(KS):
            patch = pad_ref[dh:dh + H, dw:dw + W, :].reshape(H * W, Cc)
            y = jnp.dot(patch, w_ref[dh * KS + dw],
                        preferred_element_type=jnp.float32)
            acc = y if acc is None else acc + y
    return acc


def fused_residual_kernel(x_ref, w1_ref, b1_ref, w2_ref, b2_ref, o_ref,
                          xpad, midpad):
    # x_ref:  (1, H, W, C) f32      w*_ref: (9, C, C) bf16     b*_ref: (1, C) f32
    # o_ref:  (1, H, W, C) f32
    # xpad, midpad: VMEM scratch (H+2, W+2, C) bf16
    H, W, Cc = o_ref.shape[1], o_ref.shape[2], o_ref.shape[3]

    # In-kernel zero padding: zero both padded buffers, then fill interiors.
    xpad[...] = jnp.zeros_like(xpad)
    midpad[...] = jnp.zeros_like(midpad)

    x_f32 = x_ref[0]                                    # (H, W, C) identity
    xpad[1:H + 1, 1:W + 1, :] = x_f32.astype(jnp.bfloat16)

    # conv1 + bias + ReLU (f32 accumulation), keep result resident in VMEM.
    acc1 = _conv3x3(xpad, w1_ref, H, W, Cc)
    acc1 = jnp.maximum(acc1 + b1_ref[0, :], 0.0)
    midpad[1:H + 1, 1:W + 1, :] = acc1.reshape(H, W, Cc).astype(jnp.bfloat16)

    # conv2 + bias, scale by 0.1, residual add — all in f32.
    acc2 = _conv3x3(midpad, w2_ref, H, W, Cc)
    acc2 = (acc2 + b2_ref[0, :]) * 0.1 + x_f32.reshape(H * W, Cc)
    o_ref[...] = acc2.reshape(1, H, W, Cc).astype(o_ref.dtype)


def residual_block(x_nchw, w1, b1, w2, b2):
    """EDSR residual block.  x_nchw: (N, 256, H, W) float32.
    w1, w2: (Cout, Cin, 3, 3) PyTorch OIHW layout; b1, b2: (Cout,)."""
    N, Cc, H, W = x_nchw.shape
    assert Cc == C

    # NCHW -> NHWC so channels sit on the lane (128) axis.
    x_nhwc = jnp.transpose(x_nchw, (0, 2, 3, 1)).astype(jnp.float32)

    # OIHW -> HWIO, flatten the 3x3 taps, cast to bf16 for the MXU.
    w1_taps = jnp.transpose(w1, (2, 3, 1, 0)).reshape(KS * KS, C, C).astype(jnp.bfloat16)
    w2_taps = jnp.transpose(w2, (2, 3, 1, 0)).reshape(KS * KS, C, C).astype(jnp.bfloat16)
    b1_row = b1.reshape(1, C).astype(jnp.float32)
    b2_row = b2.reshape(1, C).astype(jnp.float32)

    out_nhwc = pl.pallas_call(
        fused_residual_kernel,
        out_shape=jax.ShapeDtypeStruct((N, H, W, C), jnp.float32),
        grid_spec=pltpu.PrefetchScalarGridSpec(
            num_scalar_prefetch=0,
            grid=(N,),
            in_specs=[
                pl.BlockSpec((1, H, W, C), lambda n: (n, 0, 0, 0)),
                pl.BlockSpec((KS * KS, C, C), lambda n: (0, 0, 0)),   # const
                pl.BlockSpec((1, C), lambda n: (0, 0)),               # const
                pl.BlockSpec((KS * KS, C, C), lambda n: (0, 0, 0)),   # const
                pl.BlockSpec((1, C), lambda n: (0, 0)),               # const
            ],
            out_specs=pl.BlockSpec((1, H, W, C), lambda n: (n, 0, 0, 0)),
            scratch_shapes=[
                pltpu.VMEM((H + 2, W + 2, C), jnp.bfloat16),   # padded x
                pltpu.VMEM((H + 2, W + 2, C), jnp.bfloat16),   # padded mid
            ],
        ),
        compiler_params=pltpu.CompilerParams(
            dimension_semantics=("parallel",),          # v7x: use both TCs
            vmem_limit_bytes=32 * 1024 * 1024,          # safe on v5e/v6e/v7x
        ),
    )(x_nhwc, w1_taps, b1_row, w2_taps, b2_row)

    # back to NCHW
    return jnp.transpose(out_nhwc, (0, 3, 1, 2))


def _reference(x_nchw, w1, b1, w2, b2):
    """Pure-JAX f32 reference (lax conv) for sanity checking."""
    dn = jax.lax.conv_dimension_numbers(x_nchw.shape, w1.shape,
                                        ("NCHW", "OIHW", "NCHW"))
    def conv(x, w, b):
        y = jax.lax.conv_general_dilated(x, w, (1, 1), "SAME",
                                         dimension_numbers=dn)
        return y + b.reshape(1, -1, 1, 1)
    mid = jnp.maximum(conv(x_nchw, w1, b1), 0.0)
    return conv(mid, w2, b2) * 0.1 + x_nchw


if __name__ == "__main__":
    key = jax.random.PRNGKey(0)
    k_x, k_w1, k_b1, k_w2, k_b2 = jax.random.split(key, 5)

    N, H, W = 2, 8, 8          # small spatial; channels fixed at 256 by module
    x = jax.random.normal(k_x, (N, C, H, W), jnp.float32)
    w1 = jax.random.normal(k_w1, (C, C, KS, KS), jnp.float32) * 0.02
    b1 = jax.random.normal(k_b1, (C,), jnp.float32) * 0.02
    w2 = jax.random.normal(k_w2, (C, C, KS, KS), jnp.float32) * 0.02
    b2 = jax.random.normal(k_b2, (C,), jnp.float32) * 0.02

    out = jax.block_until_ready(residual_block(x, w1, b1, w2, b2))

    ref = jax.block_until_ready(_reference(x, w1, b1, w2, b2))
    assert out.shape == (N, C, H, W)
    # bf16 matmul operands with f32 accumulation -> loosened tolerance.
    assert jnp.max(jnp.abs(out - ref)) < 2e-2

    print("KERNEL_OK")
</pallas_src>

<mosaic_0001>
module attributes {stable_mosaic.version = 11 : i64} {
  func.func @fused_residual_kernel(%arg0: i32, %arg1: memref<1x8x8x256xf32, #tpu.memory_space<vmem>>, %arg2: memref<9x256x256xbf16, #tpu.memory_space<vmem>>, %arg3: memref<1x256xf32, #tpu.memory_space<vmem>>, %arg4: memref<9x256x256xbf16, #tpu.memory_space<vmem>>, %arg5: memref<1x256xf32, #tpu.memory_space<vmem>>, %arg6: memref<1x8x8x256xf32, #tpu.memory_space<vmem>>, %arg7: memref<10x10x256xbf16, #tpu.memory_space<vmem>>, %arg8: memref<10x10x256xbf16, #tpu.memory_space<vmem>>) attributes {dimension_semantics = [#tpu.dimension_semantics<parallel>], iteration_bounds = array<i64: 2>, scalar_prefetch = 0 : i64, scratch_operands = 2 : i64, tpu.core_type = #tpu.core_type<tc>, window_params = [{transform_indices = @transform_0, window_bounds = array<i64: 1, 8, 8, 256>}, {pipeline_mode = #tpu.pipeline_mode<synchronous>, transform_indices = @transform_1, window_bounds = array<i64: 9, 256, 256>}, {pipeline_mode = #tpu.pipeline_mode<synchronous>, transform_indices = @transform_2, window_bounds = array<i64: 1, 256>}, {pipeline_mode = #tpu.pipeline_mode<synchronous>, transform_indices = @transform_3, window_bounds = array<i64: 9, 256, 256>}, {pipeline_mode = #tpu.pipeline_mode<synchronous>, transform_indices = @transform_4, window_bounds = array<i64: 1, 256>}, {transform_indices = @transform_5, window_bounds = array<i64: 1, 8, 8, 256>}]} {
    %cst = arith.constant 0.000000e+00 : bf16
    %0 = vector.broadcast %cst : bf16 to vector<10x10x256xbf16>
    %c0 = arith.constant 0 : index
    %c0_0 = arith.constant 0 : index
    %c0_1 = arith.constant 0 : index
    %1 = vector.load %arg7[%c0, %c0_0, %c0_1] : memref<10x10x256xbf16, #tpu.memory_space<vmem>>, vector<10x10x256xbf16>
    tpu.vector_store %arg7[%c0, %c0_0, %c0_1], %0 {strides = array<i32>} : memref<10x10x256xbf16, #tpu.memory_space<vmem>>, vector<10x10x256xbf16>,
    %cst_2 = arith.constant 0.000000e+00 : bf16
    %2 = vector.broadcast %cst_2 : bf16 to vector<10x10x256xbf16>
    %c0_3 = arith.constant 0 : index
    %c0_4 = arith.constant 0 : index
    %c0_5 = arith.constant 0 : index
    %3 = vector.load %arg8[%c0_3, %c0_4, %c0_5] : memref<10x10x256xbf16, #tpu.memory_space<vmem>>, vector<10x10x256xbf16>
    tpu.vector_store %arg8[%c0_3, %c0_4, %c0_5], %2 {strides = array<i32>} : memref<10x10x256xbf16, #tpu.memory_space<vmem>>, vector<10x10x256xbf16>,
    %c0_6 = arith.constant 0 : index
    %c0_7 = arith.constant 0 : index
    %c0_8 = arith.constant 0 : index
    %c0_9 = arith.constant 0 : index
    %4 = vector.load %arg1[%c0_6, %c0_7, %c0_8, %c0_9] : memref<1x8x8x256xf32, #tpu.memory_space<vmem>>, vector<1x8x8x256xf32>
    %5 = vector.shape_cast %4 : vector<1x8x8x256xf32> to vector<8x8x256xf32>
    %6 = arith.truncf %5 : vector<8x8x256xf32> to vector<8x8x256xbf16>
    %c1 = arith.constant 1 : index
    %c1_10 = arith.constant 1 : index
    %c0_11 = arith.constant 0 : index
    %7 = vector.load %arg7[%c1, %c1_10, %c0_11] : memref<10x10x256xbf16, #tpu.memory_space<vmem>>, vector<8x8x256xbf16>
    tpu.vector_store %arg7[%c1, %c1_10, %c0_11], %6 {strides = array<i32>} : memref<10x10x256xbf16, #tpu.memory_space<vmem>>, vector<8x8x256xbf16>,
    %c0_12 = arith.constant 0 : index
    %c0_13 = arith.constant 0 : index
    %c0_14 = arith.constant 0 : index
    %8 = vector.load %arg7[%c0_12, %c0_13, %c0_14] : memref<10x10x256xbf16, #tpu.memory_space<vmem>>, vector<8x8x256xbf16>
    %9 = vector.shape_cast %8 : vector<8x8x256xbf16> to vector<64x256xbf16>
    %c0_15 = arith.constant 0 : index
    %c0_16 = arith.constant 0 : index
    %c0_17 = arith.constant 0 : index
    %10 = vector.load %arg2[%c0_15, %c0_16, %c0_17] : memref<9x256x256xbf16, #tpu.memory_space<vmem>>, vector<1x256x256xbf16>
    %11 = vector.shape_cast %10 : vector<1x256x256xbf16> to vector<256x256xbf16>
    %cst_18 = arith.constant dense<0.000000e+00> : vector<64x256xf32>
    %12 = tpu.matmul %9, %11, %cst_18 {dimension_numbers = #tpu.dot_dimension_numbers<[1], [0], [0], [1], [0, 0, 1, 1], [], []>} : vector<64x256xbf16>, vector<256x256xbf16>, vector<64x256xf32> -> vector<64x256xf32>
    %c0_19 = arith.constant 0 : index
    %c1_20 = arith.constant 1 : index
    %c0_21 = arith.constant 0 : index
    %13 = vector.load %arg7[%c0_19, %c1_20, %c0_21] : memref<10x10x256xbf16, #tpu.memory_space<vmem>>, vector<8x8x256xbf16>
    %14 = vector.shape_cast %13 : vector<8x8x256xbf16> to vector<64x256xbf16>
    %c1_22 = arith.constant 1 : index
    %c0_23 = arith.constant 0 : index
    %c0_24 = arith.constant 0 : index
    %15 = vector.load %arg2[%c1_22, %c0_23, %c0_24] : memref<9x256x256xbf16, #tpu.memory_space<vmem>>, vector<1x256x256xbf16>
    %16 = vector.shape_cast %15 : vector<1x256x256xbf16> to vector<256x256xbf16>
    %cst_25 = arith.constant dense<0.000000e+00> : vector<64x256xf32>
    %17 = tpu.matmul %14, %16, %cst_25 {dimension_numbers = #tpu.dot_dimension_numbers<[1], [0], [0], [1], [0, 0, 1, 1], [], []>} : vector<64x256xbf16>, vector<256x256xbf16>, vector<64x256xf32> -> vector<64x256xf32>
    %18 = arith.addf %12, %17 : vector<64x256xf32>
    %c0_26 = arith.constant 0 : index
    %c2 = arith.constant 2 : index
    %c0_27 = arith.constant 0 : index
    %19 = vector.load %arg7[%c0_26, %c2, %c0_27] : memref<10x10x256xbf16, #tpu.memory_space<vmem>>, vector<8x8x256xbf16>
    %20 = vector.shape_cast %19 : vector<8x8x256xbf16> to vector<64x256xbf16>
    %c2_28 = arith.constant 2 : index
    %c0_29 = arith.constant 0 : index
    %c0_30 = arith.constant 0 : index
    %21 = vector.load %arg2[%c2_28, %c0_29, %c0_30] : memref<9x256x256xbf16, #tpu.memory_space<vmem>>, vector<1x256x256xbf16>
    %22 = vector.shape_cast %21 : vector<1x256x256xbf16> to vector<256x256xbf16>
    %cst_31 = arith.constant dense<0.000000e+00> : vector<64x256xf32>
    %23 = tpu.matmul %20, %22, %cst_31 {dimension_numbers = #tpu.dot_dimension_numbers<[1], [0], [0], [1], [0, 0, 1, 1], [], []>} : vector<64x256xbf16>, vector<256x256xbf16>, vector<64x256xf32> -> vector<64x256xf32>
    %24 = arith.addf %18, %23 : vector<64x256xf32>
    %c1_32 = arith.constant 1 : index
    %c0_33 = arith.constant 0 : index
    %c0_34 = arith.constant 0 : index
    %25 = vector.load %arg7[%c1_32, %c0_33, %c0_34] : memref<10x10x256xbf16, #tpu.memory_space<vmem>>, vector<8x8x256xbf16>
    %26 = vector.shape_cast %25 : vector<8x8x256xbf16> to vector<64x256xbf16>
    %c3 = arith.constant 3 : index
    %c0_35 = arith.constant 0 : index
    %c0_36 = arith.constant 0 : index
    %27 = vector.load %arg2[%c3, %c0_35, %c0_36] : memref<9x256x256xbf16, #tpu.memory_space<vmem>>, vector<1x256x256xbf16>
    %28 = vector.shape_cast %27 : vector<1x256x256xbf16> to vector<256x256xbf16>
    %cst_37 = arith.constant dense<0.000000e+00> : vector<64x256xf32>
    %29 = tpu.matmul %26, %28, %cst_37 {dimension_numbers = #tpu.dot_dimension_numbers<[1], [0], [0], [1], [0, 0, 1, 1], [], []>} : vector<64x256xbf16>, vector<256x256xbf16>, vector<64x256xf32> -> vector<64x256xf32>
    %30 = arith.addf %24, %29 : vector<64x256xf32>
    %c1_38 = arith.constant 1 : index
    %c1_39 = arith.constant 1 : index
    %c0_40 = arith.constant 0 : index
    %31 = vector.load %arg7[%c1_38, %c1_39, %c0_40] : memref<10x10x256xbf16, #tpu.memory_space<vmem>>, vector<8x8x256xbf16>
    %32 = vector.shape_cast %31 : vector<8x8x256xbf16> to vector<64x256xbf16>
    %c4 = arith.constant 4 : index
    %c0_41 = arith.constant 0 : index
    %c0_42 = arith.constant 0 : index
    %33 = vector.load %arg2[%c4, %c0_41, %c0_42] : memref<9x256x256xbf16, #tpu.memory_space<vmem>>, vector<1x256x256xbf16>
    %34 = vector.shape_cast %33 : vector<1x256x256xbf16> to vector<256x256xbf16>
    %cst_43 = arith.constant dense<0.000000e+00> : vector<64x256xf32>
    %35 = tpu.matmul %32, %34, %cst_43 {dimension_numbers = #tpu.dot_dimension_numbers<[1], [0], [0], [1], [0, 0, 1, 1], [], []>} : vector<64x256xbf16>, vector<256x256xbf16>, vector<64x256xf32> -> vector<64x256xf32>
    %36 = arith.addf %30, %35 : vector<64x256xf32>
    %c1_44 = arith.constant 1 : index
    %c2_45 = arith.constant 2 : index
    %c0_46 = arith.constant 0 : index
    %37 = vector.load %arg7[%c1_44, %c2_45, %c0_46] : memref<10x10x256xbf16, #tpu.memory_space<vmem>>, vector<8x8x256xbf16>
    %38 = vector.shape_cast %37 : vector<8x8x256xbf16> to vector<64x256xbf16>
    %c5 = arith.constant 5 : index
    %c0_47 = arith.constant 0 : index
    %c0_48 = arith.constant 0 : index
    %39 = vector.load %arg2[%c5, %c0_47, %c0_48] : memref<9x256x256xbf16, #tpu.memory_space<vmem>>, vector<1x256x256xbf16>
    %40 = vector.shape_cast %39 : vector<1x256x256xbf16> to vector<256x256xbf16>
    %cst_49 = arith.constant dense<0.000000e+00> : vector<64x256xf32>
    %41 = tpu.matmul %38, %40, %cst_49 {dimension_numbers = #tpu.dot_dimension_numbers<[1], [0], [0], [1], [0, 0, 1, 1], [], []>} : vector<64x256xbf16>, vector<256x256xbf16>, vector<64x256xf32> -> vector<64x256xf32>
    %42 = arith.addf %36, %41 : vector<64x256xf32>
    %c2_50 = arith.constant 2 : index
    %c0_51 = arith.constant 0 : index
    %c0_52 = arith.constant 0 : index
    %43 = vector.load %arg7[%c2_50, %c0_51, %c0_52] : memref<10x10x256xbf16, #tpu.memory_space<vmem>>, vector<8x8x256xbf16>
    %44 = vector.shape_cast %43 : vector<8x8x256xbf16> to vector<64x256xbf16>
    %c6 = arith.constant 6 : index
    %c0_53 = arith.constant 0 : index
    %c0_54 = arith.constant 0 : index
    %45 = vector.load %arg2[%c6, %c0_53, %c0_54] : memref<9x256x256xbf16, #tpu.memory_space<vmem>>, vector<1x256x256xbf16>
    %46 = vector.shape_cast %45 : vector<1x256x256xbf16> to vector<256x256xbf16>
    %cst_55 = arith.constant dense<0.000000e+00> : vector<64x256xf32>
    %47 = tpu.matmul %44, %46, %cst_55 {dimension_numbers = #tpu.dot_dimension_numbers<[1], [0], [0], [1], [0, 0, 1, 1], [], []>} : vector<64x256xbf16>, vector<256x256xbf16>, vector<64x256xf32> -> vector<64x256xf32>
    %48 = arith.addf %42, %47 : vector<64x256xf32>
    %c2_56 = arith.constant 2 : index
    %c1_57 = arith.constant 1 : index
    %c0_58 = arith.constant 0 : index
    %49 = vector.load %arg7[%c2_56, %c1_57, %c0_58] : memref<10x10x256xbf16, #tpu.memory_space<vmem>>, vector<8x8x256xbf16>
    %50 = vector.shape_cast %49 : vector<8x8x256xbf16> to vector<64x256xbf16>
    %c7 = arith.constant 7 : index
    %c0_59 = arith.constant 0 : index
    %c0_60 = arith.constant 0 : index
    %51 = vector.load %arg2[%c7, %c0_59, %c0_60] : memref<9x256x256xbf16, #tpu.memory_space<vmem>>, vector<1x256x256xbf16>
    %52 = vector.shape_cast %51 : vector<1x256x256xbf16> to vector<256x256xbf16>
    %cst_61 = arith.constant dense<0.000000e+00> : vector<64x256xf32>
    %53 = tpu.matmul %50, %52, %cst_61 {dimension_numbers = #tpu.dot_dimension_numbers<[1], [0], [0], [1], [0, 0, 1, 1], [], []>} : vector<64x256xbf16>, vector<256x256xbf16>, vector<64x256xf32> -> vector<64x256xf32>
    %54 = arith.addf %48, %53 : vector<64x256xf32>
    %c2_62 = arith.constant 2 : index
    %c2_63 = arith.constant 2 : index
    %c0_64 = arith.constant 0 : index
    %55 = vector.load %arg7[%c2_62, %c2_63, %c0_64] : memref<10x10x256xbf16, #tpu.memory_space<vmem>>, vector<8x8x256xbf16>
    %56 = vector.shape_cast %55 : vector<8x8x256xbf16> to vector<64x256xbf16>
    %c8 = arith.constant 8 : index
    %c0_65 = arith.constant 0 : index
    %c0_66 = arith.constant 0 : index
    %57 = vector.load %arg2[%c8, %c0_65, %c0_66] : memref<9x256x256xbf16, #tpu.memory_space<vmem>>, vector<1x256x256xbf16>
    %58 = vector.shape_cast %57 : vector<1x256x256xbf16> to vector<256x256xbf16>
    %cst_67 = arith.constant dense<0.000000e+00> : vector<64x256xf32>
    %59 = tpu.matmul %56, %58, %cst_67 {dimension_numbers = #tpu.dot_dimension_numbers<[1], [0], [0], [1], [0, 0, 1, 1], [], []>} : vector<64x256xbf16>, vector<256x256xbf16>, vector<64x256xf32> -> vector<64x256xf32>
    %60 = arith.addf %54, %59 : vector<64x256xf32>
    %c0_68 = arith.constant 0 : index
    %c0_69 = arith.constant 0 : index
    %61 = vector.load %arg3[%c0_68, %c0_69] : memref<1x256xf32, #tpu.memory_space<vmem>>, vector<1x256xf32>
    %62 = vector.shape_cast %61 : vector<1x256xf32> to vector<256xf32>
    %63 = vector.shape_cast %62 : vector<256xf32> to vector<1x256xf32>
    %64 = vector.broadcast %63 : vector<1x256xf32> to vector<64x256xf32>
    %65 = arith.addf %60, %64 : vector<64x256xf32>
    %cst_70 = arith.constant 0.000000e+00 : f32
    %66 = vector.broadcast %cst_70 : f32 to vector<64x256xf32>
    %67 = arith.maximumf %65, %66 : vector<64x256xf32>
    %68 = vector.shape_cast %67 : vector<64x256xf32> to vector<8x8x256xf32>
    %69 = arith.truncf %68 : vector<8x8x256xf32> to vector<8x8x256xbf16>
    %c1_71 = arith.constant 1 : index
    %c1_72 = arith.constant 1 : index
    %c0_73 = arith.constant 0 : index
    %70 = vector.load %arg8[%c1_71, %c1_72, %c0_73] : memref<10x10x256xbf16, #tpu.memory_space<vmem>>, vector<8x8x256xbf16>
    tpu.vector_store %arg8[%c1_71, %c1_72, %c0_73], %69 {strides = array<i32>} : memref<10x10x256xbf16, #tpu.memory_space<vmem>>, vector<8x8x256xbf16>,
    %c0_74 = arith.constant 0 : index
    %c0_75 = arith.constant 0 : index
    %c0_76 = arith.constant 0 : index
    %71 = vector.load %arg8[%c0_74, %c0_75, %c0_76] : memref<10x10x256xbf16, #tpu.memory_space<vmem>>, vector<8x8x256xbf16>
    %72 = vector.shape_cast %71 : vector<8x8x256xbf16> to vector<64x256xbf16>
    %c0_77 = arith.constant 0 : index
    %c0_78 = arith.constant 0 : index
    %c0_79 = arith.constant 0 : index
    %73 = vector.load %arg4[%c0_77, %c0_78, %c0_79] : memref<9x256x256xbf16, #tpu.memory_space<vmem>>, vector<1x256x256xbf16>
    %74 = vector.shape_cast %73 : vector<1x256x256xbf16> to vector<256x256xbf16>
    %cst_80 = arith.constant dense<0.000000e+00> : vector<64x256xf32>
    %75 = tpu.matmul %72, %74, %cst_80 {dimension_numbers = #tpu.dot_dimension_numbers<[1], [0], [0], [1], [0, 0, 1, 1], [], []>} : vector<64x256xbf16>, vector<256x256xbf16>, vector<64x256xf32> -> vector<64x256xf32>
    %c0_81 = arith.constant 0 : index
    %c1_82 = arith.constant 1 : index
    %c0_83 = arith.constant 0 : index
    %76 = vector.load %arg8[%c0_81, %c1_82, %c0_83] : memref<10x10x256xbf16, #tpu.memory_space<vmem>>, vector<8x8x256xbf16>
    %77 = vector.shape_cast %76 : vector<8x8x256xbf16> to vector<64x256xbf16>
    %c1_84 = arith.constant 1 : index
    %c0_85 = arith.constant 0 : index
    %c0_86 = arith.constant 0 : index
    %78 = vector.load %arg4[%c1_84, %c0_85, %c0_86] : memref<9x256x256xbf16, #tpu.memory_space<vmem>>, vector<1x256x256xbf16>
    %79 = vector.shape_cast %78 : vector<1x256x256xbf16> to vector<256x256xbf16>
    %cst_87 = arith.constant dense<0.000000e+00> : vector<64x256xf32>
    %80 = tpu.matmul %77, %79, %cst_87 {dimension_numbers = #tpu.dot_dimension_numbers<[1], [0], [0], [1], [0, 0, 1, 1], [], []>} : vector<64x256xbf16>, vector<256x256xbf16>, vector<64x256xf32> -> vector<64x256xf32>
    %81 = arith.addf %75, %80 : vector<64x256xf32>
    %c0_88 = arith.constant 0 : index
    %c2_89 = arith.constant 2 : index
    %c0_90 = arith.constant 0 : index
    %82 = vector.load %arg8[%c0_88, %c2_89, %c0_90] : memref<10x10x256xbf16, #tpu.memory_space<vmem>>, vector<8x8x256xbf16>
    %83 = vector.shape_cast %82 : vector<8x8x256xbf16> to vector<64x256xbf16>
    %c2_91 = arith.constant 2 : index
    %c0_92 = arith.constant 0 : index
    %c0_93 = arith.constant 0 : index
    %84 = vector.load %arg4[%c2_91, %c0_92, %c0_93] : memref<9x256x256xbf16, #tpu.memory_space<vmem>>, vector<1x256x256xbf16>
    %85 = vector.shape_cast %84 : vector<1x256x256xbf16> to vector<256x256xbf16>
    %cst_94 = arith.constant dense<0.000000e+00> : vector<64x256xf32>
    %86 = tpu.matmul %83, %85, %cst_94 {dimension_numbers = #tpu.dot_dimension_numbers<[1], [0], [0], [1], [0, 0, 1, 1], [], []>} : vector<64x256xbf16>, vector<256x256xbf16>, vector<64x256xf32> -> vector<64x256xf32>
    %87 = arith.addf %81, %86 : vector<64x256xf32>
    %c1_95 = arith.constant 1 : index
    %c0_96 = arith.constant 0 : index
    %c0_97 = arith.constant 0 : index
    %88 = vector.load %arg8[%c1_95, %c0_96, %c0_97] : memref<10x10x256xbf16, #tpu.memory_space<vmem>>, vector<8x8x256xbf16>
    %89 = vector.shape_cast %88 : vector<8x8x256xbf16> to vector<64x256xbf16>
    %c3_98 = arith.constant 3 : index
    %c0_99 = arith.constant 0 : index
    %c0_100 = arith.constant 0 : index
    %90 = vector.load %arg4[%c3_98, %c0_99, %c0_100] : memref<9x256x256xbf16, #tpu.memory_space<vmem>>, vector<1x256x256xbf16>
    %91 = vector.shape_cast %90 : vector<1x256x256xbf16> to vector<256x256xbf16>
    %cst_101 = arith.constant dense<0.000000e+00> : vector<64x256xf32>
    %92 = tpu.matmul %89, %91, %cst_101 {dimension_numbers = #tpu.dot_dimension_numbers<[1], [0], [0], [1], [0, 0, 1, 1], [], []>} : vector<64x256xbf16>, vector<256x256xbf16>, vector<64x256xf32> -> vector<64x256xf32>
    %93 = arith.addf %87, %92 : vector<64x256xf32>
    %c1_102 = arith.constant 1 : index
    %c1_103 = arith.constant 1 : index
    %c0_104 = arith.constant 0 : index
    %94 = vector.load %arg8[%c1_102, %c1_103, %c0_104] : memref<10x10x256xbf16, #tpu.memory_space<vmem>>, vector<8x8x256xbf16>
    %95 = vector.shape_cast %94 : vector<8x8x256xbf16> to vector<64x256xbf16>
    %c4_105 = arith.constant 4 : index
    %c0_106 = arith.constant 0 : index
    %c0_107 = arith.constant 0 : index
    %96 = vector.load %arg4[%c4_105, %c0_106, %c0_107] : memref<9x256x256xbf16, #tpu.memory_space<vmem>>, vector<1x256x256xbf16>
    %97 = vector.shape_cast %96 : vector<1x256x256xbf16> to vector<256x256xbf16>
    %cst_108 = arith.constant dense<0.000000e+00> : vector<64x256xf32>
    %98 = tpu.matmul %95, %97, %cst_108 {dimension_numbers = #tpu.dot_dimension_numbers<[1], [0], [0], [1], [0, 0, 1, 1], [], []>} : vector<64x256xbf16>, vector<256x256xbf16>, vector<64x256xf32> -> vector<64x256xf32>
    %99 = arith.addf %93, %98 : vector<64x256xf32>
    %c1_109 = arith.constant 1 : index
    %c2_110 = arith.constant 2 : index
    %c0_111 = arith.constant 0 : index
    %100 = vector.load %arg8[%c1_109, %c2_110, %c0_111] : memref<10x10x256xbf16, #tpu.memory_space<vmem>>, vector<8x8x256xbf16>
    %101 = vector.shape_cast %100 : vector<8x8x256xbf16> to vector<64x256xbf16>
    %c5_112 = arith.constant 5 : index
    %c0_113 = arith.constant 0 : index
    %c0_114 = arith.constant 0 : index
    %102 = vector.load %arg4[%c5_112, %c0_113, %c0_114] : memref<9x256x256xbf16, #tpu.memory_space<vmem>>, vector<1x256x256xbf16>
    %103 = vector.shape_cast %102 : vector<1x256x256xbf16> to vector<256x256xbf16>
    %cst_115 = arith.constant dense<0.000000e+00> : vector<64x256xf32>
    %104 = tpu.matmul %101, %103, %cst_115 {dimension_numbers = #tpu.dot_dimension_numbers<[1], [0], [0], [1], [0, 0, 1, 1], [], []>} : vector<64x256xbf16>, vector<256x256xbf16>, vector<64x256xf32> -> vector<64x256xf32>
    %105 = arith.addf %99, %104 : vector<64x256xf32>
    %c2_116 = arith.constant 2 : index
    %c0_117 = arith.constant 0 : index
    %c0_118 = arith.constant 0 : index
    %106 = vector.load %arg8[%c2_116, %c0_117, %c0_118] : memref<10x10x256xbf16, #tpu.memory_space<vmem>>, vector<8x8x256xbf16>
    %107 = vector.shape_cast %106 : vector<8x8x256xbf16> to vector<64x256xbf16>
    %c6_119 = arith.constant 6 : index
    %c0_120 = arith.constant 0 : index
    %c0_121 = arith.constant 0 : index
    %108 = vector.load %arg4[%c6_119, %c0_120, %c0_121] : memref<9x256x256xbf16, #tpu.memory_space<vmem>>, vector<1x256x256xbf16>
    %109 = vector.shape_cast %108 : vector<1x256x256xbf16> to vector<256x256xbf16>
    %cst_122 = arith.constant dense<0.000000e+00> : vector<64x256xf32>
    %110 = tpu.matmul %107, %109, %cst_122 {dimension_numbers = #tpu.dot_dimension_numbers<[1], [0], [0], [1], [0, 0, 1, 1], [], []>} : vector<64x256xbf16>, vector<256x256xbf16>, vector<64x256xf32> -> vector<64x256xf32>
    %111 = arith.addf %105, %110 : vector<64x256xf32>
    %c2_123 = arith.constant 2 : index
    %c1_124 = arith.constant 1 : index
    %c0_125 = arith.constant 0 : index
    %112 = vector.load %arg8[%c2_123, %c1_124, %c0_125] : memref<10x10x256xbf16, #tpu.memory_space<vmem>>, vector<8x8x256xbf16>
    %113 = vector.shape_cast %112 : vector<8x8x256xbf16> to vector<64x256xbf16>
    %c7_126 = arith.constant 7 : index
    %c0_127 = arith.constant 0 : index
    %c0_128 = arith.constant 0 : index
    %114 = vector.load %arg4[%c7_126, %c0_127, %c0_128] : memref<9x256x256xbf16, #tpu.memory_space<vmem>>, vector<1x256x256xbf16>
    %115 = vector.shape_cast %114 : vector<1x256x256xbf16> to vector<256x256xbf16>
    %cst_129 = arith.constant dense<0.000000e+00> : vector<64x256xf32>
    %116 = tpu.matmul %113, %115, %cst_129 {dimension_numbers = #tpu.dot_dimension_numbers<[1], [0], [0], [1], [0, 0, 1, 1], [], []>} : vector<64x256xbf16>, vector<256x256xbf16>, vector<64x256xf32> -> vector<64x256xf32>
    %117 = arith.addf %111, %116 : vector<64x256xf32>
    %c2_130 = arith.constant 2 : index
    %c2_131 = arith.constant 2 : index
    %c0_132 = arith.constant 0 : index
    %118 = vector.load %arg8[%c2_130, %c2_131, %c0_132] : memref<10x10x256xbf16, #tpu.memory_space<vmem>>, vector<8x8x256xbf16>
    %119 = vector.shape_cast %118 : vector<8x8x256xbf16> to vector<64x256xbf16>
    %c8_133 = arith.constant 8 : index
    %c0_134 = arith.constant 0 : index
    %c0_135 = arith.constant 0 : index
    %120 = vector.load %arg4[%c8_133, %c0_134, %c0_135] : memref<9x256x256xbf16, #tpu.memory_space<vmem>>, vector<1x256x256xbf16>
    %121 = vector.shape_cast %120 : vector<1x256x256xbf16> to vector<256x256xbf16>
    %cst_136 = arith.constant dense<0.000000e+00> : vector<64x256xf32>
    %122 = tpu.matmul %119, %121, %cst_136 {dimension_numbers = #tpu.dot_dimension_numbers<[1], [0], [0], [1], [0, 0, 1, 1], [], []>} : vector<64x256xbf16>, vector<256x256xbf16>, vector<64x256xf32> -> vector<64x256xf32>
    %123 = arith.addf %117, %122 : vector<64x256xf32>
    %c0_137 = arith.constant 0 : index
    %c0_138 = arith.constant 0 : index
    %124 = vector.load %arg5[%c0_137, %c0_138] : memref<1x256xf32, #tpu.memory_space<vmem>>, vector<1x256xf32>
    %125 = vector.shape_cast %124 : vector<1x256xf32> to vector<256xf32>
    %126 = vector.shape_cast %125 : vector<256xf32> to vector<1x256xf32>
    %127 = vector.broadcast %126 : vector<1x256xf32> to vector<64x256xf32>
    %128 = arith.addf %123, %127 : vector<64x256xf32>
    %cst_139 = arith.constant 1.000000e-01 : f32
    %129 = vector.broadcast %cst_139 : f32 to vector<64x256xf32>
    %130 = arith.mulf %128, %129 : vector<64x256xf32>
    %131 = vector.shape_cast %5 : vector<8x8x256xf32> to vector<64x256xf32>
    %132 = arith.addf %130, %131 : vector<64x256xf32>
    %133 = vector.shape_cast %132 : vector<64x256xf32> to vector<1x8x8x256xf32>
    %c0_140 = arith.constant 0 : index
    %c0_141 = arith.constant 0 : index
    %c0_142 = arith.constant 0 : index
    %c0_143 = arith.constant 0 : index
    %134 = vector.load %arg6[%c0_140, %c0_141, %c0_142, %c0_143] : memref<1x8x8x256xf32, #tpu.memory_space<vmem>>, vector<1x8x8x256xf32>
    tpu.vector_store %arg6[%c0_140, %c0_141, %c0_142, %c0_143], %133 {strides = array<i32>} : memref<1x8x8x256xf32, #tpu.memory_space<vmem>>, vector<1x8x8x256xf32>,
    return
  }
  func.func @transform_0(%arg0: i32) -> (i32, i32, i32, i32) {
    %c0_i32 = arith.constant 0 : i32
    %c0_i32_0 = arith.constant 0 : i32
    %c0_i32_1 = arith.constant 0 : i32
    %c0_i32_2 = arith.constant 0 : i32
    return %arg0, %c0_i32, %c0_i32_0, %c0_i32_1 : i32, i32, i32, i32
  }
  func.func @transform_1(%arg0: i32) -> (i32, i32, i32) {
    %c0_i32 = arith.constant 0 : i32
    %c0_i32_0 = arith.constant 0 : i32
    %c0_i32_1 = arith.constant 0 : i32
    %c0_i32_2 = arith.constant 0 : i32
    return %c0_i32, %c0_i32_0, %c0_i32_1 : i32, i32, i32
  }
  func.func @transform_2(%arg0: i32) -> (i32, i32) {
    %c0_i32 = arith.constant 0 : i32
    %c0_i32_0 = arith.constant 0 : i32
    %c0_i32_1 = arith.constant 0 : i32
    return %c0_i32, %c0_i32_0 : i32, i32
  }
  func.func @transform_3(%arg0: i32) -> (i32, i32, i32) {
    %c0_i32 = arith.constant 0 : i32
    %c0_i32_0 = arith.constant 0 : i32
    %c0_i32_1 = arith.constant 0 : i32
    %c0_i32_2 = arith.constant 0 : i32
    return %c0_i32, %c0_i32_0, %c0_i32_1 : i32, i32, i32
  }
  func.func @transform_4(%arg0: i32) -> (i32, i32) {
    %c0_i32 = arith.constant 0 : i32
    %c0_i32_0 = arith.constant 0 : i32
    %c0_i32_1 = arith.constant 0 : i32
    return %c0_i32, %c0_i32_0 : i32, i32
  }
  func.func @transform_5(%arg0: i32) -> (i32, i32, i32, i32) {
    %c0_i32 = arith.constant 0 : i32
    %c0_i32_0 = arith.constant 0 : i32
    %c0_i32_1 = arith.constant 0 : i32
    %c0_i32_2 = arith.constant 0 : i32
    return %arg0, %c0_i32, %c0_i32_0, %c0_i32_1 : i32, i32, i32, i32
  }
}

</mosaic_0001>

<llo_original>
// kernel: tpu_custom_call.1
$region0: #{tpu_custom_call.1}
  #allocation0 [shape = 'u32[]', space=smem, size = 0x4, offset = 0x4, fixed_abs, tag = 'smem constant byte address 0x4 - core index']
  #allocation1 [shape = 'u32[72,128]{1,0:T(1,128)}', space=vmem, size = 0x9000, scoped, tag = 'internal scratch']
  #allocation2 [shape = 'bf16[10,10,256]{2,1,0:T(8,128)(2,1)}', space=vmem, size = 0x14000, scoped, tag = 'scratch operand']
  #allocation3 [shape = 'bf16[10,10,256]{2,1,0:T(8,128)(2,1)}', space=vmem, size = 0x14000, scoped, tag = 'scratch operand']
  %s0 = inlined_call_operand.hbm [shape: f32[2,8,8,256], index: 0, kind: input, shape index: {}]
  %s1 = inlined_call_operand.hbm [shape: bf16[9,256,256], index: 1, kind: input, shape index: {}]
  %s2 = inlined_call_operand.hbm [shape: f32[1,256], index: 2, kind: input, shape index: {}]
  %s3 = inlined_call_operand.hbm [shape: bf16[9,256,256], index: 3, kind: input, shape index: {}]
  %s4 = inlined_call_operand.hbm [shape: f32[1,256], index: 4, kind: input, shape index: {}]
  %s5 = inlined_call_operand.hbm [shape: f32[2,8,8,256], index: 5, kind: output, shape index: {}]
  %s6 = sld [smem:[#allocation0]]
  $region73: #{tpu_custom_call.1} parent=0
    _
  %s8 = ssub.s32 1, %s6
  %s9 = scalar_select 0, %s8, %s6
  $region1: #{tpu_custom_call.1} parent=0
    #allocation4 [shape = 'u8[131072]{0}', space=vmem, size = 0x20000, scoped, tag = 'input window, operand 0']
    #allocation5 [shape = 's32[2]{0}', space=sflag, size = 0x8, scoped, tag = 'scoped memory for tpu_custom_call.1']
    #allocation6 [shape = 's32[2]{0}', space=sflag, size = 0x8, scoped, tag = 'scoped memory for tpu_custom_call.1']
    #allocation7 [shape = 'u8[1179648]{0}', space=vmem, size = 0x120000, scoped, tag = 'input window, operand 1, single buffered']
    #allocation8 [shape = 's32[1]{0}', space=sflag, size = 0x4, scoped, tag = 'scoped memory for tpu_custom_call.1']
    #allocation9 [shape = 'u8[1024]{0}', space=vmem, size = 0x400, scoped, tag = 'input window, operand 2, single buffered']
    #allocation10 [shape = 'u8[1179648]{0}', space=vmem, size = 0x120000, scoped, tag = 'input window, operand 3, single buffered']
    #allocation11 [shape = 's32[1]{0}', space=sflag, size = 0x4, scoped, tag = 'scoped memory for tpu_custom_call.1']
    #allocation12 [shape = 'u8[1024]{0}', space=vmem, size = 0x400, scoped, tag = 'input window, operand 4, single buffered']
    #allocation13 [shape = 'u8[131072]{0}', space=vmem, size = 0x20000, scoped, tag = 'output window, operand 0']
    %10 = vsyncpa [#allocation5], 0
    %s11 = scalar_lea.sflag [#allocation5], 1
    %12 = vsyncpa %s11, 0
    %13 = vsyncpa [#allocation8], 0
    %14 = vsyncpa [#allocation11], 0
    %15 = vsyncpa [#allocation6], 0
    %s16 = scalar_lea.sflag [#allocation6], 1
    %17 = vsyncpa %s16, 0
    loop: start=0, step=1, limit=4
    $region2: #{tpu_custom_call.1} parent=1 // loop_pre_header
      _
    $region3: #{tpu_custom_call.1} parent=1 // loop_header
      %s19 = sphi 0, %s23
      %p20 = scmp.ge.s32.totalorder %s19, 4
      %s29 = sphi 0, %s31
      %s32 = sphi 0, %s29
      %s33 = sphi 0, %s32
      %s49 = sphi 0, %s33
      %s53 = sphi 0, %s53
      %s55 = sphi 0, %s53
      %s56 = sphi 0, %s55
      %s70 = sphi 0, %s56
      %s74 = sphi 0, %s74
      %s76 = sphi 0, %s74
      %s77 = sphi 0, %s76
      %s91 = sphi 0, %s77
      %s95 = sphi 0, %s95
      %s97 = sphi 0, %s95
      %s98 = sphi 0, %s97
      %s112 = sphi 0, %s98
      %s116 = sphi 0, %s116
      %s118 = sphi 0, %s116
      %s119 = sphi 0, %s118
      %s133 = sphi 0, %s119
      %s139 = sphi 0, %s141
      %s142 = sphi 0, %s139
      %s143 = sphi 0, %s142
      %s159 = sphi 0, %s143
    $region4: #{tpu_custom_call.1} parent=1 // loop_header_branch
      %22 = sbr.rel (%p20) target = $region8
    $region5: #{tpu_custom_call.1} parent=1 // loop_body
      %s24 = ssub.s32 %s19, 1
      %s25 = ssub.s32 %s19, 2
      %s26 = sadd.s32 %s19, 1
      %s27 = ssub.s32 %s19, %s26
      %p28 = scmp.eq.s32.totalorder %s27, 0
      %s30 = sadd.s32 %s29, 1
      %s31 = scalar_select %p28, %s29, %s30
      %p34 = pneg %p28
      %p35 = scmp.eq.s32.totalorder %s19, 1
      %p36 = por %p34, %p35
      %p37 = scmp.ne.s32.totalorder %s29, %s32
      %p38 = scmp.eq.s32.totalorder %s19, 0
      %p39 = por %p37, %p38
      %p40 = scmp.ne.s32.totalorder %s29, %s32
      %p41 = scmp.eq.s32.totalorder %s24, 1
      %p42 = por %p40, %p41
      %p43 = scmp.ne.s32.totalorder %s32, %s33
      %p44 = scmp.eq.s32.totalorder %s24, 0
      %p45 = por %p43, %p44
      %p46 = scmp.ne.s32.totalorder %s32, %s33
      %p47 = scmp.eq.s32.totalorder %s25, 1
      %p48 = por %p46, %p47
      %p50 = scmp.ne.s32.totalorder %s33, %s49
      %p51 = scmp.eq.s32.totalorder %s25, 0
      %p52 = por %p50, %p51
      %s54 = sadd.s32 %s53, 1
      %p57 = scmp.eq.s32.totalorder %s19, 1
      %p58 = scmp.ne.s32.totalorder %s53, %s55
      %p59 = scmp.eq.s32.totalorder %s19, 0
      %p60 = por %p58, %p59
      %p61 = scmp.ne.s32.totalorder %s53, %s55
      %p62 = scmp.eq.s32.totalorder %s24, 1
      %p63 = por %p61, %p62
      %p64 = scmp.ne.s32.totalorder %s55, %s56
      %p65 = scmp.eq.s32.totalorder %s24, 0
      %p66 = por %p64, %p65
      %p67 = scmp.ne.s32.totalorder %s55, %s56
      %p68 = scmp.eq.s32.totalorder %s25, 1
      %p69 = por %p67, %p68
      %p71 = scmp.ne.s32.totalorder %s56, %s70
      %p72 = scmp.eq.s32.totalorder %s25, 0
      %p73 = por %p71, %p72
      %s75 = sadd.s32 %s74, 1
      %p78 = scmp.eq.s32.totalorder %s19, 1
      %p79 = scmp.ne.s32.totalorder %s74, %s76
      %p80 = scmp.eq.s32.totalorder %s19, 0
      %p81 = por %p79, %p80
      %p82 = scmp.ne.s32.totalorder %s74, %s76
      %p83 = scmp.eq.s32.totalorder %s24, 1
      %p84 = por %p82, %p83
      %p85 = scmp.ne.s32.totalorder %s76, %s77
      %p86 = scmp.eq.s32.totalorder %s24, 0
      %p87 = por %p85, %p86
      %p88 = scmp.ne.s32.totalorder %s76, %s77
      %p89 = scmp.eq.s32.totalorder %s25, 1
      %p90 = por %p88, %p89
      %p92 = scmp.ne.s32.totalorder %s77, %s91
      %p93 = scmp.eq.s32.totalorder %s25, 0
      %p94 = por %p92, %p93
      %s96 = sadd.s32 %s95, 1
      %p99 = scmp.eq.s32.totalorder %s19, 1
      %p100 = scmp.ne.s32.totalorder %s95, %s97
      %p101 = scmp.eq.s32.totalorder %s19, 0
      %p102 = por %p100, %p101
      %p103 = scmp.ne.s32.totalorder %s95, %s97
      %p104 = scmp.eq.s32.totalorder %s24, 1
      %p105 = por %p103, %p104
      %p106 = scmp.ne.s32.totalorder %s97, %s98
      %p107 = scmp.eq.s32.totalorder %s24, 0
      %p108 = por %p106, %p107
      %p109 = scmp.ne.s32.totalorder %s97, %s98
      %p110 = scmp.eq.s32.totalorder %s25, 1
      %p111 = por %p109, %p110
      %p113 = scmp.ne.s32.totalorder %s98, %s112
      %p114 = scmp.eq.s32.totalorder %s25, 0
      %p115 = por %p113, %p114
      %s117 = sadd.s32 %s116, 1
      %p120 = scmp.eq.s32.totalorder %s19, 1
      %p121 = scmp.ne.s32.totalorder %s116, %s118
      %p122 = scmp.eq.s32.totalorder %s19, 0
      %p123 = por %p121, %p122
      %p124 = scmp.ne.s32.totalorder %s116, %s118
      %p125 = scmp.eq.s32.totalorder %s24, 1
      %p126 = por %p124, %p125
      %p127 = scmp.ne.s32.totalorder %s118, %s119
      %p128 = scmp.eq.s32.totalorder %s24, 0
      %p129 = por %p127, %p128
      %p130 = scmp.ne.s32.totalorder %s118, %s119
      %p131 = scmp.eq.s32.totalorder %s25, 1
      %p132 = por %p130, %p131
      %p134 = scmp.ne.s32.totalorder %s119, %s133
      %p135 = scmp.eq.s32.totalorder %s25, 0
      %p136 = por %p134, %p135
      %s137 = ssub.s32 %s19, %s26
      %p138 = scmp.eq.s32.totalorder %s137, 0
      %s140 = sadd.s32 %s139, 1
      %s141 = scalar_select %p138, %s139, %s140
      %p144 = pneg %p138
      %p145 = scmp.eq.s32.totalorder %s19, 1
      %p146 = por %p144, %p145
      %p147 = scmp.ne.s32.totalorder %s139, %s142
      %p148 = scmp.eq.s32.totalorder %s19, 0
      %p149 = por %p147, %p148
      %p150 = scmp.ne.s32.totalorder %s139, %s142
      %p151 = scmp.eq.s32.totalorder %s24, 1
      %p152 = por %p150, %p151
      %p153 = scmp.ne.s32.totalorder %s142, %s143
      %p154 = scmp.eq.s32.totalorder %s24, 0
      %p155 = por %p153, %p154
      %p156 = scmp.ne.s32.totalorder %s142, %s143
      %p157 = scmp.eq.s32.totalorder %s25, 1
      %p158 = por %p156, %p157
      %p160 = scmp.ne.s32.totalorder %s143, %s159
      %p161 = scmp.eq.s32.totalorder %s25, 0
      %p162 = por %p160, %p161
      %p163 = scmp.le.s32.totalorder 1, %s19
      %p164 = scmp.lt.s32.totalorder %s19, 3
      %p165 = pnand %p163, %p164
      %p166 = pneg %p165
      // Predicated region
      $region9: #{tpu_custom_call.1} parent=5 // pred_check
        _
      $region10: #{tpu_custom_call.1} parent=5 // pred_check_branch
        %168 = sbr.rel (%p165) target = $region12
      $region11: #{tpu_custom_call.1} parent=5 // pred_region
        %s169 = ssub.s32 %s19, 1
        // Predicated region
        $region13: #{tpu_custom_call.1} parent=11 // pred_check
          %p170 = pneg %p66
        $region14: #{tpu_custom_call.1} parent=11 // pred_check_branch
          %172 = sbr.rel (%p170) target = $region16
        $region15: #{tpu_custom_call.1} parent=11 // pred_region
          %174 = vsyncadd [#allocation8], 0
          %s175 = sshll.u32 %s1, 4
          %s176 = int_to_ptr.hbm [resolvable:$true] %s175
          %s177 = sshll.u32 [#allocation7], 4
          %s178 = int_to_ptr.vmem [resolvable:$true] %s177
          %183 = dma.hbm_to_vmem [thread:$0]  %s176, 36864, %s178, [#allocation8], 128, 128, 8
        $region16: #{tpu_custom_call.1} parent=11 // pred_fallthru
          _
        // Predicated region
        $region17: #{tpu_custom_call.1} parent=11 // pred_check
          %p184 = pneg %p87
        $region18: #{tpu_custom_call.1} parent=11 // pred_check_branch
          %186 = sbr.rel (%p184) target = $region20
        $region19: #{tpu_custom_call.1} parent=11 // pred_region
          %188 = vsyncadd [#allocation8], 0
          %s190 = sshll.u32 %s2, 4
          %s191 = int_to_ptr.hbm [resolvable:$true] %s190
          %s192 = sshll.u32 [#allocation9], 4
          %s193 = int_to_ptr.vmem [resolvable:$true] %s192
          %195 = dma.hbm_to_vmem [thread:$0]  %s191, 32, %s193, [#allocation8]
        $region20: #{tpu_custom_call.1} parent=11 // pred_fallthru
          _
        // Predicated region
        $region21: #{tpu_custom_call.1} parent=11 // pred_check
          %p196 = pneg %p108
        $region22: #{tpu_custom_call.1} parent=11 // pred_check_branch
          %198 = sbr.rel (%p196) target = $region24
        $region23: #{tpu_custom_call.1} parent=11 // pred_region
          %200 = vsyncadd [#allocation11], 0
          %s201 = sshll.u32 %s3, 4
          %s202 = int_to_ptr.hbm [resolvable:$true] %s201
          %s203 = sshll.u32 [#allocation10], 4
          %s204 = int_to_ptr.vmem [resolvable:$true] %s203
          %209 = dma.hbm_to_vmem [thread:$0]  %s202, 36864, %s204, [#allocation11], 128, 128, 8
        $region24: #{tpu_custom_call.1} parent=11 // pred_fallthru
          _
        // Predicated region
        $region25: #{tpu_custom_call.1} parent=11 // pred_check
          %p210 = pneg %p129
        $region26: #{tpu_custom_call.1} parent=11 // pred_check_branch
          %212 = sbr.rel (%p210) target = $region28
        $region27: #{tpu_custom_call.1} parent=11 // pred_region
          %214 = vsyncadd [#allocation11], 0
          %s216 = sshll.u32 %s4, 4
          %s217 = int_to_ptr.hbm [resolvable:$true] %s216
          %s218 = sshll.u32 [#allocation12], 4
          %s219 = int_to_ptr.vmem [resolvable:$true] %s218
          %221 = dma.hbm_to_vmem [thread:$0]  %s217, 32, %s219, [#allocation11]
        $region28: #{tpu_custom_call.1} parent=11 // pred_fallthru
          _
      $region12: #{tpu_custom_call.1} parent=5 // pred_fallthru
        _
      %p222 = scmp.lt.s32.totalorder %s19, 2
      // Predicated region
      $region29: #{tpu_custom_call.1} parent=5 // pred_check
        %p223 = pneg %p222
      $region30: #{tpu_custom_call.1} parent=5 // pred_check_branch
        %225 = sbr.rel (%p223) target = $region32
      $region31: #{tpu_custom_call.1} parent=5 // pred_region
        // Predicated region
        $region33: #{tpu_custom_call.1} parent=31 // pred_check
          %p226 = pneg %p39
        $region34: #{tpu_custom_call.1} parent=31 // pred_check_branch
          %228 = sbr.rel (%p226) target = $region36
        $region35: #{tpu_custom_call.1} parent=31 // pred_region
          %s229 = sand.u32 %s29, 1
          %s230 = scalar_lea.sflag [#allocation5], %s229
          %s231 = sand.u32 %s29, 1
          %s232 = smul.addr %s231, 128
          %s233 = scalar_lea.vmem [#allocation4], %s232
          %235 = vsyncadd %s230, 0
          %s236 = smul.addr %s19, 16
          %s237 = smul.addr %s236, 8
          %s238 = scalar_lea.hbm %s0, %s237
          %s239 = sshll.u32 %s238, 4
          %s240 = int_to_ptr.hbm [resolvable:$true] %s239
          %s241 = sshll.u32 %s233, 4
          %s242 = int_to_ptr.vmem [resolvable:$true] %s241
          %247 = dma.hbm_to_vmem [thread:$0]  %s240, 2048, %s242, %s230, 256, 256, 16
        $region36: #{tpu_custom_call.1} parent=31 // pred_fallthru
          _
      $region32: #{tpu_custom_call.1} parent=5 // pred_fallthru
        _
      %p248 = scmp.le.s32.totalorder 1, %s19
      %p249 = scmp.lt.s32.totalorder %s19, 3
      %p250 = pnand %p248, %p249
      %p251 = pneg %p250
      // Predicated region
      $region37: #{tpu_custom_call.1} parent=5 // pred_check
        _
      $region38: #{tpu_custom_call.1} parent=5 // pred_check_branch
        %253 = sbr.rel (%p250) target = $region40
      $region39: #{tpu_custom_call.1} parent=5 // pred_region
        %s254 = ssub.s32 %s19, 1
        %s255 = sand.u32 %s32, 1
        %s256 = scalar_lea.sflag [#allocation5], %s255
        %s257 = sand.u32 %s32, 1
        %s258 = smul.addr %s257, 128
        %s259 = scalar_lea.vmem [#allocation4], %s258
        // Predicated region
        $region41: #{tpu_custom_call.1} parent=39 // pred_check
          %p260 = pneg %p45
        $region42: #{tpu_custom_call.1} parent=39 // pred_check_branch
          %262 = sbr.rel (%p260) target = $region44
        $region43: #{tpu_custom_call.1} parent=39 // pred_region
          %264 = dma.done %s256, 2048
        $region44: #{tpu_custom_call.1} parent=39 // pred_fallthru
          _
        // Predicated region
        $region45: #{tpu_custom_call.1} parent=39 // pred_check
          %p265 = pneg %p66
        $region46: #{tpu_custom_call.1} parent=39 // pred_check_branch
          %267 = sbr.rel (%p265) target = $region48
        $region47: #{tpu_custom_call.1} parent=39 // pred_region
          %269 = dma.done [#allocation8], 36864
        $region48: #{tpu_custom_call.1} parent=39 // pred_fallthru
          _
        // Predicated region
        $region49: #{tpu_custom_call.1} parent=39 // pred_check
          %p270 = pneg %p87
        $region50: #{tpu_custom_call.1} parent=39 // pred_check_branch
          %272 = sbr.rel (%p270) target = $region52
        $region51: #{tpu_custom_call.1} parent=39 // pred_region
          %274 = dma.done [#allocation8], 32
        $region52: #{tpu_custom_call.1} parent=39 // pred_fallthru
          _
        // Predicated region
        $region53: #{tpu_custom_call.1} parent=39 // pred_check
          %p275 = pneg %p108
        $region54: #{tpu_custom_call.1} parent=39 // pred_check_branch
          %277 = sbr.rel (%p275) target = $region56
        $region55: #{tpu_custom_call.1} parent=39 // pred_region
          %279 = dma.done [#allocation11], 36864
        $region56: #{tpu_custom_call.1} parent=39 // pred_fallthru
          _
        // Predicated region
        $region57: #{tpu_custom_call.1} parent=39 // pred_check
          %p280 = pneg %p129
        $region58: #{tpu_custom_call.1} parent=39 // pred_check_branch
          %282 = sbr.rel (%p280) target = $region60
        $region59: #{tpu_custom_call.1} parent=39 // pred_region
          %284 = dma.done [#allocation11], 32
        $region60: #{tpu_custom_call.1} parent=39 // pred_fallthru
          _
        %s285 = sand.u32 %s32, 1
        %s286 = scalar_lea.sflag [#allocation5], %s285
        %s287 = sand.u32 %s32, 1
        %s288 = smul.addr %s287, 128
        %s289 = scalar_lea.vmem [#allocation4], %s288
        %p290 = pneg %p45
        %p291 = pneg %p42
        %p292 = pneg %p66
        %p293 = pneg %p63
        %p294 = pneg %p87
        %p295 = pneg %p84
        %p296 = pneg %p108
        %p297 = pneg %p105
        %p298 = pneg %p129
        %p299 = pneg %p126
        %p300 = pneg %p155
        %p301 = pneg %p152
        %s302 = sand.u32 %s142, 1
        %s303 = scalar_lea.sflag [#allocation6], %s302
        %s304 = sand.u32 %s142, 1
        %s305 = smul.addr %s304, 128
        %s306 = scalar_lea.vmem [#allocation13], %s305
        %308 = vst [vmem:[#allocation2] sm:$0xff] 0
        %309 = vst [vmem:[#allocation2 + $0x8] sm:$0x11] 0
        %310 = vst [vmem:[#allocation2 + $0x10] sm:$0xff] 0
        %311 = vst [vmem:[#allocation2 + $0x18] sm:$0x11] 0
        %312 = vst [vmem:[#allocation2 + $0x20] sm:$0xff] 0
        %313 = vst [vmem:[#allocation2 + $0x28] sm:$0x11] 0
        %314 = vst [vmem:[#allocation2 + $0x30] sm:$0xff] 0
        %315 = vst [vmem:[#allocation2 + $0x38] sm:$0x11] 0
        %316 = vst [vmem:[#allocation2 + $0x40] sm:$0xff] 0
        %317 = vst [vmem:[#allocation2 + $0x48] sm:$0x11] 0
        %318 = vst [vmem:[#allocation2 + $0x50] sm:$0xff] 0
        %319 = vst [vmem:[#allocation2 + $0x58] sm:$0x11] 0
        %320 = vst [vmem:[#allocation2 + $0x60] sm:$0xff] 0
        %321 = vst [vmem:[#allocation2 + $0x68] sm:$0x11] 0
        %322 = vst [vmem:[#allocation2 + $0x70] sm:$0xff] 0
        %323 = vst [vmem:[#allocation2 + $0x78] sm:$0x11] 0
        %324 = vst [vmem:[#allocation2 + $0x80] sm:$0xff] 0
        %325 = vst [vmem:[#allocation2 + $0x88] sm:$0x11] 0
        %326 = vst [vmem:[#allocation2 + $0x90] sm:$0xff] 0
        %327 = vst [vmem:[#allocation2 + $0x98] sm:$0x11] 0
        %328 = vst [vmem:[#allocation3] sm:$0xff] 0
        %329 = vst [vmem:[#allocation3 + $0x8] sm:$0x11] 0
        %330 = vst [vmem:[#allocation3 + $0x10] sm:$0xff] 0
        %331 = vst [vmem:[#allocation3 + $0x18] sm:$0x11] 0
        %332 = vst [vmem:[#allocation3 + $0x20] sm:$0xff] 0
        %333 = vst [vmem:[#allocation3 + $0x28] sm:$0x11] 0
        %334 = vst [vmem:[#allocation3 + $0x30] sm:$0xff] 0
        %335 = vst [vmem:[#allocation3 + $0x38] sm:$0x11] 0
        %336 = vst [vmem:[#allocation3 + $0x40] sm:$0xff] 0
        %337 = vst [vmem:[#allocation3 + $0x48] sm:$0x11] 0
        %338 = vst [vmem:[#allocation3 + $0x50] sm:$0xff] 0
        %339 = vst [vmem:[#allocation3 + $0x58] sm:$0x11] 0
        %340 = vst [vmem:[#allocation3 + $0x60] sm:$0xff] 0
        %341 = vst [vmem:[#allocation3 + $0x68] sm:$0x11] 0
        %342 = vst [vmem:[#allocation3 + $0x70] sm:$0xff] 0
        %343 = vst [vmem:[#allocation3 + $0x78] sm:$0x11] 0
        %344 = vst [vmem:[#allocation3 + $0x80] sm:$0xff] 0
        %345 = vst [vmem:[#allocation3 + $0x88] sm:$0x11] 0
        %346 = vst [vmem:[#allocation3 + $0x90] sm:$0xff] 0
        %347 = vst [vmem:[#allocation3 + $0x98] sm:$0x11] 0
        %v348 = vld [vmem:[%s259] sm:$0xff]
        %v349 = vld [vmem:[%s259 + $0x8] sm:$0xff]
        %v350 = vld [vmem:[%s259 + $0x10] sm:$0xff]
        %v351 = vld [vmem:[%s259 + $0x18] sm:$0xff]
        %v352 = vld [vmem:[%s259 + $0x20] sm:$0xff]
        %v353 = vld [vmem:[%s259 + $0x28] sm:$0xff]
        %v354 = vld [vmem:[%s259 + $0x30] sm:$0xff]
        %v355 = vld [vmem:[%s259 + $0x38] sm:$0xff]
        %v356 = vld [vmem:[%s259 + $0x40] sm:$0xff]
        %v357 = vld [vmem:[%s259 + $0x48] sm:$0xff]
        %v358 = vld [vmem:[%s259 + $0x50] sm:$0xff]
        %v359 = vld [vmem:[%s259 + $0x58] sm:$0xff]
        %v360 = vld [vmem:[%s259 + $0x60] sm:$0xff]
        %v361 = vld [vmem:[%s259 + $0x68] sm:$0xff]
        %v362 = vld [vmem:[%s259 + $0x70] sm:$0xff]
        %v363 = vld [vmem:[%s259 + $0x78] sm:$0xff]
        %v364 = vpack.c.bf16 %v349, %v348
        %v365 = vpack.c.bf16 %v351, %v350
        %v366 = vpack.c.bf16 %v353, %v352
        %v367 = vpack.c.bf16 %v355, %v354
        %v368 = vpack.c.bf16 %v357, %v356
        %v369 = vpack.c.bf16 %v359, %v358
        %v370 = vpack.c.bf16 %v361, %v360
        %v371 = vpack.c.bf16 %v363, %v362
        %v373 = vshrl.u32 %v364, 16
        %v375 = vrot.slane %v373, 7
        %v376 = vshll.u32 %v364, 16
        %v378 = vor.u32 %v375, %v376
        %v379 = vrot.slane %v375, 4
        %v381 = vshrl.u32 %v365, 16
        %v383 = vrot.slane %v381, 7
        %v384 = vshll.u32 %v365, 16
        %v386 = vor.u32 %v383, %v384
        %v387 = vrot.slane %v383, 4
        %v389 = vshrl.u32 %v366, 16
        %v391 = vrot.slane %v389, 7
        %v392 = vshll.u32 %v366, 16
        %v394 = vor.u32 %v391, %v392
        %v395 = vrot.slane %v391, 4
        %v397 = vshrl.u32 %v367, 16
        %v399 = vrot.slane %v397, 7
        %v400 = vshll.u32 %v367, 16
        %v402 = vor.u32 %v399, %v400
        %v403 = vrot.slane %v399, 4
        %v405 = vshrl.u32 %v368, 16
        %v407 = vrot.slane %v405, 7
        %v408 = vshll.u32 %v368, 16
        %v410 = vor.u32 %v407, %v408
        %v411 = vrot.slane %v407, 4
        %v413 = vshrl.u32 %v369, 16
        %v415 = vrot.slane %v413, 7
        %v416 = vshll.u32 %v369, 16
        %v418 = vor.u32 %v415, %v416
        %v419 = vrot.slane %v415, 4
        %v421 = vshrl.u32 %v370, 16
        %v423 = vrot.slane %v421, 7
        %v424 = vshll.u32 %v370, 16
        %v426 = vor.u32 %v423, %v424
        %v427 = vrot.slane %v423, 4
        %v429 = vshrl.u32 %v371, 16
        %v431 = vrot.slane %v429, 7
        %v432 = vshll.u32 %v371, 16
        %v434 = vor.u32 %v431, %v432
        %v435 = vrot.slane %v431, 4
        %s452 = scalar_lea.vmem [#allocation2], 16
        %vm453 = vcmask 1043456
        %vm454 = vsmask.f32 7938
        %vm455 = vmand %vm453, %vm454
        %vm456 = vcmask 1047556
        %vm457 = vsmask.f32 7954
        %vm458 = vmand %vm456, %vm457
        %vm459 = vmor %vm458, %vm455
        %v460 = vld [vmem:[%s452] sm:$0xff]
        %v461 = vsel %vm459, %v378, %v460
        %462 = vst [vmem:[%s452] sm:$0xff] %v461
        %vm463 = vcmask 1040384
        %vm464 = vsmask.f32 256
        %vm465 = vmand %vm463, %vm464
        %vm466 = vcmask 1044484
        %vm467 = vsmask.f32 4352
        %vm468 = vmand %vm466, %vm467
        %vm469 = vmor %vm468, %vm465
        %v470 = vld [vmem:[%s452 + $0x8] sm:$0x11]
        %v471 = vsel %vm469, %v379, %v470
        %472 = vst [vmem:[%s452 + $0x8] sm:$0x11] %v471
        %v473 = vld [vmem:[%s452 + $0x10] sm:$0xff]
        %v474 = vsel %vm459, %v386, %v473
        %475 = vst [vmem:[%s452 + $0x10] sm:$0xff] %v474
        %v476 = vld [vmem:[%s452 + $0x18] sm:$0x11]
        %v477 = vsel %vm469, %v387, %v476
        %478 = vst [vmem:[%s452 + $0x18] sm:$0x11] %v477
        %v479 = vld [vmem:[%s452 + $0x20] sm:$0xff]
        %v480 = vsel %vm459, %v394, %v479
        %481 = vst [vmem:[%s452 + $0x20] sm:$0xff] %v480
        %v482 = vld [vmem:[%s452 + $0x28] sm:$0x11]
        %v483 = vsel %vm469, %v395, %v482
        %484 = vst [vmem:[%s452 + $0x28] sm:$0x11] %v483
        %v485 = vld [vmem:[%s452 + $0x30] sm:$0xff]
        %v486 = vsel %vm459, %v402, %v485
        %487 = vst [vmem:[%s452 + $0x30] sm:$0xff] %v486
        %v488 = vld [vmem:[%s452 + $0x38] sm:$0x11]
        %v489 = vsel %vm469, %v403, %v488
        %490 = vst [vmem:[%s452 + $0x38] sm:$0x11] %v489
        %v491 = vld [vmem:[%s452 + $0x40] sm:$0xff]
        %v492 = vsel %vm459, %v410, %v491
        %493 = vst [vmem:[%s452 + $0x40] sm:$0xff] %v492
        %v494 = vld [vmem:[%s452 + $0x48] sm:$0x11]
        %v495 = vsel %vm469, %v411, %v494
        %496 = vst [vmem:[%s452 + $0x48] sm:$0x11] %v495
        %v497 = vld [vmem:[%s452 + $0x50] sm:$0xff]
        %v498 = vsel %vm459, %v418, %v497
        %499 = vst [vmem:[%s452 + $0x50] sm:$0xff] %v498
        %v500 = vld [vmem:[%s452 + $0x58] sm:$0x11]
        %v501 = vsel %vm469, %v419, %v500
        %502 = vst [vmem:[%s452 + $0x58] sm:$0x11] %v501
        %v503 = vld [vmem:[%s452 + $0x60] sm:$0xff]
        %v504 = vsel %vm459, %v426, %v503
        %505 = vst [vmem:[%s452 + $0x60] sm:$0xff] %v504
        %v506 = vld [vmem:[%s452 + $0x68] sm:$0x11]
        %v507 = vsel %vm469, %v427, %v506
        %508 = vst [vmem:[%s452 + $0x68] sm:$0x11] %v507
        %v509 = vld [vmem:[%s452 + $0x70] sm:$0xff]
        %v510 = vsel %vm459, %v434, %v509
        %511 = vst [vmem:[%s452 + $0x70] sm:$0xff] %v510
        %v512 = vld [vmem:[%s452 + $0x78] sm:$0x11]
        %v513 = vsel %vm469, %v435, %v512
        %514 = vst [vmem:[%s452 + $0x78] sm:$0x11] %v513
        %v515 = vld [vmem:[#allocation2] sm:$0xff]
        %v516 = vld [vmem:[#allocation2 + $0x10] sm:$0xff]
        %v517 = vld [vmem:[#allocation2 + $0x20] sm:$0xff]
        %v518 = vld [vmem:[#allocation2 + $0x30] sm:$0xff]
        %v519 = vld [vmem:[#allocation2 + $0x40] sm:$0xff]
        %v520 = vld [vmem:[#allocation2 + $0x50] sm:$0xff]
        %v521 = vld [vmem:[#allocation2 + $0x60] sm:$0xff]
        %v522 = vld [vmem:[#allocation2 + $0x70] sm:$0xff]
        %v523 = vld [vmem:[#allocation7] sm:$0xff]
        %v524 = vld [vmem:[#allocation7 + $0x8] sm:$0xff]
        %v525 = vld [vmem:[#allocation7 + $0x10] sm:$0xff]
        %v526 = vld [vmem:[#allocation7 + $0x18] sm:$0xff]
        %v527 = vld [vmem:[#allocation7 + $0x20] sm:$0xff]
        %v528 = vld [vmem:[#allocation7 + $0x28] sm:$0xff]
        %v529 = vld [vmem:[#allocation7 + $0x30] sm:$0xff]
        %v530 = vld [vmem:[#allocation7 + $0x38] sm:$0xff]
        %v531 = vld [vmem:[#allocation7 + $0x40] sm:$0xff]
        %v532 = vld [vmem:[#allocation7 + $0x48] sm:$0xff]
        %v533 = vld [vmem:[#allocation7 + $0x50] sm:$0xff]
        %v534 = vld [vmem:[#allocation7 + $0x58] sm:$0xff]
        %v535 = vld [vmem:[#allocation7 + $0x60] sm:$0xff]
        %v536 = vld [vmem:[#allocation7 + $0x68] sm:$0xff]
        %v537 = vld [vmem:[#allocation7 + $0x70] sm:$0xff]
        %v538 = vld [vmem:[#allocation7 + $0x78] sm:$0xff]
        %v539 = vld [vmem:[#allocation7 + $0x80] sm:$0xff]
        %v540 = vld [vmem:[#allocation7 + $0x88] sm:$0xff]
        %v541 = vld [vmem:[#allocation7 + $0x90] sm:$0xff]
        %v542 = vld [vmem:[#allocation7 + $0x98] sm:$0xff]
        %v543 = vld [vmem:[#allocation7 + $0xa0] sm:$0xff]
        %v544 = vld [vmem:[#allocation7 + $0xa8] sm:$0xff]
        %v545 = vld [vmem:[#allocation7 + $0xb0] sm:$0xff]
        %v546 = vld [vmem:[#allocation7 + $0xb8] sm:$0xff]
        %v547 = vld [vmem:[#allocation7 + $0xc0] sm:$0xff]
        %v548 = vld [vmem:[#allocation7 + $0xc8] sm:$0xff]
        %v549 = vld [vmem:[#allocation7 + $0xd0] sm:$0xff]
        %v550 = vld [vmem:[#allocation7 + $0xd8] sm:$0xff]
        %v551 = vld [vmem:[#allocation7 + $0xe0] sm:$0xff]
        %v552 = vld [vmem:[#allocation7 + $0xe8] sm:$0xff]
        %v553 = vld [vmem:[#allocation7 + $0xf0] sm:$0xff]
        %v554 = vld [vmem:[#allocation7 + $0xf8] sm:$0xff]
        %v555 = vld [vmem:[#allocation2 + $0x8] sm:$0x11]
        %v556 = vld [vmem:[#allocation2 + $0x18] sm:$0x11]
        %v557 = vld [vmem:[#allocation2 + $0x28] sm:$0x11]
        %v558 = vld [vmem:[#allocation2 + $0x38] sm:$0x11]
        %v559 = vld [vmem:[#allocation2 + $0x48] sm:$0x11]
        %v560 = vld [vmem:[#allocation2 + $0x58] sm:$0x11]
        %v561 = vld [vmem:[#allocation2 + $0x68] sm:$0x11]
        %v562 = vld [vmem:[#allocation2 + $0x78] sm:$0x11]
        %vm563 = vsmask.f32 3328
        %vm564 = vsmask.f32 7440
        %vm565 = vmor %vm563, %vm564
        %v567 = vshrl.u32 %v515, 16
        %v569 = vrot.slane %v567, 4
        %v570 = vshll.u32 %v515, 16
        %v572 = vrot.slane %v570, 5
        %v573 = vor.u32 %v569, %v572
        %v574 = vrot.slane %v573, 4
        %v576 = vshll.u32 %v555, 16
        %v578 = vrot.slane %v576, 5
        %v579 = vsel %vm565, %v574, %v578
        %v581 = vshrl.u32 %v516, 16
        %v583 = vrot.slane %v581, 4
        %v584 = vshll.u32 %v516, 16
        %v586 = vrot.slane %v584, 5
        %v587 = vor.u32 %v583, %v586
        %v588 = vrot.slane %v587, 4
        %v590 = vshll.u32 %v556, 16
        %v592 = vrot.slane %v590, 5
        %v593 = vsel %vm565, %v588, %v592
        %v595 = vshrl.u32 %v517, 16
        %v597 = vrot.slane %v595, 4
        %v598 = vshll.u32 %v517, 16
        %v600 = vrot.slane %v598, 5
        %v601 = vor.u32 %v597, %v600
        %v602 = vrot.slane %v601, 4
        %v604 = vshll.u32 %v557, 16
        %v606 = vrot.slane %v604, 5
        %v607 = vsel %vm565, %v602, %v606
        %v609 = vshrl.u32 %v518, 16
        %v611 = vrot.slane %v609, 4
        %v612 = vshll.u32 %v518, 16
        %v614 = vrot.slane %v612, 5
        %v615 = vor.u32 %v611, %v614
        %v616 = vrot.slane %v615, 4
        %v618 = vshll.u32 %v558, 16
        %v620 = vrot.slane %v618, 5
        %v621 = vsel %vm565, %v616, %v620
        %v623 = vshrl.u32 %v519, 16
        %v625 = vrot.slane %v623, 4
        %v626 = vshll.u32 %v519, 16
        %v628 = vrot.slane %v626, 5
        %v629 = vor.u32 %v625, %v628
        %v630 = vrot.slane %v629, 4
        %v632 = vshll.u32 %v559, 16
        %v634 = vrot.slane %v632, 5
        %v635 = vsel %vm565, %v630, %v634
        %v637 = vshrl.u32 %v520, 16
        %v639 = vrot.slane %v637, 4
        %v640 = vshll.u32 %v520, 16
        %v642 = vrot.slane %v640, 5
        %v643 = vor.u32 %v639, %v642
        %v644 = vrot.slane %v643, 4
        %v646 = vshll.u32 %v560, 16
        %v648 = vrot.slane %v646, 5
        %v649 = vsel %vm565, %v644, %v648
        %v651 = vshrl.u32 %v521, 16
        %v653 = vrot.slane %v651, 4
        %v654 = vshll.u32 %v521, 16
        %v656 = vrot.slane %v654, 5
        %v657 = vor.u32 %v653, %v656
        %v658 = vrot.slane %v657, 4
        %v660 = vshll.u32 %v561, 16
        %v662 = vrot.slane %v660, 5
        %v663 = vsel %vm565, %v658, %v662
        %v665 = vshrl.u32 %v522, 16
        %v667 = vrot.slane %v665, 4
        %v668 = vshll.u32 %v522, 16
        %v670 = vrot.slane %v668, 5
        %v671 = vor.u32 %v667, %v670
        %v672 = vrot.slane %v671, 4
        %v674 = vshll.u32 %v562, 16
        %v676 = vrot.slane %v674, 5
        %v677 = vsel %vm565, %v672, %v676
        %s678 = scalar_lea.vmem [#allocation7], 256
        %v679 = vld [vmem:[%s678] sm:$0xff]
        %v680 = vld [vmem:[%s678 + $0x8] sm:$0xff]
        %v681 = vld [vmem:[%s678 + $0x10] sm:$0xff]
        %v682 = vld [vmem:[%s678 + $0x18] sm:$0xff]
        %v683 = vld [vmem:[%s678 + $0x20] sm:$0xff]
        %v684 = vld [vmem:[%s678 + $0x28] sm:$0xff]
        %v685 = vld [vmem:[%s678 + $0x30] sm:$0xff]
        %v686 = vld [vmem:[%s678 + $0x38] sm:$0xff]
        %v687 = vld [vmem:[%s678 + $0x40] sm:$0xff]
        %v688 = vld [vmem:[%s678 + $0x48] sm:$0xff]
        %v689 = vld [vmem:[%s678 + $0x50] sm:$0xff]
        %v690 = vld [vmem:[%s678 + $0x58] sm:$0xff]
        %v691 = vld [vmem:[%s678 + $0x60] sm:$0xff]
        %v692 = vld [vmem:[%s678 + $0x68] sm:$0xff]
        %v693 = vld [vmem:[%s678 + $0x70] sm:$0xff]
        %v694 = vld [vmem:[%s678 + $0x78] sm:$0xff]
        %v695 = vld [vmem:[%s678 + $0x80] sm:$0xff]
        %v696 = vld [vmem:[%s678 + $0x88] sm:$0xff]
        %v697 = vld [vmem:[%s678 + $0x90] sm:$0xff]
        %v698 = vld [vmem:[%s678 + $0x98] sm:$0xff]
        %v699 = vld [vmem:[%s678 + $0xa0] sm:$0xff]
        %v700 = vld [vmem:[%s678 + $0xa8] sm:$0xff]
        %v701 = vld [vmem:[%s678 + $0xb0] sm:$0xff]
        %v702 = vld [vmem:[%s678 + $0xb8] sm:$0xff]
        %v703 = vld [vmem:[%s678 + $0xc0] sm:$0xff]
        %v704 = vld [vmem:[%s678 + $0xc8] sm:$0xff]
        %v705 = vld [vmem:[%s678 + $0xd0] sm:$0xff]
        %v706 = vld [vmem:[%s678 + $0xd8] sm:$0xff]
        %v707 = vld [vmem:[%s678 + $0xe0] sm:$0xff]
        %v708 = vld [vmem:[%s678 + $0xe8] sm:$0xff]
        %v709 = vld [vmem:[%s678 + $0xf0] sm:$0xff]
        %v710 = vld [vmem:[%s678 + $0xf8] sm:$0xff]
        %v711 = vunpack.c.l.b16 %v579
        %v712 = vunpack.c.h.b16 %v579
        %v713 = vunpack.c.l.b16 %v593
        %v714 = vunpack.c.h.b16 %v593
        %v715 = vunpack.c.l.b16 %v607
        %v716 = vunpack.c.h.b16 %v607
        %v717 = vunpack.c.l.b16 %v621
        %v718 = vunpack.c.h.b16 %v621
        %v719 = vunpack.c.l.b16 %v635
        %v720 = vunpack.c.h.b16 %v635
        %v721 = vunpack.c.l.b16 %v649
        %v722 = vunpack.c.h.b16 %v649
        %v723 = vunpack.c.l.b16 %v663
        %v724 = vunpack.c.h.b16 %v663
        %v725 = vunpack.c.l.b16 %v677
        %v726 = vunpack.c.h.b16 %v677
        %v727 = vpack.c.b16 %v713, %v711
        %v728 = vpack.c.b16 %v714, %v712
        %v729 = vpack.c.b16 %v717, %v715
        %v730 = vpack.c.b16 %v718, %v716
        %v731 = vpack.c.b16 %v721, %v719
        %v732 = vpack.c.b16 %v722, %v720
        %v733 = vpack.c.b16 %v725, %v723
        %v734 = vpack.c.b16 %v726, %v724
        %v775 = vunpack.c.l.b16 %v679
        %v776 = vunpack.c.h.b16 %v679
        %v777 = vunpack.c.l.b16 %v680
        %v778 = vunpack.c.h.b16 %v680
        %v779 = vunpack.c.l.b16 %v681
        %v780 = vunpack.c.h.b16 %v681
        %v781 = vunpack.c.l.b16 %v682
        %v782 = vunpack.c.h.b16 %v682
        %v783 = vunpack.c.l.b16 %v683
        %v784 = vunpack.c.h.b16 %v683
        %v785 = vunpack.c.l.b16 %v684
        %v786 = vunpack.c.h.b16 %v684
        %v787 = vunpack.c.l.b16 %v685
        %v788 = vunpack.c.h.b16 %v685
        %v789 = vunpack.c.l.b16 %v686
        %v790 = vunpack.c.h.b16 %v686
        %v791 = vunpack.c.l.b16 %v687
        %v792 = vunpack.c.h.b16 %v687
        %v793 = vunpack.c.l.b16 %v688
        %v794 = vunpack.c.h.b16 %v688
        %v795 = vunpack.c.l.b16 %v689
        %v796 = vunpack.c.h.b16 %v689
        %v797 = vunpack.c.l.b16 %v690
        %v798 = vunpack.c.h.b16 %v690
        %v799 = vunpack.c.l.b16 %v691
        %v800 = vunpack.c.h.b16 %v691
        %v801 = vunpack.c.l.b16 %v692
        %v802 = vunpack.c.h.b16 %v692
        %v803 = vunpack.c.l.b16 %v693
        %v804 = vunpack.c.h.b16 %v693
        %v805 = vunpack.c.l.b16 %v694
        %v806 = vunpack.c.h.b16 %v694
        %v807 = vunpack.c.l.b16 %v695
        %v808 = vunpack.c.h.b16 %v695
        %v809 = vunpack.c.l.b16 %v696
        %v810 = vunpack.c.h.b16 %v696
        %v811 = vunpack.c.l.b16 %v697
        %v812 = vunpack.c.h.b16 %v697
        %v813 = vunpack.c.l.b16 %v698
        %v814 = vunpack.c.h.b16 %v698
        %v815 = vunpack.c.l.b16 %v699
        %v816 = vunpack.c.h.b16 %v699
        %v817 = vunpack.c.l.b16 %v700
        %v818 = vunpack.c.h.b16 %v700
        %v819 = vunpack.c.l.b16 %v701
        %v820 = vunpack.c.h.b16 %v701
        %v821 = vunpack.c.l.b16 %v702
        %v822 = vunpack.c.h.b16 %v702
        %v823 = vunpack.c.l.b16 %v703
        %v824 = vunpack.c.h.b16 %v703
        %v825 = vunpack.c.l.b16 %v704
        %v826 = vunpack.c.h.b16 %v704
        %v827 = vunpack.c.l.b16 %v705
        %v828 = vunpack.c.h.b16 %v705
        %v829 = vunpack.c.l.b16 %v706
        %v830 = vunpack.c.h.b16 %v706
        %v831 = vunpack.c.l.b16 %v707
        %v832 = vunpack.c.h.b16 %v707
        %v833 = vunpack.c.l.b16 %v708
        %v834 = vunpack.c.h.b16 %v708
        %v835 = vunpack.c.l.b16 %v709
        %v836 = vunpack.c.h.b16 %v709
        %v837 = vunpack.c.l.b16 %v710
        %v838 = vunpack.c.h.b16 %v710
        %v839 = vpack.c.b16 %v777, %v775
        %v840 = vpack.c.b16 %v778, %v776
        %v841 = vpack.c.b16 %v781, %v779
        %v842 = vpack.c.b16 %v782, %v780
        %v843 = vpack.c.b16 %v785, %v783
        %v844 = vpack.c.b16 %v786, %v784
        %v845 = vpack.c.b16 %v789, %v787
        %v846 = vpack.c.b16 %v790, %v788
        %v847 = vpack.c.b16 %v793, %v791
        %v848 = vpack.c.b16 %v794, %v792
        %v849 = vpack.c.b16 %v797, %v795
        %v850 = vpack.c.b16 %v798, %v796
        %v851 = vpack.c.b16 %v801, %v799
        %v852 = vpack.c.b16 %v802, %v800
        %v853 = vpack.c.b16 %v805, %v803
        %v854 = vpack.c.b16 %v806, %v804
        %v855 = vpack.c.b16 %v809, %v807
        %v856 = vpack.c.b16 %v810, %v808
        %v857 = vpack.c.b16 %v813, %v811
        %v858 = vpack.c.b16 %v814, %v812
        %v859 = vpack.c.b16 %v817, %v815
        %v860 = vpack.c.b16 %v818, %v816
        %v861 = vpack.c.b16 %v821, %v819
        %v862 = vpack.c.b16 %v822, %v820
        %v863 = vpack.c.b16 %v825, %v823
        %v864 = vpack.c.b16 %v826, %v824
        %v865 = vpack.c.b16 %v829, %v827
        %v866 = vpack.c.b16 %v830, %v828
        %v867 = vpack.c.b16 %v833, %v831
        %v868 = vpack.c.b16 %v834, %v832
        %v869 = vpack.c.b16 %v837, %v835
        %v870 = vpack.c.b16 %v838, %v836
        %903 = vmatpush.bf16.msra.mxu0 %v853
        %904 = vmatpush.bf16.msra.mxu0 %v851
        %905 = vmatpush.bf16.msra.mxu0 %v849
        %906 = vmatpush.bf16.msra.mxu0 %v847
        %907 = vmatpush.bf16.msra.mxu0 %v845
        %908 = vmatpush.bf16.msra.mxu0 %v843
        %909 = vmatpush.bf16.msra.mxu0 %v841
        %910 = vmatpush.bf16.msra.mxu0 %v839
        %911 = vmatmul.bf16.gmra.mxu0 %v727
        %v912 = vpop.f32.mrf.mxu0
        %v913 = vadd.f32 0.0, %v912
        %v914 = vpop.f32.mrf.mxu0
        %v915 = vadd.f32 0.0, %v914
        %916 = vmatmul.bf16.gmra.mxu0 %v729
        %v917 = vpop.f32.mrf.mxu0
        %v918 = vadd.f32 0.0, %v917
        %v919 = vpop.f32.mrf.mxu0
        %v920 = vadd.f32 0.0, %v919
        %921 = vmatmul.bf16.gmra.mxu0 %v731
        %v922 = vpop.f32.mrf.mxu0
        %v923 = vadd.f32 0.0, %v922
        %v924 = vpop.f32.mrf.mxu0
        %v925 = vadd.f32 0.0, %v924
        %926 = vmatmul.bf16.gmra.mxu0 %v733
        %v927 = vpop.f32.mrf.mxu0
        %v928 = vadd.f32 0.0, %v927
        %v929 = vpop.f32.mrf.mxu0
        %v930 = vadd.f32 0.0, %v929
        %931 = vdwg.mxu0
        %932 = vmatpush.bf16.msra.mxu0 %v869
        %933 = vmatpush.bf16.msra.mxu0 %v867
        %934 = vmatpush.bf16.msra.mxu0 %v865
        %935 = vmatpush.bf16.msra.mxu0 %v863
        %936 = vmatpush.bf16.msra.mxu0 %v861
        %937 = vmatpush.bf16.msra.mxu0 %v859
        %938 = vmatpush.bf16.msra.mxu0 %v857
        %939 = vmatpush.bf16.msra.mxu0 %v855
        %940 = vmatmul.bf16.gmra.mxu0 %v728
        %v941 = vpop.f32.mrf.mxu0
        %v942 = vadd.f32 %v913, %v941
        %v943 = vpop.f32.mrf.mxu0
        %v944 = vadd.f32 %v915, %v943
        %945 = vmatmul.bf16.gmra.mxu0 %v730
        %v946 = vpop.f32.mrf.mxu0
        %v947 = vadd.f32 %v918, %v946
        %v948 = vpop.f32.mrf.mxu0
        %v949 = vadd.f32 %v920, %v948
        %950 = vmatmul.bf16.gmra.mxu0 %v732
        %v951 = vpop.f32.mrf.mxu0
        %v952 = vadd.f32 %v923, %v951
        %v953 = vpop.f32.mrf.mxu0
        %v954 = vadd.f32 %v925, %v953
        %955 = vmatmul.bf16.gmra.mxu0 %v734
        %v956 = vpop.f32.mrf.mxu0
        %v957 = vadd.f32 %v928, %v956
        %v958 = vpop.f32.mrf.mxu0
        %v959 = vadd.f32 %v930, %v958
        %960 = vdwg.mxu0
        %961 = vmatpush.bf16.msra.mxu0 %v854
        %962 = vmatpush.bf16.msra.mxu0 %v852
        %963 = vmatpush.bf16.msra.mxu0 %v850
        %964 = vmatpush.bf16.msra.mxu0 %v848
        %965 = vmatpush.bf16.msra.mxu0 %v846
        %966 = vmatpush.bf16.msra.mxu0 %v844
        %967 = vmatpush.bf16.msra.mxu0 %v842
        %968 = vmatpush.bf16.msra.mxu0 %v840
        %969 = vmatmul.bf16.gmra.mxu0 %v727
        %v970 = vpop.f32.mrf.mxu0
        %v971 = vadd.f32 0.0, %v970
        %v972 = vpop.f32.mrf.mxu0
        %v973 = vadd.f32 0.0, %v972
        %974 = vmatmul.bf16.gmra.mxu0 %v729
        %v975 = vpop.f32.mrf.mxu0
        %v976 = vadd.f32 0.0, %v975
        %v977 = vpop.f32.mrf.mxu0
        %v978 = vadd.f32 0.0, %v977
        %979 = vmatmul.bf16.gmra.mxu0 %v731
        %v980 = vpop.f32.mrf.mxu0
        %v981 = vadd.f32 0.0, %v980
        %v982 = vpop.f32.mrf.mxu0
        %v983 = vadd.f32 0.0, %v982
        %984 = vmatmul.bf16.gmra.mxu0 %v733
        %v985 = vpop.f32.mrf.mxu0
        %v986 = vadd.f32 0.0, %v985
        %v987 = vpop.f32.mrf.mxu0
        %v988 = vadd.f32 0.0, %v987
        %989 = vdwg.mxu0
        %990 = vmatpush.bf16.msra.mxu0 %v870
        %991 = vmatpush.bf16.msra.mxu0 %v868
        %992 = vmatpush.bf16.msra.mxu0 %v866
        %993 = vmatpush.bf16.msra.mxu0 %v864
        %994 = vmatpush.bf16.msra.mxu0 %v862
        %995 = vmatpush.bf16.msra.mxu0 %v860
        %996 = vmatpush.bf16.msra.mxu0 %v858
        %997 = vmatpush.bf16.msra.mxu0 %v856
        %998 = vmatmul.bf16.gmra.mxu0 %v728
        %v999 = vpop.f32.mrf.mxu0
        %v1000 = vadd.f32 %v971, %v999
        %v1001 = vpop.f32.mrf.mxu0
        %v1002 = vadd.f32 %v973, %v1001
        %1003 = vmatmul.bf16.gmra.mxu0 %v730
        %v1004 = vpop.f32.mrf.mxu0
        %v1005 = vadd.f32 %v976, %v1004
        %v1006 = vpop.f32.mrf.mxu0
        %v1007 = vadd.f32 %v978, %v1006
        %1008 = vmatmul.bf16.gmra.mxu0 %v732
        %v1009 = vpop.f32.mrf.mxu0
        %v1010 = vadd.f32 %v981, %v1009
        %v1011 = vpop.f32.mrf.mxu0
        %v1012 = vadd.f32 %v983, %v1011
        %1013 = vmatmul.bf16.gmra.mxu0 %v734
        %v1014 = vpop.f32.mrf.mxu0
        %v1015 = vadd.f32 %v986, %v1014
        %v1016 = vpop.f32.mrf.mxu0
        %v1017 = vadd.f32 %v988, %v1016
        %1018 = vdwg.mxu0
        %v1027 = vunpack.c.l.b16 %v515
        %v1028 = vunpack.c.h.b16 %v515
        %v1029 = vunpack.c.l.b16 %v516
        %v1030 = vunpack.c.h.b16 %v516
        %v1031 = vunpack.c.l.b16 %v517
        %v1032 = vunpack.c.h.b16 %v517
        %v1033 = vunpack.c.l.b16 %v518
        %v1034 = vunpack.c.h.b16 %v518
        %v1035 = vunpack.c.l.b16 %v519
        %v1036 = vunpack.c.h.b16 %v519
        %v1037 = vunpack.c.l.b16 %v520
        %v1038 = vunpack.c.h.b16 %v520
        %v1039 = vunpack.c.l.b16 %v521
        %v1040 = vunpack.c.h.b16 %v521
        %v1041 = vunpack.c.l.b16 %v522
        %v1042 = vunpack.c.h.b16 %v522
        %v1043 = vpack.c.b16 %v1029, %v1027
        %v1044 = vpack.c.b16 %v1030, %v1028
        %v1045 = vpack.c.b16 %v1033, %v1031
        %v1046 = vpack.c.b16 %v1034, %v1032
        %v1047 = vpack.c.b16 %v1037, %v1035
        %v1048 = vpack.c.b16 %v1038, %v1036
        %v1049 = vpack.c.b16 %v1041, %v1039
        %v1050 = vpack.c.b16 %v1042, %v1040
        %v1091 = vunpack.c.l.b16 %v523
        %v1092 = vunpack.c.h.b16 %v523
        %v1093 = vunpack.c.l.b16 %v524
        %v1094 = vunpack.c.h.b16 %v524
        %v1095 = vunpack.c.l.b16 %v525
        %v1096 = vunpack.c.h.b16 %v525
        %v1097 = vunpack.c.l.b16 %v526
        %v1098 = vunpack.c.h.b16 %v526
        %v1099 = vunpack.c.l.b16 %v527
        %v1100 = vunpack.c.h.b16 %v527
        %v1101 = vunpack.c.l.b16 %v528
        %v1102 = vunpack.c.h.b16 %v528
        %v1103 = vunpack.c.l.b16 %v529
        %v1104 = vunpack.c.h.b16 %v529
        %v1105 = vunpack.c.l.b16 %v530
        %v1106 = vunpack.c.h.b16 %v530
        %v1107 = vunpack.c.l.b16 %v531
        %v1108 = vunpack.c.h.b16 %v531
        %v1109 = vunpack.c.l.b16 %v532
        %v1110 = vunpack.c.h.b16 %v532
        %v1111 = vunpack.c.l.b16 %v533
        %v1112 = vunpack.c.h.b16 %v533
        %v1113 = vunpack.c.l.b16 %v534
        %v1114 = vunpack.c.h.b16 %v534
        %v1115 = vunpack.c.l.b16 %v535
        %v1116 = vunpack.c.h.b16 %v535
        %v1117 = vunpack.c.l.b16 %v536
        %v1118 = vunpack.c.h.b16 %v536
        %v1119 = vunpack.c.l.b16 %v537
        %v1120 = vunpack.c.h.b16 %v537
        %v1121 = vunpack.c.l.b16 %v538
        %v1122 = vunpack.c.h.b16 %v538
        %v1123 = vunpack.c.l.b16 %v539
        %v1124 = vunpack.c.h.b16 %v539
        %v1125 = vunpack.c.l.b16 %v540
        %v1126 = vunpack.c.h.b16 %v540
        %v1127 = vunpack.c.l.b16 %v541
        %v1128 = vunpack.c.h.b16 %v541
        %v1129 = vunpack.c.l.b16 %v542
        %v1130 = vunpack.c.h.b16 %v542
        %v1131 = vunpack.c.l.b16 %v543
        %v1132 = vunpack.c.h.b16 %v543
        %v1133 = vunpack.c.l.b16 %v544
        %v1134 = vunpack.c.h.b16 %v544
        %v1135 = vunpack.c.l.b16 %v545
        %v1136 = vunpack.c.h.b16 %v545
        %v1137 = vunpack.c.l.b16 %v546
        %v1138 = vunpack.c.h.b16 %v546
        %v1139 = vunpack.c.l.b16 %v547
        %v1140 = vunpack.c.h.b16 %v547
        %v1141 = vunpack.c.l.b16 %v548
        %v1142 = vunpack.c.h.b16 %v548
        %v1143 = vunpack.c.l.b16 %v549
        %v1144 = vunpack.c.h.b16 %v549
        %v1145 = vunpack.c.l.b16 %v550
        %v1146 = vunpack.c.h.b16 %v550
        %v1147 = vunpack.c.l.b16 %v551
        %v1148 = vunpack.c.h.b16 %v551
        %v1149 = vunpack.c.l.b16 %v552
        %v1150 = vunpack.c.h.b16 %v552
        %v1151 = vunpack.c.l.b16 %v553
        %v1152 = vunpack.c.h.b16 %v553
        %v1153 = vunpack.c.l.b16 %v554
        %v1154 = vunpack.c.h.b16 %v554
        %v1155 = vpack.c.b16 %v1093, %v1091
        %v1156 = vpack.c.b16 %v1094, %v1092
        %v1157 = vpack.c.b16 %v1097, %v1095
        %v1158 = vpack.c.b16 %v1098, %v1096
        %v1159 = vpack.c.b16 %v1101, %v1099
        %v1160 = vpack.c.b16 %v1102, %v1100
        %v1161 = vpack.c.b16 %v1105, %v1103
        %v1162 = vpack.c.b16 %v1106, %v1104
        %v1163 = vpack.c.b16 %v1109, %v1107
        %v1164 = vpack.c.b16 %v1110, %v1108
        %v1165 = vpack.c.b16 %v1113, %v1111
        %v1166 = vpack.c.b16 %v1114, %v1112
        %v1167 = vpack.c.b16 %v1117, %v1115
        %v1168 = vpack.c.b16 %v1118, %v1116
        %v1169 = vpack.c.b16 %v1121, %v1119
        %v1170 = vpack.c.b16 %v1122, %v1120
        %v1171 = vpack.c.b16 %v1125, %v1123
        %v1172 = vpack.c.b16 %v1126, %v1124
        %v1173 = vpack.c.b16 %v1129, %v1127
        %v1174 = vpack.c.b16 %v1130, %v1128
        %v1175 = vpack.c.b16 %v1133, %v1131
        %v1176 = vpack.c.b16 %v1134, %v1132
        %v1177 = vpack.c.b16 %v1137, %v1135
        %v1178 = vpack.c.b16 %v1138, %v1136
        %v1179 = vpack.c.b16 %v1141, %v1139
        %v1180 = vpack.c.b16 %v1142, %v1140
        %v1181 = vpack.c.b16 %v1145, %v1143
        %v1182 = vpack.c.b16 %v1146, %v1144
        %v1183 = vpack.c.b16 %v1149, %v1147
        %v1184 = vpack.c.b16 %v1150, %v1148
        %v1185 = vpack.c.b16 %v1153, %v1151
        %v1186 = vpack.c.b16 %v1154, %v1152
        %1219 = vmatpush.bf16.msra.mxu0 %v1169
        %1220 = vmatpush.bf16.msra.mxu0 %v1167
        %1221 = vmatpush.bf16.msra.mxu0 %v1165
        %1222 = vmatpush.bf16.msra.mxu0 %v1163
        %1223 = vmatpush.bf16.msra.mxu0 %v1161
        %1224 = vmatpush.bf16.msra.mxu0 %v1159
        %1225 = vmatpush.bf16.msra.mxu0 %v1157
        %1226 = vmatpush.bf16.msra.mxu0 %v1155
        %1227 = vmatmul.bf16.gmra.mxu0 %v1043
        %v1228 = vpop.f32.mrf.mxu0
        %v1229 = vadd.f32 %v942, %v1228
        %v1230 = vpop.f32.mrf.mxu0
        %v1231 = vadd.f32 %v944, %v1230
        %1232 = vmatmul.bf16.gmra.mxu0 %v1045
        %v1233 = vpop.f32.mrf.mxu0
        %v1234 = vadd.f32 %v947, %v1233
        %v1235 = vpop.f32.mrf.mxu0
        %v1236 = vadd.f32 %v949, %v1235
        %1237 = vmatmul.bf16.gmra.mxu0 %v1047
        %v1238 = vpop.f32.mrf.mxu0
        %v1239 = vadd.f32 %v952, %v1238
        %v1240 = vpop.f32.mrf.mxu0
        %v1241 = vadd.f32 %v954, %v1240
        %1242 = vmatmul.bf16.gmra.mxu0 %v1049
        %v1243 = vpop.f32.mrf.mxu0
        %v1244 = vadd.f32 %v957, %v1243
        %v1245 = vpop.f32.mrf.mxu0
        %v1246 = vadd.f32 %v959, %v1245
        %1247 = vdwg.mxu0
        %1248 = vmatpush.bf16.msra.mxu0 %v1185
        %1249 = vmatpush.bf16.msra.mxu0 %v1183
        %1250 = vmatpush.bf16.msra.mxu0 %v1181
        %1251 = vmatpush.bf16.msra.mxu0 %v1179
        %1252 = vmatpush.bf16.msra.mxu0 %v1177
        %1253 = vmatpush.bf16.msra.mxu0 %v1175
        %1254 = vmatpush.bf16.msra.mxu0 %v1173
        %1255 = vmatpush.bf16.msra.mxu0 %v1171
        %1256 = vmatmul.bf16.gmra.mxu0 %v1044
        %v1257 = vpop.f32.mrf.mxu0
        %v1258 = vadd.f32 %v1229, %v1257
        %v1259 = vpop.f32.mrf.mxu0
        %v1260 = vadd.f32 %v1231, %v1259
        %1261 = vmatmul.bf16.gmra.mxu0 %v1046
        %v1262 = vpop.f32.mrf.mxu0
        %v1263 = vadd.f32 %v1234, %v1262
        %v1264 = vpop.f32.mrf.mxu0
        %v1265 = vadd.f32 %v1236, %v1264
        %1266 = vmatmul.bf16.gmra.mxu0 %v1048
        %v1267 = vpop.f32.mrf.mxu0
        %v1268 = vadd.f32 %v1239, %v1267
        %v1269 = vpop.f32.mrf.mxu0
        %v1270 = vadd.f32 %v1241, %v1269
        %1271 = vmatmul.bf16.gmra.mxu0 %v1050
        %v1272 = vpop.f32.mrf.mxu0
        %v1273 = vadd.f32 %v1244, %v1272
        %v1274 = vpop.f32.mrf.mxu0
        %v1275 = vadd.f32 %v1246, %v1274
        %1276 = vdwg.mxu0
        %1277 = vmatpush.bf16.msra.mxu0 %v1170
        %1278 = vmatpush.bf16.msra.mxu0 %v1168
        %1279 = vmatpush.bf16.msra.mxu0 %v1166
        %1280 = vmatpush.bf16.msra.mxu0 %v1164
        %1281 = vmatpush.bf16.msra.mxu0 %v1162
        %1282 = vmatpush.bf16.msra.mxu0 %v1160
        %1283 = vmatpush.bf16.msra.mxu0 %v1158
        %1284 = vmatpush.bf16.msra.mxu0 %v1156
        %1285 = vmatmul.bf16.gmra.mxu0 %v1043
        %v1286 = vpop.f32.mrf.mxu0
        %v1287 = vadd.f32 %v1000, %v1286
        %v1288 = vpop.f32.mrf.mxu0
        %v1289 = vadd.f32 %v1002, %v1288
        %1290 = vmatmul.bf16.gmra.mxu0 %v1045
        %v1291 = vpop.f32.mrf.mxu0
        %v1292 = vadd.f32 %v1005, %v1291
        %v1293 = vpop.f32.mrf.mxu0
        %v1294 = vadd.f32 %v1007, %v1293
        %1295 = vmatmul.bf16.gmra.mxu0 %v1047
        %v1296 = vpop.f32.mrf.mxu0
        %v1297 = vadd.f32 %v1010, %v1296
        %v1298 = vpop.f32.mrf.mxu0
        %v1299 = vadd.f32 %v1012, %v1298
        %1300 = vmatmul.bf16.gmra.mxu0 %v1049
        %v1301 = vpop.f32.mrf.mxu0
        %v1302 = vadd.f32 %v1015, %v1301
        %v1303 = vpop.f32.mrf.mxu0
        %v1304 = vadd.f32 %v1017, %v1303
        %1305 = vdwg.mxu0
        %1306 = vmatpush.bf16.msra.mxu0 %v1186
        %1307 = vmatpush.bf16.msra.mxu0 %v1184
        %1308 = vmatpush.bf16.msra.mxu0 %v1182
        %1309 = vmatpush.bf16.msra.mxu0 %v1180
        %1310 = vmatpush.bf16.msra.mxu0 %v1178
        %1311 = vmatpush.bf16.msra.mxu0 %v1176
        %1312 = vmatpush.bf16.msra.mxu0 %v1174
        %1313 = vmatpush.bf16.msra.mxu0 %v1172
        %1314 = vmatmul.bf16.gmra.mxu0 %v1044
        %v1315 = vpop.f32.mrf.mxu0
        %v1316 = vadd.f32 %v1287, %v1315
        %v1317 = vpop.f32.mrf.mxu0
        %v1318 = vadd.f32 %v1289, %v1317
        %1319 = vmatmul.bf16.gmra.mxu0 %v1046
        %v1320 = vpop.f32.mrf.mxu0
        %v1321 = vadd.f32 %v1292, %v1320
        %v1322 = vpop.f32.mrf.mxu0
        %v1323 = vadd.f32 %v1294, %v1322
        %1324 = vmatmul.bf16.gmra.mxu0 %v1048
        %v1325 = vpop.f32.mrf.mxu0
        %v1326 = vadd.f32 %v1297, %v1325
        %v1327 = vpop.f32.mrf.mxu0
        %v1328 = vadd.f32 %v1299, %v1327
        %1329 = vmatmul.bf16.gmra.mxu0 %v1050
        %v1330 = vpop.f32.mrf.mxu0
        %v1331 = vadd.f32 %v1302, %v1330
        %v1332 = vpop.f32.mrf.mxu0
        %v1333 = vadd.f32 %v1304, %v1332
        %1334 = vdwg.mxu0
        %v1335 = vld [vmem:[#allocation2] sm:$0xee]
        %v1336 = vld [vmem:[#allocation2 + $0x10] sm:$0xee]
        %v1337 = vld [vmem:[#allocation2 + $0x20] sm:$0xee]
        %v1338 = vld [vmem:[#allocation2 + $0x30] sm:$0xee]
        %v1339 = vld [vmem:[#allocation2 + $0x40] sm:$0xee]
        %v1340 = vld [vmem:[#allocation2 + $0x50] sm:$0xee]
        %v1341 = vld [vmem:[#allocation2 + $0x60] sm:$0xee]
        %v1342 = vld [vmem:[#allocation2 + $0x70] sm:$0xee]
        %vm1359 = vcmask 1042432
        %vm1360 = vcmask 1046532
        %vm1361 = vmor %vm1359, %vm1360
        %v1362 = vrot.slane %v1335, 5
        %v1363 = vrot.slane %v1362, 4
        %v1364 = vrot.slane %v555, 5
        %v1365 = vsel %vm1361, %v1363, %v1364
        %v1366 = vrot.slane %v1336, 5
        %v1367 = vrot.slane %v1366, 4
        %v1368 = vrot.slane %v556, 5
        %v1369 = vsel %vm1361, %v1367, %v1368
        %v1370 = vrot.slane %v1337, 5
        %v1371 = vrot.slane %v1370, 4
        %v1372 = vrot.slane %v557, 5
        %v1373 = vsel %vm1361, %v1371, %v1372
        %v1374 = vrot.slane %v1338, 5
        %v1375 = vrot.slane %v1374, 4
        %v1376 = vrot.slane %v558, 5
        %v1377 = vsel %vm1361, %v1375, %v1376
        %v1378 = vrot.slane %v1339, 5
        %v1379 = vrot.slane %v1378, 4
        %v1380 = vrot.slane %v559, 5
        %v1381 = vsel %vm1361, %v1379, %v1380
        %v1382 = vrot.slane %v1340, 5
        %v1383 = vrot.slane %v1382, 4
        %v1384 = vrot.slane %v560, 5
        %v1385 = vsel %vm1361, %v1383, %v1384
        %v1386 = vrot.slane %v1341, 5
        %v1387 = vrot.slane %v1386, 4
        %v1388 = vrot.slane %v561, 5
        %v1389 = vsel %vm1361, %v1387, %v1388
        %v1390 = vrot.slane %v1342, 5
        %v1391 = vrot.slane %v1390, 4
        %v1392 = vrot.slane %v562, 5
        %v1393 = vsel %vm1361, %v1391, %v1392
        %s1394 = scalar_lea.vmem [#allocation7], 512
        %v1395 = vld [vmem:[%s1394] sm:$0xff]
        %v1396 = vld [vmem:[%s1394 + $0x8] sm:$0xff]
        %v1397 = vld [vmem:[%s1394 + $0x10] sm:$0xff]
        %v1398 = vld [vmem:[%s1394 + $0x18] sm:$0xff]
        %v1399 = vld [vmem:[%s1394 + $0x20] sm:$0xff]
        %v1400 = vld [vmem:[%s1394 + $0x28] sm:$0xff]
        %v1401 = vld [vmem:[%s1394 + $0x30] sm:$0xff]
        %v1402 = vld [vmem:[%s1394 + $0x38] sm:$0xff]
        %v1403 = vld [vmem:[%s1394 + $0x40] sm:$0xff]
        %v1404 = vld [vmem:[%s1394 + $0x48] sm:$0xff]
        %v1405 = vld [vmem:[%s1394 + $0x50] sm:$0xff]
        %v1406 = vld [vmem:[%s1394 + $0x58] sm:$0xff]
        %v1407 = vld [vmem:[%s1394 + $0x60] sm:$0xff]
        %v1408 = vld [vmem:[%s1394 + $0x68] sm:$0xff]
        %v1409 = vld [vmem:[%s1394 + $0x70] sm:$0xff]
        %v1410 = vld [vmem:[%s1394 + $0x78] sm:$0xff]
        %v1411 = vld [vmem:[%s1394 + $0x80] sm:$0xff]
        %v1412 = vld [vmem:[%s1394 + $0x88] sm:$0xff]
        %v1413 = vld [vmem:[%s1394 + $0x90] sm:$0xff]
        %v1414 = vld [vmem:[%s1394 + $0x98] sm:$0xff]
        %v1415 = vld [vmem:[%s1394 + $0xa0] sm:$0xff]
        %v1416 = vld [vmem:[%s1394 + $0xa8] sm:$0xff]
        %v1417 = vld [vmem:[%s1394 + $0xb0] sm:$0xff]
        %v1418 = vld [vmem:[%s1394 + $0xb8] sm:$0xff]
        %v1419 = vld [vmem:[%s1394 + $0xc0] sm:$0xff]
        %v1420 = vld [vmem:[%s1394 + $0xc8] sm:$0xff]
        %v1421 = vld [vmem:[%s1394 + $0xd0] sm:$0xff]
        %v1422 = vld [vmem:[%s1394 + $0xd8] sm:$0xff]
        %v1423 = vld [vmem:[%s1394 + $0xe0] sm:$0xff]
        %v1424 = vld [vmem:[%s1394 + $0xe8] sm:$0xff]
        %v1425 = vld [vmem:[%s1394 + $0xf0] sm:$0xff]
        %v1426 = vld [vmem:[%s1394 + $0xf8] sm:$0xff]
        %v1427 = vunpack.c.l.b16 %v1365
        %v1428 = vunpack.c.h.b16 %v1365
        %v1429 = vunpack.c.l.b16 %v1369
        %v1430 = vunpack.c.h.b16 %v1369
        %v1431 = vunpack.c.l.b16 %v1373
        %v1432 = vunpack.c.h.b16 %v1373
        %v1433 = vunpack.c.l.b16 %v1377
        %v1434 = vunpack.c.h.b16 %v1377
        %v1435 = vunpack.c.l.b16 %v1381
        %v1436 = vunpack.c.h.b16 %v1381
        %v1437 = vunpack.c.l.b16 %v1385
        %v1438 = vunpack.c.h.b16 %v1385
        %v1439 = vunpack.c.l.b16 %v1389
        %v1440 = vunpack.c.h.b16 %v1389
        %v1441 = vunpack.c.l.b16 %v1393
        %v1442 = vunpack.c.h.b16 %v1393
        %v1443 = vpack.c.b16 %v1429, %v1427
        %v1444 = vpack.c.b16 %v1430, %v1428
        %v1445 = vpack.c.b16 %v1433, %v1431
        %v1446 = vpack.c.b16 %v1434, %v1432
        %v1447 = vpack.c.b16 %v1437, %v1435
        %v1448 = vpack.c.b16 %v1438, %v1436
        %v1449 = vpack.c.b16 %v1441, %v1439
        %v1450 = vpack.c.b16 %v1442, %v1440
        %v1491 = vunpack.c.l.b16 %v1395
        %v1492 = vunpack.c.h.b16 %v1395
        %v1493 = vunpack.c.l.b16 %v1396
        %v1494 = vunpack.c.h.b16 %v1396
        %v1495 = vunpack.c.l.b16 %v1397
        %v1496 = vunpack.c.h.b16 %v1397
        %v1497 = vunpack.c.l.b16 %v1398
        %v1498 = vunpack.c.h.b16 %v1398
        %v1499 = vunpack.c.l.b16 %v1399
        %v1500 = vunpack.c.h.b16 %v1399
        %v1501 = vunpack.c.l.b16 %v1400
        %v1502 = vunpack.c.h.b16 %v1400
        %v1503 = vunpack.c.l.b16 %v1401
        %v1504 = vunpack.c.h.b16 %v1401
        %v1505 = vunpack.c.l.b16 %v1402
        %v1506 = vunpack.c.h.b16 %v1402
        %v1507 = vunpack.c.l.b16 %v1403
        %v1508 = vunpack.c.h.b16 %v1403
        %v1509 = vunpack.c.l.b16 %v1404
        %v1510 = vunpack.c.h.b16 %v1404
        %v1511 = vunpack.c.l.b16 %v1405
        %v1512 = vunpack.c.h.b16 %v1405
        %v1513 = vunpack.c.l.b16 %v1406
        %v1514 = vunpack.c.h.b16 %v1406
        %v1515 = vunpack.c.l.b16 %v1407
        %v1516 = vunpack.c.h.b16 %v1407
        %v1517 = vunpack.c.l.b16 %v1408
        %v1518 = vunpack.c.h.b16 %v1408
        %v1519 = vunpack.c.l.b16 %v1409
        %v1520 = vunpack.c.h.b16 %v1409
        %v1521 = vunpack.c.l.b16 %v1410
        %v1522 = vunpack.c.h.b16 %v1410
        %v1523 = vunpack.c.l.b16 %v1411
        %v1524 = vunpack.c.h.b16 %v1411
        %v1525 = vunpack.c.l.b16 %v1412
        %v1526 = vunpack.c.h.b16 %v1412
        %v1527 = vunpack.c.l.b16 %v1413
        %v1528 = vunpack.c.h.b16 %v1413
        %v1529 = vunpack.c.l.b16 %v1414
        %v1530 = vunpack.c.h.b16 %v1414
        %v1531 = vunpack.c.l.b16 %v1415
        %v1532 = vunpack.c.h.b16 %v1415
        %v1533 = vunpack.c.l.b16 %v1416
        %v1534 = vunpack.c.h.b16 %v1416
        %v1535 = vunpack.c.l.b16 %v1417
        %v1536 = vunpack.c.h.b16 %v1417
        %v1537 = vunpack.c.l.b16 %v1418
        %v1538 = vunpack.c.h.b16 %v1418
        %v1539 = vunpack.c.l.b16 %v1419
        %v1540 = vunpack.c.h.b16 %v1419
        %v1541 = vunpack.c.l.b16 %v1420
        %v1542 = vunpack.c.h.b16 %v1420
        %v1543 = vunpack.c.l.b16 %v1421
        %v1544 = vunpack.c.h.b16 %v1421
        %v1545 = vunpack.c.l.b16 %v1422
        %v1546 = vunpack.c.h.b16 %v1422
        %v1547 = vunpack.c.l.b16 %v1423
        %v1548 = vunpack.c.h.b16 %v1423
        %v1549 = vunpack.c.l.b16 %v1424
        %v1550 = vunpack.c.h.b16 %v1424
        %v1551 = vunpack.c.l.b16 %v1425
        %v1552 = vunpack.c.h.b16 %v1425
        %v1553 = vunpack.c.l.b16 %v1426
        %v1554 = vunpack.c.h.b16 %v1426
        %v1555 = vpack.c.b16 %v1493, %v1491
        %v1556 = vpack.c.b16 %v1494, %v1492
        %v1557 = vpack.c.b16 %v1497, %v1495
        %v1558 = vpack.c.b16 %v1498, %v1496
        %v1559 = vpack.c.b16 %v1501, %v1499
        %v1560 = vpack.c.b16 %v1502, %v1500
        %v1561 = vpack.c.b16 %v1505, %v1503
        %v1562 = vpack.c.b16 %v1506, %v1504
        %v1563 = vpack.c.b16 %v1509, %v1507
        %v1564 = vpack.c.b16 %v1510, %v1508
        %v1565 = vpack.c.b16 %v1513, %v1511
        %v1566 = vpack.c.b16 %v1514, %v1512
        %v1567 = vpack.c.b16 %v1517, %v1515
        %v1568 = vpack.c.b16 %v1518, %v1516
        %v1569 = vpack.c.b16 %v1521, %v1519
        %v1570 = vpack.c.b16 %v1522, %v1520
        %v1571 = vpack.c.b16 %v1525, %v1523
        %v1572 = vpack.c.b16 %v1526, %v1524
        %v1573 = vpack.c.b16 %v1529, %v1527
        %v1574 = vpack.c.b16 %v1530, %v1528
        %v1575 = vpack.c.b16 %v1533, %v1531
        %v1576 = vpack.c.b16 %v1534, %v1532
        %v1577 = vpack.c.b16 %v1537, %v1535
        %v1578 = vpack.c.b16 %v1538, %v1536
        %v1579 = vpack.c.b16 %v1541, %v1539
        %v1580 = vpack.c.b16 %v1542, %v1540
        %v1581 = vpack.c.b16 %v1545, %v1543
        %v1582 = vpack.c.b16 %v1546, %v1544
        %v1583 = vpack.c.b16 %v1549, %v1547
        %v1584 = vpack.c.b16 %v1550, %v1548
        %v1585 = vpack.c.b16 %v1553, %v1551
        %v1586 = vpack.c.b16 %v1554, %v1552
        %1619 = vmatpush.bf16.msra.mxu0 %v1569
        %1620 = vmatpush.bf16.msra.mxu0 %v1567
        %1621 = vmatpush.bf16.msra.mxu0 %v1565
        %1622 = vmatpush.bf16.msra.mxu0 %v1563
        %1623 = vmatpush.bf16.msra.mxu0 %v1561
        %1624 = vmatpush.bf16.msra.mxu0 %v1559
        %1625 = vmatpush.bf16.msra.mxu0 %v1557
        %1626 = vmatpush.bf16.msra.mxu0 %v1555
        %1627 = vmatmul.bf16.gmra.mxu0 %v1443
        %v1628 = vpop.f32.mrf.mxu0
        %v1629 = vadd.f32 0.0, %v1628
        %v1630 = vpop.f32.mrf.mxu0
        %v1631 = vadd.f32 0.0, %v1630
        %1632 = vmatmul.bf16.gmra.mxu0 %v1445
        %v1633 = vpop.f32.mrf.mxu0
        %v1634 = vadd.f32 0.0, %v1633
        %v1635 = vpop.f32.mrf.mxu0
        %v1636 = vadd.f32 0.0, %v1635
        %1637 = vmatmul.bf16.gmra.mxu0 %v1447
        %v1638 = vpop.f32.mrf.mxu0
        %v1639 = vadd.f32 0.0, %v1638
        %v1640 = vpop.f32.mrf.mxu0
        %v1641 = vadd.f32 0.0, %v1640
        %1642 = vmatmul.bf16.gmra.mxu0 %v1449
        %v1643 = vpop.f32.mrf.mxu0
        %v1644 = vadd.f32 0.0, %v1643
        %v1645 = vpop.f32.mrf.mxu0
        %v1646 = vadd.f32 0.0, %v1645
        %1647 = vdwg.mxu0
        %1648 = vmatpush.bf16.msra.mxu0 %v1585
        %1649 = vmatpush.bf16.msra.mxu0 %v1583
        %1650 = vmatpush.bf16.msra.mxu0 %v1581
        %1651 = vmatpush.bf16.msra.mxu0 %v1579
        %1652 = vmatpush.bf16.msra.mxu0 %v1577
        %1653 = vmatpush.bf16.msra.mxu0 %v1575
        %1654 = vmatpush.bf16.msra.mxu0 %v1573
        %1655 = vmatpush.bf16.msra.mxu0 %v1571
        %1656 = vmatmul.bf16.gmra.mxu0 %v1444
        %v1657 = vpop.f32.mrf.mxu0
        %v1658 = vadd.f32 %v1629, %v1657
        %v1659 = vpop.f32.mrf.mxu0
        %v1660 = vadd.f32 %v1631, %v1659
        %1661 = vmatmul.bf16.gmra.mxu0 %v1446
        %v1662 = vpop.f32.mrf.mxu0
        %v1663 = vadd.f32 %v1634, %v1662
        %v1664 = vpop.f32.mrf.mxu0
        %v1665 = vadd.f32 %v1636, %v1664
        %1666 = vmatmul.bf16.gmra.mxu0 %v1448
        %v1667 = vpop.f32.mrf.mxu0
        %v1668 = vadd.f32 %v1639, %v1667
        %v1669 = vpop.f32.mrf.mxu0
        %v1670 = vadd.f32 %v1641, %v1669
        %1671 = vmatmul.bf16.gmra.mxu0 %v1450
        %v1672 = vpop.f32.mrf.mxu0
        %v1673 = vadd.f32 %v1644, %v1672
        %v1674 = vpop.f32.mrf.mxu0
        %v1675 = vadd.f32 %v1646, %v1674
        %1676 = vdwg.mxu0
        %1677 = vmatpush.bf16.msra.mxu0 %v1570
        %1678 = vmatpush.bf16.msra.mxu0 %v1568
        %1679 = vmatpush.bf16.msra.mxu0 %v1566
        %1680 = vmatpush.bf16.msra.mxu0 %v1564
        %1681 = vmatpush.bf16.msra.mxu0 %v1562
        %1682 = vmatpush.bf16.msra.mxu0 %v1560
        %1683 = vmatpush.bf16.msra.mxu0 %v1558
        %1684 = vmatpush.bf16.msra.mxu0 %v1556
        %1685 = vmatmul.bf16.gmra.mxu0 %v1443
        %v1686 = vpop.f32.mrf.mxu0
        %v1687 = vadd.f32 0.0, %v1686
        %v1688 = vpop.f32.mrf.mxu0
        %v1689 = vadd.f32 0.0, %v1688
        %1690 = vmatmul.bf16.gmra.mxu0 %v1445
        %v1691 = vpop.f32.mrf.mxu0
        %v1692 = vadd.f32 0.0, %v1691
        %v1693 = vpop.f32.mrf.mxu0
        %v1694 = vadd.f32 0.0, %v1693
        %1695 = vmatmul.bf16.gmra.mxu0 %v1447
        %v1696 = vpop.f32.mrf.mxu0
        %v1697 = vadd.f32 0.0, %v1696
        %v1698 = vpop.f32.mrf.mxu0
        %v1699 = vadd.f32 0.0, %v1698
        %1700 = vmatmul.bf16.gmra.mxu0 %v1449
        %v1701 = vpop.f32.mrf.mxu0
        %v1702 = vadd.f32 0.0, %v1701
        %v1703 = vpop.f32.mrf.mxu0
        %v1704 = vadd.f32 0.0, %v1703
        %1705 = vdwg.mxu0
        %1706 = vmatpush.bf16.msra.mxu0 %v1586
        %1707 = vmatpush.bf16.msra.mxu0 %v1584
        %1708 = vmatpush.bf16.msra.mxu0 %v1582
        %1709 = vmatpush.bf16.msra.mxu0 %v1580
        %1710 = vmatpush.bf16.msra.mxu0 %v1578
        %1711 = vmatpush.bf16.msra.mxu0 %v1576
        %1712 = vmatpush.bf16.msra.mxu0 %v1574
        %1713 = vmatpush.bf16.msra.mxu0 %v1572
        %1714 = vmatmul.bf16.gmra.mxu0 %v1444
        %v1715 = vpop.f32.mrf.mxu0
        %v1716 = vadd.f32 %v1687, %v1715
        %v1717 = vpop.f32.mrf.mxu0
        %v1718 = vadd.f32 %v1689, %v1717
        %1719 = vmatmul.bf16.gmra.mxu0 %v1446
        %v1720 = vpop.f32.mrf.mxu0
        %v1721 = vadd.f32 %v1692, %v1720
        %v1722 = vpop.f32.mrf.mxu0
        %v1723 = vadd.f32 %v1694, %v1722
        %1724 = vmatmul.bf16.gmra.mxu0 %v1448
        %v1725 = vpop.f32.mrf.mxu0
        %v1726 = vadd.f32 %v1697, %v1725
        %v1727 = vpop.f32.mrf.mxu0
        %v1728 = vadd.f32 %v1699, %v1727
        %1729 = vmatmul.bf16.gmra.mxu0 %v1450
        %v1730 = vpop.f32.mrf.mxu0
        %v1731 = vadd.f32 %v1702, %v1730
        %v1732 = vpop.f32.mrf.mxu0
        %v1733 = vadd.f32 %v1704, %v1732
        %1734 = vdwg.mxu0
        %v1735 = vadd.f32 %v1258, %v1658
        %v1736 = vadd.f32 %v1316, %v1716
        %v1737 = vadd.f32 %v1260, %v1660
        %v1738 = vadd.f32 %v1318, %v1718
        %v1739 = vadd.f32 %v1263, %v1663
        %v1740 = vadd.f32 %v1321, %v1721
        %v1741 = vadd.f32 %v1265, %v1665
        %v1742 = vadd.f32 %v1323, %v1723
        %v1743 = vadd.f32 %v1268, %v1668
        %v1744 = vadd.f32 %v1326, %v1726
        %v1745 = vadd.f32 %v1270, %v1670
        %v1746 = vadd.f32 %v1328, %v1728
        %v1747 = vadd.f32 %v1273, %v1673
        %v1748 = vadd.f32 %v1331, %v1731
        %v1749 = vadd.f32 %v1275, %v1675
        %v1750 = vadd.f32 %v1333, %v1733
        %v1751 = vld [vmem:[%s452] sm:$0xff]
        %v1752 = vld [vmem:[%s452 + $0x10] sm:$0xff]
        %v1753 = vld [vmem:[%s452 + $0x20] sm:$0xff]
        %v1754 = vld [vmem:[%s452 + $0x30] sm:$0xff]
        %v1755 = vld [vmem:[%s452 + $0x40] sm:$0xff]
        %v1756 = vld [vmem:[%s452 + $0x50] sm:$0xff]
        %v1757 = vld [vmem:[%s452 + $0x60] sm:$0xff]
        %v1758 = vld [vmem:[%s452 + $0x70] sm:$0xff]
        %s1759 = scalar_lea.vmem [#allocation7], 768
        %v1760 = vld [vmem:[%s1759] sm:$0xff]
        %v1761 = vld [vmem:[%s1759 + $0x8] sm:$0xff]
        %v1762 = vld [vmem:[%s1759 + $0x10] sm:$0xff]
        %v1763 = vld [vmem:[%s1759 + $0x18] sm:$0xff]
        %v1764 = vld [vmem:[%s1759 + $0x20] sm:$0xff]
        %v1765 = vld [vmem:[%s1759 + $0x28] sm:$0xff]
        %v1766 = vld [vmem:[%s1759 + $0x30] sm:$0xff]
        %v1767 = vld [vmem:[%s1759 + $0x38] sm:$0xff]
        %v1768 = vld [vmem:[%s1759 + $0x40] sm:$0xff]
        %v1769 = vld [vmem:[%s1759 + $0x48] sm:$0xff]
        %v1770 = vld [vmem:[%s1759 + $0x50] sm:$0xff]
        %v1771 = vld [vmem:[%s1759 + $0x58] sm:$0xff]
        %v1772 = vld [vmem:[%s1759 + $0x60] sm:$0xff]
        %v1773 = vld [vmem:[%s1759 + $0x68] sm:$0xff]
        %v1774 = vld [vmem:[%s1759 + $0x70] sm:$0xff]
        %v1775 = vld [vmem:[%s1759 + $0x78] sm:$0xff]
        %v1776 = vld [vmem:[%s1759 + $0x80] sm:$0xff]
        %v1777 = vld [vmem:[%s1759 + $0x88] sm:$0xff]
        %v1778 = vld [vmem:[%s1759 + $0x90] sm:$0xff]
        %v1779 = vld [vmem:[%s1759 + $0x98] sm:$0xff]
        %v1780 = vld [vmem:[%s1759 + $0xa0] sm:$0xff]
        %v1781 = vld [vmem:[%s1759 + $0xa8] sm:$0xff]
        %v1782 = vld [vmem:[%s1759 + $0xb0] sm:$0xff]
        %v1783 = vld [vmem:[%s1759 + $0xb8] sm:$0xff]
        %v1784 = vld [vmem:[%s1759 + $0xc0] sm:$0xff]
        %v1785 = vld [vmem:[%s1759 + $0xc8] sm:$0xff]
        %v1786 = vld [vmem:[%s1759 + $0xd0] sm:$0xff]
        %v1787 = vld [vmem:[%s1759 + $0xd8] sm:$0xff]
        %v1788 = vld [vmem:[%s1759 + $0xe0] sm:$0xff]
        %v1789 = vld [vmem:[%s1759 + $0xe8] sm:$0xff]
        %v1790 = vld [vmem:[%s1759 + $0xf0] sm:$0xff]
        %v1791 = vld [vmem:[%s1759 + $0xf8] sm:$0xff]
        %v1800 = vunpack.c.l.b16 %v1751
        %v1801 = vunpack.c.h.b16 %v1751
        %v1802 = vunpack.c.l.b16 %v1752
        %v1803 = vunpack.c.h.b16 %v1752
        %v1804 = vunpack.c.l.b16 %v1753
        %v1805 = vunpack.c.h.b16 %v1753
        %v1806 = vunpack.c.l.b16 %v1754
        %v1807 = vunpack.c.h.b16 %v1754
        %v1808 = vunpack.c.l.b16 %v1755
        %v1809 = vunpack.c.h.b16 %v1755
        %v1810 = vunpack.c.l.b16 %v1756
        %v1811 = vunpack.c.h.b16 %v1756
        %v1812 = vunpack.c.l.b16 %v1757
        %v1813 = vunpack.c.h.b16 %v1757
        %v1814 = vunpack.c.l.b16 %v1758
        %v1815 = vunpack.c.h.b16 %v1758
        %v1816 = vpack.c.b16 %v1802, %v1800
        %v1817 = vpack.c.b16 %v1803, %v1801
        %v1818 = vpack.c.b16 %v1806, %v1804
        %v1819 = vpack.c.b16 %v1807, %v1805
        %v1820 = vpack.c.b16 %v1810, %v1808
        %v1821 = vpack.c.b16 %v1811, %v1809
        %v1822 = vpack.c.b16 %v1814, %v1812
        %v1823 = vpack.c.b16 %v1815, %v1813
        %v1864 = vunpack.c.l.b16 %v1760
        %v1865 = vunpack.c.h.b16 %v1760
        %v1866 = vunpack.c.l.b16 %v1761
        %v1867 = vunpack.c.h.b16 %v1761
        %v1868 = vunpack.c.l.b16 %v1762
        %v1869 = vunpack.c.h.b16 %v1762
        %v1870 = vunpack.c.l.b16 %v1763
        %v1871 = vunpack.c.h.b16 %v1763
        %v1872 = vunpack.c.l.b16 %v1764
        %v1873 = vunpack.c.h.b16 %v1764
        %v1874 = vunpack.c.l.b16 %v1765
        %v1875 = vunpack.c.h.b16 %v1765
        %v1876 = vunpack.c.l.b16 %v1766
        %v1877 = vunpack.c.h.b16 %v1766
        %v1878 = vunpack.c.l.b16 %v1767
        %v1879 = vunpack.c.h.b16 %v1767
        %v1880 = vunpack.c.l.b16 %v1768
        %v1881 = vunpack.c.h.b16 %v1768
        %v1882 = vunpack.c.l.b16 %v1769
        %v1883 = vunpack.c.h.b16 %v1769
        %v1884 = vunpack.c.l.b16 %v1770
        %v1885 = vunpack.c.h.b16 %v1770
        %v1886 = vunpack.c.l.b16 %v1771
        %v1887 = vunpack.c.h.b16 %v1771
        %v1888 = vunpack.c.l.b16 %v1772
        %v1889 = vunpack.c.h.b16 %v1772
        %v1890 = vunpack.c.l.b16 %v1773
        %v1891 = vunpack.c.h.b16 %v1773
        %v1892 = vunpack.c.l.b16 %v1774
        %v1893 = vunpack.c.h.b16 %v1774
        %v1894 = vunpack.c.l.b16 %v1775
        %v1895 = vunpack.c.h.b16 %v1775
        %v1896 = vunpack.c.l.b16 %v1776
        %v1897 = vunpack.c.h.b16 %v1776
        %v1898 = vunpack.c.l.b16 %v1777
        %v1899 = vunpack.c.h.b16 %v1777
        %v1900 = vunpack.c.l.b16 %v1778
        %v1901 = vunpack.c.h.b16 %v1778
        %v1902 = vunpack.c.l.b16 %v1779
        %v1903 = vunpack.c.h.b16 %v1779
        %v1904 = vunpack.c.l.b16 %v1780
        %v1905 = vunpack.c.h.b16 %v1780
        %v1906 = vunpack.c.l.b16 %v1781
        %v1907 = vunpack.c.h.b16 %v1781
        %v1908 = vunpack.c.l.b16 %v1782
        %v1909 = vunpack.c.h.b16 %v1782
        %v1910 = vunpack.c.l.b16 %v1783
        %v1911 = vunpack.c.h.b16 %v1783
        %v1912 = vunpack.c.l.b16 %v1784
        %v1913 = vunpack.c.h.b16 %v1784
        %v1914 = vunpack.c.l.b16 %v1785
        %v1915 = vunpack.c.h.b16 %v1785
        %v1916 = vunpack.c.l.b16 %v1786
        %v1917 = vunpack.c.h.b16 %v1786
        %v1918 = vunpack.c.l.b16 %v1787
        %v1919 = vunpack.c.h.b16 %v1787
        %v1920 = vunpack.c.l.b16 %v1788
        %v1921 = vunpack.c.h.b16 %v1788
        %v1922 = vunpack.c.l.b16 %v1789
        %v1923 = vunpack.c.h.b16 %v1789
        %v1924 = vunpack.c.l.b16 %v1790
        %v1925 = vunpack.c.h.b16 %v1790
        %v1926 = vunpack.c.l.b16 %v1791
        %v1927 = vunpack.c.h.b16 %v1791
        %v1928 = vpack.c.b16 %v1866, %v1864
        %v1929 = vpack.c.b16 %v1867, %v1865
        %v1930 = vpack.c.b16 %v1870, %v1868
        %v1931 = vpack.c.b16 %v1871, %v1869
        %v1932 = vpack.c.b16 %v1874, %v1872
        %v1933 = vpack.c.b16 %v1875, %v1873
        %v1934 = vpack.c.b16 %v1878, %v1876
        %v1935 = vpack.c.b16 %v1879, %v1877
        %v1936 = vpack.c.b16 %v1882, %v1880
        %v1937 = vpack.c.b16 %v1883, %v1881
        %v1938 = vpack.c.b16 %v1886, %v1884
        %v1939 = vpack.c.b16 %v1887, %v1885
        %v1940 = vpack.c.b16 %v1890, %v1888
        %v1941 = vpack.c.b16 %v1891, %v1889
        %v1942 = vpack.c.b16 %v1894, %v1892
        %v1943 = vpack.c.b16 %v1895, %v1893
        %v1944 = vpack.c.b16 %v1898, %v1896
        %v1945 = vpack.c.b16 %v1899, %v1897
        %v1946 = vpack.c.b16 %v1902, %v1900
        %v1947 = vpack.c.b16 %v1903, %v1901
        %v1948 = vpack.c.b16 %v1906, %v1904
        %v1949 = vpack.c.b16 %v1907, %v1905
        %v1950 = vpack.c.b16 %v1910, %v1908
        %v1951 = vpack.c.b16 %v1911, %v1909
        %v1952 = vpack.c.b16 %v1914, %v1912
        %v1953 = vpack.c.b16 %v1915, %v1913
        %v1954 = vpack.c.b16 %v1918, %v1916
        %v1955 = vpack.c.b16 %v1919, %v1917
        %v1956 = vpack.c.b16 %v1922, %v1920
        %v1957 = vpack.c.b16 %v1923, %v1921
        %v1958 = vpack.c.b16 %v1926, %v1924
        %v1959 = vpack.c.b16 %v1927, %v1925
        %1992 = vmatpush.bf16.msra.mxu0 %v1942
        %1993 = vmatpush.bf16.msra.mxu0 %v1940
        %1994 = vmatpush.bf16.msra.mxu0 %v1938
        %1995 = vmatpush.bf16.msra.mxu0 %v1936
        %1996 = vmatpush.bf16.msra.mxu0 %v1934
        %1997 = vmatpush.bf16.msra.mxu0 %v1932
        %1998 = vmatpush.bf16.msra.mxu0 %v1930
        %1999 = vmatpush.bf16.msra.mxu0 %v1928
        %2000 = vmatmul.bf16.gmra.mxu0 %v1816
        %v2001 = vpop.f32.mrf.mxu0
        %v2002 = vadd.f32 0.0, %v2001
        %v2003 = vpop.f32.mrf.mxu0
        %v2004 = vadd.f32 0.0, %v2003
        %2005 = vmatmul.bf16.gmra.mxu0 %v1818
        %v2006 = vpop.f32.mrf.mxu0
        %v2007 = vadd.f32 0.0, %v2006
        %v2008 = vpop.f32.mrf.mxu0
        %v2009 = vadd.f32 0.0, %v2008
        %2010 = vmatmul.bf16.gmra.mxu0 %v1820
        %v2011 = vpop.f32.mrf.mxu0
        %v2012 = vadd.f32 0.0, %v2011
        %v2013 = vpop.f32.mrf.mxu0
        %v2014 = vadd.f32 0.0, %v2013
        %2015 = vmatmul.bf16.gmra.mxu0 %v1822
        %v2016 = vpop.f32.mrf.mxu0
        %v2017 = vadd.f32 0.0, %v2016
        %v2018 = vpop.f32.mrf.mxu0
        %v2019 = vadd.f32 0.0, %v2018
        %2020 = vdwg.mxu0
        %2021 = vmatpush.bf16.msra.mxu0 %v1958
        %2022 = vmatpush.bf16.msra.mxu0 %v1956
        %2023 = vmatpush.bf16.msra.mxu0 %v1954
        %2024 = vmatpush.bf16.msra.mxu0 %v1952
        %2025 = vmatpush.bf16.msra.mxu0 %v1950
        %2026 = vmatpush.bf16.msra.mxu0 %v1948
        %2027 = vmatpush.bf16.msra.mxu0 %v1946
        %2028 = vmatpush.bf16.msra.mxu0 %v1944
        %2029 = vmatmul.bf16.gmra.mxu0 %v1817
        %v2030 = vpop.f32.mrf.mxu0
        %v2031 = vadd.f32 %v2002, %v2030
        %v2032 = vpop.f32.mrf.mxu0
        %v2033 = vadd.f32 %v2004, %v2032
        %2034 = vmatmul.bf16.gmra.mxu0 %v1819
        %v2035 = vpop.f32.mrf.mxu0
        %v2036 = vadd.f32 %v2007, %v2035
        %v2037 = vpop.f32.mrf.mxu0
        %v2038 = vadd.f32 %v2009, %v2037
        %2039 = vmatmul.bf16.gmra.mxu0 %v1821
        %v2040 = vpop.f32.mrf.mxu0
        %v2041 = vadd.f32 %v2012, %v2040
        %v2042 = vpop.f32.mrf.mxu0
        %v2043 = vadd.f32 %v2014, %v2042
        %2044 = vmatmul.bf16.gmra.mxu0 %v1823
        %v2045 = vpop.f32.mrf.mxu0
        %v2046 = vadd.f32 %v2017, %v2045
        %v2047 = vpop.f32.mrf.mxu0
        %v2048 = vadd.f32 %v2019, %v2047
        %2049 = vdwg.mxu0
        %2050 = vmatpush.bf16.msra.mxu0 %v1943
        %2051 = vmatpush.bf16.msra.mxu0 %v1941
        %2052 = vmatpush.bf16.msra.mxu0 %v1939
        %2053 = vmatpush.bf16.msra.mxu0 %v1937
        %2054 = vmatpush.bf16.msra.mxu0 %v1935
        %2055 = vmatpush.bf16.msra.mxu0 %v1933
        %2056 = vmatpush.bf16.msra.mxu0 %v1931
        %2057 = vmatpush.bf16.msra.mxu0 %v1929
        %2058 = vmatmul.bf16.gmra.mxu0 %v1816
        %v2059 = vpop.f32.mrf.mxu0
        %v2060 = vadd.f32 0.0, %v2059
        %v2061 = vpop.f32.mrf.mxu0
        %v2062 = vadd.f32 0.0, %v2061
        %2063 = vmatmul.bf16.gmra.mxu0 %v1818
        %v2064 = vpop.f32.mrf.mxu0
        %v2065 = vadd.f32 0.0, %v2064
        %v2066 = vpop.f32.mrf.mxu0
        %v2067 = vadd.f32 0.0, %v2066
        %2068 = vmatmul.bf16.gmra.mxu0 %v1820
        %v2069 = vpop.f32.mrf.mxu0
        %v2070 = vadd.f32 0.0, %v2069
        %v2071 = vpop.f32.mrf.mxu0
        %v2072 = vadd.f32 0.0, %v2071
        %2073 = vmatmul.bf16.gmra.mxu0 %v1822
        %v2074 = vpop.f32.mrf.mxu0
        %v2075 = vadd.f32 0.0, %v2074
        %v2076 = vpop.f32.mrf.mxu0
        %v2077 = vadd.f32 0.0, %v2076
        %2078 = vdwg.mxu0
        %2079 = vmatpush.bf16.msra.mxu0 %v1959
        %2080 = vmatpush.bf16.msra.mxu0 %v1957
        %2081 = vmatpush.bf16.msra.mxu0 %v1955
        %2082 = vmatpush.bf16.msra.mxu0 %v1953
        %2083 = vmatpush.bf16.msra.mxu0 %v1951
        %2084 = vmatpush.bf16.msra.mxu0 %v1949
        %2085 = vmatpush.bf16.msra.mxu0 %v1947
        %2086 = vmatpush.bf16.msra.mxu0 %v1945
        %2087 = vmatmul.bf16.gmra.mxu0 %v1817
        %v2088 = vpop.f32.mrf.mxu0
        %v2089 = vadd.f32 %v2060, %v2088
        %v2090 = vpop.f32.mrf.mxu0
        %v2091 = vadd.f32 %v2062, %v2090
        %2092 = vmatmul.bf16.gmra.mxu0 %v1819
        %v2093 = vpop.f32.mrf.mxu0
        %v2094 = vadd.f32 %v2065, %v2093
        %v2095 = vpop.f32.mrf.mxu0
        %v2096 = vadd.f32 %v2067, %v2095
        %2097 = vmatmul.bf16.gmra.mxu0 %v1821
        %v2098 = vpop.f32.mrf.mxu0
        %v2099 = vadd.f32 %v2070, %v2098
        %v2100 = vpop.f32.mrf.mxu0
        %v2101 = vadd.f32 %v2072, %v2100
        %2102 = vmatmul.bf16.gmra.mxu0 %v1823
        %v2103 = vpop.f32.mrf.mxu0
        %v2104 = vadd.f32 %v2075, %v2103
        %v2105 = vpop.f32.mrf.mxu0
        %v2106 = vadd.f32 %v2077, %v2105
        %2107 = vdwg.mxu0
        %v2108 = vadd.f32 %v1735, %v2031
        %v2109 = vadd.f32 %v1736, %v2089
        %v2110 = vadd.f32 %v1737, %v2033
        %v2111 = vadd.f32 %v1738, %v2091
        %v2112 = vadd.f32 %v1739, %v2036
        %v2113 = vadd.f32 %v1740, %v2094
        %v2114 = vadd.f32 %v1741, %v2038
        %v2115 = vadd.f32 %v1742, %v2096
        %v2116 = vadd.f32 %v1743, %v2041
        %v2117 = vadd.f32 %v1744, %v2099
        %v2118 = vadd.f32 %v1745, %v2043
        %v2119 = vadd.f32 %v1746, %v2101
        %v2120 = vadd.f32 %v1747, %v2046
        %v2121 = vadd.f32 %v1748, %v2104
        %v2122 = vadd.f32 %v1749, %v2048
        %v2123 = vadd.f32 %v1750, %v2106
        %v2124 = vld [vmem:[%s452] sm:$0xff]
        %v2125 = vld [vmem:[%s452 + $0x8] sm:$0x11]
        %v2126 = vld [vmem:[%s452 + $0x10] sm:$0xff]
        %v2127 = vld [vmem:[%s452 + $0x18] sm:$0x11]
        %v2128 = vld [vmem:[%s452 + $0x20] sm:$0xff]
        %v2129 = vld [vmem:[%s452 + $0x28] sm:$0x11]
        %v2130 = vld [vmem:[%s452 + $0x30] sm:$0xff]
        %v2131 = vld [vmem:[%s452 + $0x38] sm:$0x11]
        %v2132 = vld [vmem:[%s452 + $0x40] sm:$0xff]
        %v2133 = vld [vmem:[%s452 + $0x48] sm:$0x11]
        %v2134 = vld [vmem:[%s452 + $0x50] sm:$0xff]
        %v2135 = vld [vmem:[%s452 + $0x58] sm:$0x11]
        %v2136 = vld [vmem:[%s452 + $0x60] sm:$0xff]
        %v2137 = vld [vmem:[%s452 + $0x68] sm:$0x11]
        %v2138 = vld [vmem:[%s452 + $0x70] sm:$0xff]
        %v2139 = vld [vmem:[%s452 + $0x78] sm:$0x11]
        %v2141 = vshrl.u32 %v2124, 16
        %v2143 = vrot.slane %v2141, 4
        %v2144 = vshll.u32 %v2124, 16
        %v2146 = vrot.slane %v2144, 5
        %v2147 = vor.u32 %v2143, %v2146
        %v2148 = vrot.slane %v2147, 4
        %v2150 = vshll.u32 %v2125, 16
        %v2152 = vrot.slane %v2150, 5
        %v2153 = vsel %vm565, %v2148, %v2152
        %v2155 = vshrl.u32 %v2126, 16
        %v2157 = vrot.slane %v2155, 4
        %v2158 = vshll.u32 %v2126, 16
        %v2160 = vrot.slane %v2158, 5
        %v2161 = vor.u32 %v2157, %v2160
        %v2162 = vrot.slane %v2161, 4
        %v2164 = vshll.u32 %v2127, 16
        %v2166 = vrot.slane %v2164, 5
        %v2167 = vsel %vm565, %v2162, %v2166
        %v2169 = vshrl.u32 %v2128, 16
        %v2171 = vrot.slane %v2169, 4
        %v2172 = vshll.u32 %v2128, 16
        %v2174 = vrot.slane %v2172, 5
        %v2175 = vor.u32 %v2171, %v2174
        %v2176 = vrot.slane %v2175, 4
        %v2178 = vshll.u32 %v2129, 16
        %v2180 = vrot.slane %v2178, 5
        %v2181 = vsel %vm565, %v2176, %v2180
        %v2183 = vshrl.u32 %v2130, 16
        %v2185 = vrot.slane %v2183, 4
        %v2186 = vshll.u32 %v2130, 16
        %v2188 = vrot.slane %v2186, 5
        %v2189 = vor.u32 %v2185, %v2188
        %v2190 = vrot.slane %v2189, 4
        %v2192 = vshll.u32 %v2131, 16
        %v2194 = vrot.slane %v2192, 5
        %v2195 = vsel %vm565, %v2190, %v2194
        %v2197 = vshrl.u32 %v2132, 16
        %v2199 = vrot.slane %v2197, 4
        %v2200 = vshll.u32 %v2132, 16
        %v2202 = vrot.slane %v2200, 5
        %v2203 = vor.u32 %v2199, %v2202
        %v2204 = vrot.slane %v2203, 4
        %v2206 = vshll.u32 %v2133, 16
        %v2208 = vrot.slane %v2206, 5
        %v2209 = vsel %vm565, %v2204, %v2208
        %v2211 = vshrl.u32 %v2134, 16
        %v2213 = vrot.slane %v2211, 4
        %v2214 = vshll.u32 %v2134, 16
        %v2216 = vrot.slane %v2214, 5
        %v2217 = vor.u32 %v2213, %v2216
        %v2218 = vrot.slane %v2217, 4
        %v2220 = vshll.u32 %v2135, 16
        %v2222 = vrot.slane %v2220, 5
        %v2223 = vsel %vm565, %v2218, %v2222
        %v2225 = vshrl.u32 %v2136, 16
        %v2227 = vrot.slane %v2225, 4
        %v2228 = vshll.u32 %v2136, 16
        %v2230 = vrot.slane %v2228, 5
        %v2231 = vor.u32 %v2227, %v2230
        %v2232 = vrot.slane %v2231, 4
        %v2234 = vshll.u32 %v2137, 16
        %v2236 = vrot.slane %v2234, 5
        %v2237 = vsel %vm565, %v2232, %v2236
        %v2239 = vshrl.u32 %v2138, 16
        %v2241 = vrot.slane %v2239, 4
        %v2242 = vshll.u32 %v2138, 16
        %v2244 = vrot.slane %v2242, 5
        %v2245 = vor.u32 %v2241, %v2244
        %v2246 = vrot.slane %v2245, 4
        %v2248 = vshll.u32 %v2139, 16
        %v2250 = vrot.slane %v2248, 5
        %v2251 = vsel %vm565, %v2246, %v2250
        %s2252 = scalar_lea.vmem [#allocation7], 1024
        %v2253 = vld [vmem:[%s2252] sm:$0xff]
        %v2254 = vld [vmem:[%s2252 + $0x8] sm:$0xff]
        %v2255 = vld [vmem:[%s2252 + $0x10] sm:$0xff]
        %v2256 = vld [vmem:[%s2252 + $0x18] sm:$0xff]
        %v2257 = vld [vmem:[%s2252 + $0x20] sm:$0xff]
        %v2258 = vld [vmem:[%s2252 + $0x28] sm:$0xff]
        %v2259 = vld [vmem:[%s2252 + $0x30] sm:$0xff]
        %v2260 = vld [vmem:[%s2252 + $0x38] sm:$0xff]
        %v2261 = vld [vmem:[%s2252 + $0x40] sm:$0xff]
        %v2262 = vld [vmem:[%s2252 + $0x48] sm:$0xff]
        %v2263 = vld [vmem:[%s2252 + $0x50] sm:$0xff]
        %v2264 = vld [vmem:[%s2252 + $0x58] sm:$0xff]
        %v2265 = vld [vmem:[%s2252 + $0x60] sm:$0xff]
        %v2266 = vld [vmem:[%s2252 + $0x68] sm:$0xff]
        %v2267 = vld [vmem:[%s2252 + $0x70] sm:$0xff]
        %v2268 = vld [vmem:[%s2252 + $0x78] sm:$0xff]
        %v2269 = vld [vmem:[%s2252 + $0x80] sm:$0xff]
        %v2270 = vld [vmem:[%s2252 + $0x88] sm:$0xff]
        %v2271 = vld [vmem:[%s2252 + $0x90] sm:$0xff]
        %v2272 = vld [vmem:[%s2252 + $0x98] sm:$0xff]
        %v2273 = vld [vmem:[%s2252 + $0xa0] sm:$0xff]
        %v2274 = vld [vmem:[%s2252 + $0xa8] sm:$0xff]
        %v2275 = vld [vmem:[%s2252 + $0xb0] sm:$0xff]
        %v2276 = vld [vmem:[%s2252 + $0xb8] sm:$0xff]
        %v2277 = vld [vmem:[%s2252 + $0xc0] sm:$0xff]
        %v2278 = vld [vmem:[%s2252 + $0xc8] sm:$0xff]
        %v2279 = vld [vmem:[%s2252 + $0xd0] sm:$0xff]
        %v2280 = vld [vmem:[%s2252 + $0xd8] sm:$0xff]
        %v2281 = vld [vmem:[%s2252 + $0xe0] sm:$0xff]
        %v2282 = vld [vmem:[%s2252 + $0xe8] sm:$0xff]
        %v2283 = vld [vmem:[%s2252 + $0xf0] sm:$0xff]
        %v2284 = vld [vmem:[%s2252 + $0xf8] sm:$0xff]
        %v2285 = vunpack.c.l.b16 %v2153
        %v2286 = vunpack.c.h.b16 %v2153
        %v2287 = vunpack.c.l.b16 %v2167
        %v2288 = vunpack.c.h.b16 %v2167
        %v2289 = vunpack.c.l.b16 %v2181
        %v2290 = vunpack.c.h.b16 %v2181
        %v2291 = vunpack.c.l.b16 %v2195
        %v2292 = vunpack.c.h.b16 %v2195
        %v2293 = vunpack.c.l.b16 %v2209
        %v2294 = vunpack.c.h.b16 %v2209
        %v2295 = vunpack.c.l.b16 %v2223
        %v2296 = vunpack.c.h.b16 %v2223
        %v2297 = vunpack.c.l.b16 %v2237
        %v2298 = vunpack.c.h.b16 %v2237
        %v2299 = vunpack.c.l.b16 %v2251
        %v2300 = vunpack.c.h.b16 %v2251
        %v2301 = vpack.c.b16 %v2287, %v2285
        %v2302 = vpack.c.b16 %v2288, %v2286
        %v2303 = vpack.c.b16 %v2291, %v2289
        %v2304 = vpack.c.b16 %v2292, %v2290
        %v2305 = vpack.c.b16 %v2295, %v2293
        %v2306 = vpack.c.b16 %v2296, %v2294
        %v2307 = vpack.c.b16 %v2299, %v2297
        %v2308 = vpack.c.b16 %v2300, %v2298
        %v2349 = vunpack.c.l.b16 %v2253
        %v2350 = vunpack.c.h.b16 %v2253
        %v2351 = vunpack.c.l.b16 %v2254
        %v2352 = vunpack.c.h.b16 %v2254
        %v2353 = vunpack.c.l.b16 %v2255
        %v2354 = vunpack.c.h.b16 %v2255
        %v2355 = vunpack.c.l.b16 %v2256
        %v2356 = vunpack.c.h.b16 %v2256
        %v2357 = vunpack.c.l.b16 %v2257
        %v2358 = vunpack.c.h.b16 %v2257
        %v2359 = vunpack.c.l.b16 %v2258
        %v2360 = vunpack.c.h.b16 %v2258
        %v2361 = vunpack.c.l.b16 %v2259
        %v2362 = vunpack.c.h.b16 %v2259
        %v2363 = vunpack.c.l.b16 %v2260
        %v2364 = vunpack.c.h.b16 %v2260
        %v2365 = vunpack.c.l.b16 %v2261
        %v2366 = vunpack.c.h.b16 %v2261
        %v2367 = vunpack.c.l.b16 %v2262
        %v2368 = vunpack.c.h.b16 %v2262
        %v2369 = vunpack.c.l.b16 %v2263
        %v2370 = vunpack.c.h.b16 %v2263
        %v2371 = vunpack.c.l.b16 %v2264
        %v2372 = vunpack.c.h.b16 %v2264
        %v2373 = vunpack.c.l.b16 %v2265
        %v2374 = vunpack.c.h.b16 %v2265
        %v2375 = vunpack.c.l.b16 %v2266
        %v2376 = vunpack.c.h.b16 %v2266
        %v2377 = vunpack.c.l.b16 %v2267
        %v2378 = vunpack.c.h.b16 %v2267
        %v2379 = vunpack.c.l.b16 %v2268
        %v2380 = vunpack.c.h.b16 %v2268
        %v2381 = vunpack.c.l.b16 %v2269
        %v2382 = vunpack.c.h.b16 %v2269
        %v2383 = vunpack.c.l.b16 %v2270
        %v2384 = vunpack.c.h.b16 %v2270
        %v2385 = vunpack.c.l.b16 %v2271
        %v2386 = vunpack.c.h.b16 %v2271
        %v2387 = vunpack.c.l.b16 %v2272
        %v2388 = vunpack.c.h.b16 %v2272
        %v2389 = vunpack.c.l.b16 %v2273
        %v2390 = vunpack.c.h.b16 %v2273
        %v2391 = vunpack.c.l.b16 %v2274
        %v2392 = vunpack.c.h.b16 %v2274
        %v2393 = vunpack.c.l.b16 %v2275
        %v2394 = vunpack.c.h.b16 %v2275
        %v2395 = vunpack.c.l.b16 %v2276
        %v2396 = vunpack.c.h.b16 %v2276
        %v2397 = vunpack.c.l.b16 %v2277
        %v2398 = vunpack.c.h.b16 %v2277
        %v2399 = vunpack.c.l.b16 %v2278
        %v2400 = vunpack.c.h.b16 %v2278
        %v2401 = vunpack.c.l.b16 %v2279
        %v2402 = vunpack.c.h.b16 %v2279
        %v2403 = vunpack.c.l.b16 %v2280
        %v2404 = vunpack.c.h.b16 %v2280
        %v2405 = vunpack.c.l.b16 %v2281
        %v2406 = vunpack.c.h.b16 %v2281
        %v2407 = vunpack.c.l.b16 %v2282
        %v2408 = vunpack.c.h.b16 %v2282
        %v2409 = vunpack.c.l.b16 %v2283
        %v2410 = vunpack.c.h.b16 %v2283
        %v2411 = vunpack.c.l.b16 %v2284
        %v2412 = vunpack.c.h.b16 %v2284
        %v2413 = vpack.c.b16 %v2351, %v2349
        %v2414 = vpack.c.b16 %v2352, %v2350
        %v2415 = vpack.c.b16 %v2355, %v2353
        %v2416 = vpack.c.b16 %v2356, %v2354
        %v2417 = vpack.c.b16 %v2359, %v2357
        %v2418 = vpack.c.b16 %v2360, %v2358
        %v2419 = vpack.c.b16 %v2363, %v2361
        %v2420 = vpack.c.b16 %v2364, %v2362
        %v2421 = vpack.c.b16 %v2367, %v2365
        %v2422 = vpack.c.b16 %v2368, %v2366
        %v2423 = vpack.c.b16 %v2371, %v2369
        %v2424 = vpack.c.b16 %v2372, %v2370
        %v2425 = vpack.c.b16 %v2375, %v2373
        %v2426 = vpack.c.b16 %v2376, %v2374
        %v2427 = vpack.c.b16 %v2379, %v2377
        %v2428 = vpack.c.b16 %v2380, %v2378
        %v2429 = vpack.c.b16 %v2383, %v2381
        %v2430 = vpack.c.b16 %v2384, %v2382
        %v2431 = vpack.c.b16 %v2387, %v2385
        %v2432 = vpack.c.b16 %v2388, %v2386
        %v2433 = vpack.c.b16 %v2391, %v2389
        %v2434 = vpack.c.b16 %v2392, %v2390
        %v2435 = vpack.c.b16 %v2395, %v2393
        %v2436 = vpack.c.b16 %v2396, %v2394
        %v2437 = vpack.c.b16 %v2399, %v2397
        %v2438 = vpack.c.b16 %v2400, %v2398
        %v2439 = vpack.c.b16 %v2403, %v2401
        %v2440 = vpack.c.b16 %v2404, %v2402
        %v2441 = vpack.c.b16 %v2407, %v2405
        %v2442 = vpack.c.b16 %v2408, %v2406
        %v2443 = vpack.c.b16 %v2411, %v2409
        %v2444 = vpack.c.b16 %v2412, %v2410
        %2477 = vmatpush.bf16.msra.mxu0 %v2427
        %2478 = vmatpush.bf16.msra.mxu0 %v2425
        %2479 = vmatpush.bf16.msra.mxu0 %v2423
        %2480 = vmatpush.bf16.msra.mxu0 %v2421
        %2481 = vmatpush.bf16.msra.mxu0 %v2419
        %2482 = vmatpush.bf16.msra.mxu0 %v2417
        %2483 = vmatpush.bf16.msra.mxu0 %v2415
        %2484 = vmatpush.bf16.msra.mxu0 %v2413
        %2485 = vmatmul.bf16.gmra.mxu0 %v2301
        %v2486 = vpop.f32.mrf.mxu0
        %v2487 = vadd.f32 0.0, %v2486
        %v2488 = vpop.f32.mrf.mxu0
        %v2489 = vadd.f32 0.0, %v2488
        %2490 = vmatmul.bf16.gmra.mxu0 %v2303
        %v2491 = vpop.f32.mrf.mxu0
        %v2492 = vadd.f32 0.0, %v2491
        %v2493 = vpop.f32.mrf.mxu0
        %v2494 = vadd.f32 0.0, %v2493
        %2495 = vmatmul.bf16.gmra.mxu0 %v2305
        %v2496 = vpop.f32.mrf.mxu0
        %v2497 = vadd.f32 0.0, %v2496
        %v2498 = vpop.f32.mrf.mxu0
        %v2499 = vadd.f32 0.0, %v2498
        %2500 = vmatmul.bf16.gmra.mxu0 %v2307
        %v2501 = vpop.f32.mrf.mxu0
        %v2502 = vadd.f32 0.0, %v2501
        %v2503 = vpop.f32.mrf.mxu0
        %v2504 = vadd.f32 0.0, %v2503
        %2505 = vdwg.mxu0
        %2506 = vmatpush.bf16.msra.mxu0 %v2443
        %2507 = vmatpush.bf16.msra.mxu0 %v2441
        %2508 = vmatpush.bf16.msra.mxu0 %v2439
        %2509 = vmatpush.bf16.msra.mxu0 %v2437
        %2510 = vmatpush.bf16.msra.mxu0 %v2435
        %2511 = vmatpush.bf16.msra.mxu0 %v2433
        %2512 = vmatpush.bf16.msra.mxu0 %v2431
        %2513 = vmatpush.bf16.msra.mxu0 %v2429
        %2514 = vmatmul.bf16.gmra.mxu0 %v2302
        %v2515 = vpop.f32.mrf.mxu0
        %v2516 = vadd.f32 %v2487, %v2515
        %v2517 = vpop.f32.mrf.mxu0
        %v2518 = vadd.f32 %v2489, %v2517
        %2519 = vmatmul.bf16.gmra.mxu0 %v2304
        %v2520 = vpop.f32.mrf.mxu0
        %v2521 = vadd.f32 %v2492, %v2520
        %v2522 = vpop.f32.mrf.mxu0
        %v2523 = vadd.f32 %v2494, %v2522
        %2524 = vmatmul.bf16.gmra.mxu0 %v2306
        %v2525 = vpop.f32.mrf.mxu0
        %v2526 = vadd.f32 %v2497, %v2525
        %v2527 = vpop.f32.mrf.mxu0
        %v2528 = vadd.f32 %v2499, %v2527
        %2529 = vmatmul.bf16.gmra.mxu0 %v2308
        %v2530 = vpop.f32.mrf.mxu0
        %v2531 = vadd.f32 %v2502, %v2530
        %v2532 = vpop.f32.mrf.mxu0
        %v2533 = vadd.f32 %v2504, %v2532
        %2534 = vdwg.mxu0
        %2535 = vmatpush.bf16.msra.mxu0 %v2428
        %2536 = vmatpush.bf16.msra.mxu0 %v2426
        %2537 = vmatpush.bf16.msra.mxu0 %v2424
        %2538 = vmatpush.bf16.msra.mxu0 %v2422
        %2539 = vmatpush.bf16.msra.mxu0 %v2420
        %2540 = vmatpush.bf16.msra.mxu0 %v2418
        %2541 = vmatpush.bf16.msra.mxu0 %v2416
        %2542 = vmatpush.bf16.msra.mxu0 %v2414
        %2543 = vmatmul.bf16.gmra.mxu0 %v2301
        %v2544 = vpop.f32.mrf.mxu0
        %v2545 = vadd.f32 0.0, %v2544
        %v2546 = vpop.f32.mrf.mxu0
        %v2547 = vadd.f32 0.0, %v2546
        %2548 = vmatmul.bf16.gmra.mxu0 %v2303
        %v2549 = vpop.f32.mrf.mxu0
        %v2550 = vadd.f32 0.0, %v2549
        %v2551 = vpop.f32.mrf.mxu0
        %v2552 = vadd.f32 0.0, %v2551
        %2553 = vmatmul.bf16.gmra.mxu0 %v2305
        %v2554 = vpop.f32.mrf.mxu0
        %v2555 = vadd.f32 0.0, %v2554
        %v2556 = vpop.f32.mrf.mxu0
        %v2557 = vadd.f32 0.0, %v2556
        %2558 = vmatmul.bf16.gmra.mxu0 %v2307
        %v2559 = vpop.f32.mrf.mxu0
        %v2560 = vadd.f32 0.0, %v2559
        %v2561 = vpop.f32.mrf.mxu0
        %v2562 = vadd.f32 0.0, %v2561
        %2563 = vdwg.mxu0
        %2564 = vmatpush.bf16.msra.mxu0 %v2444
        %2565 = vmatpush.bf16.msra.mxu0 %v2442
        %2566 = vmatpush.bf16.msra.mxu0 %v2440
        %2567 = vmatpush.bf16.msra.mxu0 %v2438
        %2568 = vmatpush.bf16.msra.mxu0 %v2436
        %2569 = vmatpush.bf16.msra.mxu0 %v2434
        %2570 = vmatpush.bf16.msra.mxu0 %v2432
        %2571 = vmatpush.bf16.msra.mxu0 %v2430
        %2572 = vmatmul.bf16.gmra.mxu0 %v2302
        %v2573 = vpop.f32.mrf.mxu0
        %v2574 = vadd.f32 %v2545, %v2573
        %v2575 = vpop.f32.mrf.mxu0
        %v2576 = vadd.f32 %v2547, %v2575
        %2577 = vmatmul.bf16.gmra.mxu0 %v2304
        %v2578 = vpop.f32.mrf.mxu0
        %v2579 = vadd.f32 %v2550, %v2578
        %v2580 = vpop.f32.mrf.mxu0
        %v2581 = vadd.f32 %v2552, %v2580
        %2582 = vmatmul.bf16.gmra.mxu0 %v2306
        %v2583 = vpop.f32.mrf.mxu0
        %v2584 = vadd.f32 %v2555, %v2583
        %v2585 = vpop.f32.mrf.mxu0
        %v2586 = vadd.f32 %v2557, %v2585
        %2587 = vmatmul.bf16.gmra.mxu0 %v2308
        %v2588 = vpop.f32.mrf.mxu0
        %v2589 = vadd.f32 %v2560, %v2588
        %v2590 = vpop.f32.mrf.mxu0
        %v2591 = vadd.f32 %v2562, %v2590
        %2592 = vdwg.mxu0
        %v2593 = vadd.f32 %v2108, %v2516
        %v2594 = vadd.f32 %v2109, %v2574
        %v2595 = vadd.f32 %v2110, %v2518
        %v2596 = vadd.f32 %v2111, %v2576
        %v2597 = vadd.f32 %v2112, %v2521
        %v2598 = vadd.f32 %v2113, %v2579
        %v2599 = vadd.f32 %v2114, %v2523
        %v2600 = vadd.f32 %v2115, %v2581
        %v2601 = vadd.f32 %v2116, %v2526
        %v2602 = vadd.f32 %v2117, %v2584
        %v2603 = vadd.f32 %v2118, %v2528
        %v2604 = vadd.f32 %v2119, %v2586
        %v2605 = vadd.f32 %v2120, %v2531
        %v2606 = vadd.f32 %v2121, %v2589
        %v2607 = vadd.f32 %v2122, %v2533
        %v2608 = vadd.f32 %v2123, %v2591
        %v2609 = vld [vmem:[%s452] sm:$0xee]
        %v2610 = vld [vmem:[%s452 + $0x10] sm:$0xee]
        %v2611 = vld [vmem:[%s452 + $0x20] sm:$0xee]
        %v2612 = vld [vmem:[%s452 + $0x30] sm:$0xee]
        %v2613 = vld [vmem:[%s452 + $0x40] sm:$0xee]
        %v2614 = vld [vmem:[%s452 + $0x50] sm:$0xee]
        %v2615 = vld [vmem:[%s452 + $0x60] sm:$0xee]
        %v2616 = vld [vmem:[%s452 + $0x70] sm:$0xee]
        %v2633 = vrot.slane %v2609, 5
        %v2634 = vrot.slane %v2633, 4
        %v2635 = vrot.slane %v2125, 5
        %v2636 = vsel %vm1361, %v2634, %v2635
        %v2637 = vrot.slane %v2610, 5
        %v2638 = vrot.slane %v2637, 4
        %v2639 = vrot.slane %v2127, 5
        %v2640 = vsel %vm1361, %v2638, %v2639
        %v2641 = vrot.slane %v2611, 5
        %v2642 = vrot.slane %v2641, 4
        %v2643 = vrot.slane %v2129, 5
        %v2644 = vsel %vm1361, %v2642, %v2643
        %v2645 = vrot.slane %v2612, 5
        %v2646 = vrot.slane %v2645, 4
        %v2647 = vrot.slane %v2131, 5
        %v2648 = vsel %vm1361, %v2646, %v2647
        %v2649 = vrot.slane %v2613, 5
        %v2650 = vrot.slane %v2649, 4
        %v2651 = vrot.slane %v2133, 5
        %v2652 = vsel %vm1361, %v2650, %v2651
        %v2653 = vrot.slane %v2614, 5
        %v2654 = vrot.slane %v2653, 4
        %v2655 = vrot.slane %v2135, 5
        %v2656 = vsel %vm1361, %v2654, %v2655
        %v2657 = vrot.slane %v2615, 5
        %v2658 = vrot.slane %v2657, 4
        %v2659 = vrot.slane %v2137, 5
        %v2660 = vsel %vm1361, %v2658, %v2659
        %v2661 = vrot.slane %v2616, 5
        %v2662 = vrot.slane %v2661, 4
        %v2663 = vrot.slane %v2139, 5
        %v2664 = vsel %vm1361, %v2662, %v2663
        %s2665 = scalar_lea.vmem [#allocation7], 1280
        %v2666 = vld [vmem:[%s2665] sm:$0xff]
        %v2667 = vld [vmem:[%s2665 + $0x8] sm:$0xff]
        %v2668 = vld [vmem:[%s2665 + $0x10] sm:$0xff]
        %v2669 = vld [vmem:[%s2665 + $0x18] sm:$0xff]
        %v2670 = vld [vmem:[%s2665 + $0x20] sm:$0xff]
        %v2671 = vld [vmem:[%s2665 + $0x28] sm:$0xff]
        %v2672 = vld [vmem:[%s2665 + $0x30] sm:$0xff]
        %v2673 = vld [vmem:[%s2665 + $0x38] sm:$0xff]
        %v2674 = vld [vmem:[%s2665 + $0x40] sm:$0xff]
        %v2675 = vld [vmem:[%s2665 + $0x48] sm:$0xff]
        %v2676 = vld [vmem:[%s2665 + $0x50] sm:$0xff]
        %v2677 = vld [vmem:[%s2665 + $0x58] sm:$0xff]
        %v2678 = vld [vmem:[%s2665 + $0x60] sm:$0xff]
        %v2679 = vld [vmem:[%s2665 + $0x68] sm:$0xff]
        %v2680 = vld [vmem:[%s2665 + $0x70] sm:$0xff]
        %v2681 = vld [vmem:[%s2665 + $0x78] sm:$0xff]
        %v2682 = vld [vmem:[%s2665 + $0x80] sm:$0xff]
        %v2683 = vld [vmem:[%s2665 + $0x88] sm:$0xff]
        %v2684 = vld [vmem:[%s2665 + $0x90] sm:$0xff]
        %v2685 = vld [vmem:[%s2665 + $0x98] sm:$0xff]
        %v2686 = vld [vmem:[%s2665 + $0xa0] sm:$0xff]
        %v2687 = vld [vmem:[%s2665 + $0xa8] sm:$0xff]
        %v2688 = vld [vmem:[%s2665 + $0xb0] sm:$0xff]
        %v2689 = vld [vmem:[%s2665 + $0xb8] sm:$0xff]
        %v2690 = vld [vmem:[%s2665 + $0xc0] sm:$0xff]
        %v2691 = vld [vmem:[%s2665 + $0xc8] sm:$0xff]
        %v2692 = vld [vmem:[%s2665 + $0xd0] sm:$0xff]
        %v2693 = vld [vmem:[%s2665 + $0xd8] sm:$0xff]
        %v2694 = vld [vmem:[%s2665 + $0xe0] sm:$0xff]
        %v2695 = vld [vmem:[%s2665 + $0xe8] sm:$0xff]
        %v2696 = vld [vmem:[%s2665 + $0xf0] sm:$0xff]
        %v2697 = vld [vmem:[%s2665 + $0xf8] sm:$0xff]
        %v2698 = vunpack.c.l.b16 %v2636
        %v2699 = vunpack.c.h.b16 %v2636
        %v2700 = vunpack.c.l.b16 %v2640
        %v2701 = vunpack.c.h.b16 %v2640
        %v2702 = vunpack.c.l.b16 %v2644
        %v2703 = vunpack.c.h.b16 %v2644
        %v2704 = vunpack.c.l.b16 %v2648
        %v2705 = vunpack.c.h.b16 %v2648
        %v2706 = vunpack.c.l.b16 %v2652
        %v2707 = vunpack.c.h.b16 %v2652
        %v2708 = vunpack.c.l.b16 %v2656
        %v2709 = vunpack.c.h.b16 %v2656
        %v2710 = vunpack.c.l.b16 %v2660
        %v2711 = vunpack.c.h.b16 %v2660
        %v2712 = vunpack.c.l.b16 %v2664
        %v2713 = vunpack.c.h.b16 %v2664
        %v2714 = vpack.c.b16 %v2700, %v2698
        %v2715 = vpack.c.b16 %v2701, %v2699
        %v2716 = vpack.c.b16 %v2704, %v2702
        %v2717 = vpack.c.b16 %v2705, %v2703
        %v2718 = vpack.c.b16 %v2708, %v2706
        %v2719 = vpack.c.b16 %v2709, %v2707
        %v2720 = vpack.c.b16 %v2712, %v2710
        %v2721 = vpack.c.b16 %v2713, %v2711
        %v2762 = vunpack.c.l.b16 %v2666
        %v2763 = vunpack.c.h.b16 %v2666
        %v2764 = vunpack.c.l.b16 %v2667
        %v2765 = vunpack.c.h.b16 %v2667
        %v2766 = vunpack.c.l.b16 %v2668
        %v2767 = vunpack.c.h.b16 %v2668
        %v2768 = vunpack.c.l.b16 %v2669
        %v2769 = vunpack.c.h.b16 %v2669
        %v2770 = vunpack.c.l.b16 %v2670
        %v2771 = vunpack.c.h.b16 %v2670
        %v2772 = vunpack.c.l.b16 %v2671
        %v2773 = vunpack.c.h.b16 %v2671
        %v2774 = vunpack.c.l.b16 %v2672
        %v2775 = vunpack.c.h.b16 %v2672
        %v2776 = vunpack.c.l.b16 %v2673
        %v2777 = vunpack.c.h.b16 %v2673
        %v2778 = vunpack.c.l.b16 %v2674
        %v2779 = vunpack.c.h.b16 %v2674
        %v2780 = vunpack.c.l.b16 %v2675
        %v2781 = vunpack.c.h.b16 %v2675
        %v2782 = vunpack.c.l.b16 %v2676
        %v2783 = vunpack.c.h.b16 %v2676
        %v2784 = vunpack.c.l.b16 %v2677
        %v2785 = vunpack.c.h.b16 %v2677
        %v2786 = vunpack.c.l.b16 %v2678
        %v2787 = vunpack.c.h.b16 %v2678
        %v2788 = vunpack.c.l.b16 %v2679
        %v2789 = vunpack.c.h.b16 %v2679
        %v2790 = vunpack.c.l.b16 %v2680
        %v2791 = vunpack.c.h.b16 %v2680
        %v2792 = vunpack.c.l.b16 %v2681
        %v2793 = vunpack.c.h.b16 %v2681
        %v2794 = vunpack.c.l.b16 %v2682
        %v2795 = vunpack.c.h.b16 %v2682
        %v2796 = vunpack.c.l.b16 %v2683
        %v2797 = vunpack.c.h.b16 %v2683
        %v2798 = vunpack.c.l.b16 %v2684
        %v2799 = vunpack.c.h.b16 %v2684
        %v2800 = vunpack.c.l.b16 %v2685
        %v2801 = vunpack.c.h.b16 %v2685
        %v2802 = vunpack.c.l.b16 %v2686
        %v2803 = vunpack.c.h.b16 %v2686
        %v2804 = vunpack.c.l.b16 %v2687
        %v2805 = vunpack.c.h.b16 %v2687
        %v2806 = vunpack.c.l.b16 %v2688
        %v2807 = vunpack.c.h.b16 %v2688
        %v2808 = vunpack.c.l.b16 %v2689
        %v2809 = vunpack.c.h.b16 %v2689
        %v2810 = vunpack.c.l.b16 %v2690
        %v2811 = vunpack.c.h.b16 %v2690
        %v2812 = vunpack.c.l.b16 %v2691
        %v2813 = vunpack.c.h.b16 %v2691
        %v2814 = vunpack.c.l.b16 %v2692
        %v2815 = vunpack.c.h.b16 %v2692
        %v2816 = vunpack.c.l.b16 %v2693
        %v2817 = vunpack.c.h.b16 %v2693
        %v2818 = vunpack.c.l.b16 %v2694
        %v2819 = vunpack.c.h.b16 %v2694
        %v2820 = vunpack.c.l.b16 %v2695
        %v2821 = vunpack.c.h.b16 %v2695
        %v2822 = vunpack.c.l.b16 %v2696
        %v2823 = vunpack.c.h.b16 %v2696
        %v2824 = vunpack.c.l.b16 %v2697
        %v2825 = vunpack.c.h.b16 %v2697
        %v2826 = vpack.c.b16 %v2764, %v2762
        %v2827 = vpack.c.b16 %v2765, %v2763
        %v2828 = vpack.c.b16 %v2768, %v2766
        %v2829 = vpack.c.b16 %v2769, %v2767
        %v2830 = vpack.c.b16 %v2772, %v2770
        %v2831 = vpack.c.b16 %v2773, %v2771
        %v2832 = vpack.c.b16 %v2776, %v2774
        %v2833 = vpack.c.b16 %v2777, %v2775
        %v2834 = vpack.c.b16 %v2780, %v2778
        %v2835 = vpack.c.b16 %v2781, %v2779
        %v2836 = vpack.c.b16 %v2784, %v2782
        %v2837 = vpack.c.b16 %v2785, %v2783
        %v2838 = vpack.c.b16 %v2788, %v2786
        %v2839 = vpack.c.b16 %v2789, %v2787
        %v2840 = vpack.c.b16 %v2792, %v2790
        %v2841 = vpack.c.b16 %v2793, %v2791
        %v2842 = vpack.c.b16 %v2796, %v2794
        %v2843 = vpack.c.b16 %v2797, %v2795
        %v2844 = vpack.c.b16 %v2800, %v2798
        %v2845 = vpack.c.b16 %v2801, %v2799
        %v2846 = vpack.c.b16 %v2804, %v2802
        %v2847 = vpack.c.b16 %v2805, %v2803
        %v2848 = vpack.c.b16 %v2808, %v2806
        %v2849 = vpack.c.b16 %v2809, %v2807
        %v2850 = vpack.c.b16 %v2812, %v2810
        %v2851 = vpack.c.b16 %v2813, %v2811
        %v2852 = vpack.c.b16 %v2816, %v2814
        %v2853 = vpack.c.b16 %v2817, %v2815
        %v2854 = vpack.c.b16 %v2820, %v2818
        %v2855 = vpack.c.b16 %v2821, %v2819
        %v2856 = vpack.c.b16 %v2824, %v2822
        %v2857 = vpack.c.b16 %v2825, %v2823
        %2890 = vmatpush.bf16.msra.mxu0 %v2840
        %2891 = vmatpush.bf16.msra.mxu0 %v2838
        %2892 = vmatpush.bf16.msra.mxu0 %v2836
        %2893 = vmatpush.bf16.msra.mxu0 %v2834
        %2894 = vmatpush.bf16.msra.mxu0 %v2832
        %2895 = vmatpush.bf16.msra.mxu0 %v2830
        %2896 = vmatpush.bf16.msra.mxu0 %v2828
        %2897 = vmatpush.bf16.msra.mxu0 %v2826
        %2898 = vmatmul.bf16.gmra.mxu0 %v2714
        %v2899 = vpop.f32.mrf.mxu0
        %v2900 = vadd.f32 0.0, %v2899
        %v2901 = vpop.f32.mrf.mxu0
        %v2902 = vadd.f32 0.0, %v2901
        %2903 = vmatmul.bf16.gmra.mxu0 %v2716
        %v2904 = vpop.f32.mrf.mxu0
        %v2905 = vadd.f32 0.0, %v2904
        %v2906 = vpop.f32.mrf.mxu0
        %v2907 = vadd.f32 0.0, %v2906
        %2908 = vmatmul.bf16.gmra.mxu0 %v2718
        %v2909 = vpop.f32.mrf.mxu0
        %v2910 = vadd.f32 0.0, %v2909
        %v2911 = vpop.f32.mrf.mxu0
        %v2912 = vadd.f32 0.0, %v2911
        %2913 = vmatmul.bf16.gmra.mxu0 %v2720
        %v2914 = vpop.f32.mrf.mxu0
        %v2915 = vadd.f32 0.0, %v2914
        %v2916 = vpop.f32.mrf.mxu0
        %v2917 = vadd.f32 0.0, %v2916
        %2918 = vdwg.mxu0
        %2919 = vmatpush.bf16.msra.mxu0 %v2856
        %2920 = vmatpush.bf16.msra.mxu0 %v2854
        %2921 = vmatpush.bf16.msra.mxu0 %v2852
        %2922 = vmatpush.bf16.msra.mxu0 %v2850
        %2923 = vmatpush.bf16.msra.mxu0 %v2848
        %2924 = vmatpush.bf16.msra.mxu0 %v2846
        %2925 = vmatpush.bf16.msra.mxu0 %v2844
        %2926 = vmatpush.bf16.msra.mxu0 %v2842
        %2927 = vmatmul.bf16.gmra.mxu0 %v2715
        %v2928 = vpop.f32.mrf.mxu0
        %v2929 = vadd.f32 %v2900, %v2928
        %v2930 = vpop.f32.mrf.mxu0
        %v2931 = vadd.f32 %v2902, %v2930
        %2932 = vmatmul.bf16.gmra.mxu0 %v2717
        %v2933 = vpop.f32.mrf.mxu0
        %v2934 = vadd.f32 %v2905, %v2933
        %v2935 = vpop.f32.mrf.mxu0
        %v2936 = vadd.f32 %v2907, %v2935
        %2937 = vmatmul.bf16.gmra.mxu0 %v2719
        %v2938 = vpop.f32.mrf.mxu0
        %v2939 = vadd.f32 %v2910, %v2938
        %v2940 = vpop.f32.mrf.mxu0
        %v2941 = vadd.f32 %v2912, %v2940
        %2942 = vmatmul.bf16.gmra.mxu0 %v2721
        %v2943 = vpop.f32.mrf.mxu0
        %v2944 = vadd.f32 %v2915, %v2943
        %v2945 = vpop.f32.mrf.mxu0
        %v2946 = vadd.f32 %v2917, %v2945
        %2947 = vdwg.mxu0
        %2948 = vmatpush.bf16.msra.mxu0 %v2841
        %2949 = vmatpush.bf16.msra.mxu0 %v2839
        %2950 = vmatpush.bf16.msra.mxu0 %v2837
        %2951 = vmatpush.bf16.msra.mxu0 %v2835
        %2952 = vmatpush.bf16.msra.mxu0 %v2833
        %2953 = vmatpush.bf16.msra.mxu0 %v2831
        %2954 = vmatpush.bf16.msra.mxu0 %v2829
        %2955 = vmatpush.bf16.msra.mxu0 %v2827
        %2956 = vmatmul.bf16.gmra.mxu0 %v2714
        %v2957 = vpop.f32.mrf.mxu0
        %v2958 = vadd.f32 0.0, %v2957
        %v2959 = vpop.f32.mrf.mxu0
        %v2960 = vadd.f32 0.0, %v2959
        %2961 = vmatmul.bf16.gmra.mxu0 %v2716
        %v2962 = vpop.f32.mrf.mxu0
        %v2963 = vadd.f32 0.0, %v2962
        %v2964 = vpop.f32.mrf.mxu0
        %v2965 = vadd.f32 0.0, %v2964
        %2966 = vmatmul.bf16.gmra.mxu0 %v2718
        %v2967 = vpop.f32.mrf.mxu0
        %v2968 = vadd.f32 0.0, %v2967
        %v2969 = vpop.f32.mrf.mxu0
        %v2970 = vadd.f32 0.0, %v2969
        %2971 = vmatmul.bf16.gmra.mxu0 %v2720
        %v2972 = vpop.f32.mrf.mxu0
        %v2973 = vadd.f32 0.0, %v2972
        %v2974 = vpop.f32.mrf.mxu0
        %v2975 = vadd.f32 0.0, %v2974
        %2976 = vdwg.mxu0
        %2977 = vmatpush.bf16.msra.mxu0 %v2857
        %2978 = vmatpush.bf16.msra.mxu0 %v2855
        %2979 = vmatpush.bf16.msra.mxu0 %v2853
        %2980 = vmatpush.bf16.msra.mxu0 %v2851
        %2981 = vmatpush.bf16.msra.mxu0 %v2849
        %2982 = vmatpush.bf16.msra.mxu0 %v2847
        %2983 = vmatpush.bf16.msra.mxu0 %v2845
        %2984 = vmatpush.bf16.msra.mxu0 %v2843
        %2985 = vmatmul.bf16.gmra.mxu0 %v2715
        %v2986 = vpop.f32.mrf.mxu0
        %v2987 = vadd.f32 %v2958, %v2986
        %v2988 = vpop.f32.mrf.mxu0
        %v2989 = vadd.f32 %v2960, %v2988
        %2990 = vmatmul.bf16.gmra.mxu0 %v2717
        %v2991 = vpop.f32.mrf.mxu0
        %v2992 = vadd.f32 %v2963, %v2991
        %v2993 = vpop.f32.mrf.mxu0
        %v2994 = vadd.f32 %v2965, %v2993
        %2995 = vmatmul.bf16.gmra.mxu0 %v2719
        %v2996 = vpop.f32.mrf.mxu0
        %v2997 = vadd.f32 %v2968, %v2996
        %v2998 = vpop.f32.mrf.mxu0
        %v2999 = vadd.f32 %v2970, %v2998
        %3000 = vmatmul.bf16.gmra.mxu0 %v2721
        %v3001 = vpop.f32.mrf.mxu0
        %v3002 = vadd.f32 %v2973, %v3001
        %v3003 = vpop.f32.mrf.mxu0
        %v3004 = vadd.f32 %v2975, %v3003
        %3005 = vdwg.mxu0
        %v3006 = vadd.f32 %v2593, %v2929
        %v3007 = vadd.f32 %v2594, %v2987
        %v3008 = vadd.f32 %v2595, %v2931
        %v3009 = vadd.f32 %v2596, %v2989
        %v3010 = vadd.f32 %v2597, %v2934
        %v3011 = vadd.f32 %v2598, %v2992
        %v3012 = vadd.f32 %v2599, %v2936
        %v3013 = vadd.f32 %v2600, %v2994
        %v3014 = vadd.f32 %v2601, %v2939
        %v3015 = vadd.f32 %v2602, %v2997
        %v3016 = vadd.f32 %v2603, %v2941
        %v3017 = vadd.f32 %v2604, %v2999
        %v3018 = vadd.f32 %v2605, %v2944
        %v3019 = vadd.f32 %v2606, %v3002
        %v3020 = vadd.f32 %v2607, %v2946
        %v3021 = vadd.f32 %v2608, %v3004
        %s3022 = scalar_lea.vmem [#allocation2], 32
        %v3023 = vld [vmem:[%s3022] sm:$0xff]
        %v3024 = vld [vmem:[%s3022 + $0x10] sm:$0xff]
        %v3025 = vld [vmem:[%s3022 + $0x20] sm:$0xff]
        %v3026 = vld [vmem:[%s3022 + $0x30] sm:$0xff]
        %v3027 = vld [vmem:[%s3022 + $0x40] sm:$0xff]
        %v3028 = vld [vmem:[%s3022 + $0x50] sm:$0xff]
        %v3029 = vld [vmem:[%s3022 + $0x60] sm:$0xff]
        %v3030 = vld [vmem:[%s3022 + $0x70] sm:$0xff]
        %s3031 = scalar_lea.vmem [#allocation7], 1536
        %v3032 = vld [vmem:[%s3031] sm:$0xff]
        %v3033 = vld [vmem:[%s3031 + $0x8] sm:$0xff]
        %v3034 = vld [vmem:[%s3031 + $0x10] sm:$0xff]
        %v3035 = vld [vmem:[%s3031 + $0x18] sm:$0xff]
        %v3036 = vld [vmem:[%s3031 + $0x20] sm:$0xff]
        %v3037 = vld [vmem:[%s3031 + $0x28] sm:$0xff]
        %v3038 = vld [vmem:[%s3031 + $0x30] sm:$0xff]
        %v3039 = vld [vmem:[%s3031 + $0x38] sm:$0xff]
        %v3040 = vld [vmem:[%s3031 + $0x40] sm:$0xff]
        %v3041 = vld [vmem:[%s3031 + $0x48] sm:$0xff]
        %v3042 = vld [vmem:[%s3031 + $0x50] sm:$0xff]
        %v3043 = vld [vmem:[%s3031 + $0x58] sm:$0xff]
        %v3044 = vld [vmem:[%s3031 + $0x60] sm:$0xff]
        %v3045 = vld [vmem:[%s3031 + $0x68] sm:$0xff]
        %v3046 = vld [vmem:[%s3031 + $0x70] sm:$0xff]
        %v3047 = vld [vmem:[%s3031 + $0x78] sm:$0xff]
        %v3048 = vld [vmem:[%s3031 + $0x80] sm:$0xff]
        %v3049 = vld [vmem:[%s3031 + $0x88] sm:$0xff]
        %v3050 = vld [vmem:[%s3031 + $0x90] sm:$0xff]
        %v3051 = vld [vmem:[%s3031 + $0x98] sm:$0xff]
        %v3052 = vld [vmem:[%s3031 + $0xa0] sm:$0xff]
        %v3053 = vld [vmem:[%s3031 + $0xa8] sm:$0xff]
        %v3054 = vld [vmem:[%s3031 + $0xb0] sm:$0xff]
        %v3055 = vld [vmem:[%s3031 + $0xb8] sm:$0xff]
        %v3056 = vld [vmem:[%s3031 + $0xc0] sm:$0xff]
        %v3057 = vld [vmem:[%s3031 + $0xc8] sm:$0xff]
        %v3058 = vld [vmem:[%s3031 + $0xd0] sm:$0xff]
        %v3059 = vld [vmem:[%s3031 + $0xd8] sm:$0xff]
        %v3060 = vld [vmem:[%s3031 + $0xe0] sm:$0xff]
        %v3061 = vld [vmem:[%s3031 + $0xe8] sm:$0xff]
        %v3062 = vld [vmem:[%s3031 + $0xf0] sm:$0xff]
        %v3063 = vld [vmem:[%s3031 + $0xf8] sm:$0xff]
        %v3072 = vunpack.c.l.b16 %v3023
        %v3073 = vunpack.c.h.b16 %v3023
        %v3074 = vunpack.c.l.b16 %v3024
        %v3075 = vunpack.c.h.b16 %v3024
        %v3076 = vunpack.c.l.b16 %v3025
        %v3077 = vunpack.c.h.b16 %v3025
        %v3078 = vunpack.c.l.b16 %v3026
        %v3079 = vunpack.c.h.b16 %v3026
        %v3080 = vunpack.c.l.b16 %v3027
        %v3081 = vunpack.c.h.b16 %v3027
        %v3082 = vunpack.c.l.b16 %v3028
        %v3083 = vunpack.c.h.b16 %v3028
        %v3084 = vunpack.c.l.b16 %v3029
        %v3085 = vunpack.c.h.b16 %v3029
        %v3086 = vunpack.c.l.b16 %v3030
        %v3087 = vunpack.c.h.b16 %v3030
        %v3088 = vpack.c.b16 %v3074, %v3072
        %v3089 = vpack.c.b16 %v3075, %v3073
        %v3090 = vpack.c.b16 %v3078, %v3076
        %v3091 = vpack.c.b16 %v3079, %v3077
        %v3092 = vpack.c.b16 %v3082, %v3080
        %v3093 = vpack.c.b16 %v3083, %v3081
        %v3094 = vpack.c.b16 %v3086, %v3084
        %v3095 = vpack.c.b16 %v3087, %v3085
        %v3136 = vunpack.c.l.b16 %v3032
        %v3137 = vunpack.c.h.b16 %v3032
        %v3138 = vunpack.c.l.b16 %v3033
        %v3139 = vunpack.c.h.b16 %v3033
        %v3140 = vunpack.c.l.b16 %v3034
        %v3141 = vunpack.c.h.b16 %v3034
        %v3142 = vunpack.c.l.b16 %v3035
        %v3143 = vunpack.c.h.b16 %v3035
        %v3144 = vunpack.c.l.b16 %v3036
        %v3145 = vunpack.c.h.b16 %v3036
        %v3146 = vunpack.c.l.b16 %v3037
        %v3147 = vunpack.c.h.b16 %v3037
        %v3148 = vunpack.c.l.b16 %v3038
        %v3149 = vunpack.c.h.b16 %v3038
        %v3150 = vunpack.c.l.b16 %v3039
        %v3151 = vunpack.c.h.b16 %v3039
        %v3152 = vunpack.c.l.b16 %v3040
        %v3153 = vunpack.c.h.b16 %v3040
        %v3154 = vunpack.c.l.b16 %v3041
        %v3155 = vunpack.c.h.b16 %v3041
        %v3156 = vunpack.c.l.b16 %v3042
        %v3157 = vunpack.c.h.b16 %v3042
        %v3158 = vunpack.c.l.b16 %v3043
        %v3159 = vunpack.c.h.b16 %v3043
        %v3160 = vunpack.c.l.b16 %v3044
        %v3161 = vunpack.c.h.b16 %v3044
        %v3162 = vunpack.c.l.b16 %v3045
        %v3163 = vunpack.c.h.b16 %v3045
        %v3164 = vunpack.c.l.b16 %v3046
        %v3165 = vunpack.c.h.b16 %v3046
        %v3166 = vunpack.c.l.b16 %v3047
        %v3167 = vunpack.c.h.b16 %v3047
        %v3168 = vunpack.c.l.b16 %v3048
        %v3169 = vunpack.c.h.b16 %v3048
        %v3170 = vunpack.c.l.b16 %v3049
        %v3171 = vunpack.c.h.b16 %v3049
        %v3172 = vunpack.c.l.b16 %v3050
        %v3173 = vunpack.c.h.b16 %v3050
        %v3174 = vunpack.c.l.b16 %v3051
        %v3175 = vunpack.c.h.b16 %v3051
        %v3176 = vunpack.c.l.b16 %v3052
        %v3177 = vunpack.c.h.b16 %v3052
        %v3178 = vunpack.c.l.b16 %v3053
        %v3179 = vunpack.c.h.b16 %v3053
        %v3180 = vunpack.c.l.b16 %v3054
        %v3181 = vunpack.c.h.b16 %v3054
        %v3182 = vunpack.c.l.b16 %v3055
        %v3183 = vunpack.c.h.b16 %v3055
        %v3184 = vunpack.c.l.b16 %v3056
        %v3185 = vunpack.c.h.b16 %v3056
        %v3186 = vunpack.c.l.b16 %v3057
        %v3187 = vunpack.c.h.b16 %v3057
        %v3188 = vunpack.c.l.b16 %v3058
        %v3189 = vunpack.c.h.b16 %v3058
        %v3190 = vunpack.c.l.b16 %v3059
        %v3191 = vunpack.c.h.b16 %v3059
        %v3192 = vunpack.c.l.b16 %v3060
        %v3193 = vunpack.c.h.b16 %v3060
        %v3194 = vunpack.c.l.b16 %v3061
        %v3195 = vunpack.c.h.b16 %v3061
        %v3196 = vunpack.c.l.b16 %v3062
        %v3197 = vunpack.c.h.b16 %v3062
        %v3198 = vunpack.c.l.b16 %v3063
        %v3199 = vunpack.c.h.b16 %v3063
        %v3200 = vpack.c.b16 %v3138, %v3136
        %v3201 = vpack.c.b16 %v3139, %v3137
        %v3202 = vpack.c.b16 %v3142, %v3140
        %v3203 = vpack.c.b16 %v3143, %v3141
        %v3204 = vpack.c.b16 %v3146, %v3144
        %v3205 = vpack.c.b16 %v3147, %v3145
        %v3206 = vpack.c.b16 %v3150, %v3148
        %v3207 = vpack.c.b16 %v3151, %v3149
        %v3208 = vpack.c.b16 %v3154, %v3152
        %v3209 = vpack.c.b16 %v3155, %v3153
        %v3210 = vpack.c.b16 %v3158, %v3156
        %v3211 = vpack.c.b16 %v3159, %v3157
        %v3212 = vpack.c.b16 %v3162, %v3160
        %v3213 = vpack.c.b16 %v3163, %v3161
        %v3214 = vpack.c.b16 %v3166, %v3164
        %v3215 = vpack.c.b16 %v3167, %v3165
        %v3216 = vpack.c.b16 %v3170, %v3168
        %v3217 = vpack.c.b16 %v3171, %v3169
        %v3218 = vpack.c.b16 %v3174, %v3172
        %v3219 = vpack.c.b16 %v3175, %v3173
        %v3220 = vpack.c.b16 %v3178, %v3176
        %v3221 = vpack.c.b16 %v3179, %v3177
        %v3222 = vpack.c.b16 %v3182, %v3180
        %v3223 = vpack.c.b16 %v3183, %v3181
        %v3224 = vpack.c.b16 %v3186, %v3184
        %v3225 = vpack.c.b16 %v3187, %v3185
        %v3226 = vpack.c.b16 %v3190, %v3188
        %v3227 = vpack.c.b16 %v3191, %v3189
        %v3228 = vpack.c.b16 %v3194, %v3192
        %v3229 = vpack.c.b16 %v3195, %v3193
        %v3230 = vpack.c.b16 %v3198, %v3196
        %v3231 = vpack.c.b16 %v3199, %v3197
        %3264 = vmatpush.bf16.msra.mxu0 %v3214
        %3265 = vmatpush.bf16.msra.mxu0 %v3212
        %3266 = vmatpush.bf16.msra.mxu0 %v3210
        %3267 = vmatpush.bf16.msra.mxu0 %v3208
        %3268 = vmatpush.bf16.msra.mxu0 %v3206
        %3269 = vmatpush.bf16.msra.mxu0 %v3204
        %3270 = vmatpush.bf16.msra.mxu0 %v3202
        %3271 = vmatpush.bf16.msra.mxu0 %v3200
        %3272 = vmatmul.bf16.gmra.mxu0 %v3088
        %v3273 = vpop.f32.mrf.mxu0
        %v3274 = vadd.f32 0.0, %v3273
        %v3275 = vpop.f32.mrf.mxu0
        %v3276 = vadd.f32 0.0, %v3275
        %3277 = vmatmul.bf16.gmra.mxu0 %v3090
        %v3278 = vpop.f32.mrf.mxu0
        %v3279 = vadd.f32 0.0, %v3278
        %v3280 = vpop.f32.mrf.mxu0
        %v3281 = vadd.f32 0.0, %v3280
        %3282 = vmatmul.bf16.gmra.mxu0 %v3092
        %v3283 = vpop.f32.mrf.mxu0
        %v3284 = vadd.f32 0.0, %v3283
        %v3285 = vpop.f32.mrf.mxu0
        %v3286 = vadd.f32 0.0, %v3285
        %3287 = vmatmul.bf16.gmra.mxu0 %v3094
        %v3288 = vpop.f32.mrf.mxu0
        %v3289 = vadd.f32 0.0, %v3288
        %v3290 = vpop.f32.mrf.mxu0
        %v3291 = vadd.f32 0.0, %v3290
        %3292 = vdwg.mxu0
        %3293 = vmatpush.bf16.msra.mxu0 %v3230
        %3294 = vmatpush.bf16.msra.mxu0 %v3228
        %3295 = vmatpush.bf16.msra.mxu0 %v3226
        %3296 = vmatpush.bf16.msra.mxu0 %v3224
        %3297 = vmatpush.bf16.msra.mxu0 %v3222
        %3298 = vmatpush.bf16.msra.mxu0 %v3220
        %3299 = vmatpush.bf16.msra.mxu0 %v3218
        %3300 = vmatpush.bf16.msra.mxu0 %v3216
        %3301 = vmatmul.bf16.gmra.mxu0 %v3089
        %v3302 = vpop.f32.mrf.mxu0
        %v3303 = vadd.f32 %v3274, %v3302
        %v3304 = vpop.f32.mrf.mxu0
        %v3305 = vadd.f32 %v3276, %v3304
        %3306 = vmatmul.bf16.gmra.mxu0 %v3091
        %v3307 = vpop.f32.mrf.mxu0
        %v3308 = vadd.f32 %v3279, %v3307
        %v3309 = vpop.f32.mrf.mxu0
        %v3310 = vadd.f32 %v3281, %v3309
        %3311 = vmatmul.bf16.gmra.mxu0 %v3093
        %v3312 = vpop.f32.mrf.mxu0
        %v3313 = vadd.f32 %v3284, %v3312
        %v3314 = vpop.f32.mrf.mxu0
        %v3315 = vadd.f32 %v3286, %v3314
        %3316 = vmatmul.bf16.gmra.mxu0 %v3095
        %v3317 = vpop.f32.mrf.mxu0
        %v3318 = vadd.f32 %v3289, %v3317
        %v3319 = vpop.f32.mrf.mxu0
        %v3320 = vadd.f32 %v3291, %v3319
        %3321 = vdwg.mxu0
        %3322 = vmatpush.bf16.msra.mxu0 %v3215
        %3323 = vmatpush.bf16.msra.mxu0 %v3213
        %3324 = vmatpush.bf16.msra.mxu0 %v3211
        %3325 = vmatpush.bf16.msra.mxu0 %v3209
        %3326 = vmatpush.bf16.msra.mxu0 %v3207
        %3327 = vmatpush.bf16.msra.mxu0 %v3205
        %3328 = vmatpush.bf16.msra.mxu0 %v3203
        %3329 = vmatpush.bf16.msra.mxu0 %v3201
        %3330 = vmatmul.bf16.gmra.mxu0 %v3088
        %v3331 = vpop.f32.mrf.mxu0
        %v3332 = vadd.f32 0.0, %v3331
        %v3333 = vpop.f32.mrf.mxu0
        %v3334 = vadd.f32 0.0, %v3333
        %3335 = vmatmul.bf16.gmra.mxu0 %v3090
        %v3336 = vpop.f32.mrf.mxu0
        %v3337 = vadd.f32 0.0, %v3336
        %v3338 = vpop.f32.mrf.mxu0
        %v3339 = vadd.f32 0.0, %v3338
        %3340 = vmatmul.bf16.gmra.mxu0 %v3092
        %v3341 = vpop.f32.mrf.mxu0
        %v3342 = vadd.f32 0.0, %v3341
        %v3343 = vpop.f32.mrf.mxu0
        %v3344 = vadd.f32 0.0, %v3343
        %3345 = vmatmul.bf16.gmra.mxu0 %v3094
        %v3346 = vpop.f32.mrf.mxu0
        %v3347 = vadd.f32 0.0, %v3346
        %v3348 = vpop.f32.mrf.mxu0
        %v3349 = vadd.f32 0.0, %v3348
        %3350 = vdwg.mxu0
        %3351 = vmatpush.bf16.msra.mxu0 %v3231
        %3352 = vmatpush.bf16.msra.mxu0 %v3229
        %3353 = vmatpush.bf16.msra.mxu0 %v3227
        %3354 = vmatpush.bf16.msra.mxu0 %v3225
        %3355 = vmatpush.bf16.msra.mxu0 %v3223
        %3356 = vmatpush.bf16.msra.mxu0 %v3221
        %3357 = vmatpush.bf16.msra.mxu0 %v3219
        %3358 = vmatpush.bf16.msra.mxu0 %v3217
        %3359 = vmatmul.bf16.gmra.mxu0 %v3089
        %v3360 = vpop.f32.mrf.mxu0
        %v3361 = vadd.f32 %v3332, %v3360
        %v3362 = vpop.f32.mrf.mxu0
        %v3363 = vadd.f32 %v3334, %v3362
        %3364 = vmatmul.bf16.gmra.mxu0 %v3091
        %v3365 = vpop.f32.mrf.mxu0
        %v3366 = vadd.f32 %v3337, %v3365
        %v3367 = vpop.f32.mrf.mxu0
        %v3368 = vadd.f32 %v3339, %v3367
        %3369 = vmatmul.bf16.gmra.mxu0 %v3093
        %v3370 = vpop.f32.mrf.mxu0
        %v3371 = vadd.f32 %v3342, %v3370
        %v3372 = vpop.f32.mrf.mxu0
        %v3373 = vadd.f32 %v3344, %v3372
        %3374 = vmatmul.bf16.gmra.mxu0 %v3095
        %v3375 = vpop.f32.mrf.mxu0
        %v3376 = vadd.f32 %v3347, %v3375
        %v3377 = vpop.f32.mrf.mxu0
        %v3378 = vadd.f32 %v3349, %v3377
        %3379 = vdwg.mxu0
        %v3380 = vadd.f32 %v3006, %v3303
        %v3381 = vadd.f32 %v3007, %v3361
        %v3382 = vadd.f32 %v3008, %v3305
        %v3383 = vadd.f32 %v3009, %v3363
        %v3384 = vadd.f32 %v3010, %v3308
        %v3385 = vadd.f32 %v3011, %v3366
        %v3386 = vadd.f32 %v3012, %v3310
        %v3387 = vadd.f32 %v3013, %v3368
        %v3388 = vadd.f32 %v3014, %v3313
        %v3389 = vadd.f32 %v3015, %v3371
        %v3390 = vadd.f32 %v3016, %v3315
        %v3391 = vadd.f32 %v3017, %v3373
        %v3392 = vadd.f32 %v3018, %v3318
        %v3393 = vadd.f32 %v3019, %v3376
        %v3394 = vadd.f32 %v3020, %v3320
        %v3395 = vadd.f32 %v3021, %v3378
        %v3396 = vld [vmem:[%s3022] sm:$0xff]
        %v3397 = vld [vmem:[%s3022 + $0x8] sm:$0x11]
        %v3398 = vld [vmem:[%s3022 + $0x10] sm:$0xff]
        %v3399 = vld [vmem:[%s3022 + $0x18] sm:$0x11]
        %v3400 = vld [vmem:[%s3022 + $0x20] sm:$0xff]
        %v3401 = vld [vmem:[%s3022 + $0x28] sm:$0x11]
        %v3402 = vld [vmem:[%s3022 + $0x30] sm:$0xff]
        %v3403 = vld [vmem:[%s3022 + $0x38] sm:$0x11]
        %v3404 = vld [vmem:[%s3022 + $0x40] sm:$0xff]
        %v3405 = vld [vmem:[%s3022 + $0x48] sm:$0x11]
        %v3406 = vld [vmem:[%s3022 + $0x50] sm:$0xff]
        %v3407 = vld [vmem:[%s3022 + $0x58] sm:$0x11]
        %v3408 = vld [vmem:[%s3022 + $0x60] sm:$0xff]
        %v3409 = vld [vmem:[%s3022 + $0x68] sm:$0x11]
        %v3410 = vld [vmem:[%s3022 + $0x70] sm:$0xff]
        %v3411 = vld [vmem:[%s3022 + $0x78] sm:$0x11]
        %v3413 = vshrl.u32 %v3396, 16
        %v3415 = vrot.slane %v3413, 4
        %v3416 = vshll.u32 %v3396, 16
        %v3418 = vrot.slane %v3416, 5
        %v3419 = vor.u32 %v3415, %v3418
        %v3420 = vrot.slane %v3419, 4
        %v3422 = vshll.u32 %v3397, 16
        %v3424 = vrot.slane %v3422, 5
        %v3425 = vsel %vm565, %v3420, %v3424
        %v3427 = vshrl.u32 %v3398, 16
        %v3429 = vrot.slane %v3427, 4
        %v3430 = vshll.u32 %v3398, 16
        %v3432 = vrot.slane %v3430, 5
        %v3433 = vor.u32 %v3429, %v3432
        %v3434 = vrot.slane %v3433, 4
        %v3436 = vshll.u32 %v3399, 16
        %v3438 = vrot.slane %v3436, 5
        %v3439 = vsel %vm565, %v3434, %v3438
        %v3441 = vshrl.u32 %v3400, 16
        %v3443 = vrot.slane %v3441, 4
        %v3444 = vshll.u32 %v3400, 16
        %v3446 = vrot.slane %v3444, 5
        %v3447 = vor.u32 %v3443, %v3446
        %v3448 = vrot.slane %v3447, 4
        %v3450 = vshll.u32 %v3401, 16
        %v3452 = vrot.slane %v3450, 5
        %v3453 = vsel %vm565, %v3448, %v3452
        %v3455 = vshrl.u32 %v3402, 16
        %v3457 = vrot.slane %v3455, 4
        %v3458 = vshll.u32 %v3402, 16
        %v3460 = vrot.slane %v3458, 5
        %v3461 = vor.u32 %v3457, %v3460
        %v3462 = vrot.slane %v3461, 4
        %v3464 = vshll.u32 %v3403, 16
        %v3466 = vrot.slane %v3464, 5
        %v3467 = vsel %vm565, %v3462, %v3466
        %v3469 = vshrl.u32 %v3404, 16
        %v3471 = vrot.slane %v3469, 4
        %v3472 = vshll.u32 %v3404, 16
        %v3474 = vrot.slane %v3472, 5
        %v3475 = vor.u32 %v3471, %v3474
        %v3476 = vrot.slane %v3475, 4
        %v3478 = vshll.u32 %v3405, 16
        %v3480 = vrot.slane %v3478, 5
        %v3481 = vsel %vm565, %v3476, %v3480
        %v3483 = vshrl.u32 %v3406, 16
        %v3485 = vrot.slane %v3483, 4
        %v3486 = vshll.u32 %v3406, 16
        %v3488 = vrot.slane %v3486, 5
        %v3489 = vor.u32 %v3485, %v3488
        %v3490 = vrot.slane %v3489, 4
        %v3492 = vshll.u32 %v3407, 16
        %v3494 = vrot.slane %v3492, 5
        %v3495 = vsel %vm565, %v3490, %v3494
        %v3497 = vshrl.u32 %v3408, 16
        %v3499 = vrot.slane %v3497, 4
        %v3500 = vshll.u32 %v3408, 16
        %v3502 = vrot.slane %v3500, 5
        %v3503 = vor.u32 %v3499, %v3502
        %v3504 = vrot.slane %v3503, 4
        %v3506 = vshll.u32 %v3409, 16
        %v3508 = vrot.slane %v3506, 5
        %v3509 = vsel %vm565, %v3504, %v3508
        %v3511 = vshrl.u32 %v3410, 16
        %v3513 = vrot.slane %v3511, 4
        %v3514 = vshll.u32 %v3410, 16
        %v3516 = vrot.slane %v3514, 5
        %v3517 = vor.u32 %v3513, %v3516
        %v3518 = vrot.slane %v3517, 4
        %v3520 = vshll.u32 %v3411, 16
        %v3522 = vrot.slane %v3520, 5
        %v3523 = vsel %vm565, %v3518, %v3522
        %s3524 = scalar_lea.vmem [#allocation7], 1792
        %v3525 = vld [vmem:[%s3524] sm:$0xff]
        %v3526 = vld [vmem:[%s3524 + $0x8] sm:$0xff]
        %v3527 = vld [vmem:[%s3524 + $0x10] sm:$0xff]
        %v3528 = vld [vmem:[%s3524 + $0x18] sm:$0xff]
        %v3529 = vld [vmem:[%s3524 + $0x20] sm:$0xff]
        %v3530 = vld [vmem:[%s3524 + $0x28] sm:$0xff]
        %v3531 = vld [vmem:[%s3524 + $0x30] sm:$0xff]
        %v3532 = vld [vmem:[%s3524 + $0x38] sm:$0xff]
        %v3533 = vld [vmem:[%s3524 + $0x40] sm:$0xff]
        %v3534 = vld [vmem:[%s3524 + $0x48] sm:$0xff]
        %v3535 = vld [vmem:[%s3524 + $0x50] sm:$0xff]
        %v3536 = vld [vmem:[%s3524 + $0x58] sm:$0xff]
        %v3537 = vld [vmem:[%s3524 + $0x60] sm:$0xff]
        %v3538 = vld [vmem:[%s3524 + $0x68] sm:$0xff]
        %v3539 = vld [vmem:[%s3524 + $0x70] sm:$0xff]
        %v3540 = vld [vmem:[%s3524 + $0x78] sm:$0xff]
        %v3541 = vld [vmem:[%s3524 + $0x80] sm:$0xff]
        %v3542 = vld [vmem:[%s3524 + $0x88] sm:$0xff]
        %v3543 = vld [vmem:[%s3524 + $0x90] sm:$0xff]
        %v3544 = vld [vmem:[%s3524 + $0x98] sm:$0xff]
        %v3545 = vld [vmem:[%s3524 + $0xa0] sm:$0xff]
        %v3546 = vld [vmem:[%s3524 + $0xa8] sm:$0xff]
        %v3547 = vld [vmem:[%s3524 + $0xb0] sm:$0xff]
        %v3548 = vld [vmem:[%s3524 + $0xb8] sm:$0xff]
        %v3549 = vld [vmem:[%s3524 + $0xc0] sm:$0xff]
        %v3550 = vld [vmem:[%s3524 + $0xc8] sm:$0xff]
        %v3551 = vld [vmem:[%s3524 + $0xd0] sm:$0xff]
        %v3552 = vld [vmem:[%s3524 + $0xd8] sm:$0xff]
        %v3553 = vld [vmem:[%s3524 + $0xe0] sm:$0xff]
        %v3554 = vld [vmem:[%s3524 + $0xe8] sm:$0xff]
        %v3555 = vld [vmem:[%s3524 + $0xf0] sm:$0xff]
        %v3556 = vld [vmem:[%s3524 + $0xf8] sm:$0xff]
        %v3557 = vunpack.c.l.b16 %v3425
        %v3558 = vunpack.c.h.b16 %v3425
        %v3559 = vunpack.c.l.b16 %v3439
        %v3560 = vunpack.c.h.b16 %v3439
        %v3561 = vunpack.c.l.b16 %v3453
        %v3562 = vunpack.c.h.b16 %v3453
        %v3563 = vunpack.c.l.b16 %v3467
        %v3564 = vunpack.c.h.b16 %v3467
        %v3565 = vunpack.c.l.b16 %v3481
        %v3566 = vunpack.c.h.b16 %v3481
        %v3567 = vunpack.c.l.b16 %v3495
        %v3568 = vunpack.c.h.b16 %v3495
        %v3569 = vunpack.c.l.b16 %v3509
        %v3570 = vunpack.c.h.b16 %v3509
        %v3571 = vunpack.c.l.b16 %v3523
        %v3572 = vunpack.c.h.b16 %v3523
        %v3573 = vpack.c.b16 %v3559, %v3557
        %v3574 = vpack.c.b16 %v3560, %v3558
        %v3575 = vpack.c.b16 %v3563, %v3561
        %v3576 = vpack.c.b16 %v3564, %v3562
        %v3577 = vpack.c.b16 %v3567, %v3565
        %v3578 = vpack.c.b16 %v3568, %v3566
        %v3579 = vpack.c.b16 %v3571, %v3569
        %v3580 = vpack.c.b16 %v3572, %v3570
        %v3621 = vunpack.c.l.b16 %v3525
        %v3622 = vunpack.c.h.b16 %v3525
        %v3623 = vunpack.c.l.b16 %v3526
        %v3624 = vunpack.c.h.b16 %v3526
        %v3625 = vunpack.c.l.b16 %v3527
        %v3626 = vunpack.c.h.b16 %v3527
        %v3627 = vunpack.c.l.b16 %v3528
        %v3628 = vunpack.c.h.b16 %v3528
        %v3629 = vunpack.c.l.b16 %v3529
        %v3630 = vunpack.c.h.b16 %v3529
        %v3631 = vunpack.c.l.b16 %v3530
        %v3632 = vunpack.c.h.b16 %v3530
        %v3633 = vunpack.c.l.b16 %v3531
        %v3634 = vunpack.c.h.b16 %v3531
        %v3635 = vunpack.c.l.b16 %v3532
        %v3636 = vunpack.c.h.b16 %v3532
        %v3637 = vunpack.c.l.b16 %v3533
        %v3638 = vunpack.c.h.b16 %v3533
        %v3639 = vunpack.c.l.b16 %v3534
        %v3640 = vunpack.c.h.b16 %v3534
        %v3641 = vunpack.c.l.b16 %v3535
        %v3642 = vunpack.c.h.b16 %v3535
        %v3643 = vunpack.c.l.b16 %v3536
        %v3644 = vunpack.c.h.b16 %v3536
        %v3645 = vunpack.c.l.b16 %v3537
        %v3646 = vunpack.c.h.b16 %v3537
        %v3647 = vunpack.c.l.b16 %v3538
        %v3648 = vunpack.c.h.b16 %v3538
        %v3649 = vunpack.c.l.b16 %v3539
        %v3650 = vunpack.c.h.b16 %v3539
        %v3651 = vunpack.c.l.b16 %v3540
        %v3652 = vunpack.c.h.b16 %v3540
        %v3653 = vunpack.c.l.b16 %v3541
        %v3654 = vunpack.c.h.b16 %v3541
        %v3655 = vunpack.c.l.b16 %v3542
        %v3656 = vunpack.c.h.b16 %v3542
        %v3657 = vunpack.c.l.b16 %v3543
        %v3658 = vunpack.c.h.b16 %v3543
        %v3659 = vunpack.c.l.b16 %v3544
        %v3660 = vunpack.c.h.b16 %v3544
        %v3661 = vunpack.c.l.b16 %v3545
        %v3662 = vunpack.c.h.b16 %v3545
        %v3663 = vunpack.c.l.b16 %v3546
        %v3664 = vunpack.c.h.b16 %v3546
        %v3665 = vunpack.c.l.b16 %v3547
        %v3666 = vunpack.c.h.b16 %v3547
        %v3667 = vunpack.c.l.b16 %v3548
        %v3668 = vunpack.c.h.b16 %v3548
        %v3669 = vunpack.c.l.b16 %v3549
        %v3670 = vunpack.c.h.b16 %v3549
        %v3671 = vunpack.c.l.b16 %v3550
        %v3672 = vunpack.c.h.b16 %v3550
        %v3673 = vunpack.c.l.b16 %v3551
        %v3674 = vunpack.c.h.b16 %v3551
        %v3675 = vunpack.c.l.b16 %v3552
        %v3676 = vunpack.c.h.b16 %v3552
        %v3677 = vunpack.c.l.b16 %v3553
        %v3678 = vunpack.c.h.b16 %v3553
        %v3679 = vunpack.c.l.b16 %v3554
        %v3680 = vunpack.c.h.b16 %v3554
        %v3681 = vunpack.c.l.b16 %v3555
        %v3682 = vunpack.c.h.b16 %v3555
        %v3683 = vunpack.c.l.b16 %v3556
        %v3684 = vunpack.c.h.b16 %v3556
        %v3685 = vpack.c.b16 %v3623, %v3621
        %v3686 = vpack.c.b16 %v3624, %v3622
        %v3687 = vpack.c.b16 %v3627, %v3625
        %v3688 = vpack.c.b16 %v3628, %v3626
        %v3689 = vpack.c.b16 %v3631, %v3629
        %v3690 = vpack.c.b16 %v3632, %v3630
        %v3691 = vpack.c.b16 %v3635, %v3633
        %v3692 = vpack.c.b16 %v3636, %v3634
        %v3693 = vpack.c.b16 %v3639, %v3637
        %v3694 = vpack.c.b16 %v3640, %v3638
        %v3695 = vpack.c.b16 %v3643, %v3641
        %v3696 = vpack.c.b16 %v3644, %v3642
        %v3697 = vpack.c.b16 %v3647, %v3645
        %v3698 = vpack.c.b16 %v3648, %v3646
        %v3699 = vpack.c.b16 %v3651, %v3649
        %v3700 = vpack.c.b16 %v3652, %v3650
        %v3701 = vpack.c.b16 %v3655, %v3653
        %v3702 = vpack.c.b16 %v3656, %v3654
        %v3703 = vpack.c.b16 %v3659, %v3657
        %v3704 = vpack.c.b16 %v3660, %v3658
        %v3705 = vpack.c.b16 %v3663, %v3661
        %v3706 = vpack.c.b16 %v3664, %v3662
        %v3707 = vpack.c.b16 %v3667, %v3665
        %v3708 = vpack.c.b16 %v3668, %v3666
        %v3709 = vpack.c.b16 %v3671, %v3669
        %v3710 = vpack.c.b16 %v3672, %v3670
        %v3711 = vpack.c.b16 %v3675, %v3673
        %v3712 = vpack.c.b16 %v3676, %v3674
        %v3713 = vpack.c.b16 %v3679, %v3677
        %v3714 = vpack.c.b16 %v3680, %v3678
        %v3715 = vpack.c.b16 %v3683, %v3681
        %v3716 = vpack.c.b16 %v3684, %v3682
        %3749 = vmatpush.bf16.msra.mxu0 %v3699
        %3750 = vmatpush.bf16.msra.mxu0 %v3697
        %3751 = vmatpush.bf16.msra.mxu0 %v3695
        %3752 = vmatpush.bf16.msra.mxu0 %v3693
        %3753 = vmatpush.bf16.msra.mxu0 %v3691
        %3754 = vmatpush.bf16.msra.mxu0 %v3689
        %3755 = vmatpush.bf16.msra.mxu0 %v3687
        %3756 = vmatpush.bf16.msra.mxu0 %v3685
        %3757 = vmatmul.bf16.gmra.mxu0 %v3573
        %v3758 = vpop.f32.mrf.mxu0
        %v3759 = vadd.f32 0.0, %v3758
        %v3760 = vpop.f32.mrf.mxu0
        %v3761 = vadd.f32 0.0, %v3760
        %3762 = vmatmul.bf16.gmra.mxu0 %v3575
        %v3763 = vpop.f32.mrf.mxu0
        %v3764 = vadd.f32 0.0, %v3763
        %v3765 = vpop.f32.mrf.mxu0
        %v3766 = vadd.f32 0.0, %v3765
        %3767 = vmatmul.bf16.gmra.mxu0 %v3577
        %v3768 = vpop.f32.mrf.mxu0
        %v3769 = vadd.f32 0.0, %v3768
        %v3770 = vpop.f32.mrf.mxu0
        %v3771 = vadd.f32 0.0, %v3770
        %3772 = vmatmul.bf16.gmra.mxu0 %v3579
        %v3773 = vpop.f32.mrf.mxu0
        %v3774 = vadd.f32 0.0, %v3773
        %v3775 = vpop.f32.mrf.mxu0
        %v3776 = vadd.f32 0.0, %v3775
        %3777 = vdwg.mxu0
        %3778 = vmatpush.bf16.msra.mxu0 %v3715
        %3779 = vmatpush.bf16.msra.mxu0 %v3713
        %3780 = vmatpush.bf16.msra.mxu0 %v3711
        %3781 = vmatpush.bf16.msra.mxu0 %v3709
        %3782 = vmatpush.bf16.msra.mxu0 %v3707
        %3783 = vmatpush.bf16.msra.mxu0 %v3705
        %3784 = vmatpush.bf16.msra.mxu0 %v3703
        %3785 = vmatpush.bf16.msra.mxu0 %v3701
        %3786 = vmatmul.bf16.gmra.mxu0 %v3574
        %v3787 = vpop.f32.mrf.mxu0
        %v3788 = vadd.f32 %v3759, %v3787
        %v3789 = vpop.f32.mrf.mxu0
        %v3790 = vadd.f32 %v3761, %v3789
        %3791 = vmatmul.bf16.gmra.mxu0 %v3576
        %v3792 = vpop.f32.mrf.mxu0
        %v3793 = vadd.f32 %v3764, %v3792
        %v3794 = vpop.f32.mrf.mxu0
        %v3795 = vadd.f32 %v3766, %v3794
        %3796 = vmatmul.bf16.gmra.mxu0 %v3578
        %v3797 = vpop.f32.mrf.mxu0
        %v3798 = vadd.f32 %v3769, %v3797
        %v3799 = vpop.f32.mrf.mxu0
        %v3800 = vadd.f32 %v3771, %v3799
        %3801 = vmatmul.bf16.gmra.mxu0 %v3580
        %v3802 = vpop.f32.mrf.mxu0
        %v3803 = vadd.f32 %v3774, %v3802
        %v3804 = vpop.f32.mrf.mxu0
        %v3805 = vadd.f32 %v3776, %v3804
        %3806 = vdwg.mxu0
        %3807 = vmatpush.bf16.msra.mxu0 %v3700
        %3808 = vmatpush.bf16.msra.mxu0 %v3698
        %3809 = vmatpush.bf16.msra.mxu0 %v3696
        %3810 = vmatpush.bf16.msra.mxu0 %v3694
        %3811 = vmatpush.bf16.msra.mxu0 %v3692
        %3812 = vmatpush.bf16.msra.mxu0 %v3690
        %3813 = vmatpush.bf16.msra.mxu0 %v3688
        %3814 = vmatpush.bf16.msra.mxu0 %v3686
        %3815 = vmatmul.bf16.gmra.mxu0 %v3573
        %v3816 = vpop.f32.mrf.mxu0
        %v3817 = vadd.f32 0.0, %v3816
        %v3818 = vpop.f32.mrf.mxu0
        %v3819 = vadd.f32 0.0, %v3818
        %3820 = vmatmul.bf16.gmra.mxu0 %v3575
        %v3821 = vpop.f32.mrf.mxu0
        %v3822 = vadd.f32 0.0, %v3821
        %v3823 = vpop.f32.mrf.mxu0
        %v3824 = vadd.f32 0.0, %v3823
        %3825 = vmatmul.bf16.gmra.mxu0 %v3577
        %v3826 = vpop.f32.mrf.mxu0
        %v3827 = vadd.f32 0.0, %v3826
        %v3828 = vpop.f32.mrf.mxu0
        %v3829 = vadd.f32 0.0, %v3828
        %3830 = vmatmul.bf16.gmra.mxu0 %v3579
        %v3831 = vpop.f32.mrf.mxu0
        %v3832 = vadd.f32 0.0, %v3831
        %v3833 = vpop.f32.mrf.mxu0
        %v3834 = vadd.f32 0.0, %v3833
        %3835 = vdwg.mxu0
        %3836 = vmatpush.bf16.msra.mxu0 %v3716
        %3837 = vmatpush.bf16.msra.mxu0 %v3714
        %3838 = vmatpush.bf16.msra.mxu0 %v3712
        %3839 = vmatpush.bf16.msra.mxu0 %v3710
        %3840 = vmatpush.bf16.msra.mxu0 %v3708
        %3841 = vmatpush.bf16.msra.mxu0 %v3706
        %3842 = vmatpush.bf16.msra.mxu0 %v3704
        %3843 = vmatpush.bf16.msra.mxu0 %v3702
        %3844 = vmatmul.bf16.gmra.mxu0 %v3574
        %v3845 = vpop.f32.mrf.mxu0
        %v3846 = vadd.f32 %v3817, %v3845
        %v3847 = vpop.f32.mrf.mxu0
        %v3848 = vadd.f32 %v3819, %v3847
        %3849 = vmatmul.bf16.gmra.mxu0 %v3576
        %v3850 = vpop.f32.mrf.mxu0
        %v3851 = vadd.f32 %v3822, %v3850
        %v3852 = vpop.f32.mrf.mxu0
        %v3853 = vadd.f32 %v3824, %v3852
        %3854 = vmatmul.bf16.gmra.mxu0 %v3578
        %v3855 = vpop.f32.mrf.mxu0
        %v3856 = vadd.f32 %v3827, %v3855
        %v3857 = vpop.f32.mrf.mxu0
        %v3858 = vadd.f32 %v3829, %v3857
        %3859 = vmatmul.bf16.gmra.mxu0 %v3580
        %v3860 = vpop.f32.mrf.mxu0
        %v3861 = vadd.f32 %v3832, %v3860
        %v3862 = vpop.f32.mrf.mxu0
        %v3863 = vadd.f32 %v3834, %v3862
        %3864 = vdwg.mxu0
        %v3865 = vadd.f32 %v3380, %v3788
        %v3866 = vadd.f32 %v3381, %v3846
        %v3867 = vadd.f32 %v3382, %v3790
        %v3868 = vadd.f32 %v3383, %v3848
        %v3869 = vadd.f32 %v3384, %v3793
        %v3870 = vadd.f32 %v3385, %v3851
        %v3871 = vadd.f32 %v3386, %v3795
        %v3872 = vadd.f32 %v3387, %v3853
        %v3873 = vadd.f32 %v3388, %v3798
        %v3874 = vadd.f32 %v3389, %v3856
        %v3875 = vadd.f32 %v3390, %v3800
        %v3876 = vadd.f32 %v3391, %v3858
        %v3877 = vadd.f32 %v3392, %v3803
        %v3878 = vadd.f32 %v3393, %v3861
        %v3879 = vadd.f32 %v3394, %v3805
        %v3880 = vadd.f32 %v3395, %v3863
        %v3881 = vld [vmem:[%s3022] sm:$0xee]
        %v3882 = vld [vmem:[%s3022 + $0x10] sm:$0xee]
        %v3883 = vld [vmem:[%s3022 + $0x20] sm:$0xee]
        %v3884 = vld [vmem:[%s3022 + $0x30] sm:$0xee]
        %v3885 = vld [vmem:[%s3022 + $0x40] sm:$0xee]
        %v3886 = vld [vmem:[%s3022 + $0x50] sm:$0xee]
        %v3887 = vld [vmem:[%s3022 + $0x60] sm:$0xee]
        %v3888 = vld [vmem:[%s3022 + $0x70] sm:$0xee]
        %v3905 = vrot.slane %v3881, 5
        %v3906 = vrot.slane %v3905, 4
        %v3907 = vrot.slane %v3397, 5
        %v3908 = vsel %vm1361, %v3906, %v3907
        %v3909 = vrot.slane %v3882, 5
        %v3910 = vrot.slane %v3909, 4
        %v3911 = vrot.slane %v3399, 5
        %v3912 = vsel %vm1361, %v3910, %v3911
        %v3913 = vrot.slane %v3883, 5
        %v3914 = vrot.slane %v3913, 4
        %v3915 = vrot.slane %v3401, 5
        %v3916 = vsel %vm1361, %v3914, %v3915
        %v3917 = vrot.slane %v3884, 5
        %v3918 = vrot.slane %v3917, 4
        %v3919 = vrot.slane %v3403, 5
        %v3920 = vsel %vm1361, %v3918, %v3919
        %v3921 = vrot.slane %v3885, 5
        %v3922 = vrot.slane %v3921, 4
        %v3923 = vrot.slane %v3405, 5
        %v3924 = vsel %vm1361, %v3922, %v3923
        %v3925 = vrot.slane %v3886, 5
        %v3926 = vrot.slane %v3925, 4
        %v3927 = vrot.slane %v3407, 5
        %v3928 = vsel %vm1361, %v3926, %v3927
        %v3929 = vrot.slane %v3887, 5
        %v3930 = vrot.slane %v3929, 4
        %v3931 = vrot.slane %v3409, 5
        %v3932 = vsel %vm1361, %v3930, %v3931
        %v3933 = vrot.slane %v3888, 5
        %v3934 = vrot.slane %v3933, 4
        %v3935 = vrot.slane %v3411, 5
        %v3936 = vsel %vm1361, %v3934, %v3935
        %s3937 = scalar_lea.vmem [#allocation7], 2048
        %v3938 = vld [vmem:[%s3937] sm:$0xff]
        %v3939 = vld [vmem:[%s3937 + $0x8] sm:$0xff]
        %v3940 = vld [vmem:[%s3937 + $0x10] sm:$0xff]
        %v3941 = vld [vmem:[%s3937 + $0x18] sm:$0xff]
        %v3942 = vld [vmem:[%s3937 + $0x20] sm:$0xff]
        %v3943 = vld [vmem:[%s3937 + $0x28] sm:$0xff]
        %v3944 = vld [vmem:[%s3937 + $0x30] sm:$0xff]
        %v3945 = vld [vmem:[%s3937 + $0x38] sm:$0xff]
        %v3946 = vld [vmem:[%s3937 + $0x40] sm:$0xff]
        %v3947 = vld [vmem:[%s3937 + $0x48] sm:$0xff]
        %v3948 = vld [vmem:[%s3937 + $0x50] sm:$0xff]
        %v3949 = vld [vmem:[%s3937 + $0x58] sm:$0xff]
        %v3950 = vld [vmem:[%s3937 + $0x60] sm:$0xff]
        %v3951 = vld [vmem:[%s3937 + $0x68] sm:$0xff]
        %v3952 = vld [vmem:[%s3937 + $0x70] sm:$0xff]
        %v3953 = vld [vmem:[%s3937 + $0x78] sm:$0xff]
        %v3954 = vld [vmem:[%s3937 + $0x80] sm:$0xff]
        %v3955 = vld [vmem:[%s3937 + $0x88] sm:$0xff]
        %v3956 = vld [vmem:[%s3937 + $0x90] sm:$0xff]
        %v3957 = vld [vmem:[%s3937 + $0x98] sm:$0xff]
        %v3958 = vld [vmem:[%s3937 + $0xa0] sm:$0xff]
        %v3959 = vld [vmem:[%s3937 + $0xa8] sm:$0xff]
        %v3960 = vld [vmem:[%s3937 + $0xb0] sm:$0xff]
        %v3961 = vld [vmem:[%s3937 + $0xb8] sm:$0xff]
        %v3962 = vld [vmem:[%s3937 + $0xc0] sm:$0xff]
        %v3963 = vld [vmem:[%s3937 + $0xc8] sm:$0xff]
        %v3964 = vld [vmem:[%s3937 + $0xd0] sm:$0xff]
        %v3965 = vld [vmem:[%s3937 + $0xd8] sm:$0xff]
        %v3966 = vld [vmem:[%s3937 + $0xe0] sm:$0xff]
        %v3967 = vld [vmem:[%s3937 + $0xe8] sm:$0xff]
        %v3968 = vld [vmem:[%s3937 + $0xf0] sm:$0xff]
        %v3969 = vld [vmem:[%s3937 + $0xf8] sm:$0xff]
        %v3970 = vunpack.c.l.b16 %v3908
        %v3971 = vunpack.c.h.b16 %v3908
        %v3972 = vunpack.c.l.b16 %v3912
        %v3973 = vunpack.c.h.b16 %v3912
        %v3974 = vunpack.c.l.b16 %v3916
        %v3975 = vunpack.c.h.b16 %v3916
        %v3976 = vunpack.c.l.b16 %v3920
        %v3977 = vunpack.c.h.b16 %v3920
        %v3978 = vunpack.c.l.b16 %v3924
        %v3979 = vunpack.c.h.b16 %v3924
        %v3980 = vunpack.c.l.b16 %v3928
        %v3981 = vunpack.c.h.b16 %v3928
        %v3982 = vunpack.c.l.b16 %v3932
        %v3983 = vunpack.c.h.b16 %v3932
        %v3984 = vunpack.c.l.b16 %v3936
        %v3985 = vunpack.c.h.b16 %v3936
        %v3986 = vpack.c.b16 %v3972, %v3970
        %v3987 = vpack.c.b16 %v3973, %v3971
        %v3988 = vpack.c.b16 %v3976, %v3974
        %v3989 = vpack.c.b16 %v3977, %v3975
        %v3990 = vpack.c.b16 %v3980, %v3978
        %v3991 = vpack.c.b16 %v3981, %v3979
        %v3992 = vpack.c.b16 %v3984, %v3982
        %v3993 = vpack.c.b16 %v3985, %v3983
        %v4034 = vunpack.c.l.b16 %v3938
        %v4035 = vunpack.c.h.b16 %v3938
        %v4036 = vunpack.c.l.b16 %v3939
        %v4037 = vunpack.c.h.b16 %v3939
        %v4038 = vunpack.c.l.b16 %v3940
        %v4039 = vunpack.c.h.b16 %v3940
        %v4040 = vunpack.c.l.b16 %v3941
        %v4041 = vunpack.c.h.b16 %v3941
        %v4042 = vunpack.c.l.b16 %v3942
        %v4043 = vunpack.c.h.b16 %v3942
        %v4044 = vunpack.c.l.b16 %v3943
        %v4045 = vunpack.c.h.b16 %v3943
        %v4046 = vunpack.c.l.b16 %v3944
        %v4047 = vunpack.c.h.b16 %v3944
        %v4048 = vunpack.c.l.b16 %v3945
        %v4049 = vunpack.c.h.b16 %v3945
        %v4050 = vunpack.c.l.b16 %v3946
        %v4051 = vunpack.c.h.b16 %v3946
        %v4052 = vunpack.c.l.b16 %v3947
        %v4053 = vunpack.c.h.b16 %v3947
        %v4054 = vunpack.c.l.b16 %v3948
        %v4055 = vunpack.c.h.b16 %v3948
        %v4056 = vunpack.c.l.b16 %v3949
        %v4057 = vunpack.c.h.b16 %v3949
        %v4058 = vunpack.c.l.b16 %v3950
        %v4059 = vunpack.c.h.b16 %v3950
        %v4060 = vunpack.c.l.b16 %v3951
        %v4061 = vunpack.c.h.b16 %v3951
        %v4062 = vunpack.c.l.b16 %v3952
        %v4063 = vunpack.c.h.b16 %v3952
        %v4064 = vunpack.c.l.b16 %v3953
        %v4065 = vunpack.c.h.b16 %v3953
        %v4066 = vunpack.c.l.b16 %v3954
        %v4067 = vunpack.c.h.b16 %v3954
        %v4068 = vunpack.c.l.b16 %v3955
        %v4069 = vunpack.c.h.b16 %v3955
        %v4070 = vunpack.c.l.b16 %v3956
        %v4071 = vunpack.c.h.b16 %v3956
        %v4072 = vunpack.c.l.b16 %v3957
        %v4073 = vunpack.c.h.b16 %v3957
        %v4074 = vunpack.c.l.b16 %v3958
        %v4075 = vunpack.c.h.b16 %v3958
        %v4076 = vunpack.c.l.b16 %v3959
        %v4077 = vunpack.c.h.b16 %v3959
        %v4078 = vunpack.c.l.b16 %v3960
        %v4079 = vunpack.c.h.b16 %v3960
        %v4080 = vunpack.c.l.b16 %v3961
        %v4081 = vunpack.c.h.b16 %v3961
        %v4082 = vunpack.c.l.b16 %v3962
        %v4083 = vunpack.c.h.b16 %v3962
        %v4084 = vunpack.c.l.b16 %v3963
        %v4085 = vunpack.c.h.b16 %v3963
        %v4086 = vunpack.c.l.b16 %v3964
        %v4087 = vunpack.c.h.b16 %v3964
        %v4088 = vunpack.c.l.b16 %v3965
        %v4089 = vunpack.c.h.b16 %v3965
        %v4090 = vunpack.c.l.b16 %v3966
        %v4091 = vunpack.c.h.b16 %v3966
        %v4092 = vunpack.c.l.b16 %v3967
        %v4093 = vunpack.c.h.b16 %v3967
        %v4094 = vunpack.c.l.b16 %v3968
        %v4095 = vunpack.c.h.b16 %v3968
        %v4096 = vunpack.c.l.b16 %v3969
        %v4097 = vunpack.c.h.b16 %v3969
        %v4098 = vpack.c.b16 %v4036, %v4034
        %v4099 = vpack.c.b16 %v4037, %v4035
        %v4100 = vpack.c.b16 %v4040, %v4038
        %v4101 = vpack.c.b16 %v4041, %v4039
        %v4102 = vpack.c.b16 %v4044, %v4042
        %v4103 = vpack.c.b16 %v4045, %v4043
        %v4104 = vpack.c.b16 %v4048, %v4046
        %v4105 = vpack.c.b16 %v4049, %v4047
        %v4106 = vpack.c.b16 %v4052, %v4050
        %v4107 = vpack.c.b16 %v4053, %v4051
        %v4108 = vpack.c.b16 %v4056, %v4054
        %v4109 = vpack.c.b16 %v4057, %v4055
        %v4110 = vpack.c.b16 %v4060, %v4058
        %v4111 = vpack.c.b16 %v4061, %v4059
        %v4112 = vpack.c.b16 %v4064, %v4062
        %v4113 = vpack.c.b16 %v4065, %v4063
        %v4114 = vpack.c.b16 %v4068, %v4066
        %v4115 = vpack.c.b16 %v4069, %v4067
        %v4116 = vpack.c.b16 %v4072, %v4070
        %v4117 = vpack.c.b16 %v4073, %v4071
        %v4118 = vpack.c.b16 %v4076, %v4074
        %v4119 = vpack.c.b16 %v4077, %v4075
        %v4120 = vpack.c.b16 %v4080, %v4078
        %v4121 = vpack.c.b16 %v4081, %v4079
        %v4122 = vpack.c.b16 %v4084, %v4082
        %v4123 = vpack.c.b16 %v4085, %v4083
        %v4124 = vpack.c.b16 %v4088, %v4086
        %v4125 = vpack.c.b16 %v4089, %v4087
        %v4126 = vpack.c.b16 %v4092, %v4090
        %v4127 = vpack.c.b16 %v4093, %v4091
        %v4128 = vpack.c.b16 %v4096, %v4094
        %v4129 = vpack.c.b16 %v4097, %v4095
        %4162 = vmatpush.bf16.msra.mxu0 %v4112
        %4163 = vmatpush.bf16.msra.mxu0 %v4110
        %4164 = vmatpush.bf16.msra.mxu0 %v4108
        %4165 = vmatpush.bf16.msra.mxu0 %v4106
        %4166 = vmatpush.bf16.msra.mxu0 %v4104
        %4167 = vmatpush.bf16.msra.mxu0 %v4102
        %4168 = vmatpush.bf16.msra.mxu0 %v4100
        %4169 = vmatpush.bf16.msra.mxu0 %v4098
        %4170 = vmatmul.bf16.gmra.mxu0 %v3986
        %v4171 = vpop.f32.mrf.mxu0
        %v4172 = vadd.f32 0.0, %v4171
        %v4173 = vpop.f32.mrf.mxu0
        %v4174 = vadd.f32 0.0, %v4173
        %4175 = vmatmul.bf16.gmra.mxu0 %v3988
        %v4176 = vpop.f32.mrf.mxu0
        %v4177 = vadd.f32 0.0, %v4176
        %v4178 = vpop.f32.mrf.mxu0
        %v4179 = vadd.f32 0.0, %v4178
        %4180 = vmatmul.bf16.gmra.mxu0 %v3990
        %v4181 = vpop.f32.mrf.mxu0
        %v4182 = vadd.f32 0.0, %v4181
        %v4183 = vpop.f32.mrf.mxu0
        %v4184 = vadd.f32 0.0, %v4183
        %4185 = vmatmul.bf16.gmra.mxu0 %v3992
        %v4186 = vpop.f32.mrf.mxu0
        %v4187 = vadd.f32 0.0, %v4186
        %v4188 = vpop.f32.mrf.mxu0
        %v4189 = vadd.f32 0.0, %v4188
        %4190 = vdwg.mxu0
        %4191 = vmatpush.bf16.msra.mxu0 %v4128
        %4192 = vmatpush.bf16.msra.mxu0 %v4126
        %4193 = vmatpush.bf16.msra.mxu0 %v4124
        %4194 = vmatpush.bf16.msra.mxu0 %v4122
        %4195 = vmatpush.bf16.msra.mxu0 %v4120
        %4196 = vmatpush.bf16.msra.mxu0 %v4118
        %4197 = vmatpush.bf16.msra.mxu0 %v4116
        %4198 = vmatpush.bf16.msra.mxu0 %v4114
        %4199 = vmatmul.bf16.gmra.mxu0 %v3987
        %v4200 = vpop.f32.mrf.mxu0
        %v4201 = vadd.f32 %v4172, %v4200
        %v4202 = vpop.f32.mrf.mxu0
        %v4203 = vadd.f32 %v4174, %v4202
        %4204 = vmatmul.bf16.gmra.mxu0 %v3989
        %v4205 = vpop.f32.mrf.mxu0
        %v4206 = vadd.f32 %v4177, %v4205
        %v4207 = vpop.f32.mrf.mxu0
        %v4208 = vadd.f32 %v4179, %v4207
        %4209 = vmatmul.bf16.gmra.mxu0 %v3991
        %v4210 = vpop.f32.mrf.mxu0
        %v4211 = vadd.f32 %v4182, %v4210
        %v4212 = vpop.f32.mrf.mxu0
        %v4213 = vadd.f32 %v4184, %v4212
        %4214 = vmatmul.bf16.gmra.mxu0 %v3993
        %v4215 = vpop.f32.mrf.mxu0
        %v4216 = vadd.f32 %v4187, %v4215
        %v4217 = vpop.f32.mrf.mxu0
        %v4218 = vadd.f32 %v4189, %v4217
        %4219 = vdwg.mxu0
        %4220 = vmatpush.bf16.msra.mxu0 %v4113
        %4221 = vmatpush.bf16.msra.mxu0 %v4111
        %4222 = vmatpush.bf16.msra.mxu0 %v4109
        %4223 = vmatpush.bf16.msra.mxu0 %v4107
        %4224 = vmatpush.bf16.msra.mxu0 %v4105
        %4225 = vmatpush.bf16.msra.mxu0 %v4103
        %4226 = vmatpush.bf16.msra.mxu0 %v4101
        %4227 = vmatpush.bf16.msra.mxu0 %v4099
        %4228 = vmatmul.bf16.gmra.mxu0 %v3986
        %v4229 = vpop.f32.mrf.mxu0
        %v4230 = vadd.f32 0.0, %v4229
        %v4231 = vpop.f32.mrf.mxu0
        %v4232 = vadd.f32 0.0, %v4231
        %4233 = vmatmul.bf16.gmra.mxu0 %v3988
        %v4234 = vpop.f32.mrf.mxu0
        %v4235 = vadd.f32 0.0, %v4234
        %v4236 = vpop.f32.mrf.mxu0
        %v4237 = vadd.f32 0.0, %v4236
        %4238 = vmatmul.bf16.gmra.mxu0 %v3990
        %v4239 = vpop.f32.mrf.mxu0
        %v4240 = vadd.f32 0.0, %v4239
        %v4241 = vpop.f32.mrf.mxu0
        %v4242 = vadd.f32 0.0, %v4241
        %4243 = vmatmul.bf16.gmra.mxu0 %v3992
        %v4244 = vpop.f32.mrf.mxu0
        %v4245 = vadd.f32 0.0, %v4244
        %v4246 = vpop.f32.mrf.mxu0
        %v4247 = vadd.f32 0.0, %v4246
        %4248 = vdwg.mxu0
        %4249 = vmatpush.bf16.msra.mxu0 %v4129
        %4250 = vmatpush.bf16.msra.mxu0 %v4127
        %4251 = vmatpush.bf16.msra.mxu0 %v4125
        %4252 = vmatpush.bf16.msra.mxu0 %v4123
        %4253 = vmatpush.bf16.msra.mxu0 %v4121
        %4254 = vmatpush.bf16.msra.mxu0 %v4119
        %4255 = vmatpush.bf16.msra.mxu0 %v4117
        %4256 = vmatpush.bf16.msra.mxu0 %v4115
        %4257 = vmatmul.bf16.gmra.mxu0 %v3987
        %v4258 = vpop.f32.mrf.mxu0
        %v4259 = vadd.f32 %v4230, %v4258
        %v4260 = vpop.f32.mrf.mxu0
        %v4261 = vadd.f32 %v4232, %v4260
        %4262 = vmatmul.bf16.gmra.mxu0 %v3989
        %v4263 = vpop.f32.mrf.mxu0
        %v4264 = vadd.f32 %v4235, %v4263
        %v4265 = vpop.f32.mrf.mxu0
        %v4266 = vadd.f32 %v4237, %v4265
        %4267 = vmatmul.bf16.gmra.mxu0 %v3991
        %v4268 = vpop.f32.mrf.mxu0
        %v4269 = vadd.f32 %v4240, %v4268
        %v4270 = vpop.f32.mrf.mxu0
        %v4271 = vadd.f32 %v4242, %v4270
        %4272 = vmatmul.bf16.gmra.mxu0 %v3993
        %v4273 = vpop.f32.mrf.mxu0
        %v4274 = vadd.f32 %v4245, %v4273
        %v4275 = vpop.f32.mrf.mxu0
        %v4276 = vadd.f32 %v4247, %v4275
        %4277 = vdwg.mxu0
        %v4278 = vadd.f32 %v3865, %v4201
        %v4279 = vadd.f32 %v3866, %v4259
        %v4280 = vadd.f32 %v3867, %v4203
        %v4281 = vadd.f32 %v3868, %v4261
        %v4282 = vadd.f32 %v3869, %v4206
        %v4283 = vadd.f32 %v3870, %v4264
        %v4284 = vadd.f32 %v3871, %v4208
        %v4285 = vadd.f32 %v3872, %v4266
        %v4286 = vadd.f32 %v3873, %v4211
        %v4287 = vadd.f32 %v3874, %v4269
        %v4288 = vadd.f32 %v3875, %v4213
        %v4289 = vadd.f32 %v3876, %v4271
        %v4290 = vadd.f32 %v3877, %v4216
        %v4291 = vadd.f32 %v3878, %v4274
        %v4292 = vadd.f32 %v3879, %v4218
        %v4293 = vadd.f32 %v3880, %v4276
        %v4294 = vld [vmem:[#allocation9] sm:$0x3]
        %v4296 = vperm.slane %v4294, 0
        %v4297 = vperm.slane %v4294, 1
        %v4300 = vadd.f32 %v4278, %v4296
        %v4301 = vadd.f32 %v4279, %v4297
        %v4302 = vadd.f32 %v4280, %v4296
        %v4303 = vadd.f32 %v4281, %v4297
        %v4304 = vadd.f32 %v4282, %v4296
        %v4305 = vadd.f32 %v4283, %v4297
        %v4306 = vadd.f32 %v4284, %v4296
        %v4307 = vadd.f32 %v4285, %v4297
        %v4308 = vadd.f32 %v4286, %v4296
        %v4309 = vadd.f32 %v4287, %v4297
        %v4310 = vadd.f32 %v4288, %v4296
        %v4311 = vadd.f32 %v4289, %v4297
        %v4312 = vadd.f32 %v4290, %v4296
        %v4313 = vadd.f32 %v4291, %v4297
        %v4314 = vadd.f32 %v4292, %v4296
        %v4315 = vadd.f32 %v4293, %v4297
        %v4316 = vmax.f32 %v4300, 0.0
        %v4317 = vmax.f32 %v4301, 0.0
        %v4318 = vmax.f32 %v4302, 0.0
        %v4319 = vmax.f32 %v4303, 0.0
        %v4320 = vmax.f32 %v4304, 0.0
        %v4321 = vmax.f32 %v4305, 0.0
        %v4322 = vmax.f32 %v4306, 0.0
        %v4323 = vmax.f32 %v4307, 0.0
        %v4324 = vmax.f32 %v4308, 0.0
        %v4325 = vmax.f32 %v4309, 0.0
        %v4326 = vmax.f32 %v4310, 0.0
        %v4327 = vmax.f32 %v4311, 0.0
        %v4328 = vmax.f32 %v4312, 0.0
        %v4329 = vmax.f32 %v4313, 0.0
        %v4330 = vmax.f32 %v4314, 0.0
        %v4331 = vmax.f32 %v4315, 0.0
        %v4332 = vpack.c.bf16 %v4317, %v4316
        %v4333 = vpack.c.bf16 %v4319, %v4318
        %v4334 = vpack.c.bf16 %v4321, %v4320
        %v4335 = vpack.c.bf16 %v4323, %v4322
        %v4336 = vpack.c.bf16 %v4325, %v4324
        %v4337 = vpack.c.bf16 %v4327, %v4326
        %v4338 = vpack.c.bf16 %v4329, %v4328
        %v4339 = vpack.c.bf16 %v4331, %v4330
        %v4341 = vshrl.u32 %v4332, 16
        %v4343 = vrot.slane %v4341, 7
        %v4344 = vshll.u32 %v4332, 16
        %v4346 = vor.u32 %v4343, %v4344
        %v4347 = vrot.slane %v4343, 4
        %v4349 = vshrl.u32 %v4333, 16
        %v4351 = vrot.slane %v4349, 7
        %v4352 = vshll.u32 %v4333, 16
        %v4354 = vor.u32 %v4351, %v4352
        %v4355 = vrot.slane %v4351, 4
        %v4357 = vshrl.u32 %v4334, 16
        %v4359 = vrot.slane %v4357, 7
        %v4360 = vshll.u32 %v4334, 16
        %v4362 = vor.u32 %v4359, %v4360
        %v4363 = vrot.slane %v4359, 4
        %v4365 = vshrl.u32 %v4335, 16
        %v4367 = vrot.slane %v4365, 7
        %v4368 = vshll.u32 %v4335, 16
        %v4370 = vor.u32 %v4367, %v4368
        %v4371 = vrot.slane %v4367, 4
        %v4373 = vshrl.u32 %v4336, 16
        %v4375 = vrot.slane %v4373, 7
        %v4376 = vshll.u32 %v4336, 16
        %v4378 = vor.u32 %v4375, %v4376
        %v4379 = vrot.slane %v4375, 4
        %v4381 = vshrl.u32 %v4337, 16
        %v4383 = vrot.slane %v4381, 7
        %v4384 = vshll.u32 %v4337, 16
        %v4386 = vor.u32 %v4383, %v4384
        %v4387 = vrot.slane %v4383, 4
        %v4389 = vshrl.u32 %v4338, 16
        %v4391 = vrot.slane %v4389, 7
        %v4392 = vshll.u32 %v4338, 16
        %v4394 = vor.u32 %v4391, %v4392
        %v4395 = vrot.slane %v4391, 4
        %v4397 = vshrl.u32 %v4339, 16
        %v4399 = vrot.slane %v4397, 7
        %v4400 = vshll.u32 %v4339, 16
        %v4402 = vor.u32 %v4399, %v4400
        %v4403 = vrot.slane %v4399, 4
        %s4420 = scalar_lea.vmem [#allocation3], 16
        %v4421 = vld [vmem:[%s4420] sm:$0xff]
        %v4422 = vsel %vm459, %v4346, %v4421
        %4423 = vst [vmem:[%s4420] sm:$0xff] %v4422
        %v4424 = vld [vmem:[%s4420 + $0x8] sm:$0x11]
        %v4425 = vsel %vm469, %v4347, %v4424
        %4426 = vst [vmem:[%s4420 + $0x8] sm:$0x11] %v4425
        %v4427 = vld [vmem:[%s4420 + $0x10] sm:$0xff]
        %v4428 = vsel %vm459, %v4354, %v4427
        %4429 = vst [vmem:[%s4420 + $0x10] sm:$0xff] %v4428
        %v4430 = vld [vmem:[%s4420 + $0x18] sm:$0x11]
        %v4431 = vsel %vm469, %v4355, %v4430
        %4432 = vst [vmem:[%s4420 + $0x18] sm:$0x11] %v4431
        %v4433 = vld [vmem:[%s4420 + $0x20] sm:$0xff]
        %v4434 = vsel %vm459, %v4362, %v4433
        %4435 = vst [vmem:[%s4420 + $0x20] sm:$0xff] %v4434
        %v4436 = vld [vmem:[%s4420 + $0x28] sm:$0x11]
        %v4437 = vsel %vm469, %v4363, %v4436
        %4438 = vst [vmem:[%s4420 + $0x28] sm:$0x11] %v4437
        %v4439 = vld [vmem:[%s4420 + $0x30] sm:$0xff]
        %v4440 = vsel %vm459, %v4370, %v4439
        %4441 = vst [vmem:[%s4420 + $0x30] sm:$0xff] %v4440
        %v4442 = vld [vmem:[%s4420 + $0x38] sm:$0x11]
        %v4443 = vsel %vm469, %v4371, %v4442
        %4444 = vst [vmem:[%s4420 + $0x38] sm:$0x11] %v4443
        %v4445 = vld [vmem:[%s4420 + $0x40] sm:$0xff]
        %v4446 = vsel %vm459, %v4378, %v4445
        %4447 = vst [vmem:[%s4420 + $0x40] sm:$0xff] %v4446
        %v4448 = vld [vmem:[%s4420 + $0x48] sm:$0x11]
        %v4449 = vsel %vm469, %v4379, %v4448
        %4450 = vst [vmem:[%s4420 + $0x48] sm:$0x11] %v4449
        %v4451 = vld [vmem:[%s4420 + $0x50] sm:$0xff]
        %v4452 = vsel %vm459, %v4386, %v4451
        %4453 = vst [vmem:[%s4420 + $0x50] sm:$0xff] %v4452
        %v4454 = vld [vmem:[%s4420 + $0x58] sm:$0x11]
        %v4455 = vsel %vm469, %v4387, %v4454
        %4456 = vst [vmem:[%s4420 + $0x58] sm:$0x11] %v4455
        %v4457 = vld [vmem:[%s4420 + $0x60] sm:$0xff]
        %v4458 = vsel %vm459, %v4394, %v4457
        %4459 = vst [vmem:[%s4420 + $0x60] sm:$0xff] %v4458
        %v4460 = vld [vmem:[%s4420 + $0x68] sm:$0x11]
        %v4461 = vsel %vm469, %v4395, %v4460
        %4462 = vst [vmem:[%s4420 + $0x68] sm:$0x11] %v4461
        %v4463 = vld [vmem:[%s4420 + $0x70] sm:$0xff]
        %v4464 = vsel %vm459, %v4402, %v4463
        %4465 = vst [vmem:[%s4420 + $0x70] sm:$0xff] %v4464
        %v4466 = vld [vmem:[%s4420 + $0x78] sm:$0x11]
        %v4467 = vsel %vm469, %v4403, %v4466
        %4468 = vst [vmem:[%s4420 + $0x78] sm:$0x11] %v4467
        %v4469 = vld [vmem:[#allocation3] sm:$0xff]
        %v4470 = vld [vmem:[#allocation3 + $0x10] sm:$0xff]
        %v4471 = vld [vmem:[#allocation3 + $0x20] sm:$0xff]
        %v4472 = vld [vmem:[#allocation3 + $0x30] sm:$0xff]
        %v4473 = vld [vmem:[#allocation3 + $0x40] sm:$0xff]
        %v4474 = vld [vmem:[#allocation3 + $0x50] sm:$0xff]
        %v4475 = vld [vmem:[#allocation3 + $0x60] sm:$0xff]
        %v4476 = vld [vmem:[#allocation3 + $0x70] sm:$0xff]
        %v4477 = vld [vmem:[#allocation10] sm:$0xff]
        %v4478 = vld [vmem:[#allocation10 + $0x8] sm:$0xff]
        %v4479 = vld [vmem:[#allocation10 + $0x10] sm:$0xff]
        %v4480 = vld [vmem:[#allocation10 + $0x18] sm:$0xff]
        %v4481 = vld [vmem:[#allocation10 + $0x20] sm:$0xff]
        %v4482 = vld [vmem:[#allocation10 + $0x28] sm:$0xff]
        %v4483 = vld [vmem:[#allocation10 + $0x30] sm:$0xff]
        %v4484 = vld [vmem:[#allocation10 + $0x38] sm:$0xff]
        %v4485 = vld [vmem:[#allocation10 + $0x40] sm:$0xff]
        %v4486 = vld [vmem:[#allocation10 + $0x48] sm:$0xff]
        %v4487 = vld [vmem:[#allocation10 + $0x50] sm:$0xff]
        %v4488 = vld [vmem:[#allocation10 + $0x58] sm:$0xff]
        %v4489 = vld [vmem:[#allocation10 + $0x60] sm:$0xff]
        %v4490 = vld [vmem:[#allocation10 + $0x68] sm:$0xff]
        %v4491 = vld [vmem:[#allocation10 + $0x70] sm:$0xff]
        %v4492 = vld [vmem:[#allocation10 + $0x78] sm:$0xff]
        %v4493 = vld [vmem:[#allocation10 + $0x80] sm:$0xff]
        %v4494 = vld [vmem:[#allocation10 + $0x88] sm:$0xff]
        %v4495 = vld [vmem:[#allocation10 + $0x90] sm:$0xff]
        %v4496 = vld [vmem:[#allocation10 + $0x98] sm:$0xff]
        %v4497 = vld [vmem:[#allocation10 + $0xa0] sm:$0xff]
        %v4498 = vld [vmem:[#allocation10 + $0xa8] sm:$0xff]
        %v4499 = vld [vmem:[#allocation10 + $0xb0] sm:$0xff]
        %v4500 = vld [vmem:[#allocation10 + $0xb8] sm:$0xff]
        %v4501 = vld [vmem:[#allocation10 + $0xc0] sm:$0xff]
        %v4502 = vld [vmem:[#allocation10 + $0xc8] sm:$0xff]
        %v4503 = vld [vmem:[#allocation10 + $0xd0] sm:$0xff]
        %v4504 = vld [vmem:[#allocation10 + $0xd8] sm:$0xff]
        %v4505 = vld [vmem:[#allocation10 + $0xe0] sm:$0xff]
        %v4506 = vld [vmem:[#allocation10 + $0xe8] sm:$0xff]
        %v4507 = vld [vmem:[#allocation10 + $0xf0] sm:$0xff]
        %v4508 = vld [vmem:[#allocation10 + $0xf8] sm:$0xff]
        %v4509 = vld [vmem:[#allocation3 + $0x8] sm:$0x11]
        %v4510 = vld [vmem:[#allocation3 + $0x18] sm:$0x11]
        %v4511 = vld [vmem:[#allocation3 + $0x28] sm:$0x11]
        %v4512 = vld [vmem:[#allocation3 + $0x38] sm:$0x11]
        %v4513 = vld [vmem:[#allocation3 + $0x48] sm:$0x11]
        %v4514 = vld [vmem:[#allocation3 + $0x58] sm:$0x11]
        %v4515 = vld [vmem:[#allocation3 + $0x68] sm:$0x11]
        %v4516 = vld [vmem:[#allocation3 + $0x78] sm:$0x11]
        %v4518 = vshrl.u32 %v4469, 16
        %v4520 = vrot.slane %v4518, 4
        %v4521 = vshll.u32 %v4469, 16
        %v4523 = vrot.slane %v4521, 5
        %v4524 = vor.u32 %v4520, %v4523
        %v4525 = vrot.slane %v4524, 4
        %v4527 = vshll.u32 %v4509, 16
        %v4529 = vrot.slane %v4527, 5
        %v4530 = vsel %vm565, %v4525, %v4529
        %v4532 = vshrl.u32 %v4470, 16
        %v4534 = vrot.slane %v4532, 4
        %v4535 = vshll.u32 %v4470, 16
        %v4537 = vrot.slane %v4535, 5
        %v4538 = vor.u32 %v4534, %v4537
        %v4539 = vrot.slane %v4538, 4
        %v4541 = vshll.u32 %v4510, 16
        %v4543 = vrot.slane %v4541, 5
        %v4544 = vsel %vm565, %v4539, %v4543
        %v4546 = vshrl.u32 %v4471, 16
        %v4548 = vrot.slane %v4546, 4
        %v4549 = vshll.u32 %v4471, 16
        %v4551 = vrot.slane %v4549, 5
        %v4552 = vor.u32 %v4548, %v4551
        %v4553 = vrot.slane %v4552, 4
        %v4555 = vshll.u32 %v4511, 16
        %v4557 = vrot.slane %v4555, 5
        %v4558 = vsel %vm565, %v4553, %v4557
        %v4560 = vshrl.u32 %v4472, 16
        %v4562 = vrot.slane %v4560, 4
        %v4563 = vshll.u32 %v4472, 16
        %v4565 = vrot.slane %v4563, 5
        %v4566 = vor.u32 %v4562, %v4565
        %v4567 = vrot.slane %v4566, 4
        %v4569 = vshll.u32 %v4512, 16
        %v4571 = vrot.slane %v4569, 5
        %v4572 = vsel %vm565, %v4567, %v4571
        %v4574 = vshrl.u32 %v4473, 16
        %v4576 = vrot.slane %v4574, 4
        %v4577 = vshll.u32 %v4473, 16
        %v4579 = vrot.slane %v4577, 5
        %v4580 = vor.u32 %v4576, %v4579
        %v4581 = vrot.slane %v4580, 4
        %v4583 = vshll.u32 %v4513, 16
        %v4585 = vrot.slane %v4583, 5
        %v4586 = vsel %vm565, %v4581, %v4585
        %v4588 = vshrl.u32 %v4474, 16
        %v4590 = vrot.slane %v4588, 4
        %v4591 = vshll.u32 %v4474, 16
        %v4593 = vrot.slane %v4591, 5
        %v4594 = vor.u32 %v4590, %v4593
        %v4595 = vrot.slane %v4594, 4
        %v4597 = vshll.u32 %v4514, 16
        %v4599 = vrot.slane %v4597, 5
        %v4600 = vsel %vm565, %v4595, %v4599
        %v4602 = vshrl.u32 %v4475, 16
        %v4604 = vrot.slane %v4602, 4
        %v4605 = vshll.u32 %v4475, 16
        %v4607 = vrot.slane %v4605, 5
        %v4608 = vor.u32 %v4604, %v4607
        %v4609 = vrot.slane %v4608, 4
        %v4611 = vshll.u32 %v4515, 16
        %v4613 = vrot.slane %v4611, 5
        %v4614 = vsel %vm565, %v4609, %v4613
        %v4616 = vshrl.u32 %v4476, 16
        %v4618 = vrot.slane %v4616, 4
        %v4619 = vshll.u32 %v4476, 16
        %v4621 = vrot.slane %v4619, 5
        %v4622 = vor.u32 %v4618, %v4621
        %v4623 = vrot.slane %v4622, 4
        %v4625 = vshll.u32 %v4516, 16
        %v4627 = vrot.slane %v4625, 5
        %v4628 = vsel %vm565, %v4623, %v4627
        %s4629 = scalar_lea.vmem [#allocation10], 256
        %v4630 = vld [vmem:[%s4629] sm:$0xff]
        %v4631 = vld [vmem:[%s4629 + $0x8] sm:$0xff]
        %v4632 = vld [vmem:[%s4629 + $0x10] sm:$0xff]
        %v4633 = vld [vmem:[%s4629 + $0x18] sm:$0xff]
        %v4634 = vld [vmem:[%s4629 + $0x20] sm:$0xff]
        %v4635 = vld [vmem:[%s4629 + $0x28] sm:$0xff]
        %v4636 = vld [vmem:[%s4629 + $0x30] sm:$0xff]
        %v4637 = vld [vmem:[%s4629 + $0x38] sm:$0xff]
        %v4638 = vld [vmem:[%s4629 + $0x40] sm:$0xff]
        %v4639 = vld [vmem:[%s4629 + $0x48] sm:$0xff]
        %v4640 = vld [vmem:[%s4629 + $0x50] sm:$0xff]
        %v4641 = vld [vmem:[%s4629 + $0x58] sm:$0xff]
        %v4642 = vld [vmem:[%s4629 + $0x60] sm:$0xff]
        %v4643 = vld [vmem:[%s4629 + $0x68] sm:$0xff]
        %v4644 = vld [vmem:[%s4629 + $0x70] sm:$0xff]
        %v4645 = vld [vmem:[%s4629 + $0x78] sm:$0xff]
        %v4646 = vld [vmem:[%s4629 + $0x80] sm:$0xff]
        %v4647 = vld [vmem:[%s4629 + $0x88] sm:$0xff]
        %v4648 = vld [vmem:[%s4629 + $0x90] sm:$0xff]
        %v4649 = vld [vmem:[%s4629 + $0x98] sm:$0xff]
        %v4650 = vld [vmem:[%s4629 + $0xa0] sm:$0xff]
        %v4651 = vld [vmem:[%s4629 + $0xa8] sm:$0xff]
        %v4652 = vld [vmem:[%s4629 + $0xb0] sm:$0xff]
        %v4653 = vld [vmem:[%s4629 + $0xb8] sm:$0xff]
        %v4654 = vld [vmem:[%s4629 + $0xc0] sm:$0xff]
        %v4655 = vld [vmem:[%s4629 + $0xc8] sm:$0xff]
        %v4656 = vld [vmem:[%s4629 + $0xd0] sm:$0xff]
        %v4657 = vld [vmem:[%s4629 + $0xd8] sm:$0xff]
        %v4658 = vld [vmem:[%s4629 + $0xe0] sm:$0xff]
        %v4659 = vld [vmem:[%s4629 + $0xe8] sm:$0xff]
        %v4660 = vld [vmem:[%s4629 + $0xf0] sm:$0xff]
        %v4661 = vld [vmem:[%s4629 + $0xf8] sm:$0xff]
        %v4662 = vunpack.c.l.b16 %v4530
        %v4663 = vunpack.c.h.b16 %v4530
        %v4664 = vunpack.c.l.b16 %v4544
        %v4665 = vunpack.c.h.b16 %v4544
        %v4666 = vunpack.c.l.b16 %v4558
        %v4667 = vunpack.c.h.b16 %v4558
        %v4668 = vunpack.c.l.b16 %v4572
        %v4669 = vunpack.c.h.b16 %v4572
        %v4670 = vunpack.c.l.b16 %v4586
        %v4671 = vunpack.c.h.b16 %v4586
        %v4672 = vunpack.c.l.b16 %v4600
        %v4673 = vunpack.c.h.b16 %v4600
        %v4674 = vunpack.c.l.b16 %v4614
        %v4675 = vunpack.c.h.b16 %v4614
        %v4676 = vunpack.c.l.b16 %v4628
        %v4677 = vunpack.c.h.b16 %v4628
        %v4678 = vpack.c.b16 %v4664, %v4662
        %v4679 = vpack.c.b16 %v4665, %v4663
        %v4680 = vpack.c.b16 %v4668, %v4666
        %v4681 = vpack.c.b16 %v4669, %v4667
        %v4682 = vpack.c.b16 %v4672, %v4670
        %v4683 = vpack.c.b16 %v4673, %v4671
        %v4684 = vpack.c.b16 %v4676, %v4674
        %v4685 = vpack.c.b16 %v4677, %v4675
        %v4726 = vunpack.c.l.b16 %v4630
        %v4727 = vunpack.c.h.b16 %v4630
        %v4728 = vunpack.c.l.b16 %v4631
        %v4729 = vunpack.c.h.b16 %v4631
        %v4730 = vunpack.c.l.b16 %v4632
        %v4731 = vunpack.c.h.b16 %v4632
        %v4732 = vunpack.c.l.b16 %v4633
        %v4733 = vunpack.c.h.b16 %v4633
        %v4734 = vunpack.c.l.b16 %v4634
        %v4735 = vunpack.c.h.b16 %v4634
        %v4736 = vunpack.c.l.b16 %v4635
        %v4737 = vunpack.c.h.b16 %v4635
        %v4738 = vunpack.c.l.b16 %v4636
        %v4739 = vunpack.c.h.b16 %v4636
        %v4740 = vunpack.c.l.b16 %v4637
        %v4741 = vunpack.c.h.b16 %v4637
        %v4742 = vunpack.c.l.b16 %v4638
        %v4743 = vunpack.c.h.b16 %v4638
        %v4744 = vunpack.c.l.b16 %v4639
        %v4745 = vunpack.c.h.b16 %v4639
        %v4746 = vunpack.c.l.b16 %v4640
        %v4747 = vunpack.c.h.b16 %v4640
        %v4748 = vunpack.c.l.b16 %v4641
        %v4749 = vunpack.c.h.b16 %v4641
        %v4750 = vunpack.c.l.b16 %v4642
        %v4751 = vunpack.c.h.b16 %v4642
        %v4752 = vunpack.c.l.b16 %v4643
        %v4753 = vunpack.c.h.b16 %v4643
        %v4754 = vunpack.c.l.b16 %v4644
        %v4755 = vunpack.c.h.b16 %v4644
        %v4756 = vunpack.c.l.b16 %v4645
        %v4757 = vunpack.c.h.b16 %v4645
        %v4758 = vunpack.c.l.b16 %v4646
        %v4759 = vunpack.c.h.b16 %v4646
        %v4760 = vunpack.c.l.b16 %v4647
        %v4761 = vunpack.c.h.b16 %v4647
        %v4762 = vunpack.c.l.b16 %v4648
        %v4763 = vunpack.c.h.b16 %v4648
        %v4764 = vunpack.c.l.b16 %v4649
        %v4765 = vunpack.c.h.b16 %v4649
        %v4766 = vunpack.c.l.b16 %v4650
        %v4767 = vunpack.c.h.b16 %v4650
        %v4768 = vunpack.c.l.b16 %v4651
        %v4769 = vunpack.c.h.b16 %v4651
        %v4770 = vunpack.c.l.b16 %v4652
        %v4771 = vunpack.c.h.b16 %v4652
        %v4772 = vunpack.c.l.b16 %v4653
        %v4773 = vunpack.c.h.b16 %v4653
        %v4774 = vunpack.c.l.b16 %v4654
        %v4775 = vunpack.c.h.b16 %v4654
        %v4776 = vunpack.c.l.b16 %v4655
        %v4777 = vunpack.c.h.b16 %v4655
        %v4778 = vunpack.c.l.b16 %v4656
        %v4779 = vunpack.c.h.b16 %v4656
        %v4780 = vunpack.c.l.b16 %v4657
        %v4781 = vunpack.c.h.b16 %v4657
        %v4782 = vunpack.c.l.b16 %v4658
        %v4783 = vunpack.c.h.b16 %v4658
        %v4784 = vunpack.c.l.b16 %v4659
        %v4785 = vunpack.c.h.b16 %v4659
        %v4786 = vunpack.c.l.b16 %v4660
        %v4787 = vunpack.c.h.b16 %v4660
        %v4788 = vunpack.c.l.b16 %v4661
        %v4789 = vunpack.c.h.b16 %v4661
        %v4790 = vpack.c.b16 %v4728, %v4726
        %v4791 = vpack.c.b16 %v4729, %v4727
        %v4792 = vpack.c.b16 %v4732, %v4730
        %v4793 = vpack.c.b16 %v4733, %v4731
        %v4794 = vpack.c.b16 %v4736, %v4734
        %v4795 = vpack.c.b16 %v4737, %v4735
        %v4796 = vpack.c.b16 %v4740, %v4738
        %v4797 = vpack.c.b16 %v4741, %v4739
        %v4798 = vpack.c.b16 %v4744, %v4742
        %v4799 = vpack.c.b16 %v4745, %v4743
        %v4800 = vpack.c.b16 %v4748, %v4746
        %v4801 = vpack.c.b16 %v4749, %v4747
        %v4802 = vpack.c.b16 %v4752, %v4750
        %v4803 = vpack.c.b16 %v4753, %v4751
        %v4804 = vpack.c.b16 %v4756, %v4754
        %v4805 = vpack.c.b16 %v4757, %v4755
        %v4806 = vpack.c.b16 %v4760, %v4758
        %v4807 = vpack.c.b16 %v4761, %v4759
        %v4808 = vpack.c.b16 %v4764, %v4762
        %v4809 = vpack.c.b16 %v4765, %v4763
        %v4810 = vpack.c.b16 %v4768, %v4766
        %v4811 = vpack.c.b16 %v4769, %v4767
        %v4812 = vpack.c.b16 %v4772, %v4770
        %v4813 = vpack.c.b16 %v4773, %v4771
        %v4814 = vpack.c.b16 %v4776, %v4774
        %v4815 = vpack.c.b16 %v4777, %v4775
        %v4816 = vpack.c.b16 %v4780, %v4778
        %v4817 = vpack.c.b16 %v4781, %v4779
        %v4818 = vpack.c.b16 %v4784, %v4782
        %v4819 = vpack.c.b16 %v4785, %v4783
        %v4820 = vpack.c.b16 %v4788, %v4786
        %v4821 = vpack.c.b16 %v4789, %v4787
        %4854 = vmatpush.bf16.msra.mxu0 %v4804
        %4855 = vmatpush.bf16.msra.mxu0 %v4802
        %4856 = vmatpush.bf16.msra.mxu0 %v4800
        %4857 = vmatpush.bf16.msra.mxu0 %v4798
        %4858 = vmatpush.bf16.msra.mxu0 %v4796
        %4859 = vmatpush.bf16.msra.mxu0 %v4794
        %4860 = vmatpush.bf16.msra.mxu0 %v4792
        %4861 = vmatpush.bf16.msra.mxu0 %v4790
        %4862 = vmatmul.bf16.gmra.mxu0 %v4678
        %v4863 = vpop.f32.mrf.mxu0
        %v4864 = vadd.f32 0.0, %v4863
        %v4865 = vpop.f32.mrf.mxu0
        %v4866 = vadd.f32 0.0, %v4865
        %4867 = vmatmul.bf16.gmra.mxu0 %v4680
        %v4868 = vpop.f32.mrf.mxu0
        %v4869 = vadd.f32 0.0, %v4868
        %v4870 = vpop.f32.mrf.mxu0
        %v4871 = vadd.f32 0.0, %v4870
        %4872 = vmatmul.bf16.gmra.mxu0 %v4682
        %v4873 = vpop.f32.mrf.mxu0
        %v4874 = vadd.f32 0.0, %v4873
        %v4875 = vpop.f32.mrf.mxu0
        %v4876 = vadd.f32 0.0, %v4875
        %4877 = vmatmul.bf16.gmra.mxu0 %v4684
        %v4878 = vpop.f32.mrf.mxu0
        %v4879 = vadd.f32 0.0, %v4878
        %v4880 = vpop.f32.mrf.mxu0
        %v4881 = vadd.f32 0.0, %v4880
        %4882 = vdwg.mxu0
        %4883 = vmatpush.bf16.msra.mxu0 %v4820
        %4884 = vmatpush.bf16.msra.mxu0 %v4818
        %4885 = vmatpush.bf16.msra.mxu0 %v4816
        %4886 = vmatpush.bf16.msra.mxu0 %v4814
        %4887 = vmatpush.bf16.msra.mxu0 %v4812
        %4888 = vmatpush.bf16.msra.mxu0 %v4810
        %4889 = vmatpush.bf16.msra.mxu0 %v4808
        %4890 = vmatpush.bf16.msra.mxu0 %v4806
        %4891 = vmatmul.bf16.gmra.mxu0 %v4679
        %v4892 = vpop.f32.mrf.mxu0
        %v4893 = vadd.f32 %v4864, %v4892
        %v4894 = vpop.f32.mrf.mxu0
        %v4895 = vadd.f32 %v4866, %v4894
        %4896 = vmatmul.bf16.gmra.mxu0 %v4681
        %v4897 = vpop.f32.mrf.mxu0
        %v4898 = vadd.f32 %v4869, %v4897
        %v4899 = vpop.f32.mrf.mxu0
        %v4900 = vadd.f32 %v4871, %v4899
        %4901 = vmatmul.bf16.gmra.mxu0 %v4683
        %v4902 = vpop.f32.mrf.mxu0
        %v4903 = vadd.f32 %v4874, %v4902
        %v4904 = vpop.f32.mrf.mxu0
        %v4905 = vadd.f32 %v4876, %v4904
        %4906 = vmatmul.bf16.gmra.mxu0 %v4685
        %v4907 = vpop.f32.mrf.mxu0
        %v4908 = vadd.f32 %v4879, %v4907
        %v4909 = vpop.f32.mrf.mxu0
        %v4910 = vadd.f32 %v4881, %v4909
        %4911 = vdwg.mxu0
        %4912 = vmatpush.bf16.msra.mxu0 %v4805
        %4913 = vmatpush.bf16.msra.mxu0 %v4803
        %4914 = vmatpush.bf16.msra.mxu0 %v4801
        %4915 = vmatpush.bf16.msra.mxu0 %v4799
        %4916 = vmatpush.bf16.msra.mxu0 %v4797
        %4917 = vmatpush.bf16.msra.mxu0 %v4795
        %4918 = vmatpush.bf16.msra.mxu0 %v4793
        %4919 = vmatpush.bf16.msra.mxu0 %v4791
        %4920 = vmatmul.bf16.gmra.mxu0 %v4678
        %v4921 = vpop.f32.mrf.mxu0
        %v4922 = vadd.f32 0.0, %v4921
        %v4923 = vpop.f32.mrf.mxu0
        %v4924 = vadd.f32 0.0, %v4923
        %4925 = vmatmul.bf16.gmra.mxu0 %v4680
        %v4926 = vpop.f32.mrf.mxu0
        %v4927 = vadd.f32 0.0, %v4926
        %v4928 = vpop.f32.mrf.mxu0
        %v4929 = vadd.f32 0.0, %v4928
        %4930 = vmatmul.bf16.gmra.mxu0 %v4682
        %v4931 = vpop.f32.mrf.mxu0
        %v4932 = vadd.f32 0.0, %v4931
        %v4933 = vpop.f32.mrf.mxu0
        %v4934 = vadd.f32 0.0, %v4933
        %4935 = vmatmul.bf16.gmra.mxu0 %v4684
        %v4936 = vpop.f32.mrf.mxu0
        %v4937 = vadd.f32 0.0, %v4936
        %v4938 = vpop.f32.mrf.mxu0
        %v4939 = vadd.f32 0.0, %v4938
        %4940 = vdwg.mxu0
        %4941 = vmatpush.bf16.msra.mxu0 %v4821
        %4942 = vmatpush.bf16.msra.mxu0 %v4819
        %4943 = vmatpush.bf16.msra.mxu0 %v4817
        %4944 = vmatpush.bf16.msra.mxu0 %v4815
        %4945 = vmatpush.bf16.msra.mxu0 %v4813
        %4946 = vmatpush.bf16.msra.mxu0 %v4811
        %4947 = vmatpush.bf16.msra.mxu0 %v4809
        %4948 = vmatpush.bf16.msra.mxu0 %v4807
        %4949 = vmatmul.bf16.gmra.mxu0 %v4679
        %v4950 = vpop.f32.mrf.mxu0
        %v4951 = vadd.f32 %v4922, %v4950
        %v4952 = vpop.f32.mrf.mxu0
        %v4953 = vadd.f32 %v4924, %v4952
        %4954 = vmatmul.bf16.gmra.mxu0 %v4681
        %v4955 = vpop.f32.mrf.mxu0
        %v4956 = vadd.f32 %v4927, %v4955
        %v4957 = vpop.f32.mrf.mxu0
        %v4958 = vadd.f32 %v4929, %v4957
        %4959 = vmatmul.bf16.gmra.mxu0 %v4683
        %v4960 = vpop.f32.mrf.mxu0
        %v4961 = vadd.f32 %v4932, %v4960
        %v4962 = vpop.f32.mrf.mxu0
        %v4963 = vadd.f32 %v4934, %v4962
        %4964 = vmatmul.bf16.gmra.mxu0 %v4685
        %v4965 = vpop.f32.mrf.mxu0
        %v4966 = vadd.f32 %v4937, %v4965
        %v4967 = vpop.f32.mrf.mxu0
        %v4968 = vadd.f32 %v4939, %v4967
        %4969 = vdwg.mxu0
        %v4978 = vunpack.c.l.b16 %v4469
        %v4979 = vunpack.c.h.b16 %v4469
        %v4980 = vunpack.c.l.b16 %v4470
        %v4981 = vunpack.c.h.b16 %v4470
        %v4982 = vunpack.c.l.b16 %v4471
        %v4983 = vunpack.c.h.b16 %v4471
        %v4984 = vunpack.c.l.b16 %v4472
        %v4985 = vunpack.c.h.b16 %v4472
        %v4986 = vunpack.c.l.b16 %v4473
        %v4987 = vunpack.c.h.b16 %v4473
        %v4988 = vunpack.c.l.b16 %v4474
        %v4989 = vunpack.c.h.b16 %v4474
        %v4990 = vunpack.c.l.b16 %v4475
        %v4991 = vunpack.c.h.b16 %v4475
        %v4992 = vunpack.c.l.b16 %v4476
        %v4993 = vunpack.c.h.b16 %v4476
        %v4994 = vpack.c.b16 %v4980, %v4978
        %v4995 = vpack.c.b16 %v4981, %v4979
        %v4996 = vpack.c.b16 %v4984, %v4982
        %v4997 = vpack.c.b16 %v4985, %v4983
        %v4998 = vpack.c.b16 %v4988, %v4986
        %v4999 = vpack.c.b16 %v4989, %v4987
        %v5000 = vpack.c.b16 %v4992, %v4990
        %v5001 = vpack.c.b16 %v4993, %v4991
        %v5042 = vunpack.c.l.b16 %v4477
        %v5043 = vunpack.c.h.b16 %v4477
        %v5044 = vunpack.c.l.b16 %v4478
        %v5045 = vunpack.c.h.b16 %v4478
        %v5046 = vunpack.c.l.b16 %v4479
        %v5047 = vunpack.c.h.b16 %v4479
        %v5048 = vunpack.c.l.b16 %v4480
        %v5049 = vunpack.c.h.b16 %v4480
        %v5050 = vunpack.c.l.b16 %v4481
        %v5051 = vunpack.c.h.b16 %v4481
        %v5052 = vunpack.c.l.b16 %v4482
        %v5053 = vunpack.c.h.b16 %v4482
        %v5054 = vunpack.c.l.b16 %v4483
        %v5055 = vunpack.c.h.b16 %v4483
        %v5056 = vunpack.c.l.b16 %v4484
        %v5057 = vunpack.c.h.b16 %v4484
        %v5058 = vunpack.c.l.b16 %v4485
        %v5059 = vunpack.c.h.b16 %v4485
        %v5060 = vunpack.c.l.b16 %v4486
        %v5061 = vunpack.c.h.b16 %v4486
        %v5062 = vunpack.c.l.b16 %v4487
        %v5063 = vunpack.c.h.b16 %v4487
        %v5064 = vunpack.c.l.b16 %v4488
        %v5065 = vunpack.c.h.b16 %v4488
        %v5066 = vunpack.c.l.b16 %v4489
        %v5067 = vunpack.c.h.b16 %v4489
        %v5068 = vunpack.c.l.b16 %v4490
        %v5069 = vunpack.c.h.b16 %v4490
        %v5070 = vunpack.c.l.b16 %v4491
        %v5071 = vunpack.c.h.b16 %v4491
        %v5072 = vunpack.c.l.b16 %v4492
        %v5073 = vunpack.c.h.b16 %v4492
        %v5074 = vunpack.c.l.b16 %v4493
        %v5075 = vunpack.c.h.b16 %v4493
        %v5076 = vunpack.c.l.b16 %v4494
        %v5077 = vunpack.c.h.b16 %v4494
        %v5078 = vunpack.c.l.b16 %v4495
        %v5079 = vunpack.c.h.b16 %v4495
        %v5080 = vunpack.c.l.b16 %v4496
        %v5081 = vunpack.c.h.b16 %v4496
        %v5082 = vunpack.c.l.b16 %v4497
        %v5083 = vunpack.c.h.b16 %v4497
        %v5084 = vunpack.c.l.b16 %v4498
        %v5085 = vunpack.c.h.b16 %v4498
        %v5086 = vunpack.c.l.b16 %v4499
        %v5087 = vunpack.c.h.b16 %v4499
        %v5088 = vunpack.c.l.b16 %v4500
        %v5089 = vunpack.c.h.b16 %v4500
        %v5090 = vunpack.c.l.b16 %v4501
        %v5091 = vunpack.c.h.b16 %v4501
        %v5092 = vunpack.c.l.b16 %v4502
        %v5093 = vunpack.c.h.b16 %v4502
        %v5094 = vunpack.c.l.b16 %v4503
        %v5095 = vunpack.c.h.b16 %v4503
        %v5096 = vunpack.c.l.b16 %v4504
        %v5097 = vunpack.c.h.b16 %v4504
        %v5098 = vunpack.c.l.b16 %v4505
        %v5099 = vunpack.c.h.b16 %v4505
        %v5100 = vunpack.c.l.b16 %v4506
        %v5101 = vunpack.c.h.b16 %v4506
        %v5102 = vunpack.c.l.b16 %v4507
        %v5103 = vunpack.c.h.b16 %v4507
        %v5104 = vunpack.c.l.b16 %v4508
        %v5105 = vunpack.c.h.b16 %v4508
        %v5106 = vpack.c.b16 %v5044, %v5042
        %v5107 = vpack.c.b16 %v5045, %v5043
        %v5108 = vpack.c.b16 %v5048, %v5046
        %v5109 = vpack.c.b16 %v5049, %v5047
        %v5110 = vpack.c.b16 %v5052, %v5050
        %v5111 = vpack.c.b16 %v5053, %v5051
        %v5112 = vpack.c.b16 %v5056, %v5054
        %v5113 = vpack.c.b16 %v5057, %v5055
        %v5114 = vpack.c.b16 %v5060, %v5058
        %v5115 = vpack.c.b16 %v5061, %v5059
        %v5116 = vpack.c.b16 %v5064, %v5062
        %v5117 = vpack.c.b16 %v5065, %v5063
        %v5118 = vpack.c.b16 %v5068, %v5066
        %v5119 = vpack.c.b16 %v5069, %v5067
        %v5120 = vpack.c.b16 %v5072, %v5070
        %v5121 = vpack.c.b16 %v5073, %v5071
        %v5122 = vpack.c.b16 %v5076, %v5074
        %v5123 = vpack.c.b16 %v5077, %v5075
        %v5124 = vpack.c.b16 %v5080, %v5078
        %v5125 = vpack.c.b16 %v5081, %v5079
        %v5126 = vpack.c.b16 %v5084, %v5082
        %v5127 = vpack.c.b16 %v5085, %v5083
        %v5128 = vpack.c.b16 %v5088, %v5086
        %v5129 = vpack.c.b16 %v5089, %v5087
        %v5130 = vpack.c.b16 %v5092, %v5090
        %v5131 = vpack.c.b16 %v5093, %v5091
        %v5132 = vpack.c.b16 %v5096, %v5094
        %v5133 = vpack.c.b16 %v5097, %v5095
        %v5134 = vpack.c.b16 %v5100, %v5098
        %v5135 = vpack.c.b16 %v5101, %v5099
        %v5136 = vpack.c.b16 %v5104, %v5102
        %v5137 = vpack.c.b16 %v5105, %v5103
        %5170 = vmatpush.bf16.msra.mxu0 %v5120
        %5171 = vmatpush.bf16.msra.mxu0 %v5118
        %5172 = vmatpush.bf16.msra.mxu0 %v5116
        %5173 = vmatpush.bf16.msra.mxu0 %v5114
        %5174 = vmatpush.bf16.msra.mxu0 %v5112
        %5175 = vmatpush.bf16.msra.mxu0 %v5110
        %5176 = vmatpush.bf16.msra.mxu0 %v5108
        %5177 = vmatpush.bf16.msra.mxu0 %v5106
        %5178 = vmatmul.bf16.gmra.mxu0 %v4994
        %v5179 = vpop.f32.mrf.mxu0
        %v5180 = vadd.f32 %v4893, %v5179
        %v5181 = vpop.f32.mrf.mxu0
        %v5182 = vadd.f32 %v4895, %v5181
        %5183 = vmatmul.bf16.gmra.mxu0 %v4996
        %v5184 = vpop.f32.mrf.mxu0
        %v5185 = vadd.f32 %v4898, %v5184
        %v5186 = vpop.f32.mrf.mxu0
        %v5187 = vadd.f32 %v4900, %v5186
        %5188 = vmatmul.bf16.gmra.mxu0 %v4998
        %v5189 = vpop.f32.mrf.mxu0
        %v5190 = vadd.f32 %v4903, %v5189
        %v5191 = vpop.f32.mrf.mxu0
        %v5192 = vadd.f32 %v4905, %v5191
        %5193 = vmatmul.bf16.gmra.mxu0 %v5000
        %v5194 = vpop.f32.mrf.mxu0
        %v5195 = vadd.f32 %v4908, %v5194
        %v5196 = vpop.f32.mrf.mxu0
        %v5197 = vadd.f32 %v4910, %v5196
        %5198 = vdwg.mxu0
        %5199 = vmatpush.bf16.msra.mxu0 %v5136
        %5200 = vmatpush.bf16.msra.mxu0 %v5134
        %5201 = vmatpush.bf16.msra.mxu0 %v5132
        %5202 = vmatpush.bf16.msra.mxu0 %v5130
        %5203 = vmatpush.bf16.msra.mxu0 %v5128
        %5204 = vmatpush.bf16.msra.mxu0 %v5126
        %5205 = vmatpush.bf16.msra.mxu0 %v5124
        %5206 = vmatpush.bf16.msra.mxu0 %v5122
        %5207 = vmatmul.bf16.gmra.mxu0 %v4995
        %v5208 = vpop.f32.mrf.mxu0
        %v5209 = vadd.f32 %v5180, %v5208
        %v5210 = vpop.f32.mrf.mxu0
        %v5211 = vadd.f32 %v5182, %v5210
        %5212 = vmatmul.bf16.gmra.mxu0 %v4997
        %v5213 = vpop.f32.mrf.mxu0
        %v5214 = vadd.f32 %v5185, %v5213
        %v5215 = vpop.f32.mrf.mxu0
        %v5216 = vadd.f32 %v5187, %v5215
        %5217 = vmatmul.bf16.gmra.mxu0 %v4999
        %v5218 = vpop.f32.mrf.mxu0
        %v5219 = vadd.f32 %v5190, %v5218
        %v5220 = vpop.f32.mrf.mxu0
        %v5221 = vadd.f32 %v5192, %v5220
        %5222 = vmatmul.bf16.gmra.mxu0 %v5001
        %v5223 = vpop.f32.mrf.mxu0
        %v5224 = vadd.f32 %v5195, %v5223
        %v5225 = vpop.f32.mrf.mxu0
        %v5226 = vadd.f32 %v5197, %v5225
        %5227 = vdwg.mxu0
        %5228 = vmatpush.bf16.msra.mxu0 %v5121
        %5229 = vmatpush.bf16.msra.mxu0 %v5119
        %5230 = vmatpush.bf16.msra.mxu0 %v5117
        %5231 = vmatpush.bf16.msra.mxu0 %v5115
        %5232 = vmatpush.bf16.msra.mxu0 %v5113
        %5233 = vmatpush.bf16.msra.mxu0 %v5111
        %5234 = vmatpush.bf16.msra.mxu0 %v5109
        %5235 = vmatpush.bf16.msra.mxu0 %v5107
        %5236 = vmatmul.bf16.gmra.mxu0 %v4994
        %v5237 = vpop.f32.mrf.mxu0
        %v5238 = vadd.f32 %v4951, %v5237
        %v5239 = vpop.f32.mrf.mxu0
        %v5240 = vadd.f32 %v4953, %v5239
        %5241 = vmatmul.bf16.gmra.mxu0 %v4996
        %v5242 = vpop.f32.mrf.mxu0
        %v5243 = vadd.f32 %v4956, %v5242
        %v5244 = vpop.f32.mrf.mxu0
        %v5245 = vadd.f32 %v4958, %v5244
        %5246 = vmatmul.bf16.gmra.mxu0 %v4998
        %v5247 = vpop.f32.mrf.mxu0
        %v5248 = vadd.f32 %v4961, %v5247
        %v5249 = vpop.f32.mrf.mxu0
        %v5250 = vadd.f32 %v4963, %v5249
        %5251 = vmatmul.bf16.gmra.mxu0 %v5000
        %v5252 = vpop.f32.mrf.mxu0
        %v5253 = vadd.f32 %v4966, %v5252
        %v5254 = vpop.f32.mrf.mxu0
        %v5255 = vadd.f32 %v4968, %v5254
        %5256 = vdwg.mxu0
        %5257 = vmatpush.bf16.msra.mxu0 %v5137
        %5258 = vmatpush.bf16.msra.mxu0 %v5135
        %5259 = vmatpush.bf16.msra.mxu0 %v5133
        %5260 = vmatpush.bf16.msra.mxu0 %v5131
        %5261 = vmatpush.bf16.msra.mxu0 %v5129
        %5262 = vmatpush.bf16.msra.mxu0 %v5127
        %5263 = vmatpush.bf16.msra.mxu0 %v5125
        %5264 = vmatpush.bf16.msra.mxu0 %v5123
        %5265 = vmatmul.bf16.gmra.mxu0 %v4995
        %v5266 = vpop.f32.mrf.mxu0
        %v5267 = vadd.f32 %v5238, %v5266
        %v5268 = vpop.f32.mrf.mxu0
        %v5269 = vadd.f32 %v5240, %v5268
        %5270 = vmatmul.bf16.gmra.mxu0 %v4997
        %v5271 = vpop.f32.mrf.mxu0
        %v5272 = vadd.f32 %v5243, %v5271
        %v5273 = vpop.f32.mrf.mxu0
        %v5274 = vadd.f32 %v5245, %v5273
        %5275 = vmatmul.bf16.gmra.mxu0 %v4999
        %v5276 = vpop.f32.mrf.mxu0
        %v5277 = vadd.f32 %v5248, %v5276
        %v5278 = vpop.f32.mrf.mxu0
        %v5279 = vadd.f32 %v5250, %v5278
        %5280 = vmatmul.bf16.gmra.mxu0 %v5001
        %v5281 = vpop.f32.mrf.mxu0
        %v5282 = vadd.f32 %v5253, %v5281
        %v5283 = vpop.f32.mrf.mxu0
        %v5284 = vadd.f32 %v5255, %v5283
        %5285 = vdwg.mxu0
        %v5286 = vld [vmem:[#allocation3] sm:$0xee]
        %v5287 = vld [vmem:[#allocation3 + $0x10] sm:$0xee]
        %v5288 = vld [vmem:[#allocation3 + $0x20] sm:$0xee]
        %v5289 = vld [vmem:[#allocation3 + $0x30] sm:$0xee]
        %v5290 = vld [vmem:[#allocation3 + $0x40] sm:$0xee]
        %v5291 = vld [vmem:[#allocation3 + $0x50] sm:$0xee]
        %v5292 = vld [vmem:[#allocation3 + $0x60] sm:$0xee]
        %v5293 = vld [vmem:[#allocation3 + $0x70] sm:$0xee]
        %v5310 = vrot.slane %v5286, 5
        %v5311 = vrot.slane %v5310, 4
        %v5312 = vrot.slane %v4509, 5
        %v5313 = vsel %vm1361, %v5311, %v5312
        %v5314 = vrot.slane %v5287, 5
        %v5315 = vrot.slane %v5314, 4
        %v5316 = vrot.slane %v4510, 5
        %v5317 = vsel %vm1361, %v5315, %v5316
        %v5318 = vrot.slane %v5288, 5
        %v5319 = vrot.slane %v5318, 4
        %v5320 = vrot.slane %v4511, 5
        %v5321 = vsel %vm1361, %v5319, %v5320
        %v5322 = vrot.slane %v5289, 5
        %v5323 = vrot.slane %v5322, 4
        %v5324 = vrot.slane %v4512, 5
        %v5325 = vsel %vm1361, %v5323, %v5324
        %v5326 = vrot.slane %v5290, 5
        %v5327 = vrot.slane %v5326, 4
        %v5328 = vrot.slane %v4513, 5
        %v5329 = vsel %vm1361, %v5327, %v5328
        %v5330 = vrot.slane %v5291, 5
        %v5331 = vrot.slane %v5330, 4
        %v5332 = vrot.slane %v4514, 5
        %v5333 = vsel %vm1361, %v5331, %v5332
        %v5334 = vrot.slane %v5292, 5
        %v5335 = vrot.slane %v5334, 4
        %v5336 = vrot.slane %v4515, 5
        %v5337 = vsel %vm1361, %v5335, %v5336
        %v5338 = vrot.slane %v5293, 5
        %v5339 = vrot.slane %v5338, 4
        %v5340 = vrot.slane %v4516, 5
        %v5341 = vsel %vm1361, %v5339, %v5340
        %s5342 = scalar_lea.vmem [#allocation10], 512
        %v5343 = vld [vmem:[%s5342] sm:$0xff]
        %v5344 = vld [vmem:[%s5342 + $0x8] sm:$0xff]
        %v5345 = vld [vmem:[%s5342 + $0x10] sm:$0xff]
        %v5346 = vld [vmem:[%s5342 + $0x18] sm:$0xff]
        %v5347 = vld [vmem:[%s5342 + $0x20] sm:$0xff]
        %v5348 = vld [vmem:[%s5342 + $0x28] sm:$0xff]
        %v5349 = vld [vmem:[%s5342 + $0x30] sm:$0xff]
        %v5350 = vld [vmem:[%s5342 + $0x38] sm:$0xff]
        %v5351 = vld [vmem:[%s5342 + $0x40] sm:$0xff]
        %v5352 = vld [vmem:[%s5342 + $0x48] sm:$0xff]
        %v5353 = vld [vmem:[%s5342 + $0x50] sm:$0xff]
        %v5354 = vld [vmem:[%s5342 + $0x58] sm:$0xff]
        %v5355 = vld [vmem:[%s5342 + $0x60] sm:$0xff]
        %v5356 = vld [vmem:[%s5342 + $0x68] sm:$0xff]
        %v5357 = vld [vmem:[%s5342 + $0x70] sm:$0xff]
        %v5358 = vld [vmem:[%s5342 + $0x78] sm:$0xff]
        %v5359 = vld [vmem:[%s5342 + $0x80] sm:$0xff]
        %v5360 = vld [vmem:[%s5342 + $0x88] sm:$0xff]
        %v5361 = vld [vmem:[%s5342 + $0x90] sm:$0xff]
        %v5362 = vld [vmem:[%s5342 + $0x98] sm:$0xff]
        %v5363 = vld [vmem:[%s5342 + $0xa0] sm:$0xff]
        %v5364 = vld [vmem:[%s5342 + $0xa8] sm:$0xff]
        %v5365 = vld [vmem:[%s5342 + $0xb0] sm:$0xff]
        %v5366 = vld [vmem:[%s5342 + $0xb8] sm:$0xff]
        %v5367 = vld [vmem:[%s5342 + $0xc0] sm:$0xff]
        %v5368 = vld [vmem:[%s5342 + $0xc8] sm:$0xff]
        %v5369 = vld [vmem:[%s5342 + $0xd0] sm:$0xff]
        %v5370 = vld [vmem:[%s5342 + $0xd8] sm:$0xff]
        %v5371 = vld [vmem:[%s5342 + $0xe0] sm:$0xff]
        %v5372 = vld [vmem:[%s5342 + $0xe8] sm:$0xff]
        %v5373 = vld [vmem:[%s5342 + $0xf0] sm:$0xff]
        %v5374 = vld [vmem:[%s5342 + $0xf8] sm:$0xff]
        %v5375 = vunpack.c.l.b16 %v5313
        %v5376 = vunpack.c.h.b16 %v5313
        %v5377 = vunpack.c.l.b16 %v5317
        %v5378 = vunpack.c.h.b16 %v5317
        %v5379 = vunpack.c.l.b16 %v5321
        %v5380 = vunpack.c.h.b16 %v5321
        %v5381 = vunpack.c.l.b16 %v5325
        %v5382 = vunpack.c.h.b16 %v5325
        %v5383 = vunpack.c.l.b16 %v5329
        %v5384 = vunpack.c.h.b16 %v5329
        %v5385 = vunpack.c.l.b16 %v5333
        %v5386 = vunpack.c.h.b16 %v5333
        %v5387 = vunpack.c.l.b16 %v5337
        %v5388 = vunpack.c.h.b16 %v5337
        %v5389 = vunpack.c.l.b16 %v5341
        %v5390 = vunpack.c.h.b16 %v5341
        %v5391 = vpack.c.b16 %v5377, %v5375
        %v5392 = vpack.c.b16 %v5378, %v5376
        %v5393 = vpack.c.b16 %v5381, %v5379
        %v5394 = vpack.c.b16 %v5382, %v5380
        %v5395 = vpack.c.b16 %v5385, %v5383
        %v5396 = vpack.c.b16 %v5386, %v5384
        %v5397 = vpack.c.b16 %v5389, %v5387
        %v5398 = vpack.c.b16 %v5390, %v5388
        %v5439 = vunpack.c.l.b16 %v5343
        %v5440 = vunpack.c.h.b16 %v5343
        %v5441 = vunpack.c.l.b16 %v5344
        %v5442 = vunpack.c.h.b16 %v5344
        %v5443 = vunpack.c.l.b16 %v5345
        %v5444 = vunpack.c.h.b16 %v5345
        %v5445 = vunpack.c.l.b16 %v5346
        %v5446 = vunpack.c.h.b16 %v5346
        %v5447 = vunpack.c.l.b16 %v5347
        %v5448 = vunpack.c.h.b16 %v5347
        %v5449 = vunpack.c.l.b16 %v5348
        %v5450 = vunpack.c.h.b16 %v5348
        %v5451 = vunpack.c.l.b16 %v5349
        %v5452 = vunpack.c.h.b16 %v5349
        %v5453 = vunpack.c.l.b16 %v5350
        %v5454 = vunpack.c.h.b16 %v5350
        %v5455 = vunpack.c.l.b16 %v5351
        %v5456 = vunpack.c.h.b16 %v5351
        %v5457 = vunpack.c.l.b16 %v5352
        %v5458 = vunpack.c.h.b16 %v5352
        %v5459 = vunpack.c.l.b16 %v5353
        %v5460 = vunpack.c.h.b16 %v5353
        %v5461 = vunpack.c.l.b16 %v5354
        %v5462 = vunpack.c.h.b16 %v5354
        %v5463 = vunpack.c.l.b16 %v5355
        %v5464 = vunpack.c.h.b16 %v5355
        %v5465 = vunpack.c.l.b16 %v5356
        %v5466 = vunpack.c.h.b16 %v5356
        %v5467 = vunpack.c.l.b16 %v5357
        %v5468 = vunpack.c.h.b16 %v5357
        %v5469 = vunpack.c.l.b16 %v5358
        %v5470 = vunpack.c.h.b16 %v5358
        %v5471 = vunpack.c.l.b16 %v5359
        %v5472 = vunpack.c.h.b16 %v5359
        %v5473 = vunpack.c.l.b16 %v5360
        %v5474 = vunpack.c.h.b16 %v5360
        %v5475 = vunpack.c.l.b16 %v5361
        %v5476 = vunpack.c.h.b16 %v5361
        %v5477 = vunpack.c.l.b16 %v5362
        %v5478 = vunpack.c.h.b16 %v5362
        %v5479 = vunpack.c.l.b16 %v5363
        %v5480 = vunpack.c.h.b16 %v5363
        %v5481 = vunpack.c.l.b16 %v5364
        %v5482 = vunpack.c.h.b16 %v5364
        %v5483 = vunpack.c.l.b16 %v5365
        %v5484 = vunpack.c.h.b16 %v5365
        %v5485 = vunpack.c.l.b16 %v5366
        %v5486 = vunpack.c.h.b16 %v5366
        %v5487 = vunpack.c.l.b16 %v5367
        %v5488 = vunpack.c.h.b16 %v5367
        %v5489 = vunpack.c.l.b16 %v5368
        %v5490 = vunpack.c.h.b16 %v5368
        %v5491 = vunpack.c.l.b16 %v5369
        %v5492 = vunpack.c.h.b16 %v5369
        %v5493 = vunpack.c.l.b16 %v5370
        %v5494 = vunpack.c.h.b16 %v5370
        %v5495 = vunpack.c.l.b16 %v5371
        %v5496 = vunpack.c.h.b16 %v5371
        %v5497 = vunpack.c.l.b16 %v5372
        %v5498 = vunpack.c.h.b16 %v5372
        %v5499 = vunpack.c.l.b16 %v5373
        %v5500 = vunpack.c.h.b16 %v5373
        %v5501 = vunpack.c.l.b16 %v5374
        %v5502 = vunpack.c.h.b16 %v5374
        %v5503 = vpack.c.b16 %v5441, %v5439
        %v5504 = vpack.c.b16 %v5442, %v5440
        %v5505 = vpack.c.b16 %v5445, %v5443
        %v5506 = vpack.c.b16 %v5446, %v5444
        %v5507 = vpack.c.b16 %v5449, %v5447
        %v5508 = vpack.c.b16 %v5450, %v5448
        %v5509 = vpack.c.b16 %v5453, %v5451
        %v5510 = vpack.c.b16 %v5454, %v5452
        %v5511 = vpack.c.b16 %v5457, %v5455
        %v5512 = vpack.c.b16 %v5458, %v5456
        %v5513 = vpack.c.b16 %v5461, %v5459
        %v5514 = vpack.c.b16 %v5462, %v5460
        %v5515 = vpack.c.b16 %v5465, %v5463
        %v5516 = vpack.c.b16 %v5466, %v5464
        %v5517 = vpack.c.b16 %v5469, %v5467
        %v5518 = vpack.c.b16 %v5470, %v5468
        %v5519 = vpack.c.b16 %v5473, %v5471
        %v5520 = vpack.c.b16 %v5474, %v5472
        %v5521 = vpack.c.b16 %v5477, %v5475
        %v5522 = vpack.c.b16 %v5478, %v5476
        %v5523 = vpack.c.b16 %v5481, %v5479
        %v5524 = vpack.c.b16 %v5482, %v5480
        %v5525 = vpack.c.b16 %v5485, %v5483
        %v5526 = vpack.c.b16 %v5486, %v5484
        %v5527 = vpack.c.b16 %v5489, %v5487
        %v5528 = vpack.c.b16 %v5490, %v5488
        %v5529 = vpack.c.b16 %v5493, %v5491
        %v5530 = vpack.c.b16 %v5494, %v5492
        %v5531 = vpack.c.b16 %v5497, %v5495
        %v5532 = vpack.c.b16 %v5498, %v5496
        %v5533 = vpack.c.b16 %v5501, %v5499
        %v5534 = vpack.c.b16 %v5502, %v5500
        %5567 = vmatpush.bf16.msra.mxu0 %v5517
        %5568 = vmatpush.bf16.msra.mxu0 %v5515
        %5569 = vmatpush.bf16.msra.mxu0 %v5513
        %5570 = vmatpush.bf16.msra.mxu0 %v5511
        %5571 = vmatpush.bf16.msra.mxu0 %v5509
        %5572 = vmatpush.bf16.msra.mxu0 %v5507
        %5573 = vmatpush.bf16.msra.mxu0 %v5505
        %5574 = vmatpush.bf16.msra.mxu0 %v5503
        %5575 = vmatmul.bf16.gmra.mxu0 %v5391
        %v5576 = vpop.f32.mrf.mxu0
        %v5577 = vadd.f32 0.0, %v5576
        %v5578 = vpop.f32.mrf.mxu0
        %v5579 = vadd.f32 0.0, %v5578
        %5580 = vmatmul.bf16.gmra.mxu0 %v5393
        %v5581 = vpop.f32.mrf.mxu0
        %v5582 = vadd.f32 0.0, %v5581
        %v5583 = vpop.f32.mrf.mxu0
        %v5584 = vadd.f32 0.0, %v5583
        %5585 = vmatmul.bf16.gmra.mxu0 %v5395
        %v5586 = vpop.f32.mrf.mxu0
        %v5587 = vadd.f32 0.0, %v5586
        %v5588 = vpop.f32.mrf.mxu0
        %v5589 = vadd.f32 0.0, %v5588
        %5590 = vmatmul.bf16.gmra.mxu0 %v5397
        %v5591 = vpop.f32.mrf.mxu0
        %v5592 = vadd.f32 0.0, %v5591
        %v5593 = vpop.f32.mrf.mxu0
        %v5594 = vadd.f32 0.0, %v5593
        %5595 = vdwg.mxu0
        %5596 = vmatpush.bf16.msra.mxu0 %v5533
        %5597 = vmatpush.bf16.msra.mxu0 %v5531
        %5598 = vmatpush.bf16.msra.mxu0 %v5529
        %5599 = vmatpush.bf16.msra.mxu0 %v5527
        %5600 = vmatpush.bf16.msra.mxu0 %v5525
        %5601 = vmatpush.bf16.msra.mxu0 %v5523
        %5602 = vmatpush.bf16.msra.mxu0 %v5521
        %5603 = vmatpush.bf16.msra.mxu0 %v5519
        %5604 = vmatmul.bf16.gmra.mxu0 %v5392
        %v5605 = vpop.f32.mrf.mxu0
        %v5606 = vadd.f32 %v5577, %v5605
        %v5607 = vpop.f32.mrf.mxu0
        %v5608 = vadd.f32 %v5579, %v5607
        %5609 = vmatmul.bf16.gmra.mxu0 %v5394
        %v5610 = vpop.f32.mrf.mxu0
        %v5611 = vadd.f32 %v5582, %v5610
        %v5612 = vpop.f32.mrf.mxu0
        %v5613 = vadd.f32 %v5584, %v5612
        %5614 = vmatmul.bf16.gmra.mxu0 %v5396
        %v5615 = vpop.f32.mrf.mxu0
        %v5616 = vadd.f32 %v5587, %v5615
        %v5617 = vpop.f32.mrf.mxu0
        %v5618 = vadd.f32 %v5589, %v5617
        %5619 = vmatmul.bf16.gmra.mxu0 %v5398
        %v5620 = vpop.f32.mrf.mxu0
        %v5621 = vadd.f32 %v5592, %v5620
        %v5622 = vpop.f32.mrf.mxu0
        %v5623 = vadd.f32 %v5594, %v5622
        %5624 = vdwg.mxu0
        %5625 = vmatpush.bf16.msra.mxu0 %v5518
        %5626 = vmatpush.bf16.msra.mxu0 %v5516
        %5627 = vmatpush.bf16.msra.mxu0 %v5514
        %5628 = vmatpush.bf16.msra.mxu0 %v5512
        %5629 = vmatpush.bf16.msra.mxu0 %v5510
        %5630 = vmatpush.bf16.msra.mxu0 %v5508
        %5631 = vmatpush.bf16.msra.mxu0 %v5506
        %5632 = vmatpush.bf16.msra.mxu0 %v5504
        %5633 = vmatmul.bf16.gmra.mxu0 %v5391
        %v5634 = vpop.f32.mrf.mxu0
        %v5635 = vadd.f32 0.0, %v5634
        %v5636 = vpop.f32.mrf.mxu0
        %v5637 = vadd.f32 0.0, %v5636
        %5638 = vmatmul.bf16.gmra.mxu0 %v5393
        %v5639 = vpop.f32.mrf.mxu0
        %v5640 = vadd.f32 0.0, %v5639
        %v5641 = vpop.f32.mrf.mxu0
        %v5642 = vadd.f32 0.0, %v5641
        %5643 = vmatmul.bf16.gmra.mxu0 %v5395
        %v5644 = vpop.f32.mrf.mxu0
        %v5645 = vadd.f32 0.0, %v5644
        %v5646 = vpop.f32.mrf.mxu0
        %v5647 = vadd.f32 0.0, %v5646
        %5648 = vmatmul.bf16.gmra.mxu0 %v5397
        %v5649 = vpop.f32.mrf.mxu0
        %v5650 = vadd.f32 0.0, %v5649
        %v5651 = vpop.f32.mrf.mxu0
        %v5652 = vadd.f32 0.0, %v5651
        %5653 = vdwg.mxu0
        %5654 = vmatpush.bf16.msra.mxu0 %v5534
        %5655 = vmatpush.bf16.msra.mxu0 %v5532
        %5656 = vmatpush.bf16.msra.mxu0 %v5530
        %5657 = vmatpush.bf16.msra.mxu0 %v5528
        %5658 = vmatpush.bf16.msra.mxu0 %v5526
        %5659 = vmatpush.bf16.msra.mxu0 %v5524
        %5660 = vmatpush.bf16.msra.mxu0 %v5522
        %5661 = vmatpush.bf16.msra.mxu0 %v5520
        %5662 = vmatmul.bf16.gmra.mxu0 %v5392
        %v5663 = vpop.f32.mrf.mxu0
        %v5664 = vadd.f32 %v5635, %v5663
        %v5665 = vpop.f32.mrf.mxu0
        %v5666 = vadd.f32 %v5637, %v5665
        %5667 = vmatmul.bf16.gmra.mxu0 %v5394
        %v5668 = vpop.f32.mrf.mxu0
        %v5669 = vadd.f32 %v5640, %v5668
        %v5670 = vpop.f32.mrf.mxu0
        %v5671 = vadd.f32 %v5642, %v5670
        %5672 = vmatmul.bf16.gmra.mxu0 %v5396
        %v5673 = vpop.f32.mrf.mxu0
        %v5674 = vadd.f32 %v5645, %v5673
        %v5675 = vpop.f32.mrf.mxu0
        %v5676 = vadd.f32 %v5647, %v5675
        %5677 = vmatmul.bf16.gmra.mxu0 %v5398
        %v5678 = vpop.f32.mrf.mxu0
        %v5679 = vadd.f32 %v5650, %v5678
        %v5680 = vpop.f32.mrf.mxu0
        %v5681 = vadd.f32 %v5652, %v5680
        %5682 = vdwg.mxu0
        %v5683 = vadd.f32 %v5209, %v5606
        %v5684 = vadd.f32 %v5267, %v5664
        %v5685 = vadd.f32 %v5211, %v5608
        %v5686 = vadd.f32 %v5269, %v5666
        %v5687 = vadd.f32 %v5214, %v5611
        %v5688 = vadd.f32 %v5272, %v5669
        %v5689 = vadd.f32 %v5216, %v5613
        %v5690 = vadd.f32 %v5274, %v5671
        %v5691 = vadd.f32 %v5219, %v5616
        %v5692 = vadd.f32 %v5277, %v5674
        %v5693 = vadd.f32 %v5221, %v5618
        %v5694 = vadd.f32 %v5279, %v5676
        %v5695 = vadd.f32 %v5224, %v5621
        %v5696 = vadd.f32 %v5282, %v5679
        %v5697 = vadd.f32 %v5226, %v5623
        %v5698 = vadd.f32 %v5284, %v5681
        %v5699 = vld [vmem:[%s4420] sm:$0xff]
        %v5700 = vld [vmem:[%s4420 + $0x10] sm:$0xff]
        %v5701 = vld [vmem:[%s4420 + $0x20] sm:$0xff]
        %v5702 = vld [vmem:[%s4420 + $0x30] sm:$0xff]
        %v5703 = vld [vmem:[%s4420 + $0x40] sm:$0xff]
        %v5704 = vld [vmem:[%s4420 + $0x50] sm:$0xff]
        %v5705 = vld [vmem:[%s4420 + $0x60] sm:$0xff]
        %v5706 = vld [vmem:[%s4420 + $0x70] sm:$0xff]
        %s5707 = scalar_lea.vmem [#allocation10], 768
        %v5708 = vld [vmem:[%s5707] sm:$0xff]
        %v5709 = vld [vmem:[%s5707 + $0x8] sm:$0xff]
        %v5710 = vld [vmem:[%s5707 + $0x10] sm:$0xff]
        %v5711 = vld [vmem:[%s5707 + $0x18] sm:$0xff]
        %v5712 = vld [vmem:[%s5707 + $0x20] sm:$0xff]
        %v5713 = vld [vmem:[%s5707 + $0x28] sm:$0xff]
        %v5714 = vld [vmem:[%s5707 + $0x30] sm:$0xff]
        %v5715 = vld [vmem:[%s5707 + $0x38] sm:$0xff]
        %v5716 = vld [vmem:[%s5707 + $0x40] sm:$0xff]
        %v5717 = vld [vmem:[%s5707 + $0x48] sm:$0xff]
        %v5718 = vld [vmem:[%s5707 + $0x50] sm:$0xff]
        %v5719 = vld [vmem:[%s5707 + $0x58] sm:$0xff]
        %v5720 = vld [vmem:[%s5707 + $0x60] sm:$0xff]
        %v5721 = vld [vmem:[%s5707 + $0x68] sm:$0xff]
        %v5722 = vld [vmem:[%s5707 + $0x70] sm:$0xff]
        %v5723 = vld [vmem:[%s5707 + $0x78] sm:$0xff]
        %v5724 = vld [vmem:[%s5707 + $0x80] sm:$0xff]
        %v5725 = vld [vmem:[%s5707 + $0x88] sm:$0xff]
        %v5726 = vld [vmem:[%s5707 + $0x90] sm:$0xff]
        %v5727 = vld [vmem:[%s5707 + $0x98] sm:$0xff]
        %v5728 = vld [vmem:[%s5707 + $0xa0] sm:$0xff]
        %v5729 = vld [vmem:[%s5707 + $0xa8] sm:$0xff]
        %v5730 = vld [vmem:[%s5707 + $0xb0] sm:$0xff]
        %v5731 = vld [vmem:[%s5707 + $0xb8] sm:$0xff]
        %v5732 = vld [vmem:[%s5707 + $0xc0] sm:$0xff]
        %v5733 = vld [vmem:[%s5707 + $0xc8] sm:$0xff]
        %v5734 = vld [vmem:[%s5707 + $0xd0] sm:$0xff]
        %v5735 = vld [vmem:[%s5707 + $0xd8] sm:$0xff]
        %v5736 = vld [vmem:[%s5707 + $0xe0] sm:$0xff]
        %v5737 = vld [vmem:[%s5707 + $0xe8] sm:$0xff]
        %v5738 = vld [vmem:[%s5707 + $0xf0] sm:$0xff]
        %v5739 = vld [vmem:[%s5707 + $0xf8] sm:$0xff]
        %v5748 = vunpack.c.l.b16 %v5699
        %v5749 = vunpack.c.h.b16 %v5699
        %v5750 = vunpack.c.l.b16 %v5700
        %v5751 = vunpack.c.h.b16 %v5700
        %v5752 = vunpack.c.l.b16 %v5701
        %v5753 = vunpack.c.h.b16 %v5701
        %v5754 = vunpack.c.l.b16 %v5702
        %v5755 = vunpack.c.h.b16 %v5702
        %v5756 = vunpack.c.l.b16 %v5703
        %v5757 = vunpack.c.h.b16 %v5703
        %v5758 = vunpack.c.l.b16 %v5704
        %v5759 = vunpack.c.h.b16 %v5704
        %v5760 = vunpack.c.l.b16 %v5705
        %v5761 = vunpack.c.h.b16 %v5705
        %v5762 = vunpack.c.l.b16 %v5706
        %v5763 = vunpack.c.h.b16 %v5706
        %v5764 = vpack.c.b16 %v5750, %v5748
        %v5765 = vpack.c.b16 %v5751, %v5749
        %v5766 = vpack.c.b16 %v5754, %v5752
        %v5767 = vpack.c.b16 %v5755, %v5753
        %v5768 = vpack.c.b16 %v5758, %v5756
        %v5769 = vpack.c.b16 %v5759, %v5757
        %v5770 = vpack.c.b16 %v5762, %v5760
        %v5771 = vpack.c.b16 %v5763, %v5761
        %v5812 = vunpack.c.l.b16 %v5708
        %v5813 = vunpack.c.h.b16 %v5708
        %v5814 = vunpack.c.l.b16 %v5709
        %v5815 = vunpack.c.h.b16 %v5709
        %v5816 = vunpack.c.l.b16 %v5710
        %v5817 = vunpack.c.h.b16 %v5710
        %v5818 = vunpack.c.l.b16 %v5711
        %v5819 = vunpack.c.h.b16 %v5711
        %v5820 = vunpack.c.l.b16 %v5712
        %v5821 = vunpack.c.h.b16 %v5712
        %v5822 = vunpack.c.l.b16 %v5713
        %v5823 = vunpack.c.h.b16 %v5713
        %v5824 = vunpack.c.l.b16 %v5714
        %v5825 = vunpack.c.h.b16 %v5714
        %v5826 = vunpack.c.l.b16 %v5715
        %v5827 = vunpack.c.h.b16 %v5715
        %v5828 = vunpack.c.l.b16 %v5716
        %v5829 = vunpack.c.h.b16 %v5716
        %v5830 = vunpack.c.l.b16 %v5717
        %v5831 = vunpack.c.h.b16 %v5717
        %v5832 = vunpack.c.l.b16 %v5718
        %v5833 = vunpack.c.h.b16 %v5718
        %v5834 = vunpack.c.l.b16 %v5719
        %v5835 = vunpack.c.h.b16 %v5719
        %v5836 = vunpack.c.l.b16 %v5720
        %v5837 = vunpack.c.h.b16 %v5720
        %v5838 = vunpack.c.l.b16 %v5721
        %v5839 = vunpack.c.h.b16 %v5721
        %v5840 = vunpack.c.l.b16 %v5722
        %v5841 = vunpack.c.h.b16 %v5722
        %v5842 = vunpack.c.l.b16 %v5723
        %v5843 = vunpack.c.h.b16 %v5723
        %v5844 = vunpack.c.l.b16 %v5724
        %v5845 = vunpack.c.h.b16 %v5724
        %v5846 = vunpack.c.l.b16 %v5725
        %v5847 = vunpack.c.h.b16 %v5725
        %v5848 = vunpack.c.l.b16 %v5726
        %v5849 = vunpack.c.h.b16 %v5726
        %v5850 = vunpack.c.l.b16 %v5727
        %v5851 = vunpack.c.h.b16 %v5727
        %v5852 = vunpack.c.l.b16 %v5728
        %v5853 = vunpack.c.h.b16 %v5728
        %v5854 = vunpack.c.l.b16 %v5729
        %v5855 = vunpack.c.h.b16 %v5729
        %v5856 = vunpack.c.l.b16 %v5730
        %v5857 = vunpack.c.h.b16 %v5730
        %v5858 = vunpack.c.l.b16 %v5731
        %v5859 = vunpack.c.h.b16 %v5731
        %v5860 = vunpack.c.l.b16 %v5732
        %v5861 = vunpack.c.h.b16 %v5732
        %v5862 = vunpack.c.l.b16 %v5733
        %v5863 = vunpack.c.h.b16 %v5733
        %v5864 = vunpack.c.l.b16 %v5734
        %v5865 = vunpack.c.h.b16 %v5734
        %v5866 = vunpack.c.l.b16 %v5735
        %v5867 = vunpack.c.h.b16 %v5735
        %v5868 = vunpack.c.l.b16 %v5736
        %v5869 = vunpack.c.h.b16 %v5736
        %v5870 = vunpack.c.l.b16 %v5737
        %v5871 = vunpack.c.h.b16 %v5737
        %v5872 = vunpack.c.l.b16 %v5738
        %v5873 = vunpack.c.h.b16 %v5738
        %v5874 = vunpack.c.l.b16 %v5739
        %v5875 = vunpack.c.h.b16 %v5739
        %v5876 = vpack.c.b16 %v5814, %v5812
        %v5877 = vpack.c.b16 %v5815, %v5813
        %v5878 = vpack.c.b16 %v5818, %v5816
        %v5879 = vpack.c.b16 %v5819, %v5817
        %v5880 = vpack.c.b16 %v5822, %v5820
        %v5881 = vpack.c.b16 %v5823, %v5821
        %v5882 = vpack.c.b16 %v5826, %v5824
        %v5883 = vpack.c.b16 %v5827, %v5825
        %v5884 = vpack.c.b16 %v5830, %v5828
        %v5885 = vpack.c.b16 %v5831, %v5829
        %v5886 = vpack.c.b16 %v5834, %v5832
        %v5887 = vpack.c.b16 %v5835, %v5833
        %v5888 = vpack.c.b16 %v5838, %v5836
        %v5889 = vpack.c.b16 %v5839, %v5837
        %v5890 = vpack.c.b16 %v5842, %v5840
        %v5891 = vpack.c.b16 %v5843, %v5841
        %v5892 = vpack.c.b16 %v5846, %v5844
        %v5893 = vpack.c.b16 %v5847, %v5845
        %v5894 = vpack.c.b16 %v5850, %v5848
        %v5895 = vpack.c.b16 %v5851, %v5849
        %v5896 = vpack.c.b16 %v5854, %v5852
        %v5897 = vpack.c.b16 %v5855, %v5853
        %v5898 = vpack.c.b16 %v5858, %v5856
        %v5899 = vpack.c.b16 %v5859, %v5857
        %v5900 = vpack.c.b16 %v5862, %v5860
        %v5901 = vpack.c.b16 %v5863, %v5861
        %v5902 = vpack.c.b16 %v5866, %v5864
        %v5903 = vpack.c.b16 %v5867, %v5865
        %v5904 = vpack.c.b16 %v5870, %v5868
        %v5905 = vpack.c.b16 %v5871, %v5869
        %v5906 = vpack.c.b16 %v5874, %v5872
        %v5907 = vpack.c.b16 %v5875, %v5873
        %5940 = vmatpush.bf16.msra.mxu0 %v5890
        %5941 = vmatpush.bf16.msra.mxu0 %v5888
        %5942 = vmatpush.bf16.msra.mxu0 %v5886
        %5943 = vmatpush.bf16.msra.mxu0 %v5884
        %5944 = vmatpush.bf16.msra.mxu0 %v5882
        %5945 = vmatpush.bf16.msra.mxu0 %v5880
        %5946 = vmatpush.bf16.msra.mxu0 %v5878
        %5947 = vmatpush.bf16.msra.mxu0 %v5876
        %5948 = vmatmul.bf16.gmra.mxu0 %v5764
        %v5949 = vpop.f32.mrf.mxu0
        %v5950 = vadd.f32 0.0, %v5949
        %v5951 = vpop.f32.mrf.mxu0
        %v5952 = vadd.f32 0.0, %v5951
        %5953 = vmatmul.bf16.gmra.mxu0 %v5766
        %v5954 = vpop.f32.mrf.mxu0
        %v5955 = vadd.f32 0.0, %v5954
        %v5956 = vpop.f32.mrf.mxu0
        %v5957 = vadd.f32 0.0, %v5956
        %5958 = vmatmul.bf16.gmra.mxu0 %v5768
        %v5959 = vpop.f32.mrf.mxu0
        %v5960 = vadd.f32 0.0, %v5959
        %v5961 = vpop.f32.mrf.mxu0
        %v5962 = vadd.f32 0.0, %v5961
        %5963 = vmatmul.bf16.gmra.mxu0 %v5770
        %v5964 = vpop.f32.mrf.mxu0
        %v5965 = vadd.f32 0.0, %v5964
        %v5966 = vpop.f32.mrf.mxu0
        %v5967 = vadd.f32 0.0, %v5966
        %5968 = vdwg.mxu0
        %5969 = vmatpush.bf16.msra.mxu0 %v5906
        %5970 = vmatpush.bf16.msra.mxu0 %v5904
        %5971 = vmatpush.bf16.msra.mxu0 %v5902
        %5972 = vmatpush.bf16.msra.mxu0 %v5900
        %5973 = vmatpush.bf16.msra.mxu0 %v5898
        %5974 = vmatpush.bf16.msra.mxu0 %v5896
        %5975 = vmatpush.bf16.msra.mxu0 %v5894
        %5976 = vmatpush.bf16.msra.mxu0 %v5892
        %5977 = vmatmul.bf16.gmra.mxu0 %v5765
        %v5978 = vpop.f32.mrf.mxu0
        %v5979 = vadd.f32 %v5950, %v5978
        %v5980 = vpop.f32.mrf.mxu0
        %v5981 = vadd.f32 %v5952, %v5980
        %5982 = vmatmul.bf16.gmra.mxu0 %v5767
        %v5983 = vpop.f32.mrf.mxu0
        %v5984 = vadd.f32 %v5955, %v5983
        %v5985 = vpop.f32.mrf.mxu0
        %v5986 = vadd.f32 %v5957, %v5985
        %5987 = vmatmul.bf16.gmra.mxu0 %v5769
        %v5988 = vpop.f32.mrf.mxu0
        %v5989 = vadd.f32 %v5960, %v5988
        %v5990 = vpop.f32.mrf.mxu0
        %v5991 = vadd.f32 %v5962, %v5990
        %5992 = vmatmul.bf16.gmra.mxu0 %v5771
        %v5993 = vpop.f32.mrf.mxu0
        %v5994 = vadd.f32 %v5965, %v5993
        %v5995 = vpop.f32.mrf.mxu0
        %v5996 = vadd.f32 %v5967, %v5995
        %5997 = vdwg.mxu0
        %5998 = vmatpush.bf16.msra.mxu0 %v5891
        %5999 = vmatpush.bf16.msra.mxu0 %v5889
        %6000 = vmatpush.bf16.msra.mxu0 %v5887
        %6001 = vmatpush.bf16.msra.mxu0 %v5885
        %6002 = vmatpush.bf16.msra.mxu0 %v5883
        %6003 = vmatpush.bf16.msra.mxu0 %v5881
        %6004 = vmatpush.bf16.msra.mxu0 %v5879
        %6005 = vmatpush.bf16.msra.mxu0 %v5877
        %6006 = vmatmul.bf16.gmra.mxu0 %v5764
        %v6007 = vpop.f32.mrf.mxu0
        %v6008 = vadd.f32 0.0, %v6007
        %v6009 = vpop.f32.mrf.mxu0
        %v6010 = vadd.f32 0.0, %v6009
        %6011 = vmatmul.bf16.gmra.mxu0 %v5766
        %v6012 = vpop.f32.mrf.mxu0
        %v6013 = vadd.f32 0.0, %v6012
        %v6014 = vpop.f32.mrf.mxu0
        %v6015 = vadd.f32 0.0, %v6014
        %6016 = vmatmul.bf16.gmra.mxu0 %v5768
        %v6017 = vpop.f32.mrf.mxu0
        %v6018 = vadd.f32 0.0, %v6017
        %v6019 = vpop.f32.mrf.mxu0
        %v6020 = vadd.f32 0.0, %v6019
        %6021 = vmatmul.bf16.gmra.mxu0 %v5770
        %v6022 = vpop.f32.mrf.mxu0
        %v6023 = vadd.f32 0.0, %v6022
        %v6024 = vpop.f32.mrf.mxu0
        %v6025 = vadd.f32 0.0, %v6024
        %6026 = vdwg.mxu0
        %6027 = vmatpush.bf16.msra.mxu0 %v5907
        %6028 = vmatpush.bf16.msra.mxu0 %v5905
        %6029 = vmatpush.bf16.msra.mxu0 %v5903
        %6030 = vmatpush.bf16.msra.mxu0 %v5901
        %6031 = vmatpush.bf16.msra.mxu0 %v5899
        %6032 = vmatpush.bf16.msra.mxu0 %v5897
        %6033 = vmatpush.bf16.msra.mxu0 %v5895
        %6034 = vmatpush.bf16.msra.mxu0 %v5893
        %6035 = vmatmul.bf16.gmra.mxu0 %v5765
        %v6036 = vpop.f32.mrf.mxu0
        %v6037 = vadd.f32 %v6008, %v6036
        %v6038 = vpop.f32.mrf.mxu0
        %v6039 = vadd.f32 %v6010, %v6038
        %6040 = vmatmul.bf16.gmra.mxu0 %v5767
        %v6041 = vpop.f32.mrf.mxu0
        %v6042 = vadd.f32 %v6013, %v6041
        %v6043 = vpop.f32.mrf.mxu0
        %v6044 = vadd.f32 %v6015, %v6043
        %6045 = vmatmul.bf16.gmra.mxu0 %v5769
        %v6046 = vpop.f32.mrf.mxu0
        %v6047 = vadd.f32 %v6018, %v6046
        %v6048 = vpop.f32.mrf.mxu0
        %v6049 = vadd.f32 %v6020, %v6048
        %6050 = vmatmul.bf16.gmra.mxu0 %v5771
        %v6051 = vpop.f32.mrf.mxu0
        %v6052 = vadd.f32 %v6023, %v6051
        %v6053 = vpop.f32.mrf.mxu0
        %v6054 = vadd.f32 %v6025, %v6053
        %6055 = vdwg.mxu0
        %v6056 = vadd.f32 %v5683, %v5979
        %v6057 = vadd.f32 %v5684, %v6037
        %v6058 = vadd.f32 %v5685, %v5981
        %v6059 = vadd.f32 %v5686, %v6039
        %v6060 = vadd.f32 %v5687, %v5984
        %v6061 = vadd.f32 %v5688, %v6042
        %v6062 = vadd.f32 %v5689, %v5986
        %v6063 = vadd.f32 %v5690, %v6044
        %v6064 = vadd.f32 %v5691, %v5989
        %v6065 = vadd.f32 %v5692, %v6047
        %v6066 = vadd.f32 %v5693, %v5991
        %v6067 = vadd.f32 %v5694, %v6049
        %v6068 = vadd.f32 %v5695, %v5994
        %v6069 = vadd.f32 %v5696, %v6052
        %v6070 = vadd.f32 %v5697, %v5996
        %v6071 = vadd.f32 %v5698, %v6054
        %v6072 = vld [vmem:[%s4420] sm:$0xff]
        %v6073 = vld [vmem:[%s4420 + $0x8] sm:$0x11]
        %v6074 = vld [vmem:[%s4420 + $0x10] sm:$0xff]
        %v6075 = vld [vmem:[%s4420 + $0x18] sm:$0x11]
        %v6076 = vld [vmem:[%s4420 + $0x20] sm:$0xff]
        %v6077 = vld [vmem:[%s4420 + $0x28] sm:$0x11]
        %v6078 = vld [vmem:[%s4420 + $0x30] sm:$0xff]
        %v6079 = vld [vmem:[%s4420 + $0x38] sm:$0x11]
        %v6080 = vld [vmem:[%s4420 + $0x40] sm:$0xff]
        %v6081 = vld [vmem:[%s4420 + $0x48] sm:$0x11]
        %v6082 = vld [vmem:[%s4420 + $0x50] sm:$0xff]
        %v6083 = vld [vmem:[%s4420 + $0x58] sm:$0x11]
        %v6084 = vld [vmem:[%s4420 + $0x60] sm:$0xff]
        %v6085 = vld [vmem:[%s4420 + $0x68] sm:$0x11]
        %v6086 = vld [vmem:[%s4420 + $0x70] sm:$0xff]
        %v6087 = vld [vmem:[%s4420 + $0x78] sm:$0x11]
        %v6089 = vshrl.u32 %v6072, 16
        %v6091 = vrot.slane %v6089, 4
        %v6092 = vshll.u32 %v6072, 16
        %v6094 = vrot.slane %v6092, 5
        %v6095 = vor.u32 %v6091, %v6094
        %v6096 = vrot.slane %v6095, 4
        %v6098 = vshll.u32 %v6073, 16
        %v6100 = vrot.slane %v6098, 5
        %v6101 = vsel %vm565, %v6096, %v6100
        %v6103 = vshrl.u32 %v6074, 16
        %v6105 = vrot.slane %v6103, 4
        %v6106 = vshll.u32 %v6074, 16
        %v6108 = vrot.slane %v6106, 5
        %v6109 = vor.u32 %v6105, %v6108
        %v6110 = vrot.slane %v6109, 4
        %v6112 = vshll.u32 %v6075, 16
        %v6114 = vrot.slane %v6112, 5
        %v6115 = vsel %vm565, %v6110, %v6114
        %v6117 = vshrl.u32 %v6076, 16
        %v6119 = vrot.slane %v6117, 4
        %v6120 = vshll.u32 %v6076, 16
        %v6122 = vrot.slane %v6120, 5
        %v6123 = vor.u32 %v6119, %v6122
        %v6124 = vrot.slane %v6123, 4
        %v6126 = vshll.u32 %v6077, 16
        %v6128 = vrot.slane %v6126, 5
        %v6129 = vsel %vm565, %v6124, %v6128
        %v6131 = vshrl.u32 %v6078, 16
        %v6133 = vrot.slane %v6131, 4
        %v6134 = vshll.u32 %v6078, 16
        %v6136 = vrot.slane %v6134, 5
        %v6137 = vor.u32 %v6133, %v6136
        %v6138 = vrot.slane %v6137, 4
        %v6140 = vshll.u32 %v6079, 16
        %v6142 = vrot.slane %v6140, 5
        %v6143 = vsel %vm565, %v6138, %v6142
        %v6145 = vshrl.u32 %v6080, 16
        %v6147 = vrot.slane %v6145, 4
        %v6148 = vshll.u32 %v6080, 16
        %v6150 = vrot.slane %v6148, 5
        %v6151 = vor.u32 %v6147, %v6150
        %v6152 = vrot.slane %v6151, 4
        %v6154 = vshll.u32 %v6081, 16
        %v6156 = vrot.slane %v6154, 5
        %v6157 = vsel %vm565, %v6152, %v6156
        %v6159 = vshrl.u32 %v6082, 16
        %v6161 = vrot.slane %v6159, 4
        %v6162 = vshll.u32 %v6082, 16
        %v6164 = vrot.slane %v6162, 5
        %v6165 = vor.u32 %v6161, %v6164
        %v6166 = vrot.slane %v6165, 4
        %v6168 = vshll.u32 %v6083, 16
        %v6170 = vrot.slane %v6168, 5
        %v6171 = vsel %vm565, %v6166, %v6170
        %v6173 = vshrl.u32 %v6084, 16
        %v6175 = vrot.slane %v6173, 4
        %v6176 = vshll.u32 %v6084, 16
        %v6178 = vrot.slane %v6176, 5
        %v6179 = vor.u32 %v6175, %v6178
        %v6180 = vrot.slane %v6179, 4
        %v6182 = vshll.u32 %v6085, 16
        %v6184 = vrot.slane %v6182, 5
        %v6185 = vsel %vm565, %v6180, %v6184
        %v6187 = vshrl.u32 %v6086, 16
        %v6189 = vrot.slane %v6187, 4
        %v6190 = vshll.u32 %v6086, 16
        %v6192 = vrot.slane %v6190, 5
        %v6193 = vor.u32 %v6189, %v6192
        %v6194 = vrot.slane %v6193, 4
        %v6196 = vshll.u32 %v6087, 16
        %v6198 = vrot.slane %v6196, 5
        %v6199 = vsel %vm565, %v6194, %v6198
        %s6200 = scalar_lea.vmem [#allocation10], 1024
        %v6201 = vld [vmem:[%s6200] sm:$0xff]
        %v6202 = vld [vmem:[%s6200 + $0x8] sm:$0xff]
        %v6203 = vld [vmem:[%s6200 + $0x10] sm:$0xff]
        %v6204 = vld [vmem:[%s6200 + $0x18] sm:$0xff]
        %v6205 = vld [vmem:[%s6200 + $0x20] sm:$0xff]
        %v6206 = vld [vmem:[%s6200 + $0x28] sm:$0xff]
        %v6207 = vld [vmem:[%s6200 + $0x30] sm:$0xff]
        %v6208 = vld [vmem:[%s6200 + $0x38] sm:$0xff]
        %v6209 = vld [vmem:[%s6200 + $0x40] sm:$0xff]
        %v6210 = vld [vmem:[%s6200 + $0x48] sm:$0xff]
        %v6211 = vld [vmem:[%s6200 + $0x50] sm:$0xff]
        %v6212 = vld [vmem:[%s6200 + $0x58] sm:$0xff]
        %v6213 = vld [vmem:[%s6200 + $0x60] sm:$0xff]
        %v6214 = vld [vmem:[%s6200 + $0x68] sm:$0xff]
        %v6215 = vld [vmem:[%s6200 + $0x70] sm:$0xff]
        %v6216 = vld [vmem:[%s6200 + $0x78] sm:$0xff]
        %v6217 = vld [vmem:[%s6200 + $0x80] sm:$0xff]
        %v6218 = vld [vmem:[%s6200 + $0x88] sm:$0xff]
        %v6219 = vld [vmem:[%s6200 + $0x90] sm:$0xff]
        %v6220 = vld [vmem:[%s6200 + $0x98] sm:$0xff]
        %v6221 = vld [vmem:[%s6200 + $0xa0] sm:$0xff]
        %v6222 = vld [vmem:[%s6200 + $0xa8] sm:$0xff]
        %v6223 = vld [vmem:[%s6200 + $0xb0] sm:$0xff]
        %v6224 = vld [vmem:[%s6200 + $0xb8] sm:$0xff]
        %v6225 = vld [vmem:[%s6200 + $0xc0] sm:$0xff]
        %v6226 = vld [vmem:[%s6200 + $0xc8] sm:$0xff]
        %v6227 = vld [vmem:[%s6200 + $0xd0] sm:$0xff]
        %v6228 = vld [vmem:[%s6200 + $0xd8] sm:$0xff]
        %v6229 = vld [vmem:[%s6200 + $0xe0] sm:$0xff]
        %v6230 = vld [vmem:[%s6200 + $0xe8] sm:$0xff]
        %v6231 = vld [vmem:[%s6200 + $0xf0] sm:$0xff]
        %v6232 = vld [vmem:[%s6200 + $0xf8] sm:$0xff]
        %v6233 = vunpack.c.l.b16 %v6101
        %v6234 = vunpack.c.h.b16 %v6101
        %v6235 = vunpack.c.l.b16 %v6115
        %v6236 = vunpack.c.h.b16 %v6115
        %v6237 = vunpack.c.l.b16 %v6129
        %v6238 = vunpack.c.h.b16 %v6129
        %v6239 = vunpack.c.l.b16 %v6143
        %v6240 = vunpack.c.h.b16 %v6143
        %v6241 = vunpack.c.l.b16 %v6157
        %v6242 = vunpack.c.h.b16 %v6157
        %v6243 = vunpack.c.l.b16 %v6171
        %v6244 = vunpack.c.h.b16 %v6171
        %v6245 = vunpack.c.l.b16 %v6185
        %v6246 = vunpack.c.h.b16 %v6185
        %v6247 = vunpack.c.l.b16 %v6199
        %v6248 = vunpack.c.h.b16 %v6199
        %v6249 = vpack.c.b16 %v6235, %v6233
        %v6250 = vpack.c.b16 %v6236, %v6234
        %v6251 = vpack.c.b16 %v6239, %v6237
        %v6252 = vpack.c.b16 %v6240, %v6238
        %v6253 = vpack.c.b16 %v6243, %v6241
        %v6254 = vpack.c.b16 %v6244, %v6242
        %v6255 = vpack.c.b16 %v6247, %v6245
        %v6256 = vpack.c.b16 %v6248, %v6246
        %v6297 = vunpack.c.l.b16 %v6201
        %v6298 = vunpack.c.h.b16 %v6201
        %v6299 = vunpack.c.l.b16 %v6202
        %v6300 = vunpack.c.h.b16 %v6202
        %v6301 = vunpack.c.l.b16 %v6203
        %v6302 = vunpack.c.h.b16 %v6203
        %v6303 = vunpack.c.l.b16 %v6204
        %v6304 = vunpack.c.h.b16 %v6204
        %v6305 = vunpack.c.l.b16 %v6205
        %v6306 = vunpack.c.h.b16 %v6205
        %v6307 = vunpack.c.l.b16 %v6206
        %v6308 = vunpack.c.h.b16 %v6206
        %v6309 = vunpack.c.l.b16 %v6207
        %v6310 = vunpack.c.h.b16 %v6207
        %v6311 = vunpack.c.l.b16 %v6208
        %v6312 = vunpack.c.h.b16 %v6208
        %v6313 = vunpack.c.l.b16 %v6209
        %v6314 = vunpack.c.h.b16 %v6209
        %v6315 = vunpack.c.l.b16 %v6210
        %v6316 = vunpack.c.h.b16 %v6210
        %v6317 = vunpack.c.l.b16 %v6211
        %v6318 = vunpack.c.h.b16 %v6211
        %v6319 = vunpack.c.l.b16 %v6212
        %v6320 = vunpack.c.h.b16 %v6212
        %v6321 = vunpack.c.l.b16 %v6213
        %v6322 = vunpack.c.h.b16 %v6213
        %v6323 = vunpack.c.l.b16 %v6214
        %v6324 = vunpack.c.h.b16 %v6214
        %v6325 = vunpack.c.l.b16 %v6215
        %v6326 = vunpack.c.h.b16 %v6215
        %v6327 = vunpack.c.l.b16 %v6216
        %v6328 = vunpack.c.h.b16 %v6216
        %v6329 = vunpack.c.l.b16 %v6217
        %v6330 = vunpack.c.h.b16 %v6217
        %v6331 = vunpack.c.l.b16 %v6218
        %v6332 = vunpack.c.h.b16 %v6218
        %v6333 = vunpack.c.l.b16 %v6219
        %v6334 = vunpack.c.h.b16 %v6219
        %v6335 = vunpack.c.l.b16 %v6220
        %v6336 = vunpack.c.h.b16 %v6220
        %v6337 = vunpack.c.l.b16 %v6221
        %v6338 = vunpack.c.h.b16 %v6221
        %v6339 = vunpack.c.l.b16 %v6222
        %v6340 = vunpack.c.h.b16 %v6222
        %v6341 = vunpack.c.l.b16 %v6223
        %v6342 = vunpack.c.h.b16 %v6223
        %v6343 = vunpack.c.l.b16 %v6224
        %v6344 = vunpack.c.h.b16 %v6224
        %v6345 = vunpack.c.l.b16 %v6225
        %v6346 = vunpack.c.h.b16 %v6225
        %v6347 = vunpack.c.l.b16 %v6226
        %v6348 = vunpack.c.h.b16 %v6226
        %v6349 = vunpack.c.l.b16 %v6227
        %v6350 = vunpack.c.h.b16 %v6227
        %v6351 = vunpack.c.l.b16 %v6228
        %v6352 = vunpack.c.h.b16 %v6228
        %v6353 = vunpack.c.l.b16 %v6229
        %v6354 = vunpack.c.h.b16 %v6229
        %v6355 = vunpack.c.l.b16 %v6230
        %v6356 = vunpack.c.h.b16 %v6230
        %v6357 = vunpack.c.l.b16 %v6231
        %v6358 = vunpack.c.h.b16 %v6231
        %v6359 = vunpack.c.l.b16 %v6232
        %v6360 = vunpack.c.h.b16 %v6232
        %v6361 = vpack.c.b16 %v6299, %v6297
        %v6362 = vpack.c.b16 %v6300, %v6298
        %v6363 = vpack.c.b16 %v6303, %v6301
        %v6364 = vpack.c.b16 %v6304, %v6302
        %v6365 = vpack.c.b16 %v6307, %v6305
        %v6366 = vpack.c.b16 %v6308, %v6306
        %v6367 = vpack.c.b16 %v6311, %v6309
        %v6368 = vpack.c.b16 %v6312, %v6310
        %v6369 = vpack.c.b16 %v6315, %v6313
        %v6370 = vpack.c.b16 %v6316, %v6314
        %v6371 = vpack.c.b16 %v6319, %v6317
        %v6372 = vpack.c.b16 %v6320, %v6318
        %v6373 = vpack.c.b16 %v6323, %v6321
        %v6374 = vpack.c.b16 %v6324, %v6322
        %v6375 = vpack.c.b16 %v6327, %v6325
        %v6376 = vpack.c.b16 %v6328, %v6326
        %v6377 = vpack.c.b16 %v6331, %v6329
        %v6378 = vpack.c.b16 %v6332, %v6330
        %v6379 = vpack.c.b16 %v6335, %v6333
        %v6380 = vpack.c.b16 %v6336, %v6334
        %v6381 = vpack.c.b16 %v6339, %v6337
        %v6382 = vpack.c.b16 %v6340, %v6338
        %v6383 = vpack.c.b16 %v6343, %v6341
        %v6384 = vpack.c.b16 %v6344, %v6342
        %v6385 = vpack.c.b16 %v6347, %v6345
        %v6386 = vpack.c.b16 %v6348, %v6346
        %v6387 = vpack.c.b16 %v6351, %v6349
        %v6388 = vpack.c.b16 %v6352, %v6350
        %v6389 = vpack.c.b16 %v6355, %v6353
        %v6390 = vpack.c.b16 %v6356, %v6354
        %v6391 = vpack.c.b16 %v6359, %v6357
        %v6392 = vpack.c.b16 %v6360, %v6358
        %6425 = vmatpush.bf16.msra.mxu0 %v6375
        %6426 = vmatpush.bf16.msra.mxu0 %v6373
        %6427 = vmatpush.bf16.msra.mxu0 %v6371
        %6428 = vmatpush.bf16.msra.mxu0 %v6369
        %6429 = vmatpush.bf16.msra.mxu0 %v6367
        %6430 = vmatpush.bf16.msra.mxu0 %v6365
        %6431 = vmatpush.bf16.msra.mxu0 %v6363
        %6432 = vmatpush.bf16.msra.mxu0 %v6361
        %6433 = vmatmul.bf16.gmra.mxu0 %v6249
        %v6434 = vpop.f32.mrf.mxu0
        %v6435 = vadd.f32 0.0, %v6434
        %v6436 = vpop.f32.mrf.mxu0
        %v6437 = vadd.f32 0.0, %v6436
        %6438 = vmatmul.bf16.gmra.mxu0 %v6251
        %v6439 = vpop.f32.mrf.mxu0
        %v6440 = vadd.f32 0.0, %v6439
        %v6441 = vpop.f32.mrf.mxu0
        %v6442 = vadd.f32 0.0, %v6441
        %6443 = vmatmul.bf16.gmra.mxu0 %v6253
        %v6444 = vpop.f32.mrf.mxu0
        %v6445 = vadd.f32 0.0, %v6444
        %v6446 = vpop.f32.mrf.mxu0
        %v6447 = vadd.f32 0.0, %v6446
        %6448 = vmatmul.bf16.gmra.mxu0 %v6255
        %v6449 = vpop.f32.mrf.mxu0
        %v6450 = vadd.f32 0.0, %v6449
        %v6451 = vpop.f32.mrf.mxu0
        %v6452 = vadd.f32 0.0, %v6451
        %6453 = vdwg.mxu0
        %6454 = vmatpush.bf16.msra.mxu0 %v6391
        %6455 = vmatpush.bf16.msra.mxu0 %v6389
        %6456 = vmatpush.bf16.msra.mxu0 %v6387
        %6457 = vmatpush.bf16.msra.mxu0 %v6385
        %6458 = vmatpush.bf16.msra.mxu0 %v6383
        %6459 = vmatpush.bf16.msra.mxu0 %v6381
        %6460 = vmatpush.bf16.msra.mxu0 %v6379
        %6461 = vmatpush.bf16.msra.mxu0 %v6377
        %6462 = vmatmul.bf16.gmra.mxu0 %v6250
        %v6463 = vpop.f32.mrf.mxu0
        %v6464 = vadd.f32 %v6435, %v6463
        %v6465 = vpop.f32.mrf.mxu0
        %v6466 = vadd.f32 %v6437, %v6465
        %6467 = vmatmul.bf16.gmra.mxu0 %v6252
        %v6468 = vpop.f32.mrf.mxu0
        %v6469 = vadd.f32 %v6440, %v6468
        %v6470 = vpop.f32.mrf.mxu0
        %v6471 = vadd.f32 %v6442, %v6470
        %6472 = vmatmul.bf16.gmra.mxu0 %v6254
        %v6473 = vpop.f32.mrf.mxu0
        %v6474 = vadd.f32 %v6445, %v6473
        %v6475 = vpop.f32.mrf.mxu0
        %v6476 = vadd.f32 %v6447, %v6475
        %6477 = vmatmul.bf16.gmra.mxu0 %v6256
        %v6478 = vpop.f32.mrf.mxu0
        %v6479 = vadd.f32 %v6450, %v6478
        %v6480 = vpop.f32.mrf.mxu0
        %v6481 = vadd.f32 %v6452, %v6480
        %6482 = vdwg.mxu0
        %6483 = vmatpush.bf16.msra.mxu0 %v6376
        %6484 = vmatpush.bf16.msra.mxu0 %v6374
        %6485 = vmatpush.bf16.msra.mxu0 %v6372
        %6486 = vmatpush.bf16.msra.mxu0 %v6370
        %6487 = vmatpush.bf16.msra.mxu0 %v6368
        %6488 = vmatpush.bf16.msra.mxu0 %v6366
        %6489 = vmatpush.bf16.msra.mxu0 %v6364
        %6490 = vmatpush.bf16.msra.mxu0 %v6362
        %6491 = vmatmul.bf16.gmra.mxu0 %v6249
        %v6492 = vpop.f32.mrf.mxu0
        %v6493 = vadd.f32 0.0, %v6492
        %v6494 = vpop.f32.mrf.mxu0
        %v6495 = vadd.f32 0.0, %v6494
        %6496 = vmatmul.bf16.gmra.mxu0 %v6251
        %v6497 = vpop.f32.mrf.mxu0
        %v6498 = vadd.f32 0.0, %v6497
        %v6499 = vpop.f32.mrf.mxu0
        %v6500 = vadd.f32 0.0, %v6499
        %6501 = vmatmul.bf16.gmra.mxu0 %v6253
        %v6502 = vpop.f32.mrf.mxu0
        %v6503 = vadd.f32 0.0, %v6502
        %v6504 = vpop.f32.mrf.mxu0
        %v6505 = vadd.f32 0.0, %v6504
        %6506 = vmatmul.bf16.gmra.mxu0 %v6255
        %v6507 = vpop.f32.mrf.mxu0
        %v6508 = vadd.f32 0.0, %v6507
        %v6509 = vpop.f32.mrf.mxu0
        %v6510 = vadd.f32 0.0, %v6509
        %6511 = vdwg.mxu0
        %6512 = vmatpush.bf16.msra.mxu0 %v6392
        %6513 = vmatpush.bf16.msra.mxu0 %v6390
        %6514 = vmatpush.bf16.msra.mxu0 %v6388
        %6515 = vmatpush.bf16.msra.mxu0 %v6386
        %6516 = vmatpush.bf16.msra.mxu0 %v6384
        %6517 = vmatpush.bf16.msra.mxu0 %v6382
        %6518 = vmatpush.bf16.msra.mxu0 %v6380
        %6519 = vmatpush.bf16.msra.mxu0 %v6378
        %6520 = vmatmul.bf16.gmra.mxu0 %v6250
        %v6521 = vpop.f32.mrf.mxu0
        %v6522 = vadd.f32 %v6493, %v6521
        %v6523 = vpop.f32.mrf.mxu0
        %v6524 = vadd.f32 %v6495, %v6523
        %6525 = vmatmul.bf16.gmra.mxu0 %v6252
        %v6526 = vpop.f32.mrf.mxu0
        %v6527 = vadd.f32 %v6498, %v6526
        %v6528 = vpop.f32.mrf.mxu0
        %v6529 = vadd.f32 %v6500, %v6528
        %6530 = vmatmul.bf16.gmra.mxu0 %v6254
        %v6531 = vpop.f32.mrf.mxu0
        %v6532 = vadd.f32 %v6503, %v6531
        %v6533 = vpop.f32.mrf.mxu0
        %v6534 = vadd.f32 %v6505, %v6533
        %6535 = vmatmul.bf16.gmra.mxu0 %v6256
        %v6536 = vpop.f32.mrf.mxu0
        %v6537 = vadd.f32 %v6508, %v6536
        %v6538 = vpop.f32.mrf.mxu0
        %v6539 = vadd.f32 %v6510, %v6538
        %6540 = vdwg.mxu0
        %v6541 = vadd.f32 %v6056, %v6464
        %v6542 = vadd.f32 %v6057, %v6522
        %v6543 = vadd.f32 %v6058, %v6466
        %v6544 = vadd.f32 %v6059, %v6524
        %v6545 = vadd.f32 %v6060, %v6469
        %v6546 = vadd.f32 %v6061, %v6527
        %v6547 = vadd.f32 %v6062, %v6471
        %v6548 = vadd.f32 %v6063, %v6529
        %v6549 = vadd.f32 %v6064, %v6474
        %v6550 = vadd.f32 %v6065, %v6532
        %v6551 = vadd.f32 %v6066, %v6476
        %v6552 = vadd.f32 %v6067, %v6534
        %v6553 = vadd.f32 %v6068, %v6479
        %v6554 = vadd.f32 %v6069, %v6537
        %v6555 = vadd.f32 %v6070, %v6481
        %v6556 = vadd.f32 %v6071, %v6539
        %v6557 = vld [vmem:[%s4420] sm:$0xee]
        %v6558 = vld [vmem:[%s4420 + $0x10] sm:$0xee]
        %v6559 = vld [vmem:[%s4420 + $0x20] sm:$0xee]
        %v6560 = vld [vmem:[%s4420 + $0x30] sm:$0xee]
        %v6561 = vld [vmem:[%s4420 + $0x40] sm:$0xee]
        %v6562 = vld [vmem:[%s4420 + $0x50] sm:$0xee]
        %v6563 = vld [vmem:[%s4420 + $0x60] sm:$0xee]
        %v6564 = vld [vmem:[%s4420 + $0x70] sm:$0xee]
        %v6581 = vrot.slane %v6557, 5
        %v6582 = vrot.slane %v6581, 4
        %v6583 = vrot.slane %v6073, 5
        %v6584 = vsel %vm1361, %v6582, %v6583
        %v6585 = vrot.slane %v6558, 5
        %v6586 = vrot.slane %v6585, 4
        %v6587 = vrot.slane %v6075, 5
        %v6588 = vsel %vm1361, %v6586, %v6587
        %v6589 = vrot.slane %v6559, 5
        %v6590 = vrot.slane %v6589, 4
        %v6591 = vrot.slane %v6077, 5
        %v6592 = vsel %vm1361, %v6590, %v6591
        %v6593 = vrot.slane %v6560, 5
        %v6594 = vrot.slane %v6593, 4
        %v6595 = vrot.slane %v6079, 5
        %v6596 = vsel %vm1361, %v6594, %v6595
        %v6597 = vrot.slane %v6561, 5
        %v6598 = vrot.slane %v6597, 4
        %v6599 = vrot.slane %v6081, 5
        %v6600 = vsel %vm1361, %v6598, %v6599
        %v6601 = vrot.slane %v6562, 5
        %v6602 = vrot.slane %v6601, 4
        %v6603 = vrot.slane %v6083, 5
        %v6604 = vsel %vm1361, %v6602, %v6603
        %v6605 = vrot.slane %v6563, 5
        %v6606 = vrot.slane %v6605, 4
        %v6607 = vrot.slane %v6085, 5
        %v6608 = vsel %vm1361, %v6606, %v6607
        %v6609 = vrot.slane %v6564, 5
        %v6610 = vrot.slane %v6609, 4
        %v6611 = vrot.slane %v6087, 5
        %v6612 = vsel %vm1361, %v6610, %v6611
        %s6613 = scalar_lea.vmem [#allocation10], 1280
        %v6614 = vld [vmem:[%s6613] sm:$0xff]
        %v6615 = vld [vmem:[%s6613 + $0x8] sm:$0xff]
        %v6616 = vld [vmem:[%s6613 + $0x10] sm:$0xff]
        %v6617 = vld [vmem:[%s6613 + $0x18] sm:$0xff]
        %v6618 = vld [vmem:[%s6613 + $0x20] sm:$0xff]
        %v6619 = vld [vmem:[%s6613 + $0x28] sm:$0xff]
        %v6620 = vld [vmem:[%s6613 + $0x30] sm:$0xff]
        %v6621 = vld [vmem:[%s6613 + $0x38] sm:$0xff]
        %v6622 = vld [vmem:[%s6613 + $0x40] sm:$0xff]
        %v6623 = vld [vmem:[%s6613 + $0x48] sm:$0xff]
        %v6624 = vld [vmem:[%s6613 + $0x50] sm:$0xff]
        %v6625 = vld [vmem:[%s6613 + $0x58] sm:$0xff]
        %v6626 = vld [vmem:[%s6613 + $0x60] sm:$0xff]
        %v6627 = vld [vmem:[%s6613 + $0x68] sm:$0xff]
        %v6628 = vld [vmem:[%s6613 + $0x70] sm:$0xff]
        %v6629 = vld [vmem:[%s6613 + $0x78] sm:$0xff]
        %v6630 = vld [vmem:[%s6613 + $0x80] sm:$0xff]
        %v6631 = vld [vmem:[%s6613 + $0x88] sm:$0xff]
        %v6632 = vld [vmem:[%s6613 + $0x90] sm:$0xff]
        %v6633 = vld [vmem:[%s6613 + $0x98] sm:$0xff]
        %v6634 = vld [vmem:[%s6613 + $0xa0] sm:$0xff]
        %v6635 = vld [vmem:[%s6613 + $0xa8] sm:$0xff]
        %v6636 = vld [vmem:[%s6613 + $0xb0] sm:$0xff]
        %v6637 = vld [vmem:[%s6613 + $0xb8] sm:$0xff]
        %v6638 = vld [vmem:[%s6613 + $0xc0] sm:$0xff]
        %v6639 = vld [vmem:[%s6613 + $0xc8] sm:$0xff]
        %v6640 = vld [vmem:[%s6613 + $0xd0] sm:$0xff]
        %v6641 = vld [vmem:[%s6613 + $0xd8] sm:$0xff]
        %v6642 = vld [vmem:[%s6613 + $0xe0] sm:$0xff]
        %v6643 = vld [vmem:[%s6613 + $0xe8] sm:$0xff]
        %v6644 = vld [vmem:[%s6613 + $0xf0] sm:$0xff]
        %v6645 = vld [vmem:[%s6613 + $0xf8] sm:$0xff]
        %v6646 = vunpack.c.l.b16 %v6584
        %v6647 = vunpack.c.h.b16 %v6584
        %v6648 = vunpack.c.l.b16 %v6588
        %v6649 = vunpack.c.h.b16 %v6588
        %v6650 = vunpack.c.l.b16 %v6592
        %v6651 = vunpack.c.h.b16 %v6592
        %v6652 = vunpack.c.l.b16 %v6596
        %v6653 = vunpack.c.h.b16 %v6596
        %v6654 = vunpack.c.l.b16 %v6600
        %v6655 = vunpack.c.h.b16 %v6600
        %v6656 = vunpack.c.l.b16 %v6604
        %v6657 = vunpack.c.h.b16 %v6604
        %v6658 = vunpack.c.l.b16 %v6608
        %v6659 = vunpack.c.h.b16 %v6608
        %v6660 = vunpack.c.l.b16 %v6612
        %v6661 = vunpack.c.h.b16 %v6612
        %v6662 = vpack.c.b16 %v6648, %v6646
        %v6663 = vpack.c.b16 %v6649, %v6647
        %v6664 = vpack.c.b16 %v6652, %v6650
        %v6665 = vpack.c.b16 %v6653, %v6651
        %v6666 = vpack.c.b16 %v6656, %v6654
        %v6667 = vpack.c.b16 %v6657, %v6655
        %v6668 = vpack.c.b16 %v6660, %v6658
        %v6669 = vpack.c.b16 %v6661, %v6659
        %v6710 = vunpack.c.l.b16 %v6614
        %v6711 = vunpack.c.h.b16 %v6614
        %v6712 = vunpack.c.l.b16 %v6615
        %v6713 = vunpack.c.h.b16 %v6615
        %v6714 = vunpack.c.l.b16 %v6616
        %v6715 = vunpack.c.h.b16 %v6616
        %v6716 = vunpack.c.l.b16 %v6617
        %v6717 = vunpack.c.h.b16 %v6617
        %v6718 = vunpack.c.l.b16 %v6618
        %v6719 = vunpack.c.h.b16 %v6618
        %v6720 = vunpack.c.l.b16 %v6619
        %v6721 = vunpack.c.h.b16 %v6619
        %v6722 = vunpack.c.l.b16 %v6620
        %v6723 = vunpack.c.h.b16 %v6620
        %v6724 = vunpack.c.l.b16 %v6621
        %v6725 = vunpack.c.h.b16 %v6621
        %v6726 = vunpack.c.l.b16 %v6622
        %v6727 = vunpack.c.h.b16 %v6622
        %v6728 = vunpack.c.l.b16 %v6623
        %v6729 = vunpack.c.h.b16 %v6623
        %v6730 = vunpack.c.l.b16 %v6624
        %v6731 = vunpack.c.h.b16 %v6624
        %v6732 = vunpack.c.l.b16 %v6625
        %v6733 = vunpack.c.h.b16 %v6625
        %v6734 = vunpack.c.l.b16 %v6626
        %v6735 = vunpack.c.h.b16 %v6626
        %v6736 = vunpack.c.l.b16 %v6627
        %v6737 = vunpack.c.h.b16 %v6627
        %v6738 = vunpack.c.l.b16 %v6628
        %v6739 = vunpack.c.h.b16 %v6628
        %v6740 = vunpack.c.l.b16 %v6629
        %v6741 = vunpack.c.h.b16 %v6629
        %v6742 = vunpack.c.l.b16 %v6630
        %v6743 = vunpack.c.h.b16 %v6630
        %v6744 = vunpack.c.l.b16 %v6631
        %v6745 = vunpack.c.h.b16 %v6631
        %v6746 = vunpack.c.l.b16 %v6632
        %v6747 = vunpack.c.h.b16 %v6632
        %v6748 = vunpack.c.l.b16 %v6633
        %v6749 = vunpack.c.h.b16 %v6633
        %v6750 = vunpack.c.l.b16 %v6634
        %v6751 = vunpack.c.h.b16 %v6634
        %v6752 = vunpack.c.l.b16 %v6635
        %v6753 = vunpack.c.h.b16 %v6635
        %v6754 = vunpack.c.l.b16 %v6636
        %v6755 = vunpack.c.h.b16 %v6636
        %v6756 = vunpack.c.l.b16 %v6637
        %v6757 = vunpack.c.h.b16 %v6637
        %v6758 = vunpack.c.l.b16 %v6638
        %v6759 = vunpack.c.h.b16 %v6638
        %v6760 = vunpack.c.l.b16 %v6639
        %v6761 = vunpack.c.h.b16 %v6639
        %v6762 = vunpack.c.l.b16 %v6640
        %v6763 = vunpack.c.h.b16 %v6640
        %v6764 = vunpack.c.l.b16 %v6641
        %v6765 = vunpack.c.h.b16 %v6641
        %v6766 = vunpack.c.l.b16 %v6642
        %v6767 = vunpack.c.h.b16 %v6642
        %v6768 = vunpack.c.l.b16 %v6643
        %v6769 = vunpack.c.h.b16 %v6643
        %v6770 = vunpack.c.l.b16 %v6644
        %v6771 = vunpack.c.h.b16 %v6644
        %v6772 = vunpack.c.l.b16 %v6645
        %v6773 = vunpack.c.h.b16 %v6645
        %v6774 = vpack.c.b16 %v6712, %v6710
        %v6775 = vpack.c.b16 %v6713, %v6711
        %v6776 = vpack.c.b16 %v6716, %v6714
        %v6777 = vpack.c.b16 %v6717, %v6715
        %v6778 = vpack.c.b16 %v6720, %v6718
        %v6779 = vpack.c.b16 %v6721, %v6719
        %v6780 = vpack.c.b16 %v6724, %v6722
        %v6781 = vpack.c.b16 %v6725, %v6723
        %v6782 = vpack.c.b16 %v6728, %v6726
        %v6783 = vpack.c.b16 %v6729, %v6727
        %v6784 = vpack.c.b16 %v6732, %v6730
        %v6785 = vpack.c.b16 %v6733, %v6731
        %v6786 = vpack.c.b16 %v6736, %v6734
        %v6787 = vpack.c.b16 %v6737, %v6735
        %v6788 = vpack.c.b16 %v6740, %v6738
        %v6789 = vpack.c.b16 %v6741, %v6739
        %v6790 = vpack.c.b16 %v6744, %v6742
        %v6791 = vpack.c.b16 %v6745, %v6743
        %v6792 = vpack.c.b16 %v6748, %v6746
        %v6793 = vpack.c.b16 %v6749, %v6747
        %v6794 = vpack.c.b16 %v6752, %v6750
        %v6795 = vpack.c.b16 %v6753, %v6751
        %v6796 = vpack.c.b16 %v6756, %v6754
        %v6797 = vpack.c.b16 %v6757, %v6755
        %v6798 = vpack.c.b16 %v6760, %v6758
        %v6799 = vpack.c.b16 %v6761, %v6759
        %v6800 = vpack.c.b16 %v6764, %v6762
        %v6801 = vpack.c.b16 %v6765, %v6763
        %v6802 = vpack.c.b16 %v6768, %v6766
        %v6803 = vpack.c.b16 %v6769, %v6767
        %v6804 = vpack.c.b16 %v6772, %v6770
        %v6805 = vpack.c.b16 %v6773, %v6771
        %6838 = vmatpush.bf16.msra.mxu0 %v6788
        %6839 = vmatpush.bf16.msra.mxu0 %v6786
        %6840 = vmatpush.bf16.msra.mxu0 %v6784
        %6841 = vmatpush.bf16.msra.mxu0 %v6782
        %6842 = vmatpush.bf16.msra.mxu0 %v6780
        %6843 = vmatpush.bf16.msra.mxu0 %v6778
        %6844 = vmatpush.bf16.msra.mxu0 %v6776
        %6845 = vmatpush.bf16.msra.mxu0 %v6774
        %6846 = vmatmul.bf16.gmra.mxu0 %v6662
        %v6847 = vpop.f32.mrf.mxu0
        %v6848 = vadd.f32 0.0, %v6847
        %v6849 = vpop.f32.mrf.mxu0
        %v6850 = vadd.f32 0.0, %v6849
        %6851 = vmatmul.bf16.gmra.mxu0 %v6664
        %v6852 = vpop.f32.mrf.mxu0
        %v6853 = vadd.f32 0.0, %v6852
        %v6854 = vpop.f32.mrf.mxu0
        %v6855 = vadd.f32 0.0, %v6854
        %6856 = vmatmul.bf16.gmra.mxu0 %v6666
        %v6857 = vpop.f32.mrf.mxu0
        %v6858 = vadd.f32 0.0, %v6857
        %v6859 = vpop.f32.mrf.mxu0
        %v6860 = vadd.f32 0.0, %v6859
        %6861 = vmatmul.bf16.gmra.mxu0 %v6668
        %v6862 = vpop.f32.mrf.mxu0
        %v6863 = vadd.f32 0.0, %v6862
        %v6864 = vpop.f32.mrf.mxu0
        %v6865 = vadd.f32 0.0, %v6864
        %6866 = vdwg.mxu0
        %6867 = vmatpush.bf16.msra.mxu0 %v6804
        %6868 = vmatpush.bf16.msra.mxu0 %v6802
        %6869 = vmatpush.bf16.msra.mxu0 %v6800
        %6870 = vmatpush.bf16.msra.mxu0 %v6798
        %6871 = vmatpush.bf16.msra.mxu0 %v6796
        %6872 = vmatpush.bf16.msra.mxu0 %v6794
        %6873 = vmatpush.bf16.msra.mxu0 %v6792
        %6874 = vmatpush.bf16.msra.mxu0 %v6790
        %6875 = vmatmul.bf16.gmra.mxu0 %v6663
        %v6876 = vpop.f32.mrf.mxu0
        %v6877 = vadd.f32 %v6848, %v6876
        %v6878 = vpop.f32.mrf.mxu0
        %v6879 = vadd.f32 %v6850, %v6878
        %6880 = vmatmul.bf16.gmra.mxu0 %v6665
        %v6881 = vpop.f32.mrf.mxu0
        %v6882 = vadd.f32 %v6853, %v6881
        %v6883 = vpop.f32.mrf.mxu0
        %v6884 = vadd.f32 %v6855, %v6883
        %6885 = vmatmul.bf16.gmra.mxu0 %v6667
        %v6886 = vpop.f32.mrf.mxu0
        %v6887 = vadd.f32 %v6858, %v6886
        %v6888 = vpop.f32.mrf.mxu0
        %v6889 = vadd.f32 %v6860, %v6888
        %6890 = vmatmul.bf16.gmra.mxu0 %v6669
        %v6891 = vpop.f32.mrf.mxu0
        %v6892 = vadd.f32 %v6863, %v6891
        %v6893 = vpop.f32.mrf.mxu0
        %v6894 = vadd.f32 %v6865, %v6893
        %6895 = vdwg.mxu0
        %6896 = vmatpush.bf16.msra.mxu0 %v6789
        %6897 = vmatpush.bf16.msra.mxu0 %v6787
        %6898 = vmatpush.bf16.msra.mxu0 %v6785
        %6899 = vmatpush.bf16.msra.mxu0 %v6783
        %6900 = vmatpush.bf16.msra.mxu0 %v6781
        %6901 = vmatpush.bf16.msra.mxu0 %v6779
        %6902 = vmatpush.bf16.msra.mxu0 %v6777
        %6903 = vmatpush.bf16.msra.mxu0 %v6775
        %6904 = vmatmul.bf16.gmra.mxu0 %v6662
        %v6905 = vpop.f32.mrf.mxu0
        %v6906 = vadd.f32 0.0, %v6905
        %v6907 = vpop.f32.mrf.mxu0
        %v6908 = vadd.f32 0.0, %v6907
        %6909 = vmatmul.bf16.gmra.mxu0 %v6664
        %v6910 = vpop.f32.mrf.mxu0
        %v6911 = vadd.f32 0.0, %v6910
        %v6912 = vpop.f32.mrf.mxu0
        %v6913 = vadd.f32 0.0, %v6912
        %6914 = vmatmul.bf16.gmra.mxu0 %v6666
        %v6915 = vpop.f32.mrf.mxu0
        %v6916 = vadd.f32 0.0, %v6915
        %v6917 = vpop.f32.mrf.mxu0
        %v6918 = vadd.f32 0.0, %v6917
        %6919 = vmatmul.bf16.gmra.mxu0 %v6668
        %v6920 = vpop.f32.mrf.mxu0
        %v6921 = vadd.f32 0.0, %v6920
        %v6922 = vpop.f32.mrf.mxu0
        %v6923 = vadd.f32 0.0, %v6922
        %6924 = vdwg.mxu0
        %6925 = vmatpush.bf16.msra.mxu0 %v6805
        %6926 = vmatpush.bf16.msra.mxu0 %v6803
        %6927 = vmatpush.bf16.msra.mxu0 %v6801
        %6928 = vmatpush.bf16.msra.mxu0 %v6799
        %6929 = vmatpush.bf16.msra.mxu0 %v6797
        %6930 = vmatpush.bf16.msra.mxu0 %v6795
        %6931 = vmatpush.bf16.msra.mxu0 %v6793
        %6932 = vmatpush.bf16.msra.mxu0 %v6791
        %6933 = vmatmul.bf16.gmra.mxu0 %v6663
        %v6934 = vpop.f32.mrf.mxu0
        %v6935 = vadd.f32 %v6906, %v6934
        %v6936 = vpop.f32.mrf.mxu0
        %v6937 = vadd.f32 %v6908, %v6936
        %6938 = vmatmul.bf16.gmra.mxu0 %v6665
        %v6939 = vpop.f32.mrf.mxu0
        %v6940 = vadd.f32 %v6911, %v6939
        %v6941 = vpop.f32.mrf.mxu0
        %v6942 = vadd.f32 %v6913, %v6941
        %6943 = vmatmul.bf16.gmra.mxu0 %v6667
        %v6944 = vpop.f32.mrf.mxu0
        %v6945 = vadd.f32 %v6916, %v6944
        %v6946 = vpop.f32.mrf.mxu0
        %v6947 = vadd.f32 %v6918, %v6946
        %6948 = vmatmul.bf16.gmra.mxu0 %v6669
        %v6949 = vpop.f32.mrf.mxu0
        %v6950 = vadd.f32 %v6921, %v6949
        %v6951 = vpop.f32.mrf.mxu0
        %v6952 = vadd.f32 %v6923, %v6951
        %6953 = vdwg.mxu0
        %v6954 = vadd.f32 %v6541, %v6877
        %v6955 = vadd.f32 %v6542, %v6935
        %v6956 = vadd.f32 %v6543, %v6879
        %v6957 = vadd.f32 %v6544, %v6937
        %v6958 = vadd.f32 %v6545, %v6882
        %v6959 = vadd.f32 %v6546, %v6940
        %v6960 = vadd.f32 %v6547, %v6884
        %v6961 = vadd.f32 %v6548, %v6942
        %v6962 = vadd.f32 %v6549, %v6887
        %v6963 = vadd.f32 %v6550, %v6945
        %v6964 = vadd.f32 %v6551, %v6889
        %v6965 = vadd.f32 %v6552, %v6947
        %v6966 = vadd.f32 %v6553, %v6892
        %v6967 = vadd.f32 %v6554, %v6950
        %v6968 = vadd.f32 %v6555, %v6894
        %v6969 = vadd.f32 %v6556, %v6952
        %s6970 = scalar_lea.vmem [#allocation3], 32
        %v6971 = vld [vmem:[%s6970] sm:$0xff]
        %v6972 = vld [vmem:[%s6970 + $0x10] sm:$0xff]
        %v6973 = vld [vmem:[%s6970 + $0x20] sm:$0xff]
        %v6974 = vld [vmem:[%s6970 + $0x30] sm:$0xff]
        %v6975 = vld [vmem:[%s6970 + $0x40] sm:$0xff]
        %v6976 = vld [vmem:[%s6970 + $0x50] sm:$0xff]
        %v6977 = vld [vmem:[%s6970 + $0x60] sm:$0xff]
        %v6978 = vld [vmem:[%s6970 + $0x70] sm:$0xff]
        %s6979 = scalar_lea.vmem [#allocation10], 1536
        %v6980 = vld [vmem:[%s6979] sm:$0xff]
        %v6981 = vld [vmem:[%s6979 + $0x8] sm:$0xff]
        %v6982 = vld [vmem:[%s6979 + $0x10] sm:$0xff]
        %v6983 = vld [vmem:[%s6979 + $0x18] sm:$0xff]
        %v6984 = vld [vmem:[%s6979 + $0x20] sm:$0xff]
        %v6985 = vld [vmem:[%s6979 + $0x28] sm:$0xff]
        %v6986 = vld [vmem:[%s6979 + $0x30] sm:$0xff]
        %v6987 = vld [vmem:[%s6979 + $0x38] sm:$0xff]
        %v6988 = vld [vmem:[%s6979 + $0x40] sm:$0xff]
        %v6989 = vld [vmem:[%s6979 + $0x48] sm:$0xff]
        %v6990 = vld [vmem:[%s6979 + $0x50] sm:$0xff]
        %v6991 = vld [vmem:[%s6979 + $0x58] sm:$0xff]
        %v6992 = vld [vmem:[%s6979 + $0x60] sm:$0xff]
        %v6993 = vld [vmem:[%s6979 + $0x68] sm:$0xff]
        %v6994 = vld [vmem:[%s6979 + $0x70] sm:$0xff]
        %v6995 = vld [vmem:[%s6979 + $0x78] sm:$0xff]
        %v6996 = vld [vmem:[%s6979 + $0x80] sm:$0xff]
        %v6997 = vld [vmem:[%s6979 + $0x88] sm:$0xff]
        %v6998 = vld [vmem:[%s6979 + $0x90] sm:$0xff]
        %v6999 = vld [vmem:[%s6979 + $0x98] sm:$0xff]
        %v7000 = vld [vmem:[%s6979 + $0xa0] sm:$0xff]
        %v7001 = vld [vmem:[%s6979 + $0xa8] sm:$0xff]
        %v7002 = vld [vmem:[%s6979 + $0xb0] sm:$0xff]
        %v7003 = vld [vmem:[%s6979 + $0xb8] sm:$0xff]
        %v7004 = vld [vmem:[%s6979 + $0xc0] sm:$0xff]
        %v7005 = vld [vmem:[%s6979 + $0xc8] sm:$0xff]
        %v7006 = vld [vmem:[%s6979 + $0xd0] sm:$0xff]
        %v7007 = vld [vmem:[%s6979 + $0xd8] sm:$0xff]
        %v7008 = vld [vmem:[%s6979 + $0xe0] sm:$0xff]
        %v7009 = vld [vmem:[%s6979 + $0xe8] sm:$0xff]
        %v7010 = vld [vmem:[%s6979 + $0xf0] sm:$0xff]
        %v7011 = vld [vmem:[%s6979 + $0xf8] sm:$0xff]
        %v7020 = vunpack.c.l.b16 %v6971
        %v7021 = vunpack.c.h.b16 %v6971
        %v7022 = vunpack.c.l.b16 %v6972
        %v7023 = vunpack.c.h.b16 %v6972
        %v7024 = vunpack.c.l.b16 %v6973
        %v7025 = vunpack.c.h.b16 %v6973
        %v7026 = vunpack.c.l.b16 %v6974
        %v7027 = vunpack.c.h.b16 %v6974
        %v7028 = vunpack.c.l.b16 %v6975
        %v7029 = vunpack.c.h.b16 %v6975
        %v7030 = vunpack.c.l.b16 %v6976
        %v7031 = vunpack.c.h.b16 %v6976
        %v7032 = vunpack.c.l.b16 %v6977
        %v7033 = vunpack.c.h.b16 %v6977
        %v7034 = vunpack.c.l.b16 %v6978
        %v7035 = vunpack.c.h.b16 %v6978
        %v7036 = vpack.c.b16 %v7022, %v7020
        %v7037 = vpack.c.b16 %v7023, %v7021
        %v7038 = vpack.c.b16 %v7026, %v7024
        %v7039 = vpack.c.b16 %v7027, %v7025
        %v7040 = vpack.c.b16 %v7030, %v7028
        %v7041 = vpack.c.b16 %v7031, %v7029
        %v7042 = vpack.c.b16 %v7034, %v7032
        %v7043 = vpack.c.b16 %v7035, %v7033
        %v7084 = vunpack.c.l.b16 %v6980
        %v7085 = vunpack.c.h.b16 %v6980
        %v7086 = vunpack.c.l.b16 %v6981
        %v7087 = vunpack.c.h.b16 %v6981
        %v7088 = vunpack.c.l.b16 %v6982
        %v7089 = vunpack.c.h.b16 %v6982
        %v7090 = vunpack.c.l.b16 %v6983
        %v7091 = vunpack.c.h.b16 %v6983
        %v7092 = vunpack.c.l.b16 %v6984
        %v7093 = vunpack.c.h.b16 %v6984
        %v7094 = vunpack.c.l.b16 %v6985
        %v7095 = vunpack.c.h.b16 %v6985
        %v7096 = vunpack.c.l.b16 %v6986
        %v7097 = vunpack.c.h.b16 %v6986
        %v7098 = vunpack.c.l.b16 %v6987
        %v7099 = vunpack.c.h.b16 %v6987
        %v7100 = vunpack.c.l.b16 %v6988
        %v7101 = vunpack.c.h.b16 %v6988
        %v7102 = vunpack.c.l.b16 %v6989
        %v7103 = vunpack.c.h.b16 %v6989
        %v7104 = vunpack.c.l.b16 %v6990
        %v7105 = vunpack.c.h.b16 %v6990
        %v7106 = vunpack.c.l.b16 %v6991
        %v7107 = vunpack.c.h.b16 %v6991
        %v7108 = vunpack.c.l.b16 %v6992
        %v7109 = vunpack.c.h.b16 %v6992
        %v7110 = vunpack.c.l.b16 %v6993
        %v7111 = vunpack.c.h.b16 %v6993
        %v7112 = vunpack.c.l.b16 %v6994
        %v7113 = vunpack.c.h.b16 %v6994
        %v7114 = vunpack.c.l.b16 %v6995
        %v7115 = vunpack.c.h.b16 %v6995
        %v7116 = vunpack.c.l.b16 %v6996
        %v7117 = vunpack.c.h.b16 %v6996
        %v7118 = vunpack.c.l.b16 %v6997
        %v7119 = vunpack.c.h.b16 %v6997
        %v7120 = vunpack.c.l.b16 %v6998
        %v7121 = vunpack.c.h.b16 %v6998
        %v7122 = vunpack.c.l.b16 %v6999
        %v7123 = vunpack.c.h.b16 %v6999
        %v7124 = vunpack.c.l.b16 %v7000
        %v7125 = vunpack.c.h.b16 %v7000
        %v7126 = vunpack.c.l.b16 %v7001
        %v7127 = vunpack.c.h.b16 %v7001
        %v7128 = vunpack.c.l.b16 %v7002
        %v7129 = vunpack.c.h.b16 %v7002
        %v7130 = vunpack.c.l.b16 %v7003
        %v7131 = vunpack.c.h.b16 %v7003
        %v7132 = vunpack.c.l.b16 %v7004
        %v7133 = vunpack.c.h.b16 %v7004
        %v7134 = vunpack.c.l.b16 %v7005
        %v7135 = vunpack.c.h.b16 %v7005
        %v7136 = vunpack.c.l.b16 %v7006
        %v7137 = vunpack.c.h.b16 %v7006
        %v7138 = vunpack.c.l.b16 %v7007
        %v7139 = vunpack.c.h.b16 %v7007
        %v7140 = vunpack.c.l.b16 %v7008
        %v7141 = vunpack.c.h.b16 %v7008
        %v7142 = vunpack.c.l.b16 %v7009
        %v7143 = vunpack.c.h.b16 %v7009
        %v7144 = vunpack.c.l.b16 %v7010
        %v7145 = vunpack.c.h.b16 %v7010
        %v7146 = vunpack.c.l.b16 %v7011
        %v7147 = vunpack.c.h.b16 %v7011
        %v7148 = vpack.c.b16 %v7086, %v7084
        %v7149 = vpack.c.b16 %v7087, %v7085
        %v7150 = vpack.c.b16 %v7090, %v7088
        %v7151 = vpack.c.b16 %v7091, %v7089
        %v7152 = vpack.c.b16 %v7094, %v7092
        %v7153 = vpack.c.b16 %v7095, %v7093
        %v7154 = vpack.c.b16 %v7098, %v7096
        %v7155 = vpack.c.b16 %v7099, %v7097
        %v7156 = vpack.c.b16 %v7102, %v7100
        %v7157 = vpack.c.b16 %v7103, %v7101
        %v7158 = vpack.c.b16 %v7106, %v7104
        %v7159 = vpack.c.b16 %v7107, %v7105
        %v7160 = vpack.c.b16 %v7110, %v7108
        %v7161 = vpack.c.b16 %v7111, %v7109
        %v7162 = vpack.c.b16 %v7114, %v7112
        %v7163 = vpack.c.b16 %v7115, %v7113
        %v7164 = vpack.c.b16 %v7118, %v7116
        %v7165 = vpack.c.b16 %v7119, %v7117
        %v7166 = vpack.c.b16 %v7122, %v7120
        %v7167 = vpack.c.b16 %v7123, %v7121
        %v7168 = vpack.c.b16 %v7126, %v7124
        %v7169 = vpack.c.b16 %v7127, %v7125
        %v7170 = vpack.c.b16 %v7130, %v7128
        %v7171 = vpack.c.b16 %v7131, %v7129
        %v7172 = vpack.c.b16 %v7134, %v7132
        %v7173 = vpack.c.b16 %v7135, %v7133
        %v7174 = vpack.c.b16 %v7138, %v7136
        %v7175 = vpack.c.b16 %v7139, %v7137
        %v7176 = vpack.c.b16 %v7142, %v7140
        %v7177 = vpack.c.b16 %v7143, %v7141
        %v7178 = vpack.c.b16 %v7146, %v7144
        %v7179 = vpack.c.b16 %v7147, %v7145
        %7212 = vmatpush.bf16.msra.mxu0 %v7162
        %7213 = vmatpush.bf16.msra.mxu0 %v7160
        %7214 = vmatpush.bf16.msra.mxu0 %v7158
        %7215 = vmatpush.bf16.msra.mxu0 %v7156
        %7216 = vmatpush.bf16.msra.mxu0 %v7154
        %7217 = vmatpush.bf16.msra.mxu0 %v7152
        %7218 = vmatpush.bf16.msra.mxu0 %v7150
        %7219 = vmatpush.bf16.msra.mxu0 %v7148
        %7220 = vmatmul.bf16.gmra.mxu0 %v7036
        %v7221 = vpop.f32.mrf.mxu0
        %v7222 = vadd.f32 0.0, %v7221
        %v7223 = vpop.f32.mrf.mxu0
        %v7224 = vadd.f32 0.0, %v7223
        %7225 = vmatmul.bf16.gmra.mxu0 %v7038
        %v7226 = vpop.f32.mrf.mxu0
        %v7227 = vadd.f32 0.0, %v7226
        %v7228 = vpop.f32.mrf.mxu0
        %v7229 = vadd.f32 0.0, %v7228
        %7230 = vmatmul.bf16.gmra.mxu0 %v7040
        %v7231 = vpop.f32.mrf.mxu0
        %v7232 = vadd.f32 0.0, %v7231
        %v7233 = vpop.f32.mrf.mxu0
        %v7234 = vadd.f32 0.0, %v7233
        %7235 = vmatmul.bf16.gmra.mxu0 %v7042
        %v7236 = vpop.f32.mrf.mxu0
        %v7237 = vadd.f32 0.0, %v7236
        %v7238 = vpop.f32.mrf.mxu0
        %v7239 = vadd.f32 0.0, %v7238
        %7240 = vdwg.mxu0
        %7241 = vmatpush.bf16.msra.mxu0 %v7178
        %7242 = vmatpush.bf16.msra.mxu0 %v7176
        %7243 = vmatpush.bf16.msra.mxu0 %v7174
        %7244 = vmatpush.bf16.msra.mxu0 %v7172
        %7245 = vmatpush.bf16.msra.mxu0 %v7170
        %7246 = vmatpush.bf16.msra.mxu0 %v7168
        %7247 = vmatpush.bf16.msra.mxu0 %v7166
        %7248 = vmatpush.bf16.msra.mxu0 %v7164
        %7249 = vmatmul.bf16.gmra.mxu0 %v7037
        %v7250 = vpop.f32.mrf.mxu0
        %v7251 = vadd.f32 %v7222, %v7250
        %v7252 = vpop.f32.mrf.mxu0
        %v7253 = vadd.f32 %v7224, %v7252
        %7254 = vmatmul.bf16.gmra.mxu0 %v7039
        %v7255 = vpop.f32.mrf.mxu0
        %v7256 = vadd.f32 %v7227, %v7255
        %v7257 = vpop.f32.mrf.mxu0
        %v7258 = vadd.f32 %v7229, %v7257
        %7259 = vmatmul.bf16.gmra.mxu0 %v7041
        %v7260 = vpop.f32.mrf.mxu0
        %v7261 = vadd.f32 %v7232, %v7260
        %v7262 = vpop.f32.mrf.mxu0
        %v7263 = vadd.f32 %v7234, %v7262
        %7264 = vmatmul.bf16.gmra.mxu0 %v7043
        %v7265 = vpop.f32.mrf.mxu0
        %v7266 = vadd.f32 %v7237, %v7265
        %v7267 = vpop.f32.mrf.mxu0
        %v7268 = vadd.f32 %v7239, %v7267
        %7269 = vdwg.mxu0
        %7270 = vmatpush.bf16.msra.mxu0 %v7163
        %7271 = vmatpush.bf16.msra.mxu0 %v7161
        %7272 = vmatpush.bf16.msra.mxu0 %v7159
        %7273 = vmatpush.bf16.msra.mxu0 %v7157
        %7274 = vmatpush.bf16.msra.mxu0 %v7155
        %7275 = vmatpush.bf16.msra.mxu0 %v7153
        %7276 = vmatpush.bf16.msra.mxu0 %v7151
        %7277 = vmatpush.bf16.msra.mxu0 %v7149
        %7278 = vmatmul.bf16.gmra.mxu0 %v7036
        %v7279 = vpop.f32.mrf.mxu0
        %v7280 = vadd.f32 0.0, %v7279
        %v7281 = vpop.f32.mrf.mxu0
        %v7282 = vadd.f32 0.0, %v7281
        %7283 = vmatmul.bf16.gmra.mxu0 %v7038
        %v7284 = vpop.f32.mrf.mxu0
        %v7285 = vadd.f32 0.0, %v7284
        %v7286 = vpop.f32.mrf.mxu0
        %v7287 = vadd.f32 0.0, %v7286
        %7288 = vmatmul.bf16.gmra.mxu0 %v7040
        %v7289 = vpop.f32.mrf.mxu0
        %v7290 = vadd.f32 0.0, %v7289
        %v7291 = vpop.f32.mrf.mxu0
        %v7292 = vadd.f32 0.0, %v7291
        %7293 = vmatmul.bf16.gmra.mxu0 %v7042
        %v7294 = vpop.f32.mrf.mxu0
        %v7295 = vadd.f32 0.0, %v7294
        %v7296 = vpop.f32.mrf.mxu0
        %v7297 = vadd.f32 0.0, %v7296
        %7298 = vdwg.mxu0
        %7299 = vmatpush.bf16.msra.mxu0 %v7179
        %7300 = vmatpush.bf16.msra.mxu0 %v7177
        %7301 = vmatpush.bf16.msra.mxu0 %v7175
        %7302 = vmatpush.bf16.msra.mxu0 %v7173
        %7303 = vmatpush.bf16.msra.mxu0 %v7171
        %7304 = vmatpush.bf16.msra.mxu0 %v7169
        %7305 = vmatpush.bf16.msra.mxu0 %v7167
        %7306 = vmatpush.bf16.msra.mxu0 %v7165
        %7307 = vmatmul.bf16.gmra.mxu0 %v7037
        %v7308 = vpop.f32.mrf.mxu0
        %v7309 = vadd.f32 %v7280, %v7308
        %v7310 = vpop.f32.mrf.mxu0
        %v7311 = vadd.f32 %v7282, %v7310
        %7312 = vmatmul.bf16.gmra.mxu0 %v7039
        %v7313 = vpop.f32.mrf.mxu0
        %v7314 = vadd.f32 %v7285, %v7313
        %v7315 = vpop.f32.mrf.mxu0
        %v7316 = vadd.f32 %v7287, %v7315
        %7317 = vmatmul.bf16.gmra.mxu0 %v7041
        %v7318 = vpop.f32.mrf.mxu0
        %v7319 = vadd.f32 %v7290, %v7318
        %v7320 = vpop.f32.mrf.mxu0
        %v7321 = vadd.f32 %v7292, %v7320
        %7322 = vmatmul.bf16.gmra.mxu0 %v7043
        %v7323 = vpop.f32.mrf.mxu0
        %v7324 = vadd.f32 %v7295, %v7323
        %v7325 = vpop.f32.mrf.mxu0
        %v7326 = vadd.f32 %v7297, %v7325
        %7327 = vdwg.mxu0
        %v7328 = vadd.f32 %v6954, %v7251
        %v7329 = vadd.f32 %v6955, %v7309
        %v7330 = vadd.f32 %v6956, %v7253
        %v7331 = vadd.f32 %v6957, %v7311
        %v7332 = vadd.f32 %v6958, %v7256
        %v7333 = vadd.f32 %v6959, %v7314
        %v7334 = vadd.f32 %v6960, %v7258
        %v7335 = vadd.f32 %v6961, %v7316
        %v7336 = vadd.f32 %v6962, %v7261
        %v7337 = vadd.f32 %v6963, %v7319
        %v7338 = vadd.f32 %v6964, %v7263
        %v7339 = vadd.f32 %v6965, %v7321
        %v7340 = vadd.f32 %v6966, %v7266
        %v7341 = vadd.f32 %v6967, %v7324
        %v7342 = vadd.f32 %v6968, %v7268
        %v7343 = vadd.f32 %v6969, %v7326
        %v7344 = vld [vmem:[%s6970] sm:$0xff]
        %v7345 = vld [vmem:[%s6970 + $0x8] sm:$0x11]
        %v7346 = vld [vmem:[%s6970 + $0x10] sm:$0xff]
        %v7347 = vld [vmem:[%s6970 + $0x18] sm:$0x11]
        %v7348 = vld [vmem:[%s6970 + $0x20] sm:$0xff]
        %v7349 = vld [vmem:[%s6970 + $0x28] sm:$0x11]
        %v7350 = vld [vmem:[%s6970 + $0x30] sm:$0xff]
        %v7351 = vld [vmem:[%s6970 + $0x38] sm:$0x11]
        %v7352 = vld [vmem:[%s6970 + $0x40] sm:$0xff]
        %v7353 = vld [vmem:[%s6970 + $0x48] sm:$0x11]
        %v7354 = vld [vmem:[%s6970 + $0x50] sm:$0xff]
        %v7355 = vld [vmem:[%s6970 + $0x58] sm:$0x11]
        %v7356 = vld [vmem:[%s6970 + $0x60] sm:$0xff]
        %v7357 = vld [vmem:[%s6970 + $0x68] sm:$0x11]
        %v7358 = vld [vmem:[%s6970 + $0x70] sm:$0xff]
        %v7359 = vld [vmem:[%s6970 + $0x78] sm:$0x11]
        %v7361 = vshrl.u32 %v7344, 16
        %v7363 = vrot.slane %v7361, 4
        %v7364 = vshll.u32 %v7344, 16
        %v7366 = vrot.slane %v7364, 5
        %v7367 = vor.u32 %v7363, %v7366
        %v7368 = vrot.slane %v7367, 4
        %v7370 = vshll.u32 %v7345, 16
        %v7372 = vrot.slane %v7370, 5
        %v7373 = vsel %vm565, %v7368, %v7372
        %v7375 = vshrl.u32 %v7346, 16
        %v7377 = vrot.slane %v7375, 4
        %v7378 = vshll.u32 %v7346, 16
        %v7380 = vrot.slane %v7378, 5
        %v7381 = vor.u32 %v7377, %v7380
        %v7382 = vrot.slane %v7381, 4
        %v7384 = vshll.u32 %v7347, 16
        %v7386 = vrot.slane %v7384, 5
        %v7387 = vsel %vm565, %v7382, %v7386
        %v7389 = vshrl.u32 %v7348, 16
        %v7391 = vrot.slane %v7389, 4
        %v7392 = vshll.u32 %v7348, 16
        %v7394 = vrot.slane %v7392, 5
        %v7395 = vor.u32 %v7391, %v7394
        %v7396 = vrot.slane %v7395, 4
        %v7398 = vshll.u32 %v7349, 16
        %v7400 = vrot.slane %v7398, 5
        %v7401 = vsel %vm565, %v7396, %v7400
        %v7403 = vshrl.u32 %v7350, 16
        %v7405 = vrot.slane %v7403, 4
        %v7406 = vshll.u32 %v7350, 16
        %v7408 = vrot.slane %v7406, 5
        %v7409 = vor.u32 %v7405, %v7408
        %v7410 = vrot.slane %v7409, 4
        %v7412 = vshll.u32 %v7351, 16
        %v7414 = vrot.slane %v7412, 5
        %v7415 = vsel %vm565, %v7410, %v7414
        %v7417 = vshrl.u32 %v7352, 16
        %v7419 = vrot.slane %v7417, 4
        %v7420 = vshll.u32 %v7352, 16
        %v7422 = vrot.slane %v7420, 5
        %v7423 = vor.u32 %v7419, %v7422
        %v7424 = vrot.slane %v7423, 4
        %v7426 = vshll.u32 %v7353, 16
        %v7428 = vrot.slane %v7426, 5
        %v7429 = vsel %vm565, %v7424, %v7428
        %v7431 = vshrl.u32 %v7354, 16
        %v7433 = vrot.slane %v7431, 4
        %v7434 = vshll.u32 %v7354, 16
        %v7436 = vrot.slane %v7434, 5
        %v7437 = vor.u32 %v7433, %v7436
        %v7438 = vrot.slane %v7437, 4
        %v7440 = vshll.u32 %v7355, 16
        %v7442 = vrot.slane %v7440, 5
        %v7443 = vsel %vm565, %v7438, %v7442
        %v7445 = vshrl.u32 %v7356, 16
        %v7447 = vrot.slane %v7445, 4
        %v7448 = vshll.u32 %v7356, 16
        %v7450 = vrot.slane %v7448, 5
        %v7451 = vor.u32 %v7447, %v7450
        %v7452 = vrot.slane %v7451, 4
        %v7454 = vshll.u32 %v7357, 16
        %v7456 = vrot.slane %v7454, 5
        %v7457 = vsel %vm565, %v7452, %v7456
        %v7459 = vshrl.u32 %v7358, 16
        %v7461 = vrot.slane %v7459, 4
        %v7462 = vshll.u32 %v7358, 16
        %v7464 = vrot.slane %v7462, 5
        %v7465 = vor.u32 %v7461, %v7464
        %v7466 = vrot.slane %v7465, 4
        %v7468 = vshll.u32 %v7359, 16
        %v7470 = vrot.slane %v7468, 5
        %v7471 = vsel %vm565, %v7466, %v7470
        %s7472 = scalar_lea.vmem [#allocation10], 1792
        %v7473 = vld [vmem:[%s7472] sm:$0xff]
        %v7474 = vld [vmem:[%s7472 + $0x8] sm:$0xff]
        %v7475 = vld [vmem:[%s7472 + $0x10] sm:$0xff]
        %v7476 = vld [vmem:[%s7472 + $0x18] sm:$0xff]
        %v7477 = vld [vmem:[%s7472 + $0x20] sm:$0xff]
        %v7478 = vld [vmem:[%s7472 + $0x28] sm:$0xff]
        %v7479 = vld [vmem:[%s7472 + $0x30] sm:$0xff]
        %v7480 = vld [vmem:[%s7472 + $0x38] sm:$0xff]
        %v7481 = vld [vmem:[%s7472 + $0x40] sm:$0xff]
        %v7482 = vld [vmem:[%s7472 + $0x48] sm:$0xff]
        %v7483 = vld [vmem:[%s7472 + $0x50] sm:$0xff]
        %v7484 = vld [vmem:[%s7472 + $0x58] sm:$0xff]
        %v7485 = vld [vmem:[%s7472 + $0x60] sm:$0xff]
        %v7486 = vld [vmem:[%s7472 + $0x68] sm:$0xff]
        %v7487 = vld [vmem:[%s7472 + $0x70] sm:$0xff]
        %v7488 = vld [vmem:[%s7472 + $0x78] sm:$0xff]
        %v7489 = vld [vmem:[%s7472 + $0x80] sm:$0xff]
        %v7490 = vld [vmem:[%s7472 + $0x88] sm:$0xff]
        %v7491 = vld [vmem:[%s7472 + $0x90] sm:$0xff]
        %v7492 = vld [vmem:[%s7472 + $0x98] sm:$0xff]
        %v7493 = vld [vmem:[%s7472 + $0xa0] sm:$0xff]
        %v7494 = vld [vmem:[%s7472 + $0xa8] sm:$0xff]
        %v7495 = vld [vmem:[%s7472 + $0xb0] sm:$0xff]
        %v7496 = vld [vmem:[%s7472 + $0xb8] sm:$0xff]
        %v7497 = vld [vmem:[%s7472 + $0xc0] sm:$0xff]
        %v7498 = vld [vmem:[%s7472 + $0xc8] sm:$0xff]
        %v7499 = vld [vmem:[%s7472 + $0xd0] sm:$0xff]
        %v7500 = vld [vmem:[%s7472 + $0xd8] sm:$0xff]
        %v7501 = vld [vmem:[%s7472 + $0xe0] sm:$0xff]
        %v7502 = vld [vmem:[%s7472 + $0xe8] sm:$0xff]
        %v7503 = vld [vmem:[%s7472 + $0xf0] sm:$0xff]
        %v7504 = vld [vmem:[%s7472 + $0xf8] sm:$0xff]
        %v7505 = vunpack.c.l.b16 %v7373
        %v7506 = vunpack.c.h.b16 %v7373
        %v7507 = vunpack.c.l.b16 %v7387
        %v7508 = vunpack.c.h.b16 %v7387
        %v7509 = vunpack.c.l.b16 %v7401
        %v7510 = vunpack.c.h.b16 %v7401
        %v7511 = vunpack.c.l.b16 %v7415
        %v7512 = vunpack.c.h.b16 %v7415
        %v7513 = vunpack.c.l.b16 %v7429
        %v7514 = vunpack.c.h.b16 %v7429
        %v7515 = vunpack.c.l.b16 %v7443
        %v7516 = vunpack.c.h.b16 %v7443
        %v7517 = vunpack.c.l.b16 %v7457
        %v7518 = vunpack.c.h.b16 %v7457
        %v7519 = vunpack.c.l.b16 %v7471
        %v7520 = vunpack.c.h.b16 %v7471
        %v7521 = vpack.c.b16 %v7507, %v7505
        %v7522 = vpack.c.b16 %v7508, %v7506
        %v7523 = vpack.c.b16 %v7511, %v7509
        %v7524 = vpack.c.b16 %v7512, %v7510
        %v7525 = vpack.c.b16 %v7515, %v7513
        %v7526 = vpack.c.b16 %v7516, %v7514
        %v7527 = vpack.c.b16 %v7519, %v7517
        %v7528 = vpack.c.b16 %v7520, %v7518
        %v7569 = vunpack.c.l.b16 %v7473
        %v7570 = vunpack.c.h.b16 %v7473
        %v7571 = vunpack.c.l.b16 %v7474
        %v7572 = vunpack.c.h.b16 %v7474
        %v7573 = vunpack.c.l.b16 %v7475
        %v7574 = vunpack.c.h.b16 %v7475
        %v7575 = vunpack.c.l.b16 %v7476
        %v7576 = vunpack.c.h.b16 %v7476
        %v7577 = vunpack.c.l.b16 %v7477
        %v7578 = vunpack.c.h.b16 %v7477
        %v7579 = vunpack.c.l.b16 %v7478
        %v7580 = vunpack.c.h.b16 %v7478
        %v7581 = vunpack.c.l.b16 %v7479
        %v7582 = vunpack.c.h.b16 %v7479
        %v7583 = vunpack.c.l.b16 %v7480
        %v7584 = vunpack.c.h.b16 %v7480
        %v7585 = vunpack.c.l.b16 %v7481
        %v7586 = vunpack.c.h.b16 %v7481
        %v7587 = vunpack.c.l.b16 %v7482
        %v7588 = vunpack.c.h.b16 %v7482
        %v7589 = vunpack.c.l.b16 %v7483
        %v7590 = vunpack.c.h.b16 %v7483
        %v7591 = vunpack.c.l.b16 %v7484
        %v7592 = vunpack.c.h.b16 %v7484
        %v7593 = vunpack.c.l.b16 %v7485
        %v7594 = vunpack.c.h.b16 %v7485
        %v7595 = vunpack.c.l.b16 %v7486
        %v7596 = vunpack.c.h.b16 %v7486
        %v7597 = vunpack.c.l.b16 %v7487
        %v7598 = vunpack.c.h.b16 %v7487
        %v7599 = vunpack.c.l.b16 %v7488
        %v7600 = vunpack.c.h.b16 %v7488
        %v7601 = vunpack.c.l.b16 %v7489
        %v7602 = vunpack.c.h.b16 %v7489
        %v7603 = vunpack.c.l.b16 %v7490
        %v7604 = vunpack.c.h.b16 %v7490
        %v7605 = vunpack.c.l.b16 %v7491
        %v7606 = vunpack.c.h.b16 %v7491
        %v7607 = vunpack.c.l.b16 %v7492
        %v7608 = vunpack.c.h.b16 %v7492
        %v7609 = vunpack.c.l.b16 %v7493
        %v7610 = vunpack.c.h.b16 %v7493
        %v7611 = vunpack.c.l.b16 %v7494
        %v7612 = vunpack.c.h.b16 %v7494
        %v7613 = vunpack.c.l.b16 %v7495
        %v7614 = vunpack.c.h.b16 %v7495
        %v7615 = vunpack.c.l.b16 %v7496
        %v7616 = vunpack.c.h.b16 %v7496
        %v7617 = vunpack.c.l.b16 %v7497
        %v7618 = vunpack.c.h.b16 %v7497
        %v7619 = vunpack.c.l.b16 %v7498
        %v7620 = vunpack.c.h.b16 %v7498
        %v7621 = vunpack.c.l.b16 %v7499
        %v7622 = vunpack.c.h.b16 %v7499
        %v7623 = vunpack.c.l.b16 %v7500
        %v7624 = vunpack.c.h.b16 %v7500
        %v7625 = vunpack.c.l.b16 %v7501
        %v7626 = vunpack.c.h.b16 %v7501
        %v7627 = vunpack.c.l.b16 %v7502
        %v7628 = vunpack.c.h.b16 %v7502
        %v7629 = vunpack.c.l.b16 %v7503
        %v7630 = vunpack.c.h.b16 %v7503
        %v7631 = vunpack.c.l.b16 %v7504
        %v7632 = vunpack.c.h.b16 %v7504
        %v7633 = vpack.c.b16 %v7571, %v7569
        %v7634 = vpack.c.b16 %v7572, %v7570
        %v7635 = vpack.c.b16 %v7575, %v7573
        %v7636 = vpack.c.b16 %v7576, %v7574
        %v7637 = vpack.c.b16 %v7579, %v7577
        %v7638 = vpack.c.b16 %v7580, %v7578
        %v7639 = vpack.c.b16 %v7583, %v7581
        %v7640 = vpack.c.b16 %v7584, %v7582
        %v7641 = vpack.c.b16 %v7587, %v7585
        %v7642 = vpack.c.b16 %v7588, %v7586
        %v7643 = vpack.c.b16 %v7591, %v7589
        %v7644 = vpack.c.b16 %v7592, %v7590
        %v7645 = vpack.c.b16 %v7595, %v7593
        %v7646 = vpack.c.b16 %v7596, %v7594
        %v7647 = vpack.c.b16 %v7599, %v7597
        %v7648 = vpack.c.b16 %v7600, %v7598
        %v7649 = vpack.c.b16 %v7603, %v7601
        %v7650 = vpack.c.b16 %v7604, %v7602
        %v7651 = vpack.c.b16 %v7607, %v7605
        %v7652 = vpack.c.b16 %v7608, %v7606
        %v7653 = vpack.c.b16 %v7611, %v7609
        %v7654 = vpack.c.b16 %v7612, %v7610
        %v7655 = vpack.c.b16 %v7615, %v7613
        %v7656 = vpack.c.b16 %v7616, %v7614
        %v7657 = vpack.c.b16 %v7619, %v7617
        %v7658 = vpack.c.b16 %v7620, %v7618
        %v7659 = vpack.c.b16 %v7623, %v7621
        %v7660 = vpack.c.b16 %v7624, %v7622
        %v7661 = vpack.c.b16 %v7627, %v7625
        %v7662 = vpack.c.b16 %v7628, %v7626
        %v7663 = vpack.c.b16 %v7631, %v7629
        %v7664 = vpack.c.b16 %v7632, %v7630
        %7697 = vmatpush.bf16.msra.mxu0 %v7647
        %7698 = vmatpush.bf16.msra.mxu0 %v7645
        %7699 = vmatpush.bf16.msra.mxu0 %v7643
        %7700 = vmatpush.bf16.msra.mxu0 %v7641
        %7701 = vmatpush.bf16.msra.mxu0 %v7639
        %7702 = vmatpush.bf16.msra.mxu0 %v7637
        %7703 = vmatpush.bf16.msra.mxu0 %v7635
        %7704 = vmatpush.bf16.msra.mxu0 %v7633
        %7705 = vmatmul.bf16.gmra.mxu0 %v7521
        %v7706 = vpop.f32.mrf.mxu0
        %v7707 = vadd.f32 0.0, %v7706
        %v7708 = vpop.f32.mrf.mxu0
        %v7709 = vadd.f32 0.0, %v7708
        %7710 = vmatmul.bf16.gmra.mxu0 %v7523
        %v7711 = vpop.f32.mrf.mxu0
        %v7712 = vadd.f32 0.0, %v7711
        %v7713 = vpop.f32.mrf.mxu0
        %v7714 = vadd.f32 0.0, %v7713
        %7715 = vmatmul.bf16.gmra.mxu0 %v7525
        %v7716 = vpop.f32.mrf.mxu0
        %v7717 = vadd.f32 0.0, %v7716
        %v7718 = vpop.f32.mrf.mxu0
        %v7719 = vadd.f32 0.0, %v7718
        %7720 = vmatmul.bf16.gmra.mxu0 %v7527
        %v7721 = vpop.f32.mrf.mxu0
        %v7722 = vadd.f32 0.0, %v7721
        %v7723 = vpop.f32.mrf.mxu0
        %v7724 = vadd.f32 0.0, %v7723
        %7725 = vdwg.mxu0
        %7726 = vmatpush.bf16.msra.mxu0 %v7663
        %7727 = vmatpush.bf16.msra.mxu0 %v7661
        %7728 = vmatpush.bf16.msra.mxu0 %v7659
        %7729 = vmatpush.bf16.msra.mxu0 %v7657
        %7730 = vmatpush.bf16.msra.mxu0 %v7655
        %7731 = vmatpush.bf16.msra.mxu0 %v7653
        %7732 = vmatpush.bf16.msra.mxu0 %v7651
        %7733 = vmatpush.bf16.msra.mxu0 %v7649
        %7734 = vmatmul.bf16.gmra.mxu0 %v7522
        %v7735 = vpop.f32.mrf.mxu0
        %v7736 = vadd.f32 %v7707, %v7735
        %v7737 = vpop.f32.mrf.mxu0
        %v7738 = vadd.f32 %v7709, %v7737
        %7739 = vmatmul.bf16.gmra.mxu0 %v7524
        %v7740 = vpop.f32.mrf.mxu0
        %v7741 = vadd.f32 %v7712, %v7740
        %v7742 = vpop.f32.mrf.mxu0
        %v7743 = vadd.f32 %v7714, %v7742
        %7744 = vmatmul.bf16.gmra.mxu0 %v7526
        %v7745 = vpop.f32.mrf.mxu0
        %v7746 = vadd.f32 %v7717, %v7745
        %v7747 = vpop.f32.mrf.mxu0
        %v7748 = vadd.f32 %v7719, %v7747
        %7749 = vmatmul.bf16.gmra.mxu0 %v7528
        %v7750 = vpop.f32.mrf.mxu0
        %v7751 = vadd.f32 %v7722, %v7750
        %v7752 = vpop.f32.mrf.mxu0
        %v7753 = vadd.f32 %v7724, %v7752
        %7754 = vdwg.mxu0
        %7755 = vmatpush.bf16.msra.mxu0 %v7648
        %7756 = vmatpush.bf16.msra.mxu0 %v7646
        %7757 = vmatpush.bf16.msra.mxu0 %v7644
        %7758 = vmatpush.bf16.msra.mxu0 %v7642
        %7759 = vmatpush.bf16.msra.mxu0 %v7640
        %7760 = vmatpush.bf16.msra.mxu0 %v7638
        %7761 = vmatpush.bf16.msra.mxu0 %v7636
        %7762 = vmatpush.bf16.msra.mxu0 %v7634
        %7763 = vmatmul.bf16.gmra.mxu0 %v7521
        %v7764 = vpop.f32.mrf.mxu0
        %v7765 = vadd.f32 0.0, %v7764
        %v7766 = vpop.f32.mrf.mxu0
        %v7767 = vadd.f32 0.0, %v7766
        %7768 = vmatmul.bf16.gmra.mxu0 %v7523
        %v7769 = vpop.f32.mrf.mxu0
        %v7770 = vadd.f32 0.0, %v7769
        %v7771 = vpop.f32.mrf.mxu0
        %v7772 = vadd.f32 0.0, %v7771
        %7773 = vmatmul.bf16.gmra.mxu0 %v7525
        %v7774 = vpop.f32.mrf.mxu0
        %v7775 = vadd.f32 0.0, %v7774
        %v7776 = vpop.f32.mrf.mxu0
        %v7777 = vadd.f32 0.0, %v7776
        %7778 = vmatmul.bf16.gmra.mxu0 %v7527
        %v7779 = vpop.f32.mrf.mxu0
        %v7780 = vadd.f32 0.0, %v7779
        %v7781 = vpop.f32.mrf.mxu0
        %v7782 = vadd.f32 0.0, %v7781
        %7783 = vdwg.mxu0
        %7784 = vmatpush.bf16.msra.mxu0 %v7664
        %7785 = vmatpush.bf16.msra.mxu0 %v7662
        %7786 = vmatpush.bf16.msra.mxu0 %v7660
        %7787 = vmatpush.bf16.msra.mxu0 %v7658
        %7788 = vmatpush.bf16.msra.mxu0 %v7656
        %7789 = vmatpush.bf16.msra.mxu0 %v7654
        %7790 = vmatpush.bf16.msra.mxu0 %v7652
        %7791 = vmatpush.bf16.msra.mxu0 %v7650
        %7792 = vmatmul.bf16.gmra.mxu0 %v7522
        %v7793 = vpop.f32.mrf.mxu0
        %v7794 = vadd.f32 %v7765, %v7793
        %v7795 = vpop.f32.mrf.mxu0
        %v7796 = vadd.f32 %v7767, %v7795
        %7797 = vmatmul.bf16.gmra.mxu0 %v7524
        %v7798 = vpop.f32.mrf.mxu0
        %v7799 = vadd.f32 %v7770, %v7798
        %v7800 = vpop.f32.mrf.mxu0
        %v7801 = vadd.f32 %v7772, %v7800
        %7802 = vmatmul.bf16.gmra.mxu0 %v7526
        %v7803 = vpop.f32.mrf.mxu0
        %v7804 = vadd.f32 %v7775, %v7803
        %v7805 = vpop.f32.mrf.mxu0
        %v7806 = vadd.f32 %v7777, %v7805
        %7807 = vmatmul.bf16.gmra.mxu0 %v7528
        %v7808 = vpop.f32.mrf.mxu0
        %v7809 = vadd.f32 %v7780, %v7808
        %v7810 = vpop.f32.mrf.mxu0
        %v7811 = vadd.f32 %v7782, %v7810
        %7812 = vdwg.mxu0
        %v7813 = vadd.f32 %v7328, %v7736
        %v7814 = vadd.f32 %v7329, %v7794
        %v7815 = vadd.f32 %v7330, %v7738
        %v7816 = vadd.f32 %v7331, %v7796
        %v7817 = vadd.f32 %v7332, %v7741
        %v7818 = vadd.f32 %v7333, %v7799
        %v7819 = vadd.f32 %v7334, %v7743
        %v7820 = vadd.f32 %v7335, %v7801
        %v7821 = vadd.f32 %v7336, %v7746
        %v7822 = vadd.f32 %v7337, %v7804
        %v7823 = vadd.f32 %v7338, %v7748
        %v7824 = vadd.f32 %v7339, %v7806
        %v7825 = vadd.f32 %v7340, %v7751
        %v7826 = vadd.f32 %v7341, %v7809
        %v7827 = vadd.f32 %v7342, %v7753
        %v7828 = vadd.f32 %v7343, %v7811
        %v7829 = vld [vmem:[%s6970] sm:$0xee]
        %v7830 = vld [vmem:[%s6970 + $0x10] sm:$0xee]
        %v7831 = vld [vmem:[%s6970 + $0x20] sm:$0xee]
        %v7832 = vld [vmem:[%s6970 + $0x30] sm:$0xee]
        %v7833 = vld [vmem:[%s6970 + $0x40] sm:$0xee]
        %v7834 = vld [vmem:[%s6970 + $0x50] sm:$0xee]
        %v7835 = vld [vmem:[%s6970 + $0x60] sm:$0xee]
        %v7836 = vld [vmem:[%s6970 + $0x70] sm:$0xee]
        %v7853 = vrot.slane %v7829, 5
        %v7854 = vrot.slane %v7853, 4
        %v7855 = vrot.slane %v7345, 5
        %v7856 = vsel %vm1361, %v7854, %v7855
        %v7857 = vrot.slane %v7830, 5
        %v7858 = vrot.slane %v7857, 4
        %v7859 = vrot.slane %v7347, 5
        %v7860 = vsel %vm1361, %v7858, %v7859
        %v7861 = vrot.slane %v7831, 5
        %v7862 = vrot.slane %v7861, 4
        %v7863 = vrot.slane %v7349, 5
        %v7864 = vsel %vm1361, %v7862, %v7863
        %v7865 = vrot.slane %v7832, 5
        %v7866 = vrot.slane %v7865, 4
        %v7867 = vrot.slane %v7351, 5
        %v7868 = vsel %vm1361, %v7866, %v7867
        %v7869 = vrot.slane %v7833, 5
        %v7870 = vrot.slane %v7869, 4
        %v7871 = vrot.slane %v7353, 5
        %v7872 = vsel %vm1361, %v7870, %v7871
        %v7873 = vrot.slane %v7834, 5
        %v7874 = vrot.slane %v7873, 4
        %v7875 = vrot.slane %v7355, 5
        %v7876 = vsel %vm1361, %v7874, %v7875
        %v7877 = vrot.slane %v7835, 5
        %v7878 = vrot.slane %v7877, 4
        %v7879 = vrot.slane %v7357, 5
        %v7880 = vsel %vm1361, %v7878, %v7879
        %v7881 = vrot.slane %v7836, 5
        %v7882 = vrot.slane %v7881, 4
        %v7883 = vrot.slane %v7359, 5
        %v7884 = vsel %vm1361, %v7882, %v7883
        %s7885 = scalar_lea.vmem [#allocation10], 2048
        %v7886 = vld [vmem:[%s7885] sm:$0xff]
        %v7887 = vld [vmem:[%s7885 + $0x8] sm:$0xff]
        %v7888 = vld [vmem:[%s7885 + $0x10] sm:$0xff]
        %v7889 = vld [vmem:[%s7885 + $0x18] sm:$0xff]
        %v7890 = vld [vmem:[%s7885 + $0x20] sm:$0xff]
        %v7891 = vld [vmem:[%s7885 + $0x28] sm:$0xff]
        %v7892 = vld [vmem:[%s7885 + $0x30] sm:$0xff]
        %v7893 = vld [vmem:[%s7885 + $0x38] sm:$0xff]
        %v7894 = vld [vmem:[%s7885 + $0x40] sm:$0xff]
        %v7895 = vld [vmem:[%s7885 + $0x48] sm:$0xff]
        %v7896 = vld [vmem:[%s7885 + $0x50] sm:$0xff]
        %v7897 = vld [vmem:[%s7885 + $0x58] sm:$0xff]
        %v7898 = vld [vmem:[%s7885 + $0x60] sm:$0xff]
        %v7899 = vld [vmem:[%s7885 + $0x68] sm:$0xff]
        %v7900 = vld [vmem:[%s7885 + $0x70] sm:$0xff]
        %v7901 = vld [vmem:[%s7885 + $0x78] sm:$0xff]
        %v7902 = vld [vmem:[%s7885 + $0x80] sm:$0xff]
        %v7903 = vld [vmem:[%s7885 + $0x88] sm:$0xff]
        %v7904 = vld [vmem:[%s7885 + $0x90] sm:$0xff]
        %v7905 = vld [vmem:[%s7885 + $0x98] sm:$0xff]
        %v7906 = vld [vmem:[%s7885 + $0xa0] sm:$0xff]
        %v7907 = vld [vmem:[%s7885 + $0xa8] sm:$0xff]
        %v7908 = vld [vmem:[%s7885 + $0xb0] sm:$0xff]
        %v7909 = vld [vmem:[%s7885 + $0xb8] sm:$0xff]
        %v7910 = vld [vmem:[%s7885 + $0xc0] sm:$0xff]
        %v7911 = vld [vmem:[%s7885 + $0xc8] sm:$0xff]
        %v7912 = vld [vmem:[%s7885 + $0xd0] sm:$0xff]
        %v7913 = vld [vmem:[%s7885 + $0xd8] sm:$0xff]
        %v7914 = vld [vmem:[%s7885 + $0xe0] sm:$0xff]
        %v7915 = vld [vmem:[%s7885 + $0xe8] sm:$0xff]
        %v7916 = vld [vmem:[%s7885 + $0xf0] sm:$0xff]
        %v7917 = vld [vmem:[%s7885 + $0xf8] sm:$0xff]
        %v7918 = vunpack.c.l.b16 %v7856
        %v7919 = vunpack.c.h.b16 %v7856
        %v7920 = vunpack.c.l.b16 %v7860
        %v7921 = vunpack.c.h.b16 %v7860
        %v7922 = vunpack.c.l.b16 %v7864
        %v7923 = vunpack.c.h.b16 %v7864
        %v7924 = vunpack.c.l.b16 %v7868
        %v7925 = vunpack.c.h.b16 %v7868
        %v7926 = vunpack.c.l.b16 %v7872
        %v7927 = vunpack.c.h.b16 %v7872
        %v7928 = vunpack.c.l.b16 %v7876
        %v7929 = vunpack.c.h.b16 %v7876
        %v7930 = vunpack.c.l.b16 %v7880
        %v7931 = vunpack.c.h.b16 %v7880
        %v7932 = vunpack.c.l.b16 %v7884
        %v7933 = vunpack.c.h.b16 %v7884
        %v7934 = vpack.c.b16 %v7920, %v7918
        %v7935 = vpack.c.b16 %v7921, %v7919
        %v7936 = vpack.c.b16 %v7924, %v7922
        %v7937 = vpack.c.b16 %v7925, %v7923
        %v7938 = vpack.c.b16 %v7928, %v7926
        %v7939 = vpack.c.b16 %v7929, %v7927
        %v7940 = vpack.c.b16 %v7932, %v7930
        %v7941 = vpack.c.b16 %v7933, %v7931
        %v7982 = vunpack.c.l.b16 %v7886
        %v7983 = vunpack.c.h.b16 %v7886
        %v7984 = vunpack.c.l.b16 %v7887
        %v7985 = vunpack.c.h.b16 %v7887
        %v7986 = vunpack.c.l.b16 %v7888
        %v7987 = vunpack.c.h.b16 %v7888
        %v7988 = vunpack.c.l.b16 %v7889
        %v7989 = vunpack.c.h.b16 %v7889
        %v7990 = vunpack.c.l.b16 %v7890
        %v7991 = vunpack.c.h.b16 %v7890
        %v7992 = vunpack.c.l.b16 %v7891
        %v7993 = vunpack.c.h.b16 %v7891
        %v7994 = vunpack.c.l.b16 %v7892
        %v7995 = vunpack.c.h.b16 %v7892
        %v7996 = vunpack.c.l.b16 %v7893
        %v7997 = vunpack.c.h.b16 %v7893
        %v7998 = vunpack.c.l.b16 %v7894
        %v7999 = vunpack.c.h.b16 %v7894
        %v8000 = vunpack.c.l.b16 %v7895
        %v8001 = vunpack.c.h.b16 %v7895
        %v8002 = vunpack.c.l.b16 %v7896
        %v8003 = vunpack.c.h.b16 %v7896
        %v8004 = vunpack.c.l.b16 %v7897
        %v8005 = vunpack.c.h.b16 %v7897
        %v8006 = vunpack.c.l.b16 %v7898
        %v8007 = vunpack.c.h.b16 %v7898
        %v8008 = vunpack.c.l.b16 %v7899
        %v8009 = vunpack.c.h.b16 %v7899
        %v8010 = vunpack.c.l.b16 %v7900
        %v8011 = vunpack.c.h.b16 %v7900
        %v8012 = vunpack.c.l.b16 %v7901
        %v8013 = vunpack.c.h.b16 %v7901
        %v8014 = vunpack.c.l.b16 %v7902
        %v8015 = vunpack.c.h.b16 %v7902
        %v8016 = vunpack.c.l.b16 %v7903
        %v8017 = vunpack.c.h.b16 %v7903
        %v8018 = vunpack.c.l.b16 %v7904
        %v8019 = vunpack.c.h.b16 %v7904
        %v8020 = vunpack.c.l.b16 %v7905
        %v8021 = vunpack.c.h.b16 %v7905
        %v8022 = vunpack.c.l.b16 %v7906
        %v8023 = vunpack.c.h.b16 %v7906
        %v8024 = vunpack.c.l.b16 %v7907
        %v8025 = vunpack.c.h.b16 %v7907
        %v8026 = vunpack.c.l.b16 %v7908
        %v8027 = vunpack.c.h.b16 %v7908
        %v8028 = vunpack.c.l.b16 %v7909
        %v8029 = vunpack.c.h.b16 %v7909
        %v8030 = vunpack.c.l.b16 %v7910
        %v8031 = vunpack.c.h.b16 %v7910
        %v8032 = vunpack.c.l.b16 %v7911
        %v8033 = vunpack.c.h.b16 %v7911
        %v8034 = vunpack.c.l.b16 %v7912
        %v8035 = vunpack.c.h.b16 %v7912
        %v8036 = vunpack.c.l.b16 %v7913
        %v8037 = vunpack.c.h.b16 %v7913
        %v8038 = vunpack.c.l.b16 %v7914
        %v8039 = vunpack.c.h.b16 %v7914
        %v8040 = vunpack.c.l.b16 %v7915
        %v8041 = vunpack.c.h.b16 %v7915
        %v8042 = vunpack.c.l.b16 %v7916
        %v8043 = vunpack.c.h.b16 %v7916
        %v8044 = vunpack.c.l.b16 %v7917
        %v8045 = vunpack.c.h.b16 %v7917
        %v8046 = vpack.c.b16 %v7984, %v7982
        %v8047 = vpack.c.b16 %v7985, %v7983
        %v8048 = vpack.c.b16 %v7988, %v7986
        %v8049 = vpack.c.b16 %v7989, %v7987
        %v8050 = vpack.c.b16 %v7992, %v7990
        %v8051 = vpack.c.b16 %v7993, %v7991
        %v8052 = vpack.c.b16 %v7996, %v7994
        %v8053 = vpack.c.b16 %v7997, %v7995
        %v8054 = vpack.c.b16 %v8000, %v7998
        %v8055 = vpack.c.b16 %v8001, %v7999
        %v8056 = vpack.c.b16 %v8004, %v8002
        %v8057 = vpack.c.b16 %v8005, %v8003
        %v8058 = vpack.c.b16 %v8008, %v8006
        %v8059 = vpack.c.b16 %v8009, %v8007
        %v8060 = vpack.c.b16 %v8012, %v8010
        %v8061 = vpack.c.b16 %v8013, %v8011
        %v8062 = vpack.c.b16 %v8016, %v8014
        %v8063 = vpack.c.b16 %v8017, %v8015
        %v8064 = vpack.c.b16 %v8020, %v8018
        %v8065 = vpack.c.b16 %v8021, %v8019
        %v8066 = vpack.c.b16 %v8024, %v8022
        %v8067 = vpack.c.b16 %v8025, %v8023
        %v8068 = vpack.c.b16 %v8028, %v8026
        %v8069 = vpack.c.b16 %v8029, %v8027
        %v8070 = vpack.c.b16 %v8032, %v8030
        %v8071 = vpack.c.b16 %v8033, %v8031
        %v8072 = vpack.c.b16 %v8036, %v8034
        %v8073 = vpack.c.b16 %v8037, %v8035
        %v8074 = vpack.c.b16 %v8040, %v8038
        %v8075 = vpack.c.b16 %v8041, %v8039
        %v8076 = vpack.c.b16 %v8044, %v8042
        %v8077 = vpack.c.b16 %v8045, %v8043
        %8110 = vmatpush.bf16.msra.mxu0 %v8060
        %8111 = vmatpush.bf16.msra.mxu0 %v8058
        %8112 = vmatpush.bf16.msra.mxu0 %v8056
        %8113 = vmatpush.bf16.msra.mxu0 %v8054
        %8114 = vmatpush.bf16.msra.mxu0 %v8052
        %8115 = vmatpush.bf16.msra.mxu0 %v8050
        %8116 = vmatpush.bf16.msra.mxu0 %v8048
        %8117 = vmatpush.bf16.msra.mxu0 %v8046
        %8118 = vmatmul.bf16.gmra.mxu0 %v7934
        %v8119 = vpop.f32.mrf.mxu0
        %v8120 = vadd.f32 0.0, %v8119
        %v8121 = vpop.f32.mrf.mxu0
        %v8122 = vadd.f32 0.0, %v8121
        %8123 = vmatmul.bf16.gmra.mxu0 %v7936
        %v8124 = vpop.f32.mrf.mxu0
        %v8125 = vadd.f32 0.0, %v8124
        %v8126 = vpop.f32.mrf.mxu0
        %v8127 = vadd.f32 0.0, %v8126
        %8128 = vmatmul.bf16.gmra.mxu0 %v7938
        %v8129 = vpop.f32.mrf.mxu0
        %v8130 = vadd.f32 0.0, %v8129
        %v8131 = vpop.f32.mrf.mxu0
        %v8132 = vadd.f32 0.0, %v8131
        %8133 = vmatmul.bf16.gmra.mxu0 %v7940
        %v8134 = vpop.f32.mrf.mxu0
        %v8135 = vadd.f32 0.0, %v8134
        %v8136 = vpop.f32.mrf.mxu0
        %v8137 = vadd.f32 0.0, %v8136
        %8138 = vdwg.mxu0
        %8139 = vmatpush.bf16.msra.mxu0 %v8076
        %8140 = vmatpush.bf16.msra.mxu0 %v8074
        %8141 = vmatpush.bf16.msra.mxu0 %v8072
        %8142 = vmatpush.bf16.msra.mxu0 %v8070
        %8143 = vmatpush.bf16.msra.mxu0 %v8068
        %8144 = vmatpush.bf16.msra.mxu0 %v8066
        %8145 = vmatpush.bf16.msra.mxu0 %v8064
        %8146 = vmatpush.bf16.msra.mxu0 %v8062
        %8147 = vmatmul.bf16.gmra.mxu0 %v7935
        %v8148 = vpop.f32.mrf.mxu0
        %v8149 = vadd.f32 %v8120, %v8148
        %v8150 = vpop.f32.mrf.mxu0
        %v8151 = vadd.f32 %v8122, %v8150
        %8152 = vmatmul.bf16.gmra.mxu0 %v7937
        %v8153 = vpop.f32.mrf.mxu0
        %v8154 = vadd.f32 %v8125, %v8153
        %v8155 = vpop.f32.mrf.mxu0
        %v8156 = vadd.f32 %v8127, %v8155
        %8157 = vmatmul.bf16.gmra.mxu0 %v7939
        %v8158 = vpop.f32.mrf.mxu0
        %v8159 = vadd.f32 %v8130, %v8158
        %v8160 = vpop.f32.mrf.mxu0
        %v8161 = vadd.f32 %v8132, %v8160
        %8162 = vmatmul.bf16.gmra.mxu0 %v7941
        %v8163 = vpop.f32.mrf.mxu0
        %v8164 = vadd.f32 %v8135, %v8163
        %v8165 = vpop.f32.mrf.mxu0
        %v8166 = vadd.f32 %v8137, %v8165
        %8167 = vdwg.mxu0
        %8168 = vmatpush.bf16.msra.mxu0 %v8061
        %8169 = vmatpush.bf16.msra.mxu0 %v8059
        %8170 = vmatpush.bf16.msra.mxu0 %v8057
        %8171 = vmatpush.bf16.msra.mxu0 %v8055
        %8172 = vmatpush.bf16.msra.mxu0 %v8053
        %8173 = vmatpush.bf16.msra.mxu0 %v8051
        %8174 = vmatpush.bf16.msra.mxu0 %v8049
        %8175 = vmatpush.bf16.msra.mxu0 %v8047
        %8176 = vmatmul.bf16.gmra.mxu0 %v7934
        %v8177 = vpop.f32.mrf.mxu0
        %v8178 = vadd.f32 0.0, %v8177
        %v8179 = vpop.f32.mrf.mxu0
        %v8180 = vadd.f32 0.0, %v8179
        %8181 = vmatmul.bf16.gmra.mxu0 %v7936
        %v8182 = vpop.f32.mrf.mxu0
        %v8183 = vadd.f32 0.0, %v8182
        %v8184 = vpop.f32.mrf.mxu0
        %v8185 = vadd.f32 0.0, %v8184
        %8186 = vmatmul.bf16.gmra.mxu0 %v7938
        %v8187 = vpop.f32.mrf.mxu0
        %v8188 = vadd.f32 0.0, %v8187
        %v8189 = vpop.f32.mrf.mxu0
        %v8190 = vadd.f32 0.0, %v8189
        %8191 = vmatmul.bf16.gmra.mxu0 %v7940
        %v8192 = vpop.f32.mrf.mxu0
        %v8193 = vadd.f32 0.0, %v8192
        %v8194 = vpop.f32.mrf.mxu0
        %v8195 = vadd.f32 0.0, %v8194
        %8196 = vdwg.mxu0
        %8197 = vmatpush.bf16.msra.mxu0 %v8077
        %8198 = vmatpush.bf16.msra.mxu0 %v8075
        %8199 = vmatpush.bf16.msra.mxu0 %v8073
        %8200 = vmatpush.bf16.msra.mxu0 %v8071
        %8201 = vmatpush.bf16.msra.mxu0 %v8069
        %8202 = vmatpush.bf16.msra.mxu0 %v8067
        %8203 = vmatpush.bf16.msra.mxu0 %v8065
        %8204 = vmatpush.bf16.msra.mxu0 %v8063
        %8205 = vmatmul.bf16.gmra.mxu0 %v7935
        %v8206 = vpop.f32.mrf.mxu0
        %v8207 = vadd.f32 %v8178, %v8206
        %v8208 = vpop.f32.mrf.mxu0
        %v8209 = vadd.f32 %v8180, %v8208
        %8210 = vmatmul.bf16.gmra.mxu0 %v7937
        %v8211 = vpop.f32.mrf.mxu0
        %v8212 = vadd.f32 %v8183, %v8211
        %v8213 = vpop.f32.mrf.mxu0
        %v8214 = vadd.f32 %v8185, %v8213
        %8215 = vmatmul.bf16.gmra.mxu0 %v7939
        %v8216 = vpop.f32.mrf.mxu0
        %v8217 = vadd.f32 %v8188, %v8216
        %v8218 = vpop.f32.mrf.mxu0
        %v8219 = vadd.f32 %v8190, %v8218
        %8220 = vmatmul.bf16.gmra.mxu0 %v7941
        %v8221 = vpop.f32.mrf.mxu0
        %v8222 = vadd.f32 %v8193, %v8221
        %v8223 = vpop.f32.mrf.mxu0
        %v8224 = vadd.f32 %v8195, %v8223
        %8225 = vdwg.mxu0
        %v8226 = vadd.f32 %v7813, %v8149
        %v8227 = vadd.f32 %v7814, %v8207
        %v8228 = vadd.f32 %v7815, %v8151
        %v8229 = vadd.f32 %v7816, %v8209
        %v8230 = vadd.f32 %v7817, %v8154
        %v8231 = vadd.f32 %v7818, %v8212
        %v8232 = vadd.f32 %v7819, %v8156
        %v8233 = vadd.f32 %v7820, %v8214
        %v8234 = vadd.f32 %v7821, %v8159
        %v8235 = vadd.f32 %v7822, %v8217
        %v8236 = vadd.f32 %v7823, %v8161
        %v8237 = vadd.f32 %v7824, %v8219
        %v8238 = vadd.f32 %v7825, %v8164
        %v8239 = vadd.f32 %v7826, %v8222
        %v8240 = vadd.f32 %v7827, %v8166
        %v8241 = vadd.f32 %v7828, %v8224
        %v8242 = vld [vmem:[#allocation12] sm:$0x3]
        %v8244 = vperm.slane %v8242, 0
        %v8245 = vperm.slane %v8242, 1
        %v8248 = vadd.f32 %v8226, %v8244
        %v8249 = vadd.f32 %v8227, %v8245
        %v8250 = vadd.f32 %v8228, %v8244
        %v8251 = vadd.f32 %v8229, %v8245
        %v8252 = vadd.f32 %v8230, %v8244
        %v8253 = vadd.f32 %v8231, %v8245
        %v8254 = vadd.f32 %v8232, %v8244
        %v8255 = vadd.f32 %v8233, %v8245
        %v8256 = vadd.f32 %v8234, %v8244
        %v8257 = vadd.f32 %v8235, %v8245
        %v8258 = vadd.f32 %v8236, %v8244
        %v8259 = vadd.f32 %v8237, %v8245
        %v8260 = vadd.f32 %v8238, %v8244
        %v8261 = vadd.f32 %v8239, %v8245
        %v8262 = vadd.f32 %v8240, %v8244
        %v8263 = vadd.f32 %v8241, %v8245
        %v8264 = vmul.f32 %v8248, 0.1
        %v8265 = vmul.f32 %v8249, 0.1
        %v8266 = vmul.f32 %v8250, 0.1
        %v8267 = vmul.f32 %v8251, 0.1
        %v8268 = vmul.f32 %v8252, 0.1
        %v8269 = vmul.f32 %v8253, 0.1
        %v8270 = vmul.f32 %v8254, 0.1
        %v8271 = vmul.f32 %v8255, 0.1
        %v8272 = vmul.f32 %v8256, 0.1
        %v8273 = vmul.f32 %v8257, 0.1
        %v8274 = vmul.f32 %v8258, 0.1
        %v8275 = vmul.f32 %v8259, 0.1
        %v8276 = vmul.f32 %v8260, 0.1
        %v8277 = vmul.f32 %v8261, 0.1
        %v8278 = vmul.f32 %v8262, 0.1
        %v8279 = vmul.f32 %v8263, 0.1
        %v8280 = vadd.f32 %v8264, %v348
        %v8281 = vadd.f32 %v8265, %v349
        %v8282 = vadd.f32 %v8266, %v350
        %v8283 = vadd.f32 %v8267, %v351
        %v8284 = vadd.f32 %v8268, %v352
        %v8285 = vadd.f32 %v8269, %v353
        %v8286 = vadd.f32 %v8270, %v354
        %v8287 = vadd.f32 %v8271, %v355
        %v8288 = vadd.f32 %v8272, %v356
        %v8289 = vadd.f32 %v8273, %v357
        %v8290 = vadd.f32 %v8274, %v358
        %v8291 = vadd.f32 %v8275, %v359
        %v8292 = vadd.f32 %v8276, %v360
        %v8293 = vadd.f32 %v8277, %v361
        %v8294 = vadd.f32 %v8278, %v362
        %v8295 = vadd.f32 %v8279, %v363
        %8296 = vst [vmem:[%s306] sm:$0xff] %v8280
        %8297 = vst [vmem:[%s306 + $0x8] sm:$0xff] %v8281
        %8298 = vst [vmem:[%s306 + $0x10] sm:$0xff] %v8282
        %8299 = vst [vmem:[%s306 + $0x18] sm:$0xff] %v8283
        %8300 = vst [vmem:[%s306 + $0x20] sm:$0xff] %v8284
        %8301 = vst [vmem:[%s306 + $0x28] sm:$0xff] %v8285
        %8302 = vst [vmem:[%s306 + $0x30] sm:$0xff] %v8286
        %8303 = vst [vmem:[%s306 + $0x38] sm:$0xff] %v8287
        %8304 = vst [vmem:[%s306 + $0x40] sm:$0xff] %v8288
        %8305 = vst [vmem:[%s306 + $0x48] sm:$0xff] %v8289
        %8306 = vst [vmem:[%s306 + $0x50] sm:$0xff] %v8290
        %8307 = vst [vmem:[%s306 + $0x58] sm:$0xff] %v8291
        %8308 = vst [vmem:[%s306 + $0x60] sm:$0xff] %v8292
        %8309 = vst [vmem:[%s306 + $0x68] sm:$0xff] %v8293
        %8310 = vst [vmem:[%s306 + $0x70] sm:$0xff] %v8294
        %8311 = vst [vmem:[%s306 + $0x78] sm:$0xff] %v8295
        %s8312 = sand.u32 %s142, 1
        %s8313 = scalar_lea.sflag [#allocation6], %s8312
        %s8314 = sand.u32 %s142, 1
        %s8315 = smul.addr %s8314, 128
        %s8316 = scalar_lea.vmem [#allocation13], %s8315
        // Predicated region
        $region61: #{tpu_custom_call.1} parent=39 // pred_check
          %p8317 = pneg %p152
        $region62: #{tpu_custom_call.1} parent=39 // pred_check_branch
          %8319 = sbr.rel (%p8317) target = $region64
        $region63: #{tpu_custom_call.1} parent=39 // pred_region
          %8321 = vsyncadd %s8313, 0
          %s8322 = smul.addr %s24, 16
          %s8323 = smul.addr %s8322, 8
          %s8324 = scalar_lea.hbm %s5, %s8323
          %s8325 = sshll.u32 %s8316, 4
          %s8326 = int_to_ptr.vmem [resolvable:$true] %s8325
          %s8327 = sshll.u32 %s8324, 4
          %s8328 = int_to_ptr.hbm [resolvable:$true] %s8327
          %8333 = dma.vmem_to_hbm [thread:$0]  %s8326, 2048, %s8328, %s8313, 256, 256, 16
        $region64: #{tpu_custom_call.1} parent=39 // pred_fallthru
          _
      $region40: #{tpu_custom_call.1} parent=5 // pred_fallthru
        _
      %p8334 = scmp.le.s32.totalorder 2, %s19
      // Predicated region
      $region65: #{tpu_custom_call.1} parent=5 // pred_check
        %p8335 = pneg %p8334
      $region66: #{tpu_custom_call.1} parent=5 // pred_check_branch
        %8337 = sbr.rel (%p8335) target = $region68
      $region67: #{tpu_custom_call.1} parent=5 // pred_region
        %s8338 = ssub.s32 %s19, 2
        // Predicated region
        $region69: #{tpu_custom_call.1} parent=67 // pred_check
          %p8339 = pneg %p158
        $region70: #{tpu_custom_call.1} parent=67 // pred_check_branch
          %8341 = sbr.rel (%p8339) target = $region72
        $region71: #{tpu_custom_call.1} parent=67 // pred_region
          %s8342 = sand.u32 %s143, 1
          %s8343 = scalar_lea.sflag [#allocation6], %s8342
          %s8344 = sand.u32 %s143, 1
          %s8345 = smul.addr %s8344, 128
          %s8346 = scalar_lea.vmem [#allocation13], %s8345
          %8348 = dma.done %s8343, 2048
        $region72: #{tpu_custom_call.1} parent=67 // pred_fallthru
          _
      $region68: #{tpu_custom_call.1} parent=5 // pred_fallthru
        _
    $region6: #{tpu_custom_call.1} parent=1 // loop_footer
      %s23 = sadd.s32 1, %s19
    $region7: #{tpu_custom_call.1} parent=1 // loop_footer_branch
      %18 = sbr.rel target = $region3
    $region8: #{tpu_custom_call.1} parent=1 // loop_exit
      _
    %8349 = vsyncpa [#allocation5], 1
    %s8350 = scalar_lea.sflag [#allocation5], 1
    %8351 = vsyncpa %s8350, 1
    %8352 = vsyncpa [#allocation8], 1
    %8353 = vsyncpa [#allocation11], 1
    %8354 = vsyncpa [#allocation6], 1
    %s8355 = scalar_lea.sflag [#allocation6], 1
    %8356 = vsyncpa %s8355, 1

</llo_original>
